<compile_context>
chip_gen: v7x
topology: tpu7x:2x2x1
jax: 0.10.0
libtpu: 0.0.40
codegen_flags: <defaults>
</compile_context>

<pallas_src>
import functools

import jax
import jax.numpy as jnp
from jax import lax
from jax.experimental import pallas as pl
from jax.experimental.pallas import tpu as pltpu


def _pick_cout_tile(cout, max_tile=512):
    """Largest lane-aligned Cout tile (divisor of Cout, multiple of 128) <= max_tile."""
    if cout <= max_tile:
        return cout
    for t in range((max_tile // 128) * 128, 0, -128):
        if cout % t == 0:
            return t
    # TODO(synk): channel-pad Cout (e.g. 1408 -> 1536) to unlock 256-wide tiles
    # matching the v6e/v7x 2x256x256 MXU when no 128-multiple divisor exists.
    return cout


def _conv3x3_kernel(*refs, B, H, W, add_residual):
    """One Cout-tile grid step of a 3x3 / stride 1 / pad 1 conv (+ residual).

    refs (in order):
      x_ref   : (B, (H+2)*(W+2), Cin)  zero-padded, spatially flattened, bf16
      w_ref   : (9, Cin, cout_tile)    bf16 weight slab, tap-major
      res_ref : (B, H*W, cout_tile)    optional residual (added in f32)
      o_ref   : (B, H*W, cout_tile)    output block
      acc_ref : (B, H*(W+2), cout_tile) f32 VMEM accumulator scratch
    """
    if add_residual:
        x_ref, w_ref, res_ref, o_ref, acc_ref = refs
    else:
        x_ref, w_ref, o_ref, acc_ref = refs
        res_ref = None

    Wp = W + 2
    # Rows of the width-padded output actually needed (the rest are the
    # wrapped pad-column rows, discarded in the finalize step below).
    L = (H - 1) * Wp + W

    # 9 taps x B images of (L, Cin) @ (Cin, cout_tile) MXU matmuls with f32
    # accumulation into VMEM scratch.  Each tap's input is a *contiguous*
    # window of the flattened padded image.  Tap loop outermost so the RHS
    # weight slab is reused across the B matmuls; tap 0 initializes the
    # accumulator (no separate zeroing pass).
    for t in range(9):
        dy, dx = divmod(t, 3)
        off = dy * Wp + dx
        w_t = w_ref[t]                                    # (Cin, cout_tile) bf16
        for b in range(B):
            win = x_ref[b, off:off + L, :]                # (L, Cin) contiguous
            contrib = jnp.dot(win, w_t, preferred_element_type=jnp.float32)
            if t == 0:
                acc_ref[b, 0:L, :] = contrib
            else:
                acc_ref[b, 0:L, :] += contrib

    # Finalize once per grid step: drop the pad-column rows (x >= W), add the
    # residual in f32, cast, store lane-dense output rows.
    for y in range(H):
        row = acc_ref[:, y * Wp:y * Wp + W, :]            # (B, W, cout_tile) f32
        if add_residual:
            row = row + res_ref[:, y * W:(y + 1) * W, :].astype(jnp.float32)
        o_ref[:, y * W:(y + 1) * W, :] = row.astype(o_ref.dtype)


def _conv3x3(x_pad, w9, residual, *, H, W, out_dtype, max_cout_tile=512):
    """3x3 conv (stride 1, pad 1, no bias) on NHWC data, optional residual add.

    x_pad   : (B, (H+2)*(W+2), Cin)  zero-padded, flattened spatial, bf16
    w9      : (9, Cin, Cout)         bf16, tap-major ((dy*3+dx), ci, co)
    residual: (B, H*W, Cout) or None (added in f32 before the output cast)
    returns : (B, H*W, Cout) in out_dtype
    """
    B, HpWp, Cin = x_pad.shape
    assert HpWp == (H + 2) * (W + 2)
    assert w9.shape[:2] == (9, Cin)
    Cout = w9.shape[2]
    cout_tile = _pick_cout_tile(Cout, max_cout_tile)
    n_cout = Cout // cout_tile

    in_specs = [
        # Whole padded activation: constant index_map -> DMA'd once for the
        # entire grid and kept VMEM-resident (at real size ~0.9 MB/image bf16).
        # (Could use pipeline_mode=pl.Buffered(1) to drop the second buffer.)
        pl.BlockSpec((B, HpWp, Cin), lambda j: (0, 0, 0)),
        # Weights streamed one Cout tile per grid step (double-buffered).
        pl.BlockSpec((9, Cin, cout_tile), lambda j: (0, 0, j)),
    ]
    args = [x_pad, w9]
    if residual is not None:
        in_specs.append(pl.BlockSpec((B, H * W, cout_tile), lambda j: (0, 0, j)))
        args.append(residual)

    kernel = functools.partial(_conv3x3_kernel, B=B, H=H, W=W,
                               add_residual=residual is not None)

    # VMEM budget estimate (double-buffered blocks + f32 accumulator).
    out_isize = jnp.dtype(out_dtype).itemsize
    est = (2 * (B * HpWp * Cin * x_pad.dtype.itemsize
                + 9 * Cin * cout_tile * w9.dtype.itemsize
                + B * H * W * cout_tile * out_isize
                + (B * H * W * cout_tile * 4 if residual is not None else 0))
           + B * H * (W + 2) * cout_tile * 4)
    vmem_limit = int(min(max(2 * est, 32 * 1024 * 1024), 64 * 1024 * 1024))

    flops = 2 * 9 * B * H * W * Cin * Cout
    bytes_accessed = (x_pad.size * x_pad.dtype.itemsize
                      + w9.size * w9.dtype.itemsize
                      + B * H * W * Cout * out_isize
                      + (residual.size * residual.dtype.itemsize
                         if residual is not None else 0))

    return pl.pallas_call(
        kernel,
        out_shape=jax.ShapeDtypeStruct((B, H * W, Cout), out_dtype),
        grid_spec=pltpu.PrefetchScalarGridSpec(
            num_scalar_prefetch=0,
            grid=(n_cout,),
            in_specs=in_specs,
            out_specs=pl.BlockSpec((B, H * W, cout_tile), lambda j: (0, 0, j)),
            scratch_shapes=[pltpu.VMEM((B, H * (W + 2), cout_tile), jnp.float32)],
        ),
        compiler_params=pltpu.CompilerParams(
            dimension_semantics=("parallel",),
            vmem_limit_bytes=vmem_limit),
        cost_estimate=pl.CostEstimate(flops=flops, transcendentals=0,
                                      bytes_accessed=bytes_accessed),
    )(*args)


def prepare_conv_weight(w_pt, dtype=jnp.bfloat16):
    """PyTorch Conv2d weight [Cout, Cin, 3, 3] -> kernel layout (9, Cin, Cout).

    Hoisted out of the forward path: do this once at weight-load time.
    """
    cout, cin, kh, kw = w_pt.shape
    assert (kh, kw) == (3, 3)
    return jnp.transpose(w_pt, (2, 3, 1, 0)).reshape(9, cin, cout).astype(dtype)


def attention_adaptor_forward(x, w1_k, w2_k, *, H, W):
    """Full module forward.

    x     : [B, 1 + H*W, C]   (PyTorch: [b, 257, 1408])
    w*_k  : prepared (9, C, C) bf16 weights (see prepare_conv_weight)
    """
    B, S, C = x.shape
    assert S == 1 + H * W
    x_tok = x[:, :1, :]
    # x[:, 1:, :] of shape (B, H*W, C) reshapes *directly* to NHWC (same
    # row-major HW split as PyTorch's [B, C, HW] -> [B, C, H, W]); no transpose.
    x_sp = x[:, 1:, :]                                    # (B, H*W, C)

    def pad_flat(a):                                      # -> (B, (H+2)*(W+2), C)
        a = a.reshape(B, H, W, C)
        a = jnp.pad(a, ((0, 0), (1, 1), (1, 1), (0, 0)))
        return a.reshape(B, (H + 2) * (W + 2), C)

    x_pad = pad_flat(x_sp.astype(jnp.bfloat16))
    y = _conv3x3(x_pad, w1_k, None, H=H, W=W, out_dtype=jnp.bfloat16)
    y_pad = pad_flat(y)
    out_sp = _conv3x3(y_pad, w2_k, x_sp, H=H, W=W, out_dtype=x.dtype)
    return jnp.concatenate([x_tok, out_sp], axis=1)       # [B, 1 + H*W, C]


def _reference_forward(x, w1_pt, w2_pt, H, W):
    """Plain-JAX replica of the PyTorch forward with matching bf16 numerics."""
    B, S, C = x.shape
    x_tok = x[:, :1, :]
    x_nchw = jnp.transpose(x[:, 1:, :], (0, 2, 1)).reshape(B, C, H, W)
    dn = ("NCHW", "OIHW", "NCHW")
    c1 = lax.conv_general_dilated(
        x_nchw.astype(jnp.bfloat16), w1_pt.astype(jnp.bfloat16), (1, 1), "SAME",
        dimension_numbers=dn, preferred_element_type=jnp.float32)
    c2 = lax.conv_general_dilated(
        c1.astype(jnp.bfloat16), w2_pt.astype(jnp.bfloat16), (1, 1), "SAME",
        dimension_numbers=dn, preferred_element_type=jnp.float32)
    c2 = c2 + x_nchw.astype(jnp.float32)
    out_sp = jnp.transpose(c2.reshape(B, C, H * W), (0, 2, 1)).astype(x.dtype)
    return jnp.concatenate([x_tok, out_sp], axis=1)


if __name__ == "__main__":
    # Small stand-in for the hardcoded (b, 1408, 16, 16): C=32, 8x8 grid, seq=65.
    B, C, H, W = 2, 32, 8, 8
    key = jax.random.PRNGKey(0)
    kx, k1, k2 = jax.random.split(key, 3)

    x = jax.random.normal(kx, (B, 1 + H * W, C), dtype=jnp.float32)

    # Deterministic Conv2d-style init (kaiming-uniform bound), PyTorch layout.
    fan_in = C * 3 * 3
    bound = 1.0 / (fan_in ** 0.5)
    w1_pt = jax.random.uniform(k1, (C, C, 3, 3), jnp.float32, -bound, bound)
    w2_pt = jax.random.uniform(k2, (C, C, 3, 3), jnp.float32, -bound, bound)

    # Weight re-layout + bf16 cast done once, outside the forward path.
    w1_k = prepare_conv_weight(w1_pt)
    w2_k = prepare_conv_weight(w2_pt)

    fwd = jax.jit(functools.partial(attention_adaptor_forward, H=H, W=W))
    out = jax.block_until_ready(fwd(x, w1_k, w2_k))

    ref = _reference_forward(x, w1_pt, w2_pt, H, W)
    assert out.shape == (B, 1 + H * W, C)
    assert jnp.allclose(out, ref, atol=1e-2, rtol=1e-2), (
        "mismatch vs reference, max abs err = "
        + str(float(jnp.max(jnp.abs(out - ref)))))
    print("KERNEL_OK")
</pallas_src>

<mosaic_0001>
module attributes {stable_mosaic.version = 11 : i64} {
  func.func @_conv3x3_kernel(%arg0: i32, %arg1: memref<2x100x32xbf16, #tpu.memory_space<vmem>>, %arg2: memref<9x32x32xbf16, #tpu.memory_space<vmem>>, %arg3: memref<2x64x32xbf16, #tpu.memory_space<vmem>>, %arg4: memref<2x80x32xf32, #tpu.memory_space<vmem>>) attributes {dimension_semantics = [#tpu.dimension_semantics<parallel>], iteration_bounds = array<i64: 1>, scalar_prefetch = 0 : i64, scratch_operands = 1 : i64, tpu.core_type = #tpu.core_type<tc>, window_params = [{pipeline_mode = #tpu.pipeline_mode<synchronous>, transform_indices = @transform_0, window_bounds = array<i64: 2, 100, 32>}, {transform_indices = @transform_1, window_bounds = array<i64: 9, 32, 32>}, {transform_indices = @transform_2, window_bounds = array<i64: 2, 64, 32>}]} {
    %c0 = arith.constant 0 : index
    %c0_0 = arith.constant 0 : index
    %c0_1 = arith.constant 0 : index
    %0 = vector.load %arg2[%c0, %c0_0, %c0_1] : memref<9x32x32xbf16, #tpu.memory_space<vmem>>, vector<1x32x32xbf16>
    %1 = vector.shape_cast %0 : vector<1x32x32xbf16> to vector<32x32xbf16>
    %c0_2 = arith.constant 0 : index
    %c0_3 = arith.constant 0 : index
    %c0_4 = arith.constant 0 : index
    %2 = vector.load %arg1[%c0_2, %c0_3, %c0_4] : memref<2x100x32xbf16, #tpu.memory_space<vmem>>, vector<1x78x32xbf16>
    %3 = vector.shape_cast %2 : vector<1x78x32xbf16> to vector<78x32xbf16>
    %cst = arith.constant dense<0.000000e+00> : vector<78x32xf32>
    %4 = tpu.matmul %3, %1, %cst {dimension_numbers = #tpu.dot_dimension_numbers<[1], [0], [0], [1], [0, 0, 1, 1], [], []>} : vector<78x32xbf16>, vector<32x32xbf16>, vector<78x32xf32> -> vector<78x32xf32>
    %c0_5 = arith.constant 0 : index
    %c0_6 = arith.constant 0 : index
    %c0_7 = arith.constant 0 : index
    %5 = vector.load %arg4[%c0_5, %c0_6, %c0_7] : memref<2x80x32xf32, #tpu.memory_space<vmem>>, vector<1x78x32xf32>
    %6 = vector.shape_cast %5 : vector<1x78x32xf32> to vector<78x32xf32>
    %7 = vector.shape_cast %4 : vector<78x32xf32> to vector<1x78x32xf32>
    tpu.vector_store %arg4[%c0_5, %c0_6, %c0_7], %7 {strides = array<i32>} : memref<2x80x32xf32, #tpu.memory_space<vmem>>, vector<1x78x32xf32>,
    %c1 = arith.constant 1 : index
    %c0_8 = arith.constant 0 : index
    %c0_9 = arith.constant 0 : index
    %8 = vector.load %arg1[%c1, %c0_8, %c0_9] : memref<2x100x32xbf16, #tpu.memory_space<vmem>>, vector<1x78x32xbf16>
    %9 = vector.shape_cast %8 : vector<1x78x32xbf16> to vector<78x32xbf16>
    %cst_10 = arith.constant dense<0.000000e+00> : vector<78x32xf32>
    %10 = tpu.matmul %9, %1, %cst_10 {dimension_numbers = #tpu.dot_dimension_numbers<[1], [0], [0], [1], [0, 0, 1, 1], [], []>} : vector<78x32xbf16>, vector<32x32xbf16>, vector<78x32xf32> -> vector<78x32xf32>
    %c1_11 = arith.constant 1 : index
    %c0_12 = arith.constant 0 : index
    %c0_13 = arith.constant 0 : index
    %11 = vector.load %arg4[%c1_11, %c0_12, %c0_13] : memref<2x80x32xf32, #tpu.memory_space<vmem>>, vector<1x78x32xf32>
    %12 = vector.shape_cast %11 : vector<1x78x32xf32> to vector<78x32xf32>
    %13 = vector.shape_cast %10 : vector<78x32xf32> to vector<1x78x32xf32>
    tpu.vector_store %arg4[%c1_11, %c0_12, %c0_13], %13 {strides = array<i32>} : memref<2x80x32xf32, #tpu.memory_space<vmem>>, vector<1x78x32xf32>,
    %c1_14 = arith.constant 1 : index
    %c0_15 = arith.constant 0 : index
    %c0_16 = arith.constant 0 : index
    %14 = vector.load %arg2[%c1_14, %c0_15, %c0_16] : memref<9x32x32xbf16, #tpu.memory_space<vmem>>, vector<1x32x32xbf16>
    %15 = vector.shape_cast %14 : vector<1x32x32xbf16> to vector<32x32xbf16>
    %c0_17 = arith.constant 0 : index
    %c1_18 = arith.constant 1 : index
    %c0_19 = arith.constant 0 : index
    %16 = vector.load %arg1[%c0_17, %c1_18, %c0_19] : memref<2x100x32xbf16, #tpu.memory_space<vmem>>, vector<1x78x32xbf16>
    %17 = vector.shape_cast %16 : vector<1x78x32xbf16> to vector<78x32xbf16>
    %cst_20 = arith.constant dense<0.000000e+00> : vector<78x32xf32>
    %18 = tpu.matmul %17, %15, %cst_20 {dimension_numbers = #tpu.dot_dimension_numbers<[1], [0], [0], [1], [0, 0, 1, 1], [], []>} : vector<78x32xbf16>, vector<32x32xbf16>, vector<78x32xf32> -> vector<78x32xf32>
    %c0_21 = arith.constant 0 : index
    %c0_22 = arith.constant 0 : index
    %c0_23 = arith.constant 0 : index
    %19 = vector.load %arg4[%c0_21, %c0_22, %c0_23] : memref<2x80x32xf32, #tpu.memory_space<vmem>>, vector<1x78x32xf32>
    %20 = vector.shape_cast %19 : vector<1x78x32xf32> to vector<78x32xf32>
    %21 = arith.addf %20, %18 : vector<78x32xf32>
    %c0_24 = arith.constant 0 : index
    %c0_25 = arith.constant 0 : index
    %c0_26 = arith.constant 0 : index
    %22 = vector.load %arg4[%c0_24, %c0_25, %c0_26] : memref<2x80x32xf32, #tpu.memory_space<vmem>>, vector<1x78x32xf32>
    %23 = vector.shape_cast %22 : vector<1x78x32xf32> to vector<78x32xf32>
    %24 = vector.shape_cast %21 : vector<78x32xf32> to vector<1x78x32xf32>
    tpu.vector_store %arg4[%c0_24, %c0_25, %c0_26], %24 {strides = array<i32>} : memref<2x80x32xf32, #tpu.memory_space<vmem>>, vector<1x78x32xf32>,
    %c1_27 = arith.constant 1 : index
    %c1_28 = arith.constant 1 : index
    %c0_29 = arith.constant 0 : index
    %25 = vector.load %arg1[%c1_27, %c1_28, %c0_29] : memref<2x100x32xbf16, #tpu.memory_space<vmem>>, vector<1x78x32xbf16>
    %26 = vector.shape_cast %25 : vector<1x78x32xbf16> to vector<78x32xbf16>
    %cst_30 = arith.constant dense<0.000000e+00> : vector<78x32xf32>
    %27 = tpu.matmul %26, %15, %cst_30 {dimension_numbers = #tpu.dot_dimension_numbers<[1], [0], [0], [1], [0, 0, 1, 1], [], []>} : vector<78x32xbf16>, vector<32x32xbf16>, vector<78x32xf32> -> vector<78x32xf32>
    %c1_31 = arith.constant 1 : index
    %c0_32 = arith.constant 0 : index
    %c0_33 = arith.constant 0 : index
    %28 = vector.load %arg4[%c1_31, %c0_32, %c0_33] : memref<2x80x32xf32, #tpu.memory_space<vmem>>, vector<1x78x32xf32>
    %29 = vector.shape_cast %28 : vector<1x78x32xf32> to vector<78x32xf32>
    %30 = arith.addf %29, %27 : vector<78x32xf32>
    %c1_34 = arith.constant 1 : index
    %c0_35 = arith.constant 0 : index
    %c0_36 = arith.constant 0 : index
    %31 = vector.load %arg4[%c1_34, %c0_35, %c0_36] : memref<2x80x32xf32, #tpu.memory_space<vmem>>, vector<1x78x32xf32>
    %32 = vector.shape_cast %31 : vector<1x78x32xf32> to vector<78x32xf32>
    %33 = vector.shape_cast %30 : vector<78x32xf32> to vector<1x78x32xf32>
    tpu.vector_store %arg4[%c1_34, %c0_35, %c0_36], %33 {strides = array<i32>} : memref<2x80x32xf32, #tpu.memory_space<vmem>>, vector<1x78x32xf32>,
    %c2 = arith.constant 2 : index
    %c0_37 = arith.constant 0 : index
    %c0_38 = arith.constant 0 : index
    %34 = vector.load %arg2[%c2, %c0_37, %c0_38] : memref<9x32x32xbf16, #tpu.memory_space<vmem>>, vector<1x32x32xbf16>
    %35 = vector.shape_cast %34 : vector<1x32x32xbf16> to vector<32x32xbf16>
    %c0_39 = arith.constant 0 : index
    %c2_40 = arith.constant 2 : index
    %c0_41 = arith.constant 0 : index
    %36 = vector.load %arg1[%c0_39, %c2_40, %c0_41] : memref<2x100x32xbf16, #tpu.memory_space<vmem>>, vector<1x78x32xbf16>
    %37 = vector.shape_cast %36 : vector<1x78x32xbf16> to vector<78x32xbf16>
    %cst_42 = arith.constant dense<0.000000e+00> : vector<78x32xf32>
    %38 = tpu.matmul %37, %35, %cst_42 {dimension_numbers = #tpu.dot_dimension_numbers<[1], [0], [0], [1], [0, 0, 1, 1], [], []>} : vector<78x32xbf16>, vector<32x32xbf16>, vector<78x32xf32> -> vector<78x32xf32>
    %c0_43 = arith.constant 0 : index
    %c0_44 = arith.constant 0 : index
    %c0_45 = arith.constant 0 : index
    %39 = vector.load %arg4[%c0_43, %c0_44, %c0_45] : memref<2x80x32xf32, #tpu.memory_space<vmem>>, vector<1x78x32xf32>
    %40 = vector.shape_cast %39 : vector<1x78x32xf32> to vector<78x32xf32>
    %41 = arith.addf %40, %38 : vector<78x32xf32>
    %c0_46 = arith.constant 0 : index
    %c0_47 = arith.constant 0 : index
    %c0_48 = arith.constant 0 : index
    %42 = vector.load %arg4[%c0_46, %c0_47, %c0_48] : memref<2x80x32xf32, #tpu.memory_space<vmem>>, vector<1x78x32xf32>
    %43 = vector.shape_cast %42 : vector<1x78x32xf32> to vector<78x32xf32>
    %44 = vector.shape_cast %41 : vector<78x32xf32> to vector<1x78x32xf32>
    tpu.vector_store %arg4[%c0_46, %c0_47, %c0_48], %44 {strides = array<i32>} : memref<2x80x32xf32, #tpu.memory_space<vmem>>, vector<1x78x32xf32>,
    %c1_49 = arith.constant 1 : index
    %c2_50 = arith.constant 2 : index
    %c0_51 = arith.constant 0 : index
    %45 = vector.load %arg1[%c1_49, %c2_50, %c0_51] : memref<2x100x32xbf16, #tpu.memory_space<vmem>>, vector<1x78x32xbf16>
    %46 = vector.shape_cast %45 : vector<1x78x32xbf16> to vector<78x32xbf16>
    %cst_52 = arith.constant dense<0.000000e+00> : vector<78x32xf32>
    %47 = tpu.matmul %46, %35, %cst_52 {dimension_numbers = #tpu.dot_dimension_numbers<[1], [0], [0], [1], [0, 0, 1, 1], [], []>} : vector<78x32xbf16>, vector<32x32xbf16>, vector<78x32xf32> -> vector<78x32xf32>
    %c1_53 = arith.constant 1 : index
    %c0_54 = arith.constant 0 : index
    %c0_55 = arith.constant 0 : index
    %48 = vector.load %arg4[%c1_53, %c0_54, %c0_55] : memref<2x80x32xf32, #tpu.memory_space<vmem>>, vector<1x78x32xf32>
    %49 = vector.shape_cast %48 : vector<1x78x32xf32> to vector<78x32xf32>
    %50 = arith.addf %49, %47 : vector<78x32xf32>
    %c1_56 = arith.constant 1 : index
    %c0_57 = arith.constant 0 : index
    %c0_58 = arith.constant 0 : index
    %51 = vector.load %arg4[%c1_56, %c0_57, %c0_58] : memref<2x80x32xf32, #tpu.memory_space<vmem>>, vector<1x78x32xf32>
    %52 = vector.shape_cast %51 : vector<1x78x32xf32> to vector<78x32xf32>
    %53 = vector.shape_cast %50 : vector<78x32xf32> to vector<1x78x32xf32>
    tpu.vector_store %arg4[%c1_56, %c0_57, %c0_58], %53 {strides = array<i32>} : memref<2x80x32xf32, #tpu.memory_space<vmem>>, vector<1x78x32xf32>,
    %c3 = arith.constant 3 : index
    %c0_59 = arith.constant 0 : index
    %c0_60 = arith.constant 0 : index
    %54 = vector.load %arg2[%c3, %c0_59, %c0_60] : memref<9x32x32xbf16, #tpu.memory_space<vmem>>, vector<1x32x32xbf16>
    %55 = vector.shape_cast %54 : vector<1x32x32xbf16> to vector<32x32xbf16>
    %c0_61 = arith.constant 0 : index
    %c10 = arith.constant 10 : index
    %c0_62 = arith.constant 0 : index
    %56 = vector.load %arg1[%c0_61, %c10, %c0_62] : memref<2x100x32xbf16, #tpu.memory_space<vmem>>, vector<1x78x32xbf16>
    %57 = vector.shape_cast %56 : vector<1x78x32xbf16> to vector<78x32xbf16>
    %cst_63 = arith.constant dense<0.000000e+00> : vector<78x32xf32>
    %58 = tpu.matmul %57, %55, %cst_63 {dimension_numbers = #tpu.dot_dimension_numbers<[1], [0], [0], [1], [0, 0, 1, 1], [], []>} : vector<78x32xbf16>, vector<32x32xbf16>, vector<78x32xf32> -> vector<78x32xf32>
    %c0_64 = arith.constant 0 : index
    %c0_65 = arith.constant 0 : index
    %c0_66 = arith.constant 0 : index
    %59 = vector.load %arg4[%c0_64, %c0_65, %c0_66] : memref<2x80x32xf32, #tpu.memory_space<vmem>>, vector<1x78x32xf32>
    %60 = vector.shape_cast %59 : vector<1x78x32xf32> to vector<78x32xf32>
    %61 = arith.addf %60, %58 : vector<78x32xf32>
    %c0_67 = arith.constant 0 : index
    %c0_68 = arith.constant 0 : index
    %c0_69 = arith.constant 0 : index
    %62 = vector.load %arg4[%c0_67, %c0_68, %c0_69] : memref<2x80x32xf32, #tpu.memory_space<vmem>>, vector<1x78x32xf32>
    %63 = vector.shape_cast %62 : vector<1x78x32xf32> to vector<78x32xf32>
    %64 = vector.shape_cast %61 : vector<78x32xf32> to vector<1x78x32xf32>
    tpu.vector_store %arg4[%c0_67, %c0_68, %c0_69], %64 {strides = array<i32>} : memref<2x80x32xf32, #tpu.memory_space<vmem>>, vector<1x78x32xf32>,
    %c1_70 = arith.constant 1 : index
    %c10_71 = arith.constant 10 : index
    %c0_72 = arith.constant 0 : index
    %65 = vector.load %arg1[%c1_70, %c10_71, %c0_72] : memref<2x100x32xbf16, #tpu.memory_space<vmem>>, vector<1x78x32xbf16>
    %66 = vector.shape_cast %65 : vector<1x78x32xbf16> to vector<78x32xbf16>
    %cst_73 = arith.constant dense<0.000000e+00> : vector<78x32xf32>
    %67 = tpu.matmul %66, %55, %cst_73 {dimension_numbers = #tpu.dot_dimension_numbers<[1], [0], [0], [1], [0, 0, 1, 1], [], []>} : vector<78x32xbf16>, vector<32x32xbf16>, vector<78x32xf32> -> vector<78x32xf32>
    %c1_74 = arith.constant 1 : index
    %c0_75 = arith.constant 0 : index
    %c0_76 = arith.constant 0 : index
    %68 = vector.load %arg4[%c1_74, %c0_75, %c0_76] : memref<2x80x32xf32, #tpu.memory_space<vmem>>, vector<1x78x32xf32>
    %69 = vector.shape_cast %68 : vector<1x78x32xf32> to vector<78x32xf32>
    %70 = arith.addf %69, %67 : vector<78x32xf32>
    %c1_77 = arith.constant 1 : index
    %c0_78 = arith.constant 0 : index
    %c0_79 = arith.constant 0 : index
    %71 = vector.load %arg4[%c1_77, %c0_78, %c0_79] : memref<2x80x32xf32, #tpu.memory_space<vmem>>, vector<1x78x32xf32>
    %72 = vector.shape_cast %71 : vector<1x78x32xf32> to vector<78x32xf32>
    %73 = vector.shape_cast %70 : vector<78x32xf32> to vector<1x78x32xf32>
    tpu.vector_store %arg4[%c1_77, %c0_78, %c0_79], %73 {strides = array<i32>} : memref<2x80x32xf32, #tpu.memory_space<vmem>>, vector<1x78x32xf32>,
    %c4 = arith.constant 4 : index
    %c0_80 = arith.constant 0 : index
    %c0_81 = arith.constant 0 : index
    %74 = vector.load %arg2[%c4, %c0_80, %c0_81] : memref<9x32x32xbf16, #tpu.memory_space<vmem>>, vector<1x32x32xbf16>
    %75 = vector.shape_cast %74 : vector<1x32x32xbf16> to vector<32x32xbf16>
    %c0_82 = arith.constant 0 : index
    %c11 = arith.constant 11 : index
    %c0_83 = arith.constant 0 : index
    %76 = vector.load %arg1[%c0_82, %c11, %c0_83] : memref<2x100x32xbf16, #tpu.memory_space<vmem>>, vector<1x78x32xbf16>
    %77 = vector.shape_cast %76 : vector<1x78x32xbf16> to vector<78x32xbf16>
    %cst_84 = arith.constant dense<0.000000e+00> : vector<78x32xf32>
    %78 = tpu.matmul %77, %75, %cst_84 {dimension_numbers = #tpu.dot_dimension_numbers<[1], [0], [0], [1], [0, 0, 1, 1], [], []>} : vector<78x32xbf16>, vector<32x32xbf16>, vector<78x32xf32> -> vector<78x32xf32>
    %c0_85 = arith.constant 0 : index
    %c0_86 = arith.constant 0 : index
    %c0_87 = arith.constant 0 : index
    %79 = vector.load %arg4[%c0_85, %c0_86, %c0_87] : memref<2x80x32xf32, #tpu.memory_space<vmem>>, vector<1x78x32xf32>
    %80 = vector.shape_cast %79 : vector<1x78x32xf32> to vector<78x32xf32>
    %81 = arith.addf %80, %78 : vector<78x32xf32>
    %c0_88 = arith.constant 0 : index
    %c0_89 = arith.constant 0 : index
    %c0_90 = arith.constant 0 : index
    %82 = vector.load %arg4[%c0_88, %c0_89, %c0_90] : memref<2x80x32xf32, #tpu.memory_space<vmem>>, vector<1x78x32xf32>
    %83 = vector.shape_cast %82 : vector<1x78x32xf32> to vector<78x32xf32>
    %84 = vector.shape_cast %81 : vector<78x32xf32> to vector<1x78x32xf32>
    tpu.vector_store %arg4[%c0_88, %c0_89, %c0_90], %84 {strides = array<i32>} : memref<2x80x32xf32, #tpu.memory_space<vmem>>, vector<1x78x32xf32>,
    %c1_91 = arith.constant 1 : index
    %c11_92 = arith.constant 11 : index
    %c0_93 = arith.constant 0 : index
    %85 = vector.load %arg1[%c1_91, %c11_92, %c0_93] : memref<2x100x32xbf16, #tpu.memory_space<vmem>>, vector<1x78x32xbf16>
    %86 = vector.shape_cast %85 : vector<1x78x32xbf16> to vector<78x32xbf16>
    %cst_94 = arith.constant dense<0.000000e+00> : vector<78x32xf32>
    %87 = tpu.matmul %86, %75, %cst_94 {dimension_numbers = #tpu.dot_dimension_numbers<[1], [0], [0], [1], [0, 0, 1, 1], [], []>} : vector<78x32xbf16>, vector<32x32xbf16>, vector<78x32xf32> -> vector<78x32xf32>
    %c1_95 = arith.constant 1 : index
    %c0_96 = arith.constant 0 : index
    %c0_97 = arith.constant 0 : index
    %88 = vector.load %arg4[%c1_95, %c0_96, %c0_97] : memref<2x80x32xf32, #tpu.memory_space<vmem>>, vector<1x78x32xf32>
    %89 = vector.shape_cast %88 : vector<1x78x32xf32> to vector<78x32xf32>
    %90 = arith.addf %89, %87 : vector<78x32xf32>
    %c1_98 = arith.constant 1 : index
    %c0_99 = arith.constant 0 : index
    %c0_100 = arith.constant 0 : index
    %91 = vector.load %arg4[%c1_98, %c0_99, %c0_100] : memref<2x80x32xf32, #tpu.memory_space<vmem>>, vector<1x78x32xf32>
    %92 = vector.shape_cast %91 : vector<1x78x32xf32> to vector<78x32xf32>
    %93 = vector.shape_cast %90 : vector<78x32xf32> to vector<1x78x32xf32>
    tpu.vector_store %arg4[%c1_98, %c0_99, %c0_100], %93 {strides = array<i32>} : memref<2x80x32xf32, #tpu.memory_space<vmem>>, vector<1x78x32xf32>,
    %c5 = arith.constant 5 : index
    %c0_101 = arith.constant 0 : index
    %c0_102 = arith.constant 0 : index
    %94 = vector.load %arg2[%c5, %c0_101, %c0_102] : memref<9x32x32xbf16, #tpu.memory_space<vmem>>, vector<1x32x32xbf16>
    %95 = vector.shape_cast %94 : vector<1x32x32xbf16> to vector<32x32xbf16>
    %c0_103 = arith.constant 0 : index
    %c12 = arith.constant 12 : index
    %c0_104 = arith.constant 0 : index
    %96 = vector.load %arg1[%c0_103, %c12, %c0_104] : memref<2x100x32xbf16, #tpu.memory_space<vmem>>, vector<1x78x32xbf16>
    %97 = vector.shape_cast %96 : vector<1x78x32xbf16> to vector<78x32xbf16>
    %cst_105 = arith.constant dense<0.000000e+00> : vector<78x32xf32>
    %98 = tpu.matmul %97, %95, %cst_105 {dimension_numbers = #tpu.dot_dimension_numbers<[1], [0], [0], [1], [0, 0, 1, 1], [], []>} : vector<78x32xbf16>, vector<32x32xbf16>, vector<78x32xf32> -> vector<78x32xf32>
    %c0_106 = arith.constant 0 : index
    %c0_107 = arith.constant 0 : index
    %c0_108 = arith.constant 0 : index
    %99 = vector.load %arg4[%c0_106, %c0_107, %c0_108] : memref<2x80x32xf32, #tpu.memory_space<vmem>>, vector<1x78x32xf32>
    %100 = vector.shape_cast %99 : vector<1x78x32xf32> to vector<78x32xf32>
    %101 = arith.addf %100, %98 : vector<78x32xf32>
    %c0_109 = arith.constant 0 : index
    %c0_110 = arith.constant 0 : index
    %c0_111 = arith.constant 0 : index
    %102 = vector.load %arg4[%c0_109, %c0_110, %c0_111] : memref<2x80x32xf32, #tpu.memory_space<vmem>>, vector<1x78x32xf32>
    %103 = vector.shape_cast %102 : vector<1x78x32xf32> to vector<78x32xf32>
    %104 = vector.shape_cast %101 : vector<78x32xf32> to vector<1x78x32xf32>
    tpu.vector_store %arg4[%c0_109, %c0_110, %c0_111], %104 {strides = array<i32>} : memref<2x80x32xf32, #tpu.memory_space<vmem>>, vector<1x78x32xf32>,
    %c1_112 = arith.constant 1 : index
    %c12_113 = arith.constant 12 : index
    %c0_114 = arith.constant 0 : index
    %105 = vector.load %arg1[%c1_112, %c12_113, %c0_114] : memref<2x100x32xbf16, #tpu.memory_space<vmem>>, vector<1x78x32xbf16>
    %106 = vector.shape_cast %105 : vector<1x78x32xbf16> to vector<78x32xbf16>
    %cst_115 = arith.constant dense<0.000000e+00> : vector<78x32xf32>
    %107 = tpu.matmul %106, %95, %cst_115 {dimension_numbers = #tpu.dot_dimension_numbers<[1], [0], [0], [1], [0, 0, 1, 1], [], []>} : vector<78x32xbf16>, vector<32x32xbf16>, vector<78x32xf32> -> vector<78x32xf32>
    %c1_116 = arith.constant 1 : index
    %c0_117 = arith.constant 0 : index
    %c0_118 = arith.constant 0 : index
    %108 = vector.load %arg4[%c1_116, %c0_117, %c0_118] : memref<2x80x32xf32, #tpu.memory_space<vmem>>, vector<1x78x32xf32>
    %109 = vector.shape_cast %108 : vector<1x78x32xf32> to vector<78x32xf32>
    %110 = arith.addf %109, %107 : vector<78x32xf32>
    %c1_119 = arith.constant 1 : index
    %c0_120 = arith.constant 0 : index
    %c0_121 = arith.constant 0 : index
    %111 = vector.load %arg4[%c1_119, %c0_120, %c0_121] : memref<2x80x32xf32, #tpu.memory_space<vmem>>, vector<1x78x32xf32>
    %112 = vector.shape_cast %111 : vector<1x78x32xf32> to vector<78x32xf32>
    %113 = vector.shape_cast %110 : vector<78x32xf32> to vector<1x78x32xf32>
    tpu.vector_store %arg4[%c1_119, %c0_120, %c0_121], %113 {strides = array<i32>} : memref<2x80x32xf32, #tpu.memory_space<vmem>>, vector<1x78x32xf32>,
    %c6 = arith.constant 6 : index
    %c0_122 = arith.constant 0 : index
    %c0_123 = arith.constant 0 : index
    %114 = vector.load %arg2[%c6, %c0_122, %c0_123] : memref<9x32x32xbf16, #tpu.memory_space<vmem>>, vector<1x32x32xbf16>
    %115 = vector.shape_cast %114 : vector<1x32x32xbf16> to vector<32x32xbf16>
    %c0_124 = arith.constant 0 : index
    %c20 = arith.constant 20 : index
    %c0_125 = arith.constant 0 : index
    %116 = vector.load %arg1[%c0_124, %c20, %c0_125] : memref<2x100x32xbf16, #tpu.memory_space<vmem>>, vector<1x78x32xbf16>
    %117 = vector.shape_cast %116 : vector<1x78x32xbf16> to vector<78x32xbf16>
    %cst_126 = arith.constant dense<0.000000e+00> : vector<78x32xf32>
    %118 = tpu.matmul %117, %115, %cst_126 {dimension_numbers = #tpu.dot_dimension_numbers<[1], [0], [0], [1], [0, 0, 1, 1], [], []>} : vector<78x32xbf16>, vector<32x32xbf16>, vector<78x32xf32> -> vector<78x32xf32>
    %c0_127 = arith.constant 0 : index
    %c0_128 = arith.constant 0 : index
    %c0_129 = arith.constant 0 : index
    %119 = vector.load %arg4[%c0_127, %c0_128, %c0_129] : memref<2x80x32xf32, #tpu.memory_space<vmem>>, vector<1x78x32xf32>
    %120 = vector.shape_cast %119 : vector<1x78x32xf32> to vector<78x32xf32>
    %121 = arith.addf %120, %118 : vector<78x32xf32>
    %c0_130 = arith.constant 0 : index
    %c0_131 = arith.constant 0 : index
    %c0_132 = arith.constant 0 : index
    %122 = vector.load %arg4[%c0_130, %c0_131, %c0_132] : memref<2x80x32xf32, #tpu.memory_space<vmem>>, vector<1x78x32xf32>
    %123 = vector.shape_cast %122 : vector<1x78x32xf32> to vector<78x32xf32>
    %124 = vector.shape_cast %121 : vector<78x32xf32> to vector<1x78x32xf32>
    tpu.vector_store %arg4[%c0_130, %c0_131, %c0_132], %124 {strides = array<i32>} : memref<2x80x32xf32, #tpu.memory_space<vmem>>, vector<1x78x32xf32>,
    %c1_133 = arith.constant 1 : index
    %c20_134 = arith.constant 20 : index
    %c0_135 = arith.constant 0 : index
    %125 = vector.load %arg1[%c1_133, %c20_134, %c0_135] : memref<2x100x32xbf16, #tpu.memory_space<vmem>>, vector<1x78x32xbf16>
    %126 = vector.shape_cast %125 : vector<1x78x32xbf16> to vector<78x32xbf16>
    %cst_136 = arith.constant dense<0.000000e+00> : vector<78x32xf32>
    %127 = tpu.matmul %126, %115, %cst_136 {dimension_numbers = #tpu.dot_dimension_numbers<[1], [0], [0], [1], [0, 0, 1, 1], [], []>} : vector<78x32xbf16>, vector<32x32xbf16>, vector<78x32xf32> -> vector<78x32xf32>
    %c1_137 = arith.constant 1 : index
    %c0_138 = arith.constant 0 : index
    %c0_139 = arith.constant 0 : index
    %128 = vector.load %arg4[%c1_137, %c0_138, %c0_139] : memref<2x80x32xf32, #tpu.memory_space<vmem>>, vector<1x78x32xf32>
    %129 = vector.shape_cast %128 : vector<1x78x32xf32> to vector<78x32xf32>
    %130 = arith.addf %129, %127 : vector<78x32xf32>
    %c1_140 = arith.constant 1 : index
    %c0_141 = arith.constant 0 : index
    %c0_142 = arith.constant 0 : index
    %131 = vector.load %arg4[%c1_140, %c0_141, %c0_142] : memref<2x80x32xf32, #tpu.memory_space<vmem>>, vector<1x78x32xf32>
    %132 = vector.shape_cast %131 : vector<1x78x32xf32> to vector<78x32xf32>
    %133 = vector.shape_cast %130 : vector<78x32xf32> to vector<1x78x32xf32>
    tpu.vector_store %arg4[%c1_140, %c0_141, %c0_142], %133 {strides = array<i32>} : memref<2x80x32xf32, #tpu.memory_space<vmem>>, vector<1x78x32xf32>,
    %c7 = arith.constant 7 : index
    %c0_143 = arith.constant 0 : index
    %c0_144 = arith.constant 0 : index
    %134 = vector.load %arg2[%c7, %c0_143, %c0_144] : memref<9x32x32xbf16, #tpu.memory_space<vmem>>, vector<1x32x32xbf16>
    %135 = vector.shape_cast %134 : vector<1x32x32xbf16> to vector<32x32xbf16>
    %c0_145 = arith.constant 0 : index
    %c21 = arith.constant 21 : index
    %c0_146 = arith.constant 0 : index
    %136 = vector.load %arg1[%c0_145, %c21, %c0_146] : memref<2x100x32xbf16, #tpu.memory_space<vmem>>, vector<1x78x32xbf16>
    %137 = vector.shape_cast %136 : vector<1x78x32xbf16> to vector<78x32xbf16>
    %cst_147 = arith.constant dense<0.000000e+00> : vector<78x32xf32>
    %138 = tpu.matmul %137, %135, %cst_147 {dimension_numbers = #tpu.dot_dimension_numbers<[1], [0], [0], [1], [0, 0, 1, 1], [], []>} : vector<78x32xbf16>, vector<32x32xbf16>, vector<78x32xf32> -> vector<78x32xf32>
    %c0_148 = arith.constant 0 : index
    %c0_149 = arith.constant 0 : index
    %c0_150 = arith.constant 0 : index
    %139 = vector.load %arg4[%c0_148, %c0_149, %c0_150] : memref<2x80x32xf32, #tpu.memory_space<vmem>>, vector<1x78x32xf32>
    %140 = vector.shape_cast %139 : vector<1x78x32xf32> to vector<78x32xf32>
    %141 = arith.addf %140, %138 : vector<78x32xf32>
    %c0_151 = arith.constant 0 : index
    %c0_152 = arith.constant 0 : index
    %c0_153 = arith.constant 0 : index
    %142 = vector.load %arg4[%c0_151, %c0_152, %c0_153] : memref<2x80x32xf32, #tpu.memory_space<vmem>>, vector<1x78x32xf32>
    %143 = vector.shape_cast %142 : vector<1x78x32xf32> to vector<78x32xf32>
    %144 = vector.shape_cast %141 : vector<78x32xf32> to vector<1x78x32xf32>
    tpu.vector_store %arg4[%c0_151, %c0_152, %c0_153], %144 {strides = array<i32>} : memref<2x80x32xf32, #tpu.memory_space<vmem>>, vector<1x78x32xf32>,
    %c1_154 = arith.constant 1 : index
    %c21_155 = arith.constant 21 : index
    %c0_156 = arith.constant 0 : index
    %145 = vector.load %arg1[%c1_154, %c21_155, %c0_156] : memref<2x100x32xbf16, #tpu.memory_space<vmem>>, vector<1x78x32xbf16>
    %146 = vector.shape_cast %145 : vector<1x78x32xbf16> to vector<78x32xbf16>
    %cst_157 = arith.constant dense<0.000000e+00> : vector<78x32xf32>
    %147 = tpu.matmul %146, %135, %cst_157 {dimension_numbers = #tpu.dot_dimension_numbers<[1], [0], [0], [1], [0, 0, 1, 1], [], []>} : vector<78x32xbf16>, vector<32x32xbf16>, vector<78x32xf32> -> vector<78x32xf32>
    %c1_158 = arith.constant 1 : index
    %c0_159 = arith.constant 0 : index
    %c0_160 = arith.constant 0 : index
    %148 = vector.load %arg4[%c1_158, %c0_159, %c0_160] : memref<2x80x32xf32, #tpu.memory_space<vmem>>, vector<1x78x32xf32>
    %149 = vector.shape_cast %148 : vector<1x78x32xf32> to vector<78x32xf32>
    %150 = arith.addf %149, %147 : vector<78x32xf32>
    %c1_161 = arith.constant 1 : index
    %c0_162 = arith.constant 0 : index
    %c0_163 = arith.constant 0 : index
    %151 = vector.load %arg4[%c1_161, %c0_162, %c0_163] : memref<2x80x32xf32, #tpu.memory_space<vmem>>, vector<1x78x32xf32>
    %152 = vector.shape_cast %151 : vector<1x78x32xf32> to vector<78x32xf32>
    %153 = vector.shape_cast %150 : vector<78x32xf32> to vector<1x78x32xf32>
    tpu.vector_store %arg4[%c1_161, %c0_162, %c0_163], %153 {strides = array<i32>} : memref<2x80x32xf32, #tpu.memory_space<vmem>>, vector<1x78x32xf32>,
    %c8 = arith.constant 8 : index
    %c0_164 = arith.constant 0 : index
    %c0_165 = arith.constant 0 : index
    %154 = vector.load %arg2[%c8, %c0_164, %c0_165] : memref<9x32x32xbf16, #tpu.memory_space<vmem>>, vector<1x32x32xbf16>
    %155 = vector.shape_cast %154 : vector<1x32x32xbf16> to vector<32x32xbf16>
    %c0_166 = arith.constant 0 : index
    %c22 = arith.constant 22 : index
    %c0_167 = arith.constant 0 : index
    %156 = vector.load %arg1[%c0_166, %c22, %c0_167] : memref<2x100x32xbf16, #tpu.memory_space<vmem>>, vector<1x78x32xbf16>
    %157 = vector.shape_cast %156 : vector<1x78x32xbf16> to vector<78x32xbf16>
    %cst_168 = arith.constant dense<0.000000e+00> : vector<78x32xf32>
    %158 = tpu.matmul %157, %155, %cst_168 {dimension_numbers = #tpu.dot_dimension_numbers<[1], [0], [0], [1], [0, 0, 1, 1], [], []>} : vector<78x32xbf16>, vector<32x32xbf16>, vector<78x32xf32> -> vector<78x32xf32>
    %c0_169 = arith.constant 0 : index
    %c0_170 = arith.constant 0 : index
    %c0_171 = arith.constant 0 : index
    %159 = vector.load %arg4[%c0_169, %c0_170, %c0_171] : memref<2x80x32xf32, #tpu.memory_space<vmem>>, vector<1x78x32xf32>
    %160 = vector.shape_cast %159 : vector<1x78x32xf32> to vector<78x32xf32>
    %161 = arith.addf %160, %158 : vector<78x32xf32>
    %c0_172 = arith.constant 0 : index
    %c0_173 = arith.constant 0 : index
    %c0_174 = arith.constant 0 : index
    %162 = vector.load %arg4[%c0_172, %c0_173, %c0_174] : memref<2x80x32xf32, #tpu.memory_space<vmem>>, vector<1x78x32xf32>
    %163 = vector.shape_cast %162 : vector<1x78x32xf32> to vector<78x32xf32>
    %164 = vector.shape_cast %161 : vector<78x32xf32> to vector<1x78x32xf32>
    tpu.vector_store %arg4[%c0_172, %c0_173, %c0_174], %164 {strides = array<i32>} : memref<2x80x32xf32, #tpu.memory_space<vmem>>, vector<1x78x32xf32>,
    %c1_175 = arith.constant 1 : index
    %c22_176 = arith.constant 22 : index
    %c0_177 = arith.constant 0 : index
    %165 = vector.load %arg1[%c1_175, %c22_176, %c0_177] : memref<2x100x32xbf16, #tpu.memory_space<vmem>>, vector<1x78x32xbf16>
    %166 = vector.shape_cast %165 : vector<1x78x32xbf16> to vector<78x32xbf16>
    %cst_178 = arith.constant dense<0.000000e+00> : vector<78x32xf32>
    %167 = tpu.matmul %166, %155, %cst_178 {dimension_numbers = #tpu.dot_dimension_numbers<[1], [0], [0], [1], [0, 0, 1, 1], [], []>} : vector<78x32xbf16>, vector<32x32xbf16>, vector<78x32xf32> -> vector<78x32xf32>
    %c1_179 = arith.constant 1 : index
    %c0_180 = arith.constant 0 : index
    %c0_181 = arith.constant 0 : index
    %168 = vector.load %arg4[%c1_179, %c0_180, %c0_181] : memref<2x80x32xf32, #tpu.memory_space<vmem>>, vector<1x78x32xf32>
    %169 = vector.shape_cast %168 : vector<1x78x32xf32> to vector<78x32xf32>
    %170 = arith.addf %169, %167 : vector<78x32xf32>
    %c1_182 = arith.constant 1 : index
    %c0_183 = arith.constant 0 : index
    %c0_184 = arith.constant 0 : index
    %171 = vector.load %arg4[%c1_182, %c0_183, %c0_184] : memref<2x80x32xf32, #tpu.memory_space<vmem>>, vector<1x78x32xf32>
    %172 = vector.shape_cast %171 : vector<1x78x32xf32> to vector<78x32xf32>
    %173 = vector.shape_cast %170 : vector<78x32xf32> to vector<1x78x32xf32>
    tpu.vector_store %arg4[%c1_182, %c0_183, %c0_184], %173 {strides = array<i32>} : memref<2x80x32xf32, #tpu.memory_space<vmem>>, vector<1x78x32xf32>,
    %c0_185 = arith.constant 0 : index
    %c0_186 = arith.constant 0 : index
    %c0_187 = arith.constant 0 : index
    %174 = vector.load %arg4[%c0_185, %c0_186, %c0_187] : memref<2x80x32xf32, #tpu.memory_space<vmem>>, vector<2x8x32xf32>
    %175 = arith.truncf %174 : vector<2x8x32xf32> to vector<2x8x32xbf16>
    %c0_188 = arith.constant 0 : index
    %c0_189 = arith.constant 0 : index
    %c0_190 = arith.constant 0 : index
    %176 = vector.load %arg3[%c0_188, %c0_189, %c0_190] : memref<2x64x32xbf16, #tpu.memory_space<vmem>>, vector<2x8x32xbf16>
    tpu.vector_store %arg3[%c0_188, %c0_189, %c0_190], %175 {strides = array<i32>} : memref<2x64x32xbf16, #tpu.memory_space<vmem>>, vector<2x8x32xbf16>,
    %c0_191 = arith.constant 0 : index
    %c10_192 = arith.constant 10 : index
    %c0_193 = arith.constant 0 : index
    %177 = vector.load %arg4[%c0_191, %c10_192, %c0_193] : memref<2x80x32xf32, #tpu.memory_space<vmem>>, vector<2x8x32xf32>
    %178 = arith.truncf %177 : vector<2x8x32xf32> to vector<2x8x32xbf16>
    %c0_194 = arith.constant 0 : index
    %c8_195 = arith.constant 8 : index
    %c0_196 = arith.constant 0 : index
    %179 = vector.load %arg3[%c0_194, %c8_195, %c0_196] : memref<2x64x32xbf16, #tpu.memory_space<vmem>>, vector<2x8x32xbf16>
    tpu.vector_store %arg3[%c0_194, %c8_195, %c0_196], %178 {strides = array<i32>} : memref<2x64x32xbf16, #tpu.memory_space<vmem>>, vector<2x8x32xbf16>,
    %c0_197 = arith.constant 0 : index
    %c20_198 = arith.constant 20 : index
    %c0_199 = arith.constant 0 : index
    %180 = vector.load %arg4[%c0_197, %c20_198, %c0_199] : memref<2x80x32xf32, #tpu.memory_space<vmem>>, vector<2x8x32xf32>
    %181 = arith.truncf %180 : vector<2x8x32xf32> to vector<2x8x32xbf16>
    %c0_200 = arith.constant 0 : index
    %c16 = arith.constant 16 : index
    %c0_201 = arith.constant 0 : index
    %182 = vector.load %arg3[%c0_200, %c16, %c0_201] : memref<2x64x32xbf16, #tpu.memory_space<vmem>>, vector<2x8x32xbf16>
    tpu.vector_store %arg3[%c0_200, %c16, %c0_201], %181 {strides = array<i32>} : memref<2x64x32xbf16, #tpu.memory_space<vmem>>, vector<2x8x32xbf16>,
    %c0_202 = arith.constant 0 : index
    %c30 = arith.constant 30 : index
    %c0_203 = arith.constant 0 : index
    %183 = vector.load %arg4[%c0_202, %c30, %c0_203] : memref<2x80x32xf32, #tpu.memory_space<vmem>>, vector<2x8x32xf32>
    %184 = arith.truncf %183 : vector<2x8x32xf32> to vector<2x8x32xbf16>
    %c0_204 = arith.constant 0 : index
    %c24 = arith.constant 24 : index
    %c0_205 = arith.constant 0 : index
    %185 = vector.load %arg3[%c0_204, %c24, %c0_205] : memref<2x64x32xbf16, #tpu.memory_space<vmem>>, vector<2x8x32xbf16>
    tpu.vector_store %arg3[%c0_204, %c24, %c0_205], %184 {strides = array<i32>} : memref<2x64x32xbf16, #tpu.memory_space<vmem>>, vector<2x8x32xbf16>,
    %c0_206 = arith.constant 0 : index
    %c40 = arith.constant 40 : index
    %c0_207 = arith.constant 0 : index
    %186 = vector.load %arg4[%c0_206, %c40, %c0_207] : memref<2x80x32xf32, #tpu.memory_space<vmem>>, vector<2x8x32xf32>
    %187 = arith.truncf %186 : vector<2x8x32xf32> to vector<2x8x32xbf16>
    %c0_208 = arith.constant 0 : index
    %c32 = arith.constant 32 : index
    %c0_209 = arith.constant 0 : index
    %188 = vector.load %arg3[%c0_208, %c32, %c0_209] : memref<2x64x32xbf16, #tpu.memory_space<vmem>>, vector<2x8x32xbf16>
    tpu.vector_store %arg3[%c0_208, %c32, %c0_209], %187 {strides = array<i32>} : memref<2x64x32xbf16, #tpu.memory_space<vmem>>, vector<2x8x32xbf16>,
    %c0_210 = arith.constant 0 : index
    %c50 = arith.constant 50 : index
    %c0_211 = arith.constant 0 : index
    %189 = vector.load %arg4[%c0_210, %c50, %c0_211] : memref<2x80x32xf32, #tpu.memory_space<vmem>>, vector<2x8x32xf32>
    %190 = arith.truncf %189 : vector<2x8x32xf32> to vector<2x8x32xbf16>
    %c0_212 = arith.constant 0 : index
    %c40_213 = arith.constant 40 : index
    %c0_214 = arith.constant 0 : index
    %191 = vector.load %arg3[%c0_212, %c40_213, %c0_214] : memref<2x64x32xbf16, #tpu.memory_space<vmem>>, vector<2x8x32xbf16>
    tpu.vector_store %arg3[%c0_212, %c40_213, %c0_214], %190 {strides = array<i32>} : memref<2x64x32xbf16, #tpu.memory_space<vmem>>, vector<2x8x32xbf16>,
    %c0_215 = arith.constant 0 : index
    %c60 = arith.constant 60 : index
    %c0_216 = arith.constant 0 : index
    %192 = vector.load %arg4[%c0_215, %c60, %c0_216] : memref<2x80x32xf32, #tpu.memory_space<vmem>>, vector<2x8x32xf32>
    %193 = arith.truncf %192 : vector<2x8x32xf32> to vector<2x8x32xbf16>
    %c0_217 = arith.constant 0 : index
    %c48 = arith.constant 48 : index
    %c0_218 = arith.constant 0 : index
    %194 = vector.load %arg3[%c0_217, %c48, %c0_218] : memref<2x64x32xbf16, #tpu.memory_space<vmem>>, vector<2x8x32xbf16>
    tpu.vector_store %arg3[%c0_217, %c48, %c0_218], %193 {strides = array<i32>} : memref<2x64x32xbf16, #tpu.memory_space<vmem>>, vector<2x8x32xbf16>,
    %c0_219 = arith.constant 0 : index
    %c70 = arith.constant 70 : index
    %c0_220 = arith.constant 0 : index
    %195 = vector.load %arg4[%c0_219, %c70, %c0_220] : memref<2x80x32xf32, #tpu.memory_space<vmem>>, vector<2x8x32xf32>
    %196 = arith.truncf %195 : vector<2x8x32xf32> to vector<2x8x32xbf16>
    %c0_221 = arith.constant 0 : index
    %c56 = arith.constant 56 : index
    %c0_222 = arith.constant 0 : index
    %197 = vector.load %arg3[%c0_221, %c56, %c0_222] : memref<2x64x32xbf16, #tpu.memory_space<vmem>>, vector<2x8x32xbf16>
    tpu.vector_store %arg3[%c0_221, %c56, %c0_222], %196 {strides = array<i32>} : memref<2x64x32xbf16, #tpu.memory_space<vmem>>, vector<2x8x32xbf16>,
    return
  }
  func.func @transform_0(%arg0: i32) -> (i32, i32, i32) {
    %c0_i32 = arith.constant 0 : i32
    %c0_i32_0 = arith.constant 0 : i32
    %c0_i32_1 = arith.constant 0 : i32
    %c0_i32_2 = arith.constant 0 : i32
    return %c0_i32, %c0_i32_0, %c0_i32_1 : i32, i32, i32
  }
  func.func @transform_1(%arg0: i32) -> (i32, i32, i32) {
    %c0_i32 = arith.constant 0 : i32
    %c0_i32_0 = arith.constant 0 : i32
    %c0_i32_1 = arith.constant 0 : i32
    return %c0_i32, %c0_i32_0, %arg0 : i32, i32, i32
  }
  func.func @transform_2(%arg0: i32) -> (i32, i32, i32) {
    %c0_i32 = arith.constant 0 : i32
    %c0_i32_0 = arith.constant 0 : i32
    %c0_i32_1 = arith.constant 0 : i32
    return %c0_i32, %c0_i32_0, %arg0 : i32, i32, i32
  }
}

module attributes {stable_mosaic.version = 11 : i64} {
  func.func @_conv3x3_kernel(%arg0: i32, %arg1: memref<2x100x32xbf16, #tpu.memory_space<vmem>>, %arg2: memref<9x32x32xbf16, #tpu.memory_space<vmem>>, %arg3: memref<2x64x32xf32, #tpu.memory_space<vmem>>, %arg4: memref<2x64x32xf32, #tpu.memory_space<vmem>>, %arg5: memref<2x80x32xf32, #tpu.memory_space<vmem>>) attributes {dimension_semantics = [#tpu.dimension_semantics<parallel>], iteration_bounds = array<i64: 1>, scalar_prefetch = 0 : i64, scratch_operands = 1 : i64, tpu.core_type = #tpu.core_type<tc>, window_params = [{pipeline_mode = #tpu.pipeline_mode<synchronous>, transform_indices = @transform_0, window_bounds = array<i64: 2, 100, 32>}, {transform_indices = @transform_1, window_bounds = array<i64: 9, 32, 32>}, {transform_indices = @transform_2, window_bounds = array<i64: 2, 64, 32>}, {transform_indices = @transform_3, window_bounds = array<i64: 2, 64, 32>}]} {
    %c0 = arith.constant 0 : index
    %c0_0 = arith.constant 0 : index
    %c0_1 = arith.constant 0 : index
    %0 = vector.load %arg2[%c0, %c0_0, %c0_1] : memref<9x32x32xbf16, #tpu.memory_space<vmem>>, vector<1x32x32xbf16>
    %1 = vector.shape_cast %0 : vector<1x32x32xbf16> to vector<32x32xbf16>
    %c0_2 = arith.constant 0 : index
    %c0_3 = arith.constant 0 : index
    %c0_4 = arith.constant 0 : index
    %2 = vector.load %arg1[%c0_2, %c0_3, %c0_4] : memref<2x100x32xbf16, #tpu.memory_space<vmem>>, vector<1x78x32xbf16>
    %3 = vector.shape_cast %2 : vector<1x78x32xbf16> to vector<78x32xbf16>
    %cst = arith.constant dense<0.000000e+00> : vector<78x32xf32>
    %4 = tpu.matmul %3, %1, %cst {dimension_numbers = #tpu.dot_dimension_numbers<[1], [0], [0], [1], [0, 0, 1, 1], [], []>} : vector<78x32xbf16>, vector<32x32xbf16>, vector<78x32xf32> -> vector<78x32xf32>
    %c0_5 = arith.constant 0 : index
    %c0_6 = arith.constant 0 : index
    %c0_7 = arith.constant 0 : index
    %5 = vector.load %arg5[%c0_5, %c0_6, %c0_7] : memref<2x80x32xf32, #tpu.memory_space<vmem>>, vector<1x78x32xf32>
    %6 = vector.shape_cast %5 : vector<1x78x32xf32> to vector<78x32xf32>
    %7 = vector.shape_cast %4 : vector<78x32xf32> to vector<1x78x32xf32>
    tpu.vector_store %arg5[%c0_5, %c0_6, %c0_7], %7 {strides = array<i32>} : memref<2x80x32xf32, #tpu.memory_space<vmem>>, vector<1x78x32xf32>,
    %c1 = arith.constant 1 : index
    %c0_8 = arith.constant 0 : index
    %c0_9 = arith.constant 0 : index
    %8 = vector.load %arg1[%c1, %c0_8, %c0_9] : memref<2x100x32xbf16, #tpu.memory_space<vmem>>, vector<1x78x32xbf16>
    %9 = vector.shape_cast %8 : vector<1x78x32xbf16> to vector<78x32xbf16>
    %cst_10 = arith.constant dense<0.000000e+00> : vector<78x32xf32>
    %10 = tpu.matmul %9, %1, %cst_10 {dimension_numbers = #tpu.dot_dimension_numbers<[1], [0], [0], [1], [0, 0, 1, 1], [], []>} : vector<78x32xbf16>, vector<32x32xbf16>, vector<78x32xf32> -> vector<78x32xf32>
    %c1_11 = arith.constant 1 : index
    %c0_12 = arith.constant 0 : index
    %c0_13 = arith.constant 0 : index
    %11 = vector.load %arg5[%c1_11, %c0_12, %c0_13] : memref<2x80x32xf32, #tpu.memory_space<vmem>>, vector<1x78x32xf32>
    %12 = vector.shape_cast %11 : vector<1x78x32xf32> to vector<78x32xf32>
    %13 = vector.shape_cast %10 : vector<78x32xf32> to vector<1x78x32xf32>
    tpu.vector_store %arg5[%c1_11, %c0_12, %c0_13], %13 {strides = array<i32>} : memref<2x80x32xf32, #tpu.memory_space<vmem>>, vector<1x78x32xf32>,
    %c1_14 = arith.constant 1 : index
    %c0_15 = arith.constant 0 : index
    %c0_16 = arith.constant 0 : index
    %14 = vector.load %arg2[%c1_14, %c0_15, %c0_16] : memref<9x32x32xbf16, #tpu.memory_space<vmem>>, vector<1x32x32xbf16>
    %15 = vector.shape_cast %14 : vector<1x32x32xbf16> to vector<32x32xbf16>
    %c0_17 = arith.constant 0 : index
    %c1_18 = arith.constant 1 : index
    %c0_19 = arith.constant 0 : index
    %16 = vector.load %arg1[%c0_17, %c1_18, %c0_19] : memref<2x100x32xbf16, #tpu.memory_space<vmem>>, vector<1x78x32xbf16>
    %17 = vector.shape_cast %16 : vector<1x78x32xbf16> to vector<78x32xbf16>
    %cst_20 = arith.constant dense<0.000000e+00> : vector<78x32xf32>
    %18 = tpu.matmul %17, %15, %cst_20 {dimension_numbers = #tpu.dot_dimension_numbers<[1], [0], [0], [1], [0, 0, 1, 1], [], []>} : vector<78x32xbf16>, vector<32x32xbf16>, vector<78x32xf32> -> vector<78x32xf32>
    %c0_21 = arith.constant 0 : index
    %c0_22 = arith.constant 0 : index
    %c0_23 = arith.constant 0 : index
    %19 = vector.load %arg5[%c0_21, %c0_22, %c0_23] : memref<2x80x32xf32, #tpu.memory_space<vmem>>, vector<1x78x32xf32>
    %20 = vector.shape_cast %19 : vector<1x78x32xf32> to vector<78x32xf32>
    %21 = arith.addf %20, %18 : vector<78x32xf32>
    %c0_24 = arith.constant 0 : index
    %c0_25 = arith.constant 0 : index
    %c0_26 = arith.constant 0 : index
    %22 = vector.load %arg5[%c0_24, %c0_25, %c0_26] : memref<2x80x32xf32, #tpu.memory_space<vmem>>, vector<1x78x32xf32>
    %23 = vector.shape_cast %22 : vector<1x78x32xf32> to vector<78x32xf32>
    %24 = vector.shape_cast %21 : vector<78x32xf32> to vector<1x78x32xf32>
    tpu.vector_store %arg5[%c0_24, %c0_25, %c0_26], %24 {strides = array<i32>} : memref<2x80x32xf32, #tpu.memory_space<vmem>>, vector<1x78x32xf32>,
    %c1_27 = arith.constant 1 : index
    %c1_28 = arith.constant 1 : index
    %c0_29 = arith.constant 0 : index
    %25 = vector.load %arg1[%c1_27, %c1_28, %c0_29] : memref<2x100x32xbf16, #tpu.memory_space<vmem>>, vector<1x78x32xbf16>
    %26 = vector.shape_cast %25 : vector<1x78x32xbf16> to vector<78x32xbf16>
    %cst_30 = arith.constant dense<0.000000e+00> : vector<78x32xf32>
    %27 = tpu.matmul %26, %15, %cst_30 {dimension_numbers = #tpu.dot_dimension_numbers<[1], [0], [0], [1], [0, 0, 1, 1], [], []>} : vector<78x32xbf16>, vector<32x32xbf16>, vector<78x32xf32> -> vector<78x32xf32>
    %c1_31 = arith.constant 1 : index
    %c0_32 = arith.constant 0 : index
    %c0_33 = arith.constant 0 : index
    %28 = vector.load %arg5[%c1_31, %c0_32, %c0_33] : memref<2x80x32xf32, #tpu.memory_space<vmem>>, vector<1x78x32xf32>
    %29 = vector.shape_cast %28 : vector<1x78x32xf32> to vector<78x32xf32>
    %30 = arith.addf %29, %27 : vector<78x32xf32>
    %c1_34 = arith.constant 1 : index
    %c0_35 = arith.constant 0 : index
    %c0_36 = arith.constant 0 : index
    %31 = vector.load %arg5[%c1_34, %c0_35, %c0_36] : memref<2x80x32xf32, #tpu.memory_space<vmem>>, vector<1x78x32xf32>
    %32 = vector.shape_cast %31 : vector<1x78x32xf32> to vector<78x32xf32>
    %33 = vector.shape_cast %30 : vector<78x32xf32> to vector<1x78x32xf32>
    tpu.vector_store %arg5[%c1_34, %c0_35, %c0_36], %33 {strides = array<i32>} : memref<2x80x32xf32, #tpu.memory_space<vmem>>, vector<1x78x32xf32>,
    %c2 = arith.constant 2 : index
    %c0_37 = arith.constant 0 : index
    %c0_38 = arith.constant 0 : index
    %34 = vector.load %arg2[%c2, %c0_37, %c0_38] : memref<9x32x32xbf16, #tpu.memory_space<vmem>>, vector<1x32x32xbf16>
    %35 = vector.shape_cast %34 : vector<1x32x32xbf16> to vector<32x32xbf16>
    %c0_39 = arith.constant 0 : index
    %c2_40 = arith.constant 2 : index
    %c0_41 = arith.constant 0 : index
    %36 = vector.load %arg1[%c0_39, %c2_40, %c0_41] : memref<2x100x32xbf16, #tpu.memory_space<vmem>>, vector<1x78x32xbf16>
    %37 = vector.shape_cast %36 : vector<1x78x32xbf16> to vector<78x32xbf16>
    %cst_42 = arith.constant dense<0.000000e+00> : vector<78x32xf32>
    %38 = tpu.matmul %37, %35, %cst_42 {dimension_numbers = #tpu.dot_dimension_numbers<[1], [0], [0], [1], [0, 0, 1, 1], [], []>} : vector<78x32xbf16>, vector<32x32xbf16>, vector<78x32xf32> -> vector<78x32xf32>
    %c0_43 = arith.constant 0 : index
    %c0_44 = arith.constant 0 : index
    %c0_45 = arith.constant 0 : index
    %39 = vector.load %arg5[%c0_43, %c0_44, %c0_45] : memref<2x80x32xf32, #tpu.memory_space<vmem>>, vector<1x78x32xf32>
    %40 = vector.shape_cast %39 : vector<1x78x32xf32> to vector<78x32xf32>
    %41 = arith.addf %40, %38 : vector<78x32xf32>
    %c0_46 = arith.constant 0 : index
    %c0_47 = arith.constant 0 : index
    %c0_48 = arith.constant 0 : index
    %42 = vector.load %arg5[%c0_46, %c0_47, %c0_48] : memref<2x80x32xf32, #tpu.memory_space<vmem>>, vector<1x78x32xf32>
    %43 = vector.shape_cast %42 : vector<1x78x32xf32> to vector<78x32xf32>
    %44 = vector.shape_cast %41 : vector<78x32xf32> to vector<1x78x32xf32>
    tpu.vector_store %arg5[%c0_46, %c0_47, %c0_48], %44 {strides = array<i32>} : memref<2x80x32xf32, #tpu.memory_space<vmem>>, vector<1x78x32xf32>,
    %c1_49 = arith.constant 1 : index
    %c2_50 = arith.constant 2 : index
    %c0_51 = arith.constant 0 : index
    %45 = vector.load %arg1[%c1_49, %c2_50, %c0_51] : memref<2x100x32xbf16, #tpu.memory_space<vmem>>, vector<1x78x32xbf16>
    %46 = vector.shape_cast %45 : vector<1x78x32xbf16> to vector<78x32xbf16>
    %cst_52 = arith.constant dense<0.000000e+00> : vector<78x32xf32>
    %47 = tpu.matmul %46, %35, %cst_52 {dimension_numbers = #tpu.dot_dimension_numbers<[1], [0], [0], [1], [0, 0, 1, 1], [], []>} : vector<78x32xbf16>, vector<32x32xbf16>, vector<78x32xf32> -> vector<78x32xf32>
    %c1_53 = arith.constant 1 : index
    %c0_54 = arith.constant 0 : index
    %c0_55 = arith.constant 0 : index
    %48 = vector.load %arg5[%c1_53, %c0_54, %c0_55] : memref<2x80x32xf32, #tpu.memory_space<vmem>>, vector<1x78x32xf32>
    %49 = vector.shape_cast %48 : vector<1x78x32xf32> to vector<78x32xf32>
    %50 = arith.addf %49, %47 : vector<78x32xf32>
    %c1_56 = arith.constant 1 : index
    %c0_57 = arith.constant 0 : index
    %c0_58 = arith.constant 0 : index
    %51 = vector.load %arg5[%c1_56, %c0_57, %c0_58] : memref<2x80x32xf32, #tpu.memory_space<vmem>>, vector<1x78x32xf32>
    %52 = vector.shape_cast %51 : vector<1x78x32xf32> to vector<78x32xf32>
    %53 = vector.shape_cast %50 : vector<78x32xf32> to vector<1x78x32xf32>
    tpu.vector_store %arg5[%c1_56, %c0_57, %c0_58], %53 {strides = array<i32>} : memref<2x80x32xf32, #tpu.memory_space<vmem>>, vector<1x78x32xf32>,
    %c3 = arith.constant 3 : index
    %c0_59 = arith.constant 0 : index
    %c0_60 = arith.constant 0 : index
    %54 = vector.load %arg2[%c3, %c0_59, %c0_60] : memref<9x32x32xbf16, #tpu.memory_space<vmem>>, vector<1x32x32xbf16>
    %55 = vector.shape_cast %54 : vector<1x32x32xbf16> to vector<32x32xbf16>
    %c0_61 = arith.constant 0 : index
    %c10 = arith.constant 10 : index
    %c0_62 = arith.constant 0 : index
    %56 = vector.load %arg1[%c0_61, %c10, %c0_62] : memref<2x100x32xbf16, #tpu.memory_space<vmem>>, vector<1x78x32xbf16>
    %57 = vector.shape_cast %56 : vector<1x78x32xbf16> to vector<78x32xbf16>
    %cst_63 = arith.constant dense<0.000000e+00> : vector<78x32xf32>
    %58 = tpu.matmul %57, %55, %cst_63 {dimension_numbers = #tpu.dot_dimension_numbers<[1], [0], [0], [1], [0, 0, 1, 1], [], []>} : vector<78x32xbf16>, vector<32x32xbf16>, vector<78x32xf32> -> vector<78x32xf32>
    %c0_64 = arith.constant 0 : index
    %c0_65 = arith.constant 0 : index
    %c0_66 = arith.constant 0 : index
    %59 = vector.load %arg5[%c0_64, %c0_65, %c0_66] : memref<2x80x32xf32, #tpu.memory_space<vmem>>, vector<1x78x32xf32>
    %60 = vector.shape_cast %59 : vector<1x78x32xf32> to vector<78x32xf32>
    %61 = arith.addf %60, %58 : vector<78x32xf32>
    %c0_67 = arith.constant 0 : index
    %c0_68 = arith.constant 0 : index
    %c0_69 = arith.constant 0 : index
    %62 = vector.load %arg5[%c0_67, %c0_68, %c0_69] : memref<2x80x32xf32, #tpu.memory_space<vmem>>, vector<1x78x32xf32>
    %63 = vector.shape_cast %62 : vector<1x78x32xf32> to vector<78x32xf32>
    %64 = vector.shape_cast %61 : vector<78x32xf32> to vector<1x78x32xf32>
    tpu.vector_store %arg5[%c0_67, %c0_68, %c0_69], %64 {strides = array<i32>} : memref<2x80x32xf32, #tpu.memory_space<vmem>>, vector<1x78x32xf32>,
    %c1_70 = arith.constant 1 : index
    %c10_71 = arith.constant 10 : index
    %c0_72 = arith.constant 0 : index
    %65 = vector.load %arg1[%c1_70, %c10_71, %c0_72] : memref<2x100x32xbf16, #tpu.memory_space<vmem>>, vector<1x78x32xbf16>
    %66 = vector.shape_cast %65 : vector<1x78x32xbf16> to vector<78x32xbf16>
    %cst_73 = arith.constant dense<0.000000e+00> : vector<78x32xf32>
    %67 = tpu.matmul %66, %55, %cst_73 {dimension_numbers = #tpu.dot_dimension_numbers<[1], [0], [0], [1], [0, 0, 1, 1], [], []>} : vector<78x32xbf16>, vector<32x32xbf16>, vector<78x32xf32> -> vector<78x32xf32>
    %c1_74 = arith.constant 1 : index
    %c0_75 = arith.constant 0 : index
    %c0_76 = arith.constant 0 : index
    %68 = vector.load %arg5[%c1_74, %c0_75, %c0_76] : memref<2x80x32xf32, #tpu.memory_space<vmem>>, vector<1x78x32xf32>
    %69 = vector.shape_cast %68 : vector<1x78x32xf32> to vector<78x32xf32>
    %70 = arith.addf %69, %67 : vector<78x32xf32>
    %c1_77 = arith.constant 1 : index
    %c0_78 = arith.constant 0 : index
    %c0_79 = arith.constant 0 : index
    %71 = vector.load %arg5[%c1_77, %c0_78, %c0_79] : memref<2x80x32xf32, #tpu.memory_space<vmem>>, vector<1x78x32xf32>
    %72 = vector.shape_cast %71 : vector<1x78x32xf32> to vector<78x32xf32>
    %73 = vector.shape_cast %70 : vector<78x32xf32> to vector<1x78x32xf32>
    tpu.vector_store %arg5[%c1_77, %c0_78, %c0_79], %73 {strides = array<i32>} : memref<2x80x32xf32, #tpu.memory_space<vmem>>, vector<1x78x32xf32>,
    %c4 = arith.constant 4 : index
    %c0_80 = arith.constant 0 : index
    %c0_81 = arith.constant 0 : index
    %74 = vector.load %arg2[%c4, %c0_80, %c0_81] : memref<9x32x32xbf16, #tpu.memory_space<vmem>>, vector<1x32x32xbf16>
    %75 = vector.shape_cast %74 : vector<1x32x32xbf16> to vector<32x32xbf16>
    %c0_82 = arith.constant 0 : index
    %c11 = arith.constant 11 : index
    %c0_83 = arith.constant 0 : index
    %76 = vector.load %arg1[%c0_82, %c11, %c0_83] : memref<2x100x32xbf16, #tpu.memory_space<vmem>>, vector<1x78x32xbf16>
    %77 = vector.shape_cast %76 : vector<1x78x32xbf16> to vector<78x32xbf16>
    %cst_84 = arith.constant dense<0.000000e+00> : vector<78x32xf32>
    %78 = tpu.matmul %77, %75, %cst_84 {dimension_numbers = #tpu.dot_dimension_numbers<[1], [0], [0], [1], [0, 0, 1, 1], [], []>} : vector<78x32xbf16>, vector<32x32xbf16>, vector<78x32xf32> -> vector<78x32xf32>
    %c0_85 = arith.constant 0 : index
    %c0_86 = arith.constant 0 : index
    %c0_87 = arith.constant 0 : index
    %79 = vector.load %arg5[%c0_85, %c0_86, %c0_87] : memref<2x80x32xf32, #tpu.memory_space<vmem>>, vector<1x78x32xf32>
    %80 = vector.shape_cast %79 : vector<1x78x32xf32> to vector<78x32xf32>
    %81 = arith.addf %80, %78 : vector<78x32xf32>
    %c0_88 = arith.constant 0 : index
    %c0_89 = arith.constant 0 : index
    %c0_90 = arith.constant 0 : index
    %82 = vector.load %arg5[%c0_88, %c0_89, %c0_90] : memref<2x80x32xf32, #tpu.memory_space<vmem>>, vector<1x78x32xf32>
    %83 = vector.shape_cast %82 : vector<1x78x32xf32> to vector<78x32xf32>
    %84 = vector.shape_cast %81 : vector<78x32xf32> to vector<1x78x32xf32>
    tpu.vector_store %arg5[%c0_88, %c0_89, %c0_90], %84 {strides = array<i32>} : memref<2x80x32xf32, #tpu.memory_space<vmem>>, vector<1x78x32xf32>,
    %c1_91 = arith.constant 1 : index
    %c11_92 = arith.constant 11 : index
    %c0_93 = arith.constant 0 : index
    %85 = vector.load %arg1[%c1_91, %c11_92, %c0_93] : memref<2x100x32xbf16, #tpu.memory_space<vmem>>, vector<1x78x32xbf16>
    %86 = vector.shape_cast %85 : vector<1x78x32xbf16> to vector<78x32xbf16>
    %cst_94 = arith.constant dense<0.000000e+00> : vector<78x32xf32>
    %87 = tpu.matmul %86, %75, %cst_94 {dimension_numbers = #tpu.dot_dimension_numbers<[1], [0], [0], [1], [0, 0, 1, 1], [], []>} : vector<78x32xbf16>, vector<32x32xbf16>, vector<78x32xf32> -> vector<78x32xf32>
    %c1_95 = arith.constant 1 : index
    %c0_96 = arith.constant 0 : index
    %c0_97 = arith.constant 0 : index
    %88 = vector.load %arg5[%c1_95, %c0_96, %c0_97] : memref<2x80x32xf32, #tpu.memory_space<vmem>>, vector<1x78x32xf32>
    %89 = vector.shape_cast %88 : vector<1x78x32xf32> to vector<78x32xf32>
    %90 = arith.addf %89, %87 : vector<78x32xf32>
    %c1_98 = arith.constant 1 : index
    %c0_99 = arith.constant 0 : index
    %c0_100 = arith.constant 0 : index
    %91 = vector.load %arg5[%c1_98, %c0_99, %c0_100] : memref<2x80x32xf32, #tpu.memory_space<vmem>>, vector<1x78x32xf32>
    %92 = vector.shape_cast %91 : vector<1x78x32xf32> to vector<78x32xf32>
    %93 = vector.shape_cast %90 : vector<78x32xf32> to vector<1x78x32xf32>
    tpu.vector_store %arg5[%c1_98, %c0_99, %c0_100], %93 {strides = array<i32>} : memref<2x80x32xf32, #tpu.memory_space<vmem>>, vector<1x78x32xf32>,
    %c5 = arith.constant 5 : index
    %c0_101 = arith.constant 0 : index
    %c0_102 = arith.constant 0 : index
    %94 = vector.load %arg2[%c5, %c0_101, %c0_102] : memref<9x32x32xbf16, #tpu.memory_space<vmem>>, vector<1x32x32xbf16>
    %95 = vector.shape_cast %94 : vector<1x32x32xbf16> to vector<32x32xbf16>
    %c0_103 = arith.constant 0 : index
    %c12 = arith.constant 12 : index
    %c0_104 = arith.constant 0 : index
    %96 = vector.load %arg1[%c0_103, %c12, %c0_104] : memref<2x100x32xbf16, #tpu.memory_space<vmem>>, vector<1x78x32xbf16>
    %97 = vector.shape_cast %96 : vector<1x78x32xbf16> to vector<78x32xbf16>
    %cst_105 = arith.constant dense<0.000000e+00> : vector<78x32xf32>
    %98 = tpu.matmul %97, %95, %cst_105 {dimension_numbers = #tpu.dot_dimension_numbers<[1], [0], [0], [1], [0, 0, 1, 1], [], []>} : vector<78x32xbf16>, vector<32x32xbf16>, vector<78x32xf32> -> vector<78x32xf32>
    %c0_106 = arith.constant 0 : index
    %c0_107 = arith.constant 0 : index
    %c0_108 = arith.constant 0 : index
    %99 = vector.load %arg5[%c0_106, %c0_107, %c0_108] : memref<2x80x32xf32, #tpu.memory_space<vmem>>, vector<1x78x32xf32>
    %100 = vector.shape_cast %99 : vector<1x78x32xf32> to vector<78x32xf32>
    %101 = arith.addf %100, %98 : vector<78x32xf32>
    %c0_109 = arith.constant 0 : index
    %c0_110 = arith.constant 0 : index
    %c0_111 = arith.constant 0 : index
    %102 = vector.load %arg5[%c0_109, %c0_110, %c0_111] : memref<2x80x32xf32, #tpu.memory_space<vmem>>, vector<1x78x32xf32>
    %103 = vector.shape_cast %102 : vector<1x78x32xf32> to vector<78x32xf32>
    %104 = vector.shape_cast %101 : vector<78x32xf32> to vector<1x78x32xf32>
    tpu.vector_store %arg5[%c0_109, %c0_110, %c0_111], %104 {strides = array<i32>} : memref<2x80x32xf32, #tpu.memory_space<vmem>>, vector<1x78x32xf32>,
    %c1_112 = arith.constant 1 : index
    %c12_113 = arith.constant 12 : index
    %c0_114 = arith.constant 0 : index
    %105 = vector.load %arg1[%c1_112, %c12_113, %c0_114] : memref<2x100x32xbf16, #tpu.memory_space<vmem>>, vector<1x78x32xbf16>
    %106 = vector.shape_cast %105 : vector<1x78x32xbf16> to vector<78x32xbf16>
    %cst_115 = arith.constant dense<0.000000e+00> : vector<78x32xf32>
    %107 = tpu.matmul %106, %95, %cst_115 {dimension_numbers = #tpu.dot_dimension_numbers<[1], [0], [0], [1], [0, 0, 1, 1], [], []>} : vector<78x32xbf16>, vector<32x32xbf16>, vector<78x32xf32> -> vector<78x32xf32>
    %c1_116 = arith.constant 1 : index
    %c0_117 = arith.constant 0 : index
    %c0_118 = arith.constant 0 : index
    %108 = vector.load %arg5[%c1_116, %c0_117, %c0_118] : memref<2x80x32xf32, #tpu.memory_space<vmem>>, vector<1x78x32xf32>
    %109 = vector.shape_cast %108 : vector<1x78x32xf32> to vector<78x32xf32>
    %110 = arith.addf %109, %107 : vector<78x32xf32>
    %c1_119 = arith.constant 1 : index
    %c0_120 = arith.constant 0 : index
    %c0_121 = arith.constant 0 : index
    %111 = vector.load %arg5[%c1_119, %c0_120, %c0_121] : memref<2x80x32xf32, #tpu.memory_space<vmem>>, vector<1x78x32xf32>
    %112 = vector.shape_cast %111 : vector<1x78x32xf32> to vector<78x32xf32>
    %113 = vector.shape_cast %110 : vector<78x32xf32> to vector<1x78x32xf32>
    tpu.vector_store %arg5[%c1_119, %c0_120, %c0_121], %113 {strides = array<i32>} : memref<2x80x32xf32, #tpu.memory_space<vmem>>, vector<1x78x32xf32>,
    %c6 = arith.constant 6 : index
    %c0_122 = arith.constant 0 : index
    %c0_123 = arith.constant 0 : index
    %114 = vector.load %arg2[%c6, %c0_122, %c0_123] : memref<9x32x32xbf16, #tpu.memory_space<vmem>>, vector<1x32x32xbf16>
    %115 = vector.shape_cast %114 : vector<1x32x32xbf16> to vector<32x32xbf16>
    %c0_124 = arith.constant 0 : index
    %c20 = arith.constant 20 : index
    %c0_125 = arith.constant 0 : index
    %116 = vector.load %arg1[%c0_124, %c20, %c0_125] : memref<2x100x32xbf16, #tpu.memory_space<vmem>>, vector<1x78x32xbf16>
    %117 = vector.shape_cast %116 : vector<1x78x32xbf16> to vector<78x32xbf16>
    %cst_126 = arith.constant dense<0.000000e+00> : vector<78x32xf32>
    %118 = tpu.matmul %117, %115, %cst_126 {dimension_numbers = #tpu.dot_dimension_numbers<[1], [0], [0], [1], [0, 0, 1, 1], [], []>} : vector<78x32xbf16>, vector<32x32xbf16>, vector<78x32xf32> -> vector<78x32xf32>
    %c0_127 = arith.constant 0 : index
    %c0_128 = arith.constant 0 : index
    %c0_129 = arith.constant 0 : index
    %119 = vector.load %arg5[%c0_127, %c0_128, %c0_129] : memref<2x80x32xf32, #tpu.memory_space<vmem>>, vector<1x78x32xf32>
    %120 = vector.shape_cast %119 : vector<1x78x32xf32> to vector<78x32xf32>
    %121 = arith.addf %120, %118 : vector<78x32xf32>
    %c0_130 = arith.constant 0 : index
    %c0_131 = arith.constant 0 : index
    %c0_132 = arith.constant 0 : index
    %122 = vector.load %arg5[%c0_130, %c0_131, %c0_132] : memref<2x80x32xf32, #tpu.memory_space<vmem>>, vector<1x78x32xf32>
    %123 = vector.shape_cast %122 : vector<1x78x32xf32> to vector<78x32xf32>
    %124 = vector.shape_cast %121 : vector<78x32xf32> to vector<1x78x32xf32>
    tpu.vector_store %arg5[%c0_130, %c0_131, %c0_132], %124 {strides = array<i32>} : memref<2x80x32xf32, #tpu.memory_space<vmem>>, vector<1x78x32xf32>,
    %c1_133 = arith.constant 1 : index
    %c20_134 = arith.constant 20 : index
    %c0_135 = arith.constant 0 : index
    %125 = vector.load %arg1[%c1_133, %c20_134, %c0_135] : memref<2x100x32xbf16, #tpu.memory_space<vmem>>, vector<1x78x32xbf16>
    %126 = vector.shape_cast %125 : vector<1x78x32xbf16> to vector<78x32xbf16>
    %cst_136 = arith.constant dense<0.000000e+00> : vector<78x32xf32>
    %127 = tpu.matmul %126, %115, %cst_136 {dimension_numbers = #tpu.dot_dimension_numbers<[1], [0], [0], [1], [0, 0, 1, 1], [], []>} : vector<78x32xbf16>, vector<32x32xbf16>, vector<78x32xf32> -> vector<78x32xf32>
    %c1_137 = arith.constant 1 : index
    %c0_138 = arith.constant 0 : index
    %c0_139 = arith.constant 0 : index
    %128 = vector.load %arg5[%c1_137, %c0_138, %c0_139] : memref<2x80x32xf32, #tpu.memory_space<vmem>>, vector<1x78x32xf32>
    %129 = vector.shape_cast %128 : vector<1x78x32xf32> to vector<78x32xf32>
    %130 = arith.addf %129, %127 : vector<78x32xf32>
    %c1_140 = arith.constant 1 : index
    %c0_141 = arith.constant 0 : index
    %c0_142 = arith.constant 0 : index
    %131 = vector.load %arg5[%c1_140, %c0_141, %c0_142] : memref<2x80x32xf32, #tpu.memory_space<vmem>>, vector<1x78x32xf32>
    %132 = vector.shape_cast %131 : vector<1x78x32xf32> to vector<78x32xf32>
    %133 = vector.shape_cast %130 : vector<78x32xf32> to vector<1x78x32xf32>
    tpu.vector_store %arg5[%c1_140, %c0_141, %c0_142], %133 {strides = array<i32>} : memref<2x80x32xf32, #tpu.memory_space<vmem>>, vector<1x78x32xf32>,
    %c7 = arith.constant 7 : index
    %c0_143 = arith.constant 0 : index
    %c0_144 = arith.constant 0 : index
    %134 = vector.load %arg2[%c7, %c0_143, %c0_144] : memref<9x32x32xbf16, #tpu.memory_space<vmem>>, vector<1x32x32xbf16>
    %135 = vector.shape_cast %134 : vector<1x32x32xbf16> to vector<32x32xbf16>
    %c0_145 = arith.constant 0 : index
    %c21 = arith.constant 21 : index
    %c0_146 = arith.constant 0 : index
    %136 = vector.load %arg1[%c0_145, %c21, %c0_146] : memref<2x100x32xbf16, #tpu.memory_space<vmem>>, vector<1x78x32xbf16>
    %137 = vector.shape_cast %136 : vector<1x78x32xbf16> to vector<78x32xbf16>
    %cst_147 = arith.constant dense<0.000000e+00> : vector<78x32xf32>
    %138 = tpu.matmul %137, %135, %cst_147 {dimension_numbers = #tpu.dot_dimension_numbers<[1], [0], [0], [1], [0, 0, 1, 1], [], []>} : vector<78x32xbf16>, vector<32x32xbf16>, vector<78x32xf32> -> vector<78x32xf32>
    %c0_148 = arith.constant 0 : index
    %c0_149 = arith.constant 0 : index
    %c0_150 = arith.constant 0 : index
    %139 = vector.load %arg5[%c0_148, %c0_149, %c0_150] : memref<2x80x32xf32, #tpu.memory_space<vmem>>, vector<1x78x32xf32>
    %140 = vector.shape_cast %139 : vector<1x78x32xf32> to vector<78x32xf32>
    %141 = arith.addf %140, %138 : vector<78x32xf32>
    %c0_151 = arith.constant 0 : index
    %c0_152 = arith.constant 0 : index
    %c0_153 = arith.constant 0 : index
    %142 = vector.load %arg5[%c0_151, %c0_152, %c0_153] : memref<2x80x32xf32, #tpu.memory_space<vmem>>, vector<1x78x32xf32>
    %143 = vector.shape_cast %142 : vector<1x78x32xf32> to vector<78x32xf32>
    %144 = vector.shape_cast %141 : vector<78x32xf32> to vector<1x78x32xf32>
    tpu.vector_store %arg5[%c0_151, %c0_152, %c0_153], %144 {strides = array<i32>} : memref<2x80x32xf32, #tpu.memory_space<vmem>>, vector<1x78x32xf32>,
    %c1_154 = arith.constant 1 : index
    %c21_155 = arith.constant 21 : index
    %c0_156 = arith.constant 0 : index
    %145 = vector.load %arg1[%c1_154, %c21_155, %c0_156] : memref<2x100x32xbf16, #tpu.memory_space<vmem>>, vector<1x78x32xbf16>
    %146 = vector.shape_cast %145 : vector<1x78x32xbf16> to vector<78x32xbf16>
    %cst_157 = arith.constant dense<0.000000e+00> : vector<78x32xf32>
    %147 = tpu.matmul %146, %135, %cst_157 {dimension_numbers = #tpu.dot_dimension_numbers<[1], [0], [0], [1], [0, 0, 1, 1], [], []>} : vector<78x32xbf16>, vector<32x32xbf16>, vector<78x32xf32> -> vector<78x32xf32>
    %c1_158 = arith.constant 1 : index
    %c0_159 = arith.constant 0 : index
    %c0_160 = arith.constant 0 : index
    %148 = vector.load %arg5[%c1_158, %c0_159, %c0_160] : memref<2x80x32xf32, #tpu.memory_space<vmem>>, vector<1x78x32xf32>
    %149 = vector.shape_cast %148 : vector<1x78x32xf32> to vector<78x32xf32>
    %150 = arith.addf %149, %147 : vector<78x32xf32>
    %c1_161 = arith.constant 1 : index
    %c0_162 = arith.constant 0 : index
    %c0_163 = arith.constant 0 : index
    %151 = vector.load %arg5[%c1_161, %c0_162, %c0_163] : memref<2x80x32xf32, #tpu.memory_space<vmem>>, vector<1x78x32xf32>
    %152 = vector.shape_cast %151 : vector<1x78x32xf32> to vector<78x32xf32>
    %153 = vector.shape_cast %150 : vector<78x32xf32> to vector<1x78x32xf32>
    tpu.vector_store %arg5[%c1_161, %c0_162, %c0_163], %153 {strides = array<i32>} : memref<2x80x32xf32, #tpu.memory_space<vmem>>, vector<1x78x32xf32>,
    %c8 = arith.constant 8 : index
    %c0_164 = arith.constant 0 : index
    %c0_165 = arith.constant 0 : index
    %154 = vector.load %arg2[%c8, %c0_164, %c0_165] : memref<9x32x32xbf16, #tpu.memory_space<vmem>>, vector<1x32x32xbf16>
    %155 = vector.shape_cast %154 : vector<1x32x32xbf16> to vector<32x32xbf16>
    %c0_166 = arith.constant 0 : index
    %c22 = arith.constant 22 : index
    %c0_167 = arith.constant 0 : index
    %156 = vector.load %arg1[%c0_166, %c22, %c0_167] : memref<2x100x32xbf16, #tpu.memory_space<vmem>>, vector<1x78x32xbf16>
    %157 = vector.shape_cast %156 : vector<1x78x32xbf16> to vector<78x32xbf16>
    %cst_168 = arith.constant dense<0.000000e+00> : vector<78x32xf32>
    %158 = tpu.matmul %157, %155, %cst_168 {dimension_numbers = #tpu.dot_dimension_numbers<[1], [0], [0], [1], [0, 0, 1, 1], [], []>} : vector<78x32xbf16>, vector<32x32xbf16>, vector<78x32xf32> -> vector<78x32xf32>
    %c0_169 = arith.constant 0 : index
    %c0_170 = arith.constant 0 : index
    %c0_171 = arith.constant 0 : index
    %159 = vector.load %arg5[%c0_169, %c0_170, %c0_171] : memref<2x80x32xf32, #tpu.memory_space<vmem>>, vector<1x78x32xf32>
    %160 = vector.shape_cast %159 : vector<1x78x32xf32> to vector<78x32xf32>
    %161 = arith.addf %160, %158 : vector<78x32xf32>
    %c0_172 = arith.constant 0 : index
    %c0_173 = arith.constant 0 : index
    %c0_174 = arith.constant 0 : index
    %162 = vector.load %arg5[%c0_172, %c0_173, %c0_174] : memref<2x80x32xf32, #tpu.memory_space<vmem>>, vector<1x78x32xf32>
    %163 = vector.shape_cast %162 : vector<1x78x32xf32> to vector<78x32xf32>
    %164 = vector.shape_cast %161 : vector<78x32xf32> to vector<1x78x32xf32>
    tpu.vector_store %arg5[%c0_172, %c0_173, %c0_174], %164 {strides = array<i32>} : memref<2x80x32xf32, #tpu.memory_space<vmem>>, vector<1x78x32xf32>,
    %c1_175 = arith.constant 1 : index
    %c22_176 = arith.constant 22 : index
    %c0_177 = arith.constant 0 : index
    %165 = vector.load %arg1[%c1_175, %c22_176, %c0_177] : memref<2x100x32xbf16, #tpu.memory_space<vmem>>, vector<1x78x32xbf16>
    %166 = vector.shape_cast %165 : vector<1x78x32xbf16> to vector<78x32xbf16>
    %cst_178 = arith.constant dense<0.000000e+00> : vector<78x32xf32>
    %167 = tpu.matmul %166, %155, %cst_178 {dimension_numbers = #tpu.dot_dimension_numbers<[1], [0], [0], [1], [0, 0, 1, 1], [], []>} : vector<78x32xbf16>, vector<32x32xbf16>, vector<78x32xf32> -> vector<78x32xf32>
    %c1_179 = arith.constant 1 : index
    %c0_180 = arith.constant 0 : index
    %c0_181 = arith.constant 0 : index
    %168 = vector.load %arg5[%c1_179, %c0_180, %c0_181] : memref<2x80x32xf32, #tpu.memory_space<vmem>>, vector<1x78x32xf32>
    %169 = vector.shape_cast %168 : vector<1x78x32xf32> to vector<78x32xf32>
    %170 = arith.addf %169, %167 : vector<78x32xf32>
    %c1_182 = arith.constant 1 : index
    %c0_183 = arith.constant 0 : index
    %c0_184 = arith.constant 0 : index
    %171 = vector.load %arg5[%c1_182, %c0_183, %c0_184] : memref<2x80x32xf32, #tpu.memory_space<vmem>>, vector<1x78x32xf32>
    %172 = vector.shape_cast %171 : vector<1x78x32xf32> to vector<78x32xf32>
    %173 = vector.shape_cast %170 : vector<78x32xf32> to vector<1x78x32xf32>
    tpu.vector_store %arg5[%c1_182, %c0_183, %c0_184], %173 {strides = array<i32>} : memref<2x80x32xf32, #tpu.memory_space<vmem>>, vector<1x78x32xf32>,
    %c0_185 = arith.constant 0 : index
    %c0_186 = arith.constant 0 : index
    %c0_187 = arith.constant 0 : index
    %174 = vector.load %arg5[%c0_185, %c0_186, %c0_187] : memref<2x80x32xf32, #tpu.memory_space<vmem>>, vector<2x8x32xf32>
    %c0_188 = arith.constant 0 : index
    %c0_189 = arith.constant 0 : index
    %c0_190 = arith.constant 0 : index
    %175 = vector.load %arg3[%c0_188, %c0_189, %c0_190] : memref<2x64x32xf32, #tpu.memory_space<vmem>>, vector<2x8x32xf32>
    %176 = arith.addf %174, %175 : vector<2x8x32xf32>
    %c0_191 = arith.constant 0 : index
    %c0_192 = arith.constant 0 : index
    %c0_193 = arith.constant 0 : index
    %177 = vector.load %arg4[%c0_191, %c0_192, %c0_193] : memref<2x64x32xf32, #tpu.memory_space<vmem>>, vector<2x8x32xf32>
    tpu.vector_store %arg4[%c0_191, %c0_192, %c0_193], %176 {strides = array<i32>} : memref<2x64x32xf32, #tpu.memory_space<vmem>>, vector<2x8x32xf32>,
    %c0_194 = arith.constant 0 : index
    %c10_195 = arith.constant 10 : index
    %c0_196 = arith.constant 0 : index
    %178 = vector.load %arg5[%c0_194, %c10_195, %c0_196] : memref<2x80x32xf32, #tpu.memory_space<vmem>>, vector<2x8x32xf32>
    %c0_197 = arith.constant 0 : index
    %c8_198 = arith.constant 8 : index
    %c0_199 = arith.constant 0 : index
    %179 = vector.load %arg3[%c0_197, %c8_198, %c0_199] : memref<2x64x32xf32, #tpu.memory_space<vmem>>, vector<2x8x32xf32>
    %180 = arith.addf %178, %179 : vector<2x8x32xf32>
    %c0_200 = arith.constant 0 : index
    %c8_201 = arith.constant 8 : index
    %c0_202 = arith.constant 0 : index
    %181 = vector.load %arg4[%c0_200, %c8_201, %c0_202] : memref<2x64x32xf32, #tpu.memory_space<vmem>>, vector<2x8x32xf32>
    tpu.vector_store %arg4[%c0_200, %c8_201, %c0_202], %180 {strides = array<i32>} : memref<2x64x32xf32, #tpu.memory_space<vmem>>, vector<2x8x32xf32>,
    %c0_203 = arith.constant 0 : index
    %c20_204 = arith.constant 20 : index
    %c0_205 = arith.constant 0 : index
    %182 = vector.load %arg5[%c0_203, %c20_204, %c0_205] : memref<2x80x32xf32, #tpu.memory_space<vmem>>, vector<2x8x32xf32>
    %c0_206 = arith.constant 0 : index
    %c16 = arith.constant 16 : index
    %c0_207 = arith.constant 0 : index
    %183 = vector.load %arg3[%c0_206, %c16, %c0_207] : memref<2x64x32xf32, #tpu.memory_space<vmem>>, vector<2x8x32xf32>
    %184 = arith.addf %182, %183 : vector<2x8x32xf32>
    %c0_208 = arith.constant 0 : index
    %c16_209 = arith.constant 16 : index
    %c0_210 = arith.constant 0 : index
    %185 = vector.load %arg4[%c0_208, %c16_209, %c0_210] : memref<2x64x32xf32, #tpu.memory_space<vmem>>, vector<2x8x32xf32>
    tpu.vector_store %arg4[%c0_208, %c16_209, %c0_210], %184 {strides = array<i32>} : memref<2x64x32xf32, #tpu.memory_space<vmem>>, vector<2x8x32xf32>,
    %c0_211 = arith.constant 0 : index
    %c30 = arith.constant 30 : index
    %c0_212 = arith.constant 0 : index
    %186 = vector.load %arg5[%c0_211, %c30, %c0_212] : memref<2x80x32xf32, #tpu.memory_space<vmem>>, vector<2x8x32xf32>
    %c0_213 = arith.constant 0 : index
    %c24 = arith.constant 24 : index
    %c0_214 = arith.constant 0 : index
    %187 = vector.load %arg3[%c0_213, %c24, %c0_214] : memref<2x64x32xf32, #tpu.memory_space<vmem>>, vector<2x8x32xf32>
    %188 = arith.addf %186, %187 : vector<2x8x32xf32>
    %c0_215 = arith.constant 0 : index
    %c24_216 = arith.constant 24 : index
    %c0_217 = arith.constant 0 : index
    %189 = vector.load %arg4[%c0_215, %c24_216, %c0_217] : memref<2x64x32xf32, #tpu.memory_space<vmem>>, vector<2x8x32xf32>
    tpu.vector_store %arg4[%c0_215, %c24_216, %c0_217], %188 {strides = array<i32>} : memref<2x64x32xf32, #tpu.memory_space<vmem>>, vector<2x8x32xf32>,
    %c0_218 = arith.constant 0 : index
    %c40 = arith.constant 40 : index
    %c0_219 = arith.constant 0 : index
    %190 = vector.load %arg5[%c0_218, %c40, %c0_219] : memref<2x80x32xf32, #tpu.memory_space<vmem>>, vector<2x8x32xf32>
    %c0_220 = arith.constant 0 : index
    %c32 = arith.constant 32 : index
    %c0_221 = arith.constant 0 : index
    %191 = vector.load %arg3[%c0_220, %c32, %c0_221] : memref<2x64x32xf32, #tpu.memory_space<vmem>>, vector<2x8x32xf32>
    %192 = arith.addf %190, %191 : vector<2x8x32xf32>
    %c0_222 = arith.constant 0 : index
    %c32_223 = arith.constant 32 : index
    %c0_224 = arith.constant 0 : index
    %193 = vector.load %arg4[%c0_222, %c32_223, %c0_224] : memref<2x64x32xf32, #tpu.memory_space<vmem>>, vector<2x8x32xf32>
    tpu.vector_store %arg4[%c0_222, %c32_223, %c0_224], %192 {strides = array<i32>} : memref<2x64x32xf32, #tpu.memory_space<vmem>>, vector<2x8x32xf32>,
    %c0_225 = arith.constant 0 : index
    %c50 = arith.constant 50 : index
    %c0_226 = arith.constant 0 : index
    %194 = vector.load %arg5[%c0_225, %c50, %c0_226] : memref<2x80x32xf32, #tpu.memory_space<vmem>>, vector<2x8x32xf32>
    %c0_227 = arith.constant 0 : index
    %c40_228 = arith.constant 40 : index
    %c0_229 = arith.constant 0 : index
    %195 = vector.load %arg3[%c0_227, %c40_228, %c0_229] : memref<2x64x32xf32, #tpu.memory_space<vmem>>, vector<2x8x32xf32>
    %196 = arith.addf %194, %195 : vector<2x8x32xf32>
    %c0_230 = arith.constant 0 : index
    %c40_231 = arith.constant 40 : index
    %c0_232 = arith.constant 0 : index
    %197 = vector.load %arg4[%c0_230, %c40_231, %c0_232] : memref<2x64x32xf32, #tpu.memory_space<vmem>>, vector<2x8x32xf32>
    tpu.vector_store %arg4[%c0_230, %c40_231, %c0_232], %196 {strides = array<i32>} : memref<2x64x32xf32, #tpu.memory_space<vmem>>, vector<2x8x32xf32>,
    %c0_233 = arith.constant 0 : index
    %c60 = arith.constant 60 : index
    %c0_234 = arith.constant 0 : index
    %198 = vector.load %arg5[%c0_233, %c60, %c0_234] : memref<2x80x32xf32, #tpu.memory_space<vmem>>, vector<2x8x32xf32>
    %c0_235 = arith.constant 0 : index
    %c48 = arith.constant 48 : index
    %c0_236 = arith.constant 0 : index
    %199 = vector.load %arg3[%c0_235, %c48, %c0_236] : memref<2x64x32xf32, #tpu.memory_space<vmem>>, vector<2x8x32xf32>
    %200 = arith.addf %198, %199 : vector<2x8x32xf32>
    %c0_237 = arith.constant 0 : index
    %c48_238 = arith.constant 48 : index
    %c0_239 = arith.constant 0 : index
    %201 = vector.load %arg4[%c0_237, %c48_238, %c0_239] : memref<2x64x32xf32, #tpu.memory_space<vmem>>, vector<2x8x32xf32>
    tpu.vector_store %arg4[%c0_237, %c48_238, %c0_239], %200 {strides = array<i32>} : memref<2x64x32xf32, #tpu.memory_space<vmem>>, vector<2x8x32xf32>,
    %c0_240 = arith.constant 0 : index
    %c70 = arith.constant 70 : index
    %c0_241 = arith.constant 0 : index
    %202 = vector.load %arg5[%c0_240, %c70, %c0_241] : memref<2x80x32xf32, #tpu.memory_space<vmem>>, vector<2x8x32xf32>
    %c0_242 = arith.constant 0 : index
    %c56 = arith.constant 56 : index
    %c0_243 = arith.constant 0 : index
    %203 = vector.load %arg3[%c0_242, %c56, %c0_243] : memref<2x64x32xf32, #tpu.memory_space<vmem>>, vector<2x8x32xf32>
    %204 = arith.addf %202, %203 : vector<2x8x32xf32>
    %c0_244 = arith.constant 0 : index
    %c56_245 = arith.constant 56 : index
    %c0_246 = arith.constant 0 : index
    %205 = vector.load %arg4[%c0_244, %c56_245, %c0_246] : memref<2x64x32xf32, #tpu.memory_space<vmem>>, vector<2x8x32xf32>
    tpu.vector_store %arg4[%c0_244, %c56_245, %c0_246], %204 {strides = array<i32>} : memref<2x64x32xf32, #tpu.memory_space<vmem>>, vector<2x8x32xf32>,
    return
  }
  func.func @transform_0(%arg0: i32) -> (i32, i32, i32) {
    %c0_i32 = arith.constant 0 : i32
    %c0_i32_0 = arith.constant 0 : i32
    %c0_i32_1 = arith.constant 0 : i32
    %c0_i32_2 = arith.constant 0 : i32
    return %c0_i32, %c0_i32_0, %c0_i32_1 : i32, i32, i32
  }
  func.func @transform_1(%arg0: i32) -> (i32, i32, i32) {
    %c0_i32 = arith.constant 0 : i32
    %c0_i32_0 = arith.constant 0 : i32
    %c0_i32_1 = arith.constant 0 : i32
    return %c0_i32, %c0_i32_0, %arg0 : i32, i32, i32
  }
  func.func @transform_2(%arg0: i32) -> (i32, i32, i32) {
    %c0_i32 = arith.constant 0 : i32
    %c0_i32_0 = arith.constant 0 : i32
    %c0_i32_1 = arith.constant 0 : i32
    return %c0_i32, %c0_i32_0, %arg0 : i32, i32, i32
  }
  func.func @transform_3(%arg0: i32) -> (i32, i32, i32) {
    %c0_i32 = arith.constant 0 : i32
    %c0_i32_0 = arith.constant 0 : i32
    %c0_i32_1 = arith.constant 0 : i32
    return %c0_i32, %c0_i32_0, %arg0 : i32, i32, i32
  }
}

</mosaic_0001>

<llo_original>
// kernel: attention_adaptor_forward.2
$region0: #{attention_adaptor_forward.2}
  #allocation0 [shape = 'u32[]', space=smem, size = 0x4, offset = 0x4, fixed_abs, tag = 'smem constant byte address 0x4 - core index']
  #allocation1 [shape = 'u32[144,128]{1,0:T(1,128)}', space=vmem, size = 0x12000, scoped, tag = 'internal scratch']
  #allocation2 [shape = 'f32[2,80,32]{2,1,0:T(8,128)}', space=vmem, size = 0x14000, scoped, tag = 'scratch operand']
  %s0 = inlined_call_operand.vmem [shape: bf16[2,100,32], index: 0, kind: input, shape index: {}]
  %s1 = inlined_call_operand.vmem [shape: bf16[9,32,32], index: 1, kind: input, shape index: {}]
  %s2 = inlined_call_operand.vmem [shape: bf16[2,64,32], index: 2, kind: output, shape index: {}]
  %s3 = sld [smem:[#allocation0]]
  $region18: #{attention_adaptor_forward.2} parent=0
    _
  %s5 = ssub.s32 1, %s3
  %s6 = scalar_select 0, %s5, %s3
  // Predicated region
  $region2: #{attention_adaptor_forward.2} parent=0 // pred_check
    _
  $region3: #{attention_adaptor_forward.2} parent=0 // pred_check_branch
    %8 = sbr.rel (0) target = $region5
  $region4: #{attention_adaptor_forward.2} parent=0 // pred_region
    _
  $region5: #{attention_adaptor_forward.2} parent=0 // pred_fallthru
    _
  // Predicated region
  $region6: #{attention_adaptor_forward.2} parent=0 // pred_check
    _
  $region7: #{attention_adaptor_forward.2} parent=0 // pred_check_branch
    %10 = sbr.rel (0) target = $region9
  $region8: #{attention_adaptor_forward.2} parent=0 // pred_region
    _
  $region9: #{attention_adaptor_forward.2} parent=0 // pred_fallthru
    _
  %v12 = vld [vmem:[%s1] sm:$0xf]
  %v13 = vld [vmem:[%s1 + $0x4] sm:$0xf]
  %v14 = vld [vmem:[%s1 + $0x8] sm:$0xf]
  %v15 = vld [vmem:[%s1 + $0xc] sm:$0xf]
  %v16 = vld [vmem:[%s0] sm:$0xf]
  %v17 = vld [vmem:[%s0 + $0x4] sm:$0xf]
  %v18 = vld [vmem:[%s0 + $0x8] sm:$0xf]
  %v19 = vld [vmem:[%s0 + $0xc] sm:$0xf]
  %v20 = vld [vmem:[%s0 + $0x10] sm:$0xf]
  %v21 = vld [vmem:[%s0 + $0x14] sm:$0xf]
  %v22 = vld [vmem:[%s0 + $0x18] sm:$0xf]
  %v23 = vld [vmem:[%s0 + $0x1c] sm:$0xf]
  %v24 = vld [vmem:[%s0 + $0x20] sm:$0xf]
  %v25 = vld [vmem:[%s0 + $0x24] sm:$0x7]
  %v36 = vunpack.c.l.b16 %v16
  %v37 = vunpack.c.l.b16 %v17
  %v38 = vunpack.c.l.b16 %v18
  %v39 = vunpack.c.l.b16 %v19
  %v40 = vunpack.c.l.b16 %v20
  %v41 = vunpack.c.l.b16 %v21
  %v42 = vunpack.c.l.b16 %v22
  %v43 = vunpack.c.l.b16 %v23
  %v44 = vunpack.c.l.b16 %v24
  %v45 = vunpack.c.l.b16 %v25
  %v46 = vpack.c.b16 %v37, %v36
  %v47 = vpack.c.b16 %v39, %v38
  %v48 = vpack.c.b16 %v41, %v40
  %v49 = vpack.c.b16 %v43, %v42
  %v50 = vpack.c.b16 %v45, %v44
  %v55 = vunpack.c.l.b16 %v12
  %v56 = vunpack.c.l.b16 %v13
  %v57 = vunpack.c.l.b16 %v14
  %v58 = vunpack.c.l.b16 %v15
  %v59 = vpack.c.b16 %v56, %v55
  %v60 = vpack.c.b16 %v58, %v57
  %vm63 = vcmask 261120
  %v65 = vsel %vm63, %v46, 0
  %v68 = vsel %vm63, %v47, 0
  %v71 = vsel %vm63, %v48, 0
  %v74 = vsel %vm63, %v49, 0
  %v77 = vsel %vm63, %v50, 0
  %79 = vmatprep.subr.bf16.mxu0 0
  %80 = vmatpush1.bf16.msra.mxu0 %v59
  %81 = vmatprep.subr.bf16.mxu0 0
  %82 = vmatpush1.bf16.msra.mxu0 %v60
  %83 = vmatprep.subr.bf16.mxu0 0
  %84 = vmatpush1.bf16.msra.mxu0 0
  %85 = vmatprep.subr.bf16.mxu0 0
  %86 = vmatpush1.bf16.msra.mxu0 0
  %87 = vmatprep.subr.bf16.mxu0 0
  %88 = vmatpush1.bf16.msra.mxu0 0
  %89 = vmatprep.subr.bf16.mxu0 0
  %90 = vmatpush1.bf16.msra.mxu0 0
  %91 = vmatprep.subr.bf16.mxu0 0
  %92 = vmatpush1.bf16.msra.mxu0 0
  %93 = vmatprep.subr.bf16.mxu0 0
  %94 = vmatpush1.bf16.msra.mxu0 0
  %95 = vmatprep.subr.bf16.mxu0 0
  %96 = vmatpush1.bf16.msra.mxu0 0
  %97 = vmatprep.subr.bf16.mxu0 0
  %98 = vmatpush1.bf16.msra.mxu0 0
  %99 = vmatprep.subr.bf16.mxu0 0
  %100 = vmatpush1.bf16.msra.mxu0 0
  %101 = vmatprep.subr.bf16.mxu0 0
  %102 = vmatpush1.bf16.msra.mxu0 0
  %103 = vmatprep.subr.bf16.mxu0 0
  %104 = vmatpush1.bf16.msra.mxu0 0
  %105 = vmatprep.subr.bf16.mxu0 0
  %106 = vmatpush1.bf16.msra.mxu0 0
  %107 = vmatprep.subr.bf16.mxu0 0
  %108 = vmatpush1.bf16.msra.mxu0 0
  %109 = vmatprep.subr.bf16.mxu0 0
  %110 = vmatpush1.bf16.msra.mxu0 0
  %111 = vmatprep.mubr.bf16.mxu0 0
  %112 = vmatmul.mubr.bf16.gmra.mrb[0].mxu0 %v65
  %v113 = vpop.f32.mrb[0].mxu0
  %v114 = vadd.f32 0.0, %v113
  %v115 = vpop.f32.mrb[0].mxu0
  %v116 = vpop.f32.mrb[0].mxu0
  %v117 = vadd.f32 0.0, %v116
  %v118 = vpop.f32.mrb[0].mxu0
  %119 = vmatprep.mubr.bf16.mxu0 0
  %120 = vmatmul.mubr.bf16.gmra.mrb[0].mxu0 %v68
  %v121 = vpop.f32.mrb[0].mxu0
  %v122 = vadd.f32 0.0, %v121
  %v123 = vpop.f32.mrb[0].mxu0
  %v124 = vpop.f32.mrb[0].mxu0
  %v125 = vadd.f32 0.0, %v124
  %v126 = vpop.f32.mrb[0].mxu0
  %127 = vmatprep.mubr.bf16.mxu0 0
  %128 = vmatmul.mubr.bf16.gmra.mrb[0].mxu0 %v71
  %v129 = vpop.f32.mrb[0].mxu0
  %v130 = vadd.f32 0.0, %v129
  %v131 = vpop.f32.mrb[0].mxu0
  %v132 = vpop.f32.mrb[0].mxu0
  %v133 = vadd.f32 0.0, %v132
  %v134 = vpop.f32.mrb[0].mxu0
  %135 = vmatprep.mubr.bf16.mxu0 0
  %136 = vmatmul.mubr.bf16.gmra.mrb[0].mxu0 %v74
  %v137 = vpop.f32.mrb[0].mxu0
  %v138 = vadd.f32 0.0, %v137
  %v139 = vpop.f32.mrb[0].mxu0
  %v140 = vpop.f32.mrb[0].mxu0
  %v141 = vadd.f32 0.0, %v140
  %v142 = vpop.f32.mrb[0].mxu0
  %143 = vmatprep.mubr.bf16.mxu0 0
  %144 = vmatmul.mubr.bf16.gmra.mrb[0].mxu0 %v77
  %v145 = vpop.f32.mrb[0].mxu0
  %v146 = vadd.f32 0.0, %v145
  %v147 = vpop.f32.mrb[0].mxu0
  %v148 = vpop.f32.mrb[0].mxu0
  %v149 = vadd.f32 0.0, %v148
  %v150 = vpop.f32.mrb[0].mxu0
  %151 = vdwg.mxu0
  %152 = vst.msk [vmem:[#allocation2] sm:$0xff] %vm63, %v114
  %153 = vst.msk [vmem:[#allocation2 + $0x8] sm:$0xff] %vm63, %v117
  %154 = vst.msk [vmem:[#allocation2 + $0x10] sm:$0xff] %vm63, %v122
  %155 = vst.msk [vmem:[#allocation2 + $0x18] sm:$0xff] %vm63, %v125
  %156 = vst.msk [vmem:[#allocation2 + $0x20] sm:$0xff] %vm63, %v130
  %157 = vst.msk [vmem:[#allocation2 + $0x28] sm:$0xff] %vm63, %v133
  %158 = vst.msk [vmem:[#allocation2 + $0x30] sm:$0xff] %vm63, %v138
  %159 = vst.msk [vmem:[#allocation2 + $0x38] sm:$0xff] %vm63, %v141
  %160 = vst.msk [vmem:[#allocation2 + $0x40] sm:$0xff] %vm63, %v146
  %vm161 = vcmask 259072
  %162 = vst.msk [vmem:[#allocation2 + $0x48] sm:$0x3f] %vm161, %v149
  %s163 = scalar_lea.vmem %s0, 52
  %v164 = vld [vmem:[%s163] sm:$0xf]
  %v165 = vld [vmem:[%s163 + $0x4] sm:$0xf]
  %v166 = vld [vmem:[%s163 + $0x8] sm:$0xf]
  %v167 = vld [vmem:[%s163 + $0xc] sm:$0xf]
  %v168 = vld [vmem:[%s163 + $0x10] sm:$0xf]
  %v169 = vld [vmem:[%s163 + $0x14] sm:$0xf]
  %v170 = vld [vmem:[%s163 + $0x18] sm:$0xf]
  %v171 = vld [vmem:[%s163 + $0x1c] sm:$0xf]
  %v172 = vld [vmem:[%s163 + $0x20] sm:$0xf]
  %v173 = vld [vmem:[%s163 + $0x24] sm:$0x7]
  %v184 = vunpack.c.l.b16 %v164
  %v185 = vunpack.c.l.b16 %v165
  %v186 = vunpack.c.l.b16 %v166
  %v187 = vunpack.c.l.b16 %v167
  %v188 = vunpack.c.l.b16 %v168
  %v189 = vunpack.c.l.b16 %v169
  %v190 = vunpack.c.l.b16 %v170
  %v191 = vunpack.c.l.b16 %v171
  %v192 = vunpack.c.l.b16 %v172
  %v193 = vunpack.c.l.b16 %v173
  %v194 = vpack.c.b16 %v185, %v184
  %v195 = vpack.c.b16 %v187, %v186
  %v196 = vpack.c.b16 %v189, %v188
  %v197 = vpack.c.b16 %v191, %v190
  %v198 = vpack.c.b16 %v193, %v192
  %v200 = vsel %vm63, %v194, 0
  %v203 = vsel %vm63, %v195, 0
  %v206 = vsel %vm63, %v196, 0
  %v209 = vsel %vm63, %v197, 0
  %v212 = vsel %vm63, %v198, 0
  %214 = vmatprep.subr.bf16.mxu0 0
  %215 = vmatpush1.bf16.msra.mxu0 %v59
  %216 = vmatprep.subr.bf16.mxu0 0
  %217 = vmatpush1.bf16.msra.mxu0 %v60
  %218 = vmatprep.subr.bf16.mxu0 0
  %219 = vmatpush1.bf16.msra.mxu0 0
  %220 = vmatprep.subr.bf16.mxu0 0
  %221 = vmatpush1.bf16.msra.mxu0 0
  %222 = vmatprep.subr.bf16.mxu0 0
  %223 = vmatpush1.bf16.msra.mxu0 0
  %224 = vmatprep.subr.bf16.mxu0 0
  %225 = vmatpush1.bf16.msra.mxu0 0
  %226 = vmatprep.subr.bf16.mxu0 0
  %227 = vmatpush1.bf16.msra.mxu0 0
  %228 = vmatprep.subr.bf16.mxu0 0
  %229 = vmatpush1.bf16.msra.mxu0 0
  %230 = vmatprep.subr.bf16.mxu0 0
  %231 = vmatpush1.bf16.msra.mxu0 0
  %232 = vmatprep.subr.bf16.mxu0 0
  %233 = vmatpush1.bf16.msra.mxu0 0
  %234 = vmatprep.subr.bf16.mxu0 0
  %235 = vmatpush1.bf16.msra.mxu0 0
  %236 = vmatprep.subr.bf16.mxu0 0
  %237 = vmatpush1.bf16.msra.mxu0 0
  %238 = vmatprep.subr.bf16.mxu0 0
  %239 = vmatpush1.bf16.msra.mxu0 0
  %240 = vmatprep.subr.bf16.mxu0 0
  %241 = vmatpush1.bf16.msra.mxu0 0
  %242 = vmatprep.subr.bf16.mxu0 0
  %243 = vmatpush1.bf16.msra.mxu0 0
  %244 = vmatprep.subr.bf16.mxu0 0
  %245 = vmatpush1.bf16.msra.mxu0 0
  %246 = vmatprep.mubr.bf16.mxu0 0
  %247 = vmatmul.mubr.bf16.gmra.mrb[0].mxu0 %v200
  %v248 = vpop.f32.mrb[0].mxu0
  %v249 = vadd.f32 0.0, %v248
  %v250 = vpop.f32.mrb[0].mxu0
  %v251 = vpop.f32.mrb[0].mxu0
  %v252 = vadd.f32 0.0, %v251
  %v253 = vpop.f32.mrb[0].mxu0
  %254 = vmatprep.mubr.bf16.mxu0 0
  %255 = vmatmul.mubr.bf16.gmra.mrb[0].mxu0 %v203
  %v256 = vpop.f32.mrb[0].mxu0
  %v257 = vadd.f32 0.0, %v256
  %v258 = vpop.f32.mrb[0].mxu0
  %v259 = vpop.f32.mrb[0].mxu0
  %v260 = vadd.f32 0.0, %v259
  %v261 = vpop.f32.mrb[0].mxu0
  %262 = vmatprep.mubr.bf16.mxu0 0
  %263 = vmatmul.mubr.bf16.gmra.mrb[0].mxu0 %v206
  %v264 = vpop.f32.mrb[0].mxu0
  %v265 = vadd.f32 0.0, %v264
  %v266 = vpop.f32.mrb[0].mxu0
  %v267 = vpop.f32.mrb[0].mxu0
  %v268 = vadd.f32 0.0, %v267
  %v269 = vpop.f32.mrb[0].mxu0
  %270 = vmatprep.mubr.bf16.mxu0 0
  %271 = vmatmul.mubr.bf16.gmra.mrb[0].mxu0 %v209
  %v272 = vpop.f32.mrb[0].mxu0
  %v273 = vadd.f32 0.0, %v272
  %v274 = vpop.f32.mrb[0].mxu0
  %v275 = vpop.f32.mrb[0].mxu0
  %v276 = vadd.f32 0.0, %v275
  %v277 = vpop.f32.mrb[0].mxu0
  %278 = vmatprep.mubr.bf16.mxu0 0
  %279 = vmatmul.mubr.bf16.gmra.mrb[0].mxu0 %v212
  %v280 = vpop.f32.mrb[0].mxu0
  %v281 = vadd.f32 0.0, %v280
  %v282 = vpop.f32.mrb[0].mxu0
  %v283 = vpop.f32.mrb[0].mxu0
  %v284 = vadd.f32 0.0, %v283
  %v285 = vpop.f32.mrb[0].mxu0
  %286 = vdwg.mxu0
  %s287 = scalar_lea.vmem [#allocation2], 80
  %288 = vst.msk [vmem:[%s287] sm:$0xff] %vm63, %v249
  %289 = vst.msk [vmem:[%s287 + $0x8] sm:$0xff] %vm63, %v252
  %290 = vst.msk [vmem:[%s287 + $0x10] sm:$0xff] %vm63, %v257
  %291 = vst.msk [vmem:[%s287 + $0x18] sm:$0xff] %vm63, %v260
  %292 = vst.msk [vmem:[%s287 + $0x20] sm:$0xff] %vm63, %v265
  %293 = vst.msk [vmem:[%s287 + $0x28] sm:$0xff] %vm63, %v268
  %294 = vst.msk [vmem:[%s287 + $0x30] sm:$0xff] %vm63, %v273
  %295 = vst.msk [vmem:[%s287 + $0x38] sm:$0xff] %vm63, %v276
  %296 = vst.msk [vmem:[%s287 + $0x40] sm:$0xff] %vm63, %v281
  %297 = vst.msk [vmem:[%s287 + $0x48] sm:$0x3f] %vm161, %v284
  %s298 = scalar_lea.vmem %s1, 16
  %v299 = vld [vmem:[%s298] sm:$0xf]
  %v300 = vld [vmem:[%s298 + $0x4] sm:$0xf]
  %v301 = vld [vmem:[%s298 + $0x8] sm:$0xf]
  %v302 = vld [vmem:[%s298 + $0xc] sm:$0xf]
  %v303 = vld [vmem:[%s0] sm:$0xf]
  %v304 = vld [vmem:[%s0 + $0x4] sm:$0xf]
  %v305 = vld [vmem:[%s0 + $0x8] sm:$0xf]
  %v306 = vld [vmem:[%s0 + $0xc] sm:$0xf]
  %v307 = vld [vmem:[%s0 + $0x10] sm:$0xf]
  %v308 = vld [vmem:[%s0 + $0x14] sm:$0xf]
  %v309 = vld [vmem:[%s0 + $0x18] sm:$0xf]
  %v310 = vld [vmem:[%s0 + $0x1c] sm:$0xf]
  %v311 = vld [vmem:[%s0 + $0x20] sm:$0xf]
  %v312 = vld [vmem:[%s0 + $0x24] sm:$0xf]
  %v323 = vunpack.c.l.b16 %v303
  %v324 = vunpack.c.l.b16 %v304
  %v325 = vunpack.c.l.b16 %v305
  %v326 = vunpack.c.l.b16 %v306
  %v327 = vunpack.c.l.b16 %v307
  %v328 = vunpack.c.l.b16 %v308
  %v329 = vunpack.c.l.b16 %v309
  %v330 = vunpack.c.l.b16 %v310
  %v331 = vunpack.c.l.b16 %v311
  %v332 = vunpack.c.l.b16 %v312
  %v333 = vpack.c.b16 %v324, %v323
  %v334 = vpack.c.b16 %v326, %v325
  %v335 = vpack.c.b16 %v328, %v327
  %v336 = vpack.c.b16 %v330, %v329
  %v337 = vpack.c.b16 %v332, %v331
  %vm338 = vsmask.f32 7424
  %v340 = vshrl.u32 %v333, 16
  %v342 = vshll.u32 %v333, 16
  %v344 = vrot.slane %v342, 1
  %v345 = vor.u32 %v340, %v344
  %v347 = vshll.u32 %v334, 16
  %v349 = vrot.slane %v347, 1
  %v350 = vsel %vm338, %v345, %v349
  %v351 = vshrl.u32 %v334, 16
  %v353 = vor.u32 %v351, %v349
  %v355 = vshll.u32 %v335, 16
  %v357 = vrot.slane %v355, 1
  %v358 = vsel %vm338, %v353, %v357
  %v359 = vshrl.u32 %v335, 16
  %v361 = vor.u32 %v359, %v357
  %v363 = vshll.u32 %v336, 16
  %v365 = vrot.slane %v363, 1
  %v366 = vsel %vm338, %v361, %v365
  %v367 = vshrl.u32 %v336, 16
  %v369 = vor.u32 %v367, %v365
  %v371 = vshll.u32 %v337, 16
  %v373 = vrot.slane %v371, 1
  %v374 = vsel %vm338, %v369, %v373
  %v375 = vshrl.u32 %v337, 16
  %v377 = vor.u32 %v375, %v373
  %v382 = vunpack.c.l.b16 %v299
  %v383 = vunpack.c.l.b16 %v300
  %v384 = vunpack.c.l.b16 %v301
  %v385 = vunpack.c.l.b16 %v302
  %v386 = vpack.c.b16 %v383, %v382
  %v387 = vpack.c.b16 %v385, %v384
  %v391 = vsel %vm63, %v350, 0
  %v394 = vsel %vm63, %v358, 0
  %v397 = vsel %vm63, %v366, 0
  %v400 = vsel %vm63, %v374, 0
  %v403 = vsel %vm63, %v377, 0
  %405 = vmatprep.subr.bf16.mxu0 0
  %406 = vmatpush1.bf16.msra.mxu0 %v386
  %407 = vmatprep.subr.bf16.mxu0 0
  %408 = vmatpush1.bf16.msra.mxu0 %v387
  %409 = vmatprep.subr.bf16.mxu0 0
  %410 = vmatpush1.bf16.msra.mxu0 0
  %411 = vmatprep.subr.bf16.mxu0 0
  %412 = vmatpush1.bf16.msra.mxu0 0
  %413 = vmatprep.subr.bf16.mxu0 0
  %414 = vmatpush1.bf16.msra.mxu0 0
  %415 = vmatprep.subr.bf16.mxu0 0
  %416 = vmatpush1.bf16.msra.mxu0 0
  %417 = vmatprep.subr.bf16.mxu0 0
  %418 = vmatpush1.bf16.msra.mxu0 0
  %419 = vmatprep.subr.bf16.mxu0 0
  %420 = vmatpush1.bf16.msra.mxu0 0
  %421 = vmatprep.subr.bf16.mxu0 0
  %422 = vmatpush1.bf16.msra.mxu0 0
  %423 = vmatprep.subr.bf16.mxu0 0
  %424 = vmatpush1.bf16.msra.mxu0 0
  %425 = vmatprep.subr.bf16.mxu0 0
  %426 = vmatpush1.bf16.msra.mxu0 0
  %427 = vmatprep.subr.bf16.mxu0 0
  %428 = vmatpush1.bf16.msra.mxu0 0
  %429 = vmatprep.subr.bf16.mxu0 0
  %430 = vmatpush1.bf16.msra.mxu0 0
  %431 = vmatprep.subr.bf16.mxu0 0
  %432 = vmatpush1.bf16.msra.mxu0 0
  %433 = vmatprep.subr.bf16.mxu0 0
  %434 = vmatpush1.bf16.msra.mxu0 0
  %435 = vmatprep.subr.bf16.mxu0 0
  %436 = vmatpush1.bf16.msra.mxu0 0
  %437 = vmatprep.mubr.bf16.mxu0 0
  %438 = vmatmul.mubr.bf16.gmra.mrb[0].mxu0 %v391
  %v439 = vpop.f32.mrb[0].mxu0
  %v440 = vadd.f32 0.0, %v439
  %v441 = vpop.f32.mrb[0].mxu0
  %v442 = vpop.f32.mrb[0].mxu0
  %v443 = vadd.f32 0.0, %v442
  %v444 = vpop.f32.mrb[0].mxu0
  %445 = vmatprep.mubr.bf16.mxu0 0
  %446 = vmatmul.mubr.bf16.gmra.mrb[0].mxu0 %v394
  %v447 = vpop.f32.mrb[0].mxu0
  %v448 = vadd.f32 0.0, %v447
  %v449 = vpop.f32.mrb[0].mxu0
  %v450 = vpop.f32.mrb[0].mxu0
  %v451 = vadd.f32 0.0, %v450
  %v452 = vpop.f32.mrb[0].mxu0
  %453 = vmatprep.mubr.bf16.mxu0 0
  %454 = vmatmul.mubr.bf16.gmra.mrb[0].mxu0 %v397
  %v455 = vpop.f32.mrb[0].mxu0
  %v456 = vadd.f32 0.0, %v455
  %v457 = vpop.f32.mrb[0].mxu0
  %v458 = vpop.f32.mrb[0].mxu0
  %v459 = vadd.f32 0.0, %v458
  %v460 = vpop.f32.mrb[0].mxu0
  %461 = vmatprep.mubr.bf16.mxu0 0
  %462 = vmatmul.mubr.bf16.gmra.mrb[0].mxu0 %v400
  %v463 = vpop.f32.mrb[0].mxu0
  %v464 = vadd.f32 0.0, %v463
  %v465 = vpop.f32.mrb[0].mxu0
  %v466 = vpop.f32.mrb[0].mxu0
  %v467 = vadd.f32 0.0, %v466
  %v468 = vpop.f32.mrb[0].mxu0
  %469 = vmatprep.mubr.bf16.mxu0 0
  %470 = vmatmul.mubr.bf16.gmra.mrb[0].mxu0 %v403
  %v471 = vpop.f32.mrb[0].mxu0
  %v472 = vadd.f32 0.0, %v471
  %v473 = vpop.f32.mrb[0].mxu0
  %v474 = vpop.f32.mrb[0].mxu0
  %v475 = vadd.f32 0.0, %v474
  %v476 = vpop.f32.mrb[0].mxu0
  %477 = vdwg.mxu0
  %v478 = vld [vmem:[#allocation2] sm:$0xff]
  %v479 = vld [vmem:[#allocation2 + $0x8] sm:$0xff]
  %v480 = vld [vmem:[#allocation2 + $0x10] sm:$0xff]
  %v481 = vld [vmem:[#allocation2 + $0x18] sm:$0xff]
  %v482 = vld [vmem:[#allocation2 + $0x20] sm:$0xff]
  %v483 = vld [vmem:[#allocation2 + $0x28] sm:$0xff]
  %v484 = vld [vmem:[#allocation2 + $0x30] sm:$0xff]
  %v485 = vld [vmem:[#allocation2 + $0x38] sm:$0xff]
  %v486 = vld [vmem:[#allocation2 + $0x40] sm:$0xff]
  %v487 = vld [vmem:[#allocation2 + $0x48] sm:$0x3f]
  %v488 = vadd.f32 %v478, %v440
  %v489 = vadd.f32 %v479, %v443
  %v490 = vadd.f32 %v480, %v448
  %v491 = vadd.f32 %v481, %v451
  %v492 = vadd.f32 %v482, %v456
  %v493 = vadd.f32 %v483, %v459
  %v494 = vadd.f32 %v484, %v464
  %v495 = vadd.f32 %v485, %v467
  %v496 = vadd.f32 %v486, %v472
  %v497 = vadd.f32 %v487, %v475
  %498 = vst.msk [vmem:[#allocation2] sm:$0xff] %vm63, %v488
  %499 = vst.msk [vmem:[#allocation2 + $0x8] sm:$0xff] %vm63, %v489
  %500 = vst.msk [vmem:[#allocation2 + $0x10] sm:$0xff] %vm63, %v490
  %501 = vst.msk [vmem:[#allocation2 + $0x18] sm:$0xff] %vm63, %v491
  %502 = vst.msk [vmem:[#allocation2 + $0x20] sm:$0xff] %vm63, %v492
  %503 = vst.msk [vmem:[#allocation2 + $0x28] sm:$0xff] %vm63, %v493
  %504 = vst.msk [vmem:[#allocation2 + $0x30] sm:$0xff] %vm63, %v494
  %505 = vst.msk [vmem:[#allocation2 + $0x38] sm:$0xff] %vm63, %v495
  %506 = vst.msk [vmem:[#allocation2 + $0x40] sm:$0xff] %vm63, %v496
  %507 = vst.msk [vmem:[#allocation2 + $0x48] sm:$0x3f] %vm161, %v497
  %v508 = vld [vmem:[%s163] sm:$0xf]
  %v509 = vld [vmem:[%s163 + $0x4] sm:$0xf]
  %v510 = vld [vmem:[%s163 + $0x8] sm:$0xf]
  %v511 = vld [vmem:[%s163 + $0xc] sm:$0xf]
  %v512 = vld [vmem:[%s163 + $0x10] sm:$0xf]
  %v513 = vld [vmem:[%s163 + $0x14] sm:$0xf]
  %v514 = vld [vmem:[%s163 + $0x18] sm:$0xf]
  %v515 = vld [vmem:[%s163 + $0x1c] sm:$0xf]
  %v516 = vld [vmem:[%s163 + $0x20] sm:$0xf]
  %v517 = vld [vmem:[%s163 + $0x24] sm:$0xf]
  %v528 = vunpack.c.l.b16 %v508
  %v529 = vunpack.c.l.b16 %v509
  %v530 = vunpack.c.l.b16 %v510
  %v531 = vunpack.c.l.b16 %v511
  %v532 = vunpack.c.l.b16 %v512
  %v533 = vunpack.c.l.b16 %v513
  %v534 = vunpack.c.l.b16 %v514
  %v535 = vunpack.c.l.b16 %v515
  %v536 = vunpack.c.l.b16 %v516
  %v537 = vunpack.c.l.b16 %v517
  %v538 = vpack.c.b16 %v529, %v528
  %v539 = vpack.c.b16 %v531, %v530
  %v540 = vpack.c.b16 %v533, %v532
  %v541 = vpack.c.b16 %v535, %v534
  %v542 = vpack.c.b16 %v537, %v536
  %v544 = vshrl.u32 %v538, 16
  %v546 = vshll.u32 %v538, 16
  %v548 = vrot.slane %v546, 1
  %v549 = vor.u32 %v544, %v548
  %v551 = vshll.u32 %v539, 16
  %v553 = vrot.slane %v551, 1
  %v554 = vsel %vm338, %v549, %v553
  %v555 = vshrl.u32 %v539, 16
  %v557 = vor.u32 %v555, %v553
  %v559 = vshll.u32 %v540, 16
  %v561 = vrot.slane %v559, 1
  %v562 = vsel %vm338, %v557, %v561
  %v563 = vshrl.u32 %v540, 16
  %v565 = vor.u32 %v563, %v561
  %v567 = vshll.u32 %v541, 16
  %v569 = vrot.slane %v567, 1
  %v570 = vsel %vm338, %v565, %v569
  %v571 = vshrl.u32 %v541, 16
  %v573 = vor.u32 %v571, %v569
  %v575 = vshll.u32 %v542, 16
  %v577 = vrot.slane %v575, 1
  %v578 = vsel %vm338, %v573, %v577
  %v579 = vshrl.u32 %v542, 16
  %v581 = vor.u32 %v579, %v577
  %v583 = vsel %vm63, %v554, 0
  %v586 = vsel %vm63, %v562, 0
  %v589 = vsel %vm63, %v570, 0
  %v592 = vsel %vm63, %v578, 0
  %v595 = vsel %vm63, %v581, 0
  %597 = vmatprep.subr.bf16.mxu0 0
  %598 = vmatpush1.bf16.msra.mxu0 %v386
  %599 = vmatprep.subr.bf16.mxu0 0
  %600 = vmatpush1.bf16.msra.mxu0 %v387
  %601 = vmatprep.subr.bf16.mxu0 0
  %602 = vmatpush1.bf16.msra.mxu0 0
  %603 = vmatprep.subr.bf16.mxu0 0
  %604 = vmatpush1.bf16.msra.mxu0 0
  %605 = vmatprep.subr.bf16.mxu0 0
  %606 = vmatpush1.bf16.msra.mxu0 0
  %607 = vmatprep.subr.bf16.mxu0 0
  %608 = vmatpush1.bf16.msra.mxu0 0
  %609 = vmatprep.subr.bf16.mxu0 0
  %610 = vmatpush1.bf16.msra.mxu0 0
  %611 = vmatprep.subr.bf16.mxu0 0
  %612 = vmatpush1.bf16.msra.mxu0 0
  %613 = vmatprep.subr.bf16.mxu0 0
  %614 = vmatpush1.bf16.msra.mxu0 0
  %615 = vmatprep.subr.bf16.mxu0 0
  %616 = vmatpush1.bf16.msra.mxu0 0
  %617 = vmatprep.subr.bf16.mxu0 0
  %618 = vmatpush1.bf16.msra.mxu0 0
  %619 = vmatprep.subr.bf16.mxu0 0
  %620 = vmatpush1.bf16.msra.mxu0 0
  %621 = vmatprep.subr.bf16.mxu0 0
  %622 = vmatpush1.bf16.msra.mxu0 0
  %623 = vmatprep.subr.bf16.mxu0 0
  %624 = vmatpush1.bf16.msra.mxu0 0
  %625 = vmatprep.subr.bf16.mxu0 0
  %626 = vmatpush1.bf16.msra.mxu0 0
  %627 = vmatprep.subr.bf16.mxu0 0
  %628 = vmatpush1.bf16.msra.mxu0 0
  %629 = vmatprep.mubr.bf16.mxu0 0
  %630 = vmatmul.mubr.bf16.gmra.mrb[0].mxu0 %v583
  %v631 = vpop.f32.mrb[0].mxu0
  %v632 = vadd.f32 0.0, %v631
  %v633 = vpop.f32.mrb[0].mxu0
  %v634 = vpop.f32.mrb[0].mxu0
  %v635 = vadd.f32 0.0, %v634
  %v636 = vpop.f32.mrb[0].mxu0
  %637 = vmatprep.mubr.bf16.mxu0 0
  %638 = vmatmul.mubr.bf16.gmra.mrb[0].mxu0 %v586
  %v639 = vpop.f32.mrb[0].mxu0
  %v640 = vadd.f32 0.0, %v639
  %v641 = vpop.f32.mrb[0].mxu0
  %v642 = vpop.f32.mrb[0].mxu0
  %v643 = vadd.f32 0.0, %v642
  %v644 = vpop.f32.mrb[0].mxu0
  %645 = vmatprep.mubr.bf16.mxu0 0
  %646 = vmatmul.mubr.bf16.gmra.mrb[0].mxu0 %v589
  %v647 = vpop.f32.mrb[0].mxu0
  %v648 = vadd.f32 0.0, %v647
  %v649 = vpop.f32.mrb[0].mxu0
  %v650 = vpop.f32.mrb[0].mxu0
  %v651 = vadd.f32 0.0, %v650
  %v652 = vpop.f32.mrb[0].mxu0
  %653 = vmatprep.mubr.bf16.mxu0 0
  %654 = vmatmul.mubr.bf16.gmra.mrb[0].mxu0 %v592
  %v655 = vpop.f32.mrb[0].mxu0
  %v656 = vadd.f32 0.0, %v655
  %v657 = vpop.f32.mrb[0].mxu0
  %v658 = vpop.f32.mrb[0].mxu0
  %v659 = vadd.f32 0.0, %v658
  %v660 = vpop.f32.mrb[0].mxu0
  %661 = vmatprep.mubr.bf16.mxu0 0
  %662 = vmatmul.mubr.bf16.gmra.mrb[0].mxu0 %v595
  %v663 = vpop.f32.mrb[0].mxu0
  %v664 = vadd.f32 0.0, %v663
  %v665 = vpop.f32.mrb[0].mxu0
  %v666 = vpop.f32.mrb[0].mxu0
  %v667 = vadd.f32 0.0, %v666
  %v668 = vpop.f32.mrb[0].mxu0
  %669 = vdwg.mxu0
  %v670 = vld [vmem:[%s287] sm:$0xff]
  %v671 = vld [vmem:[%s287 + $0x8] sm:$0xff]
  %v672 = vld [vmem:[%s287 + $0x10] sm:$0xff]
  %v673 = vld [vmem:[%s287 + $0x18] sm:$0xff]
  %v674 = vld [vmem:[%s287 + $0x20] sm:$0xff]
  %v675 = vld [vmem:[%s287 + $0x28] sm:$0xff]
  %v676 = vld [vmem:[%s287 + $0x30] sm:$0xff]
  %v677 = vld [vmem:[%s287 + $0x38] sm:$0xff]
  %v678 = vld [vmem:[%s287 + $0x40] sm:$0xff]
  %v679 = vld [vmem:[%s287 + $0x48] sm:$0x3f]
  %v680 = vadd.f32 %v670, %v632
  %v681 = vadd.f32 %v671, %v635
  %v682 = vadd.f32 %v672, %v640
  %v683 = vadd.f32 %v673, %v643
  %v684 = vadd.f32 %v674, %v648
  %v685 = vadd.f32 %v675, %v651
  %v686 = vadd.f32 %v676, %v656
  %v687 = vadd.f32 %v677, %v659
  %v688 = vadd.f32 %v678, %v664
  %v689 = vadd.f32 %v679, %v667
  %690 = vst.msk [vmem:[%s287] sm:$0xff] %vm63, %v680
  %691 = vst.msk [vmem:[%s287 + $0x8] sm:$0xff] %vm63, %v681
  %692 = vst.msk [vmem:[%s287 + $0x10] sm:$0xff] %vm63, %v682
  %693 = vst.msk [vmem:[%s287 + $0x18] sm:$0xff] %vm63, %v683
  %694 = vst.msk [vmem:[%s287 + $0x20] sm:$0xff] %vm63, %v684
  %695 = vst.msk [vmem:[%s287 + $0x28] sm:$0xff] %vm63, %v685
  %696 = vst.msk [vmem:[%s287 + $0x30] sm:$0xff] %vm63, %v686
  %697 = vst.msk [vmem:[%s287 + $0x38] sm:$0xff] %vm63, %v687
  %698 = vst.msk [vmem:[%s287 + $0x40] sm:$0xff] %vm63, %v688
  %699 = vst.msk [vmem:[%s287 + $0x48] sm:$0x3f] %vm161, %v689
  %s700 = scalar_lea.vmem %s1, 32
  %v701 = vld [vmem:[%s700] sm:$0xf]
  %v702 = vld [vmem:[%s700 + $0x4] sm:$0xf]
  %v703 = vld [vmem:[%s700 + $0x8] sm:$0xf]
  %v704 = vld [vmem:[%s700 + $0xc] sm:$0xf]
  %v705 = vld [vmem:[%s0] sm:$0xe]
  %v706 = vld [vmem:[%s0 + $0x4] sm:$0xf]
  %v707 = vld [vmem:[%s0 + $0x8] sm:$0xf]
  %v708 = vld [vmem:[%s0 + $0xc] sm:$0xf]
  %v709 = vld [vmem:[%s0 + $0x10] sm:$0xf]
  %v710 = vld [vmem:[%s0 + $0x14] sm:$0xf]
  %v711 = vld [vmem:[%s0 + $0x18] sm:$0xf]
  %v712 = vld [vmem:[%s0 + $0x1c] sm:$0xf]
  %v713 = vld [vmem:[%s0 + $0x20] sm:$0xf]
  %v714 = vld [vmem:[%s0 + $0x24] sm:$0xf]
  %v725 = vunpack.c.l.b16 %v705
  %v726 = vunpack.c.l.b16 %v706
  %v727 = vunpack.c.l.b16 %v707
  %v728 = vunpack.c.l.b16 %v708
  %v729 = vunpack.c.l.b16 %v709
  %v730 = vunpack.c.l.b16 %v710
  %v731 = vunpack.c.l.b16 %v711
  %v732 = vunpack.c.l.b16 %v712
  %v733 = vunpack.c.l.b16 %v713
  %v734 = vunpack.c.l.b16 %v714
  %v735 = vpack.c.b16 %v726, %v725
  %v736 = vpack.c.b16 %v728, %v727
  %v737 = vpack.c.b16 %v730, %v729
  %v738 = vpack.c.b16 %v732, %v731
  %v739 = vpack.c.b16 %v734, %v733
  %vm740 = vcmask 1046528
  %v741 = vrot.slane %v735, 1
  %v742 = vrot.slane %v736, 1
  %v743 = vsel %vm740, %v741, %v742
  %v744 = vrot.slane %v737, 1
  %v745 = vsel %vm740, %v742, %v744
  %v746 = vrot.slane %v738, 1
  %v747 = vsel %vm740, %v744, %v746
  %v748 = vrot.slane %v739, 1
  %v749 = vsel %vm740, %v746, %v748
  %v754 = vunpack.c.l.b16 %v701
  %v755 = vunpack.c.l.b16 %v702
  %v756 = vunpack.c.l.b16 %v703
  %v757 = vunpack.c.l.b16 %v704
  %v758 = vpack.c.b16 %v755, %v754
  %v759 = vpack.c.b16 %v757, %v756
  %v763 = vsel %vm63, %v743, 0
  %v766 = vsel %vm63, %v745, 0
  %v769 = vsel %vm63, %v747, 0
  %v772 = vsel %vm63, %v749, 0
  %v775 = vsel %vm63, %v748, 0
  %777 = vmatprep.subr.bf16.mxu0 0
  %778 = vmatpush1.bf16.msra.mxu0 %v758
  %779 = vmatprep.subr.bf16.mxu0 0
  %780 = vmatpush1.bf16.msra.mxu0 %v759
  %781 = vmatprep.subr.bf16.mxu0 0
  %782 = vmatpush1.bf16.msra.mxu0 0
  %783 = vmatprep.subr.bf16.mxu0 0
  %784 = vmatpush1.bf16.msra.mxu0 0
  %785 = vmatprep.subr.bf16.mxu0 0
  %786 = vmatpush1.bf16.msra.mxu0 0
  %787 = vmatprep.subr.bf16.mxu0 0
  %788 = vmatpush1.bf16.msra.mxu0 0
  %789 = vmatprep.subr.bf16.mxu0 0
  %790 = vmatpush1.bf16.msra.mxu0 0
  %791 = vmatprep.subr.bf16.mxu0 0
  %792 = vmatpush1.bf16.msra.mxu0 0
  %793 = vmatprep.subr.bf16.mxu0 0
  %794 = vmatpush1.bf16.msra.mxu0 0
  %795 = vmatprep.subr.bf16.mxu0 0
  %796 = vmatpush1.bf16.msra.mxu0 0
  %797 = vmatprep.subr.bf16.mxu0 0
  %798 = vmatpush1.bf16.msra.mxu0 0
  %799 = vmatprep.subr.bf16.mxu0 0
  %800 = vmatpush1.bf16.msra.mxu0 0
  %801 = vmatprep.subr.bf16.mxu0 0
  %802 = vmatpush1.bf16.msra.mxu0 0
  %803 = vmatprep.subr.bf16.mxu0 0
  %804 = vmatpush1.bf16.msra.mxu0 0
  %805 = vmatprep.subr.bf16.mxu0 0
  %806 = vmatpush1.bf16.msra.mxu0 0
  %807 = vmatprep.subr.bf16.mxu0 0
  %808 = vmatpush1.bf16.msra.mxu0 0
  %809 = vmatprep.mubr.bf16.mxu0 0
  %810 = vmatmul.mubr.bf16.gmra.mrb[0].mxu0 %v763
  %v811 = vpop.f32.mrb[0].mxu0
  %v812 = vadd.f32 0.0, %v811
  %v813 = vpop.f32.mrb[0].mxu0
  %v814 = vpop.f32.mrb[0].mxu0
  %v815 = vadd.f32 0.0, %v814
  %v816 = vpop.f32.mrb[0].mxu0
  %817 = vmatprep.mubr.bf16.mxu0 0
  %818 = vmatmul.mubr.bf16.gmra.mrb[0].mxu0 %v766
  %v819 = vpop.f32.mrb[0].mxu0
  %v820 = vadd.f32 0.0, %v819
  %v821 = vpop.f32.mrb[0].mxu0
  %v822 = vpop.f32.mrb[0].mxu0
  %v823 = vadd.f32 0.0, %v822
  %v824 = vpop.f32.mrb[0].mxu0
  %825 = vmatprep.mubr.bf16.mxu0 0
  %826 = vmatmul.mubr.bf16.gmra.mrb[0].mxu0 %v769
  %v827 = vpop.f32.mrb[0].mxu0
  %v828 = vadd.f32 0.0, %v827
  %v829 = vpop.f32.mrb[0].mxu0
  %v830 = vpop.f32.mrb[0].mxu0
  %v831 = vadd.f32 0.0, %v830
  %v832 = vpop.f32.mrb[0].mxu0
  %833 = vmatprep.mubr.bf16.mxu0 0
  %834 = vmatmul.mubr.bf16.gmra.mrb[0].mxu0 %v772
  %v835 = vpop.f32.mrb[0].mxu0
  %v836 = vadd.f32 0.0, %v835
  %v837 = vpop.f32.mrb[0].mxu0
  %v838 = vpop.f32.mrb[0].mxu0
  %v839 = vadd.f32 0.0, %v838
  %v840 = vpop.f32.mrb[0].mxu0
  %841 = vmatprep.mubr.bf16.mxu0 0
  %842 = vmatmul.mubr.bf16.gmra.mrb[0].mxu0 %v775
  %v843 = vpop.f32.mrb[0].mxu0
  %v844 = vadd.f32 0.0, %v843
  %v845 = vpop.f32.mrb[0].mxu0
  %v846 = vpop.f32.mrb[0].mxu0
  %v847 = vadd.f32 0.0, %v846
  %v848 = vpop.f32.mrb[0].mxu0
  %849 = vdwg.mxu0
  %v850 = vld [vmem:[#allocation2] sm:$0xff]
  %v851 = vld [vmem:[#allocation2 + $0x8] sm:$0xff]
  %v852 = vld [vmem:[#allocation2 + $0x10] sm:$0xff]
  %v853 = vld [vmem:[#allocation2 + $0x18] sm:$0xff]
  %v854 = vld [vmem:[#allocation2 + $0x20] sm:$0xff]
  %v855 = vld [vmem:[#allocation2 + $0x28] sm:$0xff]
  %v856 = vld [vmem:[#allocation2 + $0x30] sm:$0xff]
  %v857 = vld [vmem:[#allocation2 + $0x38] sm:$0xff]
  %v858 = vld [vmem:[#allocation2 + $0x40] sm:$0xff]
  %v859 = vld [vmem:[#allocation2 + $0x48] sm:$0x3f]
  %v860 = vadd.f32 %v850, %v812
  %v861 = vadd.f32 %v851, %v815
  %v862 = vadd.f32 %v852, %v820
  %v863 = vadd.f32 %v853, %v823
  %v864 = vadd.f32 %v854, %v828
  %v865 = vadd.f32 %v855, %v831
  %v866 = vadd.f32 %v856, %v836
  %v867 = vadd.f32 %v857, %v839
  %v868 = vadd.f32 %v858, %v844
  %v869 = vadd.f32 %v859, %v847
  %870 = vst.msk [vmem:[#allocation2] sm:$0xff] %vm63, %v860
  %871 = vst.msk [vmem:[#allocation2 + $0x8] sm:$0xff] %vm63, %v861
  %872 = vst.msk [vmem:[#allocation2 + $0x10] sm:$0xff] %vm63, %v862
  %873 = vst.msk [vmem:[#allocation2 + $0x18] sm:$0xff] %vm63, %v863
  %874 = vst.msk [vmem:[#allocation2 + $0x20] sm:$0xff] %vm63, %v864
  %875 = vst.msk [vmem:[#allocation2 + $0x28] sm:$0xff] %vm63, %v865
  %876 = vst.msk [vmem:[#allocation2 + $0x30] sm:$0xff] %vm63, %v866
  %877 = vst.msk [vmem:[#allocation2 + $0x38] sm:$0xff] %vm63, %v867
  %878 = vst.msk [vmem:[#allocation2 + $0x40] sm:$0xff] %vm63, %v868
  %879 = vst.msk [vmem:[#allocation2 + $0x48] sm:$0x3f] %vm161, %v869
  %v880 = vld [vmem:[%s163] sm:$0xe]
  %v881 = vld [vmem:[%s163 + $0x4] sm:$0xf]
  %v882 = vld [vmem:[%s163 + $0x8] sm:$0xf]
  %v883 = vld [vmem:[%s163 + $0xc] sm:$0xf]
  %v884 = vld [vmem:[%s163 + $0x10] sm:$0xf]
  %v885 = vld [vmem:[%s163 + $0x14] sm:$0xf]
  %v886 = vld [vmem:[%s163 + $0x18] sm:$0xf]
  %v887 = vld [vmem:[%s163 + $0x1c] sm:$0xf]
  %v888 = vld [vmem:[%s163 + $0x20] sm:$0xf]
  %v889 = vld [vmem:[%s163 + $0x24] sm:$0xf]
  %v900 = vunpack.c.l.b16 %v880
  %v901 = vunpack.c.l.b16 %v881
  %v902 = vunpack.c.l.b16 %v882
  %v903 = vunpack.c.l.b16 %v883
  %v904 = vunpack.c.l.b16 %v884
  %v905 = vunpack.c.l.b16 %v885
  %v906 = vunpack.c.l.b16 %v886
  %v907 = vunpack.c.l.b16 %v887
  %v908 = vunpack.c.l.b16 %v888
  %v909 = vunpack.c.l.b16 %v889
  %v910 = vpack.c.b16 %v901, %v900
  %v911 = vpack.c.b16 %v903, %v902
  %v912 = vpack.c.b16 %v905, %v904
  %v913 = vpack.c.b16 %v907, %v906
  %v914 = vpack.c.b16 %v909, %v908
  %v915 = vrot.slane %v910, 1
  %v916 = vrot.slane %v911, 1
  %v917 = vsel %vm740, %v915, %v916
  %v918 = vrot.slane %v912, 1
  %v919 = vsel %vm740, %v916, %v918
  %v920 = vrot.slane %v913, 1
  %v921 = vsel %vm740, %v918, %v920
  %v922 = vrot.slane %v914, 1
  %v923 = vsel %vm740, %v920, %v922
  %v925 = vsel %vm63, %v917, 0
  %v928 = vsel %vm63, %v919, 0
  %v931 = vsel %vm63, %v921, 0
  %v934 = vsel %vm63, %v923, 0
  %v937 = vsel %vm63, %v922, 0
  %939 = vmatprep.subr.bf16.mxu0 0
  %940 = vmatpush1.bf16.msra.mxu0 %v758
  %941 = vmatprep.subr.bf16.mxu0 0
  %942 = vmatpush1.bf16.msra.mxu0 %v759
  %943 = vmatprep.subr.bf16.mxu0 0
  %944 = vmatpush1.bf16.msra.mxu0 0
  %945 = vmatprep.subr.bf16.mxu0 0
  %946 = vmatpush1.bf16.msra.mxu0 0
  %947 = vmatprep.subr.bf16.mxu0 0
  %948 = vmatpush1.bf16.msra.mxu0 0
  %949 = vmatprep.subr.bf16.mxu0 0
  %950 = vmatpush1.bf16.msra.mxu0 0
  %951 = vmatprep.subr.bf16.mxu0 0
  %952 = vmatpush1.bf16.msra.mxu0 0
  %953 = vmatprep.subr.bf16.mxu0 0
  %954 = vmatpush1.bf16.msra.mxu0 0
  %955 = vmatprep.subr.bf16.mxu0 0
  %956 = vmatpush1.bf16.msra.mxu0 0
  %957 = vmatprep.subr.bf16.mxu0 0
  %958 = vmatpush1.bf16.msra.mxu0 0
  %959 = vmatprep.subr.bf16.mxu0 0
  %960 = vmatpush1.bf16.msra.mxu0 0
  %961 = vmatprep.subr.bf16.mxu0 0
  %962 = vmatpush1.bf16.msra.mxu0 0
  %963 = vmatprep.subr.bf16.mxu0 0
  %964 = vmatpush1.bf16.msra.mxu0 0
  %965 = vmatprep.subr.bf16.mxu0 0
  %966 = vmatpush1.bf16.msra.mxu0 0
  %967 = vmatprep.subr.bf16.mxu0 0
  %968 = vmatpush1.bf16.msra.mxu0 0
  %969 = vmatprep.subr.bf16.mxu0 0
  %970 = vmatpush1.bf16.msra.mxu0 0
  %971 = vmatprep.mubr.bf16.mxu0 0
  %972 = vmatmul.mubr.bf16.gmra.mrb[0].mxu0 %v925
  %v973 = vpop.f32.mrb[0].mxu0
  %v974 = vadd.f32 0.0, %v973
  %v975 = vpop.f32.mrb[0].mxu0
  %v976 = vpop.f32.mrb[0].mxu0
  %v977 = vadd.f32 0.0, %v976
  %v978 = vpop.f32.mrb[0].mxu0
  %979 = vmatprep.mubr.bf16.mxu0 0
  %980 = vmatmul.mubr.bf16.gmra.mrb[0].mxu0 %v928
  %v981 = vpop.f32.mrb[0].mxu0
  %v982 = vadd.f32 0.0, %v981
  %v983 = vpop.f32.mrb[0].mxu0
  %v984 = vpop.f32.mrb[0].mxu0
  %v985 = vadd.f32 0.0, %v984
  %v986 = vpop.f32.mrb[0].mxu0
  %987 = vmatprep.mubr.bf16.mxu0 0
  %988 = vmatmul.mubr.bf16.gmra.mrb[0].mxu0 %v931
  %v989 = vpop.f32.mrb[0].mxu0
  %v990 = vadd.f32 0.0, %v989
  %v991 = vpop.f32.mrb[0].mxu0
  %v992 = vpop.f32.mrb[0].mxu0
  %v993 = vadd.f32 0.0, %v992
  %v994 = vpop.f32.mrb[0].mxu0
  %995 = vmatprep.mubr.bf16.mxu0 0
  %996 = vmatmul.mubr.bf16.gmra.mrb[0].mxu0 %v934
  %v997 = vpop.f32.mrb[0].mxu0
  %v998 = vadd.f32 0.0, %v997
  %v999 = vpop.f32.mrb[0].mxu0
  %v1000 = vpop.f32.mrb[0].mxu0
  %v1001 = vadd.f32 0.0, %v1000
  %v1002 = vpop.f32.mrb[0].mxu0
  %1003 = vmatprep.mubr.bf16.mxu0 0
  %1004 = vmatmul.mubr.bf16.gmra.mrb[0].mxu0 %v937
  %v1005 = vpop.f32.mrb[0].mxu0
  %v1006 = vadd.f32 0.0, %v1005
  %v1007 = vpop.f32.mrb[0].mxu0
  %v1008 = vpop.f32.mrb[0].mxu0
  %v1009 = vadd.f32 0.0, %v1008
  %v1010 = vpop.f32.mrb[0].mxu0
  %1011 = vdwg.mxu0
  %v1012 = vld [vmem:[%s287] sm:$0xff]
  %v1013 = vld [vmem:[%s287 + $0x8] sm:$0xff]
  %v1014 = vld [vmem:[%s287 + $0x10] sm:$0xff]
  %v1015 = vld [vmem:[%s287 + $0x18] sm:$0xff]
  %v1016 = vld [vmem:[%s287 + $0x20] sm:$0xff]
  %v1017 = vld [vmem:[%s287 + $0x28] sm:$0xff]
  %v1018 = vld [vmem:[%s287 + $0x30] sm:$0xff]
  %v1019 = vld [vmem:[%s287 + $0x38] sm:$0xff]
  %v1020 = vld [vmem:[%s287 + $0x40] sm:$0xff]
  %v1021 = vld [vmem:[%s287 + $0x48] sm:$0x3f]
  %v1022 = vadd.f32 %v1012, %v974
  %v1023 = vadd.f32 %v1013, %v977
  %v1024 = vadd.f32 %v1014, %v982
  %v1025 = vadd.f32 %v1015, %v985
  %v1026 = vadd.f32 %v1016, %v990
  %v1027 = vadd.f32 %v1017, %v993
  %v1028 = vadd.f32 %v1018, %v998
  %v1029 = vadd.f32 %v1019, %v1001
  %v1030 = vadd.f32 %v1020, %v1006
  %v1031 = vadd.f32 %v1021, %v1009
  %1032 = vst.msk [vmem:[%s287] sm:$0xff] %vm63, %v1022
  %1033 = vst.msk [vmem:[%s287 + $0x8] sm:$0xff] %vm63, %v1023
  %1034 = vst.msk [vmem:[%s287 + $0x10] sm:$0xff] %vm63, %v1024
  %1035 = vst.msk [vmem:[%s287 + $0x18] sm:$0xff] %vm63, %v1025
  %1036 = vst.msk [vmem:[%s287 + $0x20] sm:$0xff] %vm63, %v1026
  %1037 = vst.msk [vmem:[%s287 + $0x28] sm:$0xff] %vm63, %v1027
  %1038 = vst.msk [vmem:[%s287 + $0x30] sm:$0xff] %vm63, %v1028
  %1039 = vst.msk [vmem:[%s287 + $0x38] sm:$0xff] %vm63, %v1029
  %1040 = vst.msk [vmem:[%s287 + $0x40] sm:$0xff] %vm63, %v1030
  %1041 = vst.msk [vmem:[%s287 + $0x48] sm:$0x3f] %vm161, %v1031
  %s1042 = scalar_lea.vmem %s1, 48
  %v1043 = vld [vmem:[%s1042] sm:$0xf]
  %v1044 = vld [vmem:[%s1042 + $0x4] sm:$0xf]
  %v1045 = vld [vmem:[%s1042 + $0x8] sm:$0xf]
  %v1046 = vld [vmem:[%s1042 + $0xc] sm:$0xf]
  %v1047 = vld [vmem:[%s0 + $0x4] sm:$0xe]
  %v1048 = vld [vmem:[%s0 + $0x8] sm:$0xf]
  %v1049 = vld [vmem:[%s0 + $0xc] sm:$0xf]
  %v1050 = vld [vmem:[%s0 + $0x10] sm:$0xf]
  %v1051 = vld [vmem:[%s0 + $0x14] sm:$0xf]
  %v1052 = vld [vmem:[%s0 + $0x18] sm:$0xf]
  %v1053 = vld [vmem:[%s0 + $0x1c] sm:$0xf]
  %v1054 = vld [vmem:[%s0 + $0x20] sm:$0xf]
  %v1055 = vld [vmem:[%s0 + $0x24] sm:$0xf]
  %v1056 = vld [vmem:[%s0 + $0x28] sm:$0xf]
  %v1067 = vunpack.c.l.b16 %v1047
  %v1068 = vunpack.c.l.b16 %v1048
  %v1069 = vunpack.c.l.b16 %v1049
  %v1070 = vunpack.c.l.b16 %v1050
  %v1071 = vunpack.c.l.b16 %v1051
  %v1072 = vunpack.c.l.b16 %v1052
  %v1073 = vunpack.c.l.b16 %v1053
  %v1074 = vunpack.c.l.b16 %v1054
  %v1075 = vunpack.c.l.b16 %v1055
  %v1076 = vunpack.c.l.b16 %v1056
  %v1077 = vpack.c.b16 %v1068, %v1067
  %v1078 = vpack.c.b16 %v1070, %v1069
  %v1079 = vpack.c.b16 %v1072, %v1071
  %v1080 = vpack.c.b16 %v1074, %v1073
  %v1081 = vpack.c.b16 %v1076, %v1075
  %v1082 = vrot.slane %v1077, 1
  %v1083 = vrot.slane %v1078, 1
  %v1084 = vsel %vm740, %v1082, %v1083
  %v1085 = vrot.slane %v1079, 1
  %v1086 = vsel %vm740, %v1083, %v1085
  %v1087 = vrot.slane %v1080, 1
  %v1088 = vsel %vm740, %v1085, %v1087
  %v1089 = vrot.slane %v1081, 1
  %v1090 = vsel %vm740, %v1087, %v1089
  %v1095 = vunpack.c.l.b16 %v1043
  %v1096 = vunpack.c.l.b16 %v1044
  %v1097 = vunpack.c.l.b16 %v1045
  %v1098 = vunpack.c.l.b16 %v1046
  %v1099 = vpack.c.b16 %v1096, %v1095
  %v1100 = vpack.c.b16 %v1098, %v1097
  %v1104 = vsel %vm63, %v1084, 0
  %v1107 = vsel %vm63, %v1086, 0
  %v1110 = vsel %vm63, %v1088, 0
  %v1113 = vsel %vm63, %v1090, 0
  %v1116 = vsel %vm63, %v1089, 0
  %1118 = vmatprep.subr.bf16.mxu0 0
  %1119 = vmatpush1.bf16.msra.mxu0 %v1099
  %1120 = vmatprep.subr.bf16.mxu0 0
  %1121 = vmatpush1.bf16.msra.mxu0 %v1100
  %1122 = vmatprep.subr.bf16.mxu0 0
  %1123 = vmatpush1.bf16.msra.mxu0 0
  %1124 = vmatprep.subr.bf16.mxu0 0
  %1125 = vmatpush1.bf16.msra.mxu0 0
  %1126 = vmatprep.subr.bf16.mxu0 0
  %1127 = vmatpush1.bf16.msra.mxu0 0
  %1128 = vmatprep.subr.bf16.mxu0 0
  %1129 = vmatpush1.bf16.msra.mxu0 0
  %1130 = vmatprep.subr.bf16.mxu0 0
  %1131 = vmatpush1.bf16.msra.mxu0 0
  %1132 = vmatprep.subr.bf16.mxu0 0
  %1133 = vmatpush1.bf16.msra.mxu0 0
  %1134 = vmatprep.subr.bf16.mxu0 0
  %1135 = vmatpush1.bf16.msra.mxu0 0
  %1136 = vmatprep.subr.bf16.mxu0 0
  %1137 = vmatpush1.bf16.msra.mxu0 0
  %1138 = vmatprep.subr.bf16.mxu0 0
  %1139 = vmatpush1.bf16.msra.mxu0 0
  %1140 = vmatprep.subr.bf16.mxu0 0
  %1141 = vmatpush1.bf16.msra.mxu0 0
  %1142 = vmatprep.subr.bf16.mxu0 0
  %1143 = vmatpush1.bf16.msra.mxu0 0
  %1144 = vmatprep.subr.bf16.mxu0 0
  %1145 = vmatpush1.bf16.msra.mxu0 0
  %1146 = vmatprep.subr.bf16.mxu0 0
  %1147 = vmatpush1.bf16.msra.mxu0 0
  %1148 = vmatprep.subr.bf16.mxu0 0
  %1149 = vmatpush1.bf16.msra.mxu0 0
  %1150 = vmatprep.mubr.bf16.mxu0 0
  %1151 = vmatmul.mubr.bf16.gmra.mrb[0].mxu0 %v1104
  %v1152 = vpop.f32.mrb[0].mxu0
  %v1153 = vadd.f32 0.0, %v1152
  %v1154 = vpop.f32.mrb[0].mxu0
  %v1155 = vpop.f32.mrb[0].mxu0
  %v1156 = vadd.f32 0.0, %v1155
  %v1157 = vpop.f32.mrb[0].mxu0
  %1158 = vmatprep.mubr.bf16.mxu0 0
  %1159 = vmatmul.mubr.bf16.gmra.mrb[0].mxu0 %v1107
  %v1160 = vpop.f32.mrb[0].mxu0
  %v1161 = vadd.f32 0.0, %v1160
  %v1162 = vpop.f32.mrb[0].mxu0
  %v1163 = vpop.f32.mrb[0].mxu0
  %v1164 = vadd.f32 0.0, %v1163
  %v1165 = vpop.f32.mrb[0].mxu0
  %1166 = vmatprep.mubr.bf16.mxu0 0
  %1167 = vmatmul.mubr.bf16.gmra.mrb[0].mxu0 %v1110
  %v1168 = vpop.f32.mrb[0].mxu0
  %v1169 = vadd.f32 0.0, %v1168
  %v1170 = vpop.f32.mrb[0].mxu0
  %v1171 = vpop.f32.mrb[0].mxu0
  %v1172 = vadd.f32 0.0, %v1171
  %v1173 = vpop.f32.mrb[0].mxu0
  %1174 = vmatprep.mubr.bf16.mxu0 0
  %1175 = vmatmul.mubr.bf16.gmra.mrb[0].mxu0 %v1113
  %v1176 = vpop.f32.mrb[0].mxu0
  %v1177 = vadd.f32 0.0, %v1176
  %v1178 = vpop.f32.mrb[0].mxu0
  %v1179 = vpop.f32.mrb[0].mxu0
  %v1180 = vadd.f32 0.0, %v1179
  %v1181 = vpop.f32.mrb[0].mxu0
  %1182 = vmatprep.mubr.bf16.mxu0 0
  %1183 = vmatmul.mubr.bf16.gmra.mrb[0].mxu0 %v1116
  %v1184 = vpop.f32.mrb[0].mxu0
  %v1185 = vadd.f32 0.0, %v1184
  %v1186 = vpop.f32.mrb[0].mxu0
  %v1187 = vpop.f32.mrb[0].mxu0
  %v1188 = vadd.f32 0.0, %v1187
  %v1189 = vpop.f32.mrb[0].mxu0
  %1190 = vdwg.mxu0
  %v1191 = vld [vmem:[#allocation2] sm:$0xff]
  %v1192 = vld [vmem:[#allocation2 + $0x8] sm:$0xff]
  %v1193 = vld [vmem:[#allocation2 + $0x10] sm:$0xff]
  %v1194 = vld [vmem:[#allocation2 + $0x18] sm:$0xff]
  %v1195 = vld [vmem:[#allocation2 + $0x20] sm:$0xff]
  %v1196 = vld [vmem:[#allocation2 + $0x28] sm:$0xff]
  %v1197 = vld [vmem:[#allocation2 + $0x30] sm:$0xff]
  %v1198 = vld [vmem:[#allocation2 + $0x38] sm:$0xff]
  %v1199 = vld [vmem:[#allocation2 + $0x40] sm:$0xff]
  %v1200 = vld [vmem:[#allocation2 + $0x48] sm:$0x3f]
  %v1201 = vadd.f32 %v1191, %v1153
  %v1202 = vadd.f32 %v1192, %v1156
  %v1203 = vadd.f32 %v1193, %v1161
  %v1204 = vadd.f32 %v1194, %v1164
  %v1205 = vadd.f32 %v1195, %v1169
  %v1206 = vadd.f32 %v1196, %v1172
  %v1207 = vadd.f32 %v1197, %v1177
  %v1208 = vadd.f32 %v1198, %v1180
  %v1209 = vadd.f32 %v1199, %v1185
  %v1210 = vadd.f32 %v1200, %v1188
  %1211 = vst.msk [vmem:[#allocation2] sm:$0xff] %vm63, %v1201
  %1212 = vst.msk [vmem:[#allocation2 + $0x8] sm:$0xff] %vm63, %v1202
  %1213 = vst.msk [vmem:[#allocation2 + $0x10] sm:$0xff] %vm63, %v1203
  %1214 = vst.msk [vmem:[#allocation2 + $0x18] sm:$0xff] %vm63, %v1204
  %1215 = vst.msk [vmem:[#allocation2 + $0x20] sm:$0xff] %vm63, %v1205
  %1216 = vst.msk [vmem:[#allocation2 + $0x28] sm:$0xff] %vm63, %v1206
  %1217 = vst.msk [vmem:[#allocation2 + $0x30] sm:$0xff] %vm63, %v1207
  %1218 = vst.msk [vmem:[#allocation2 + $0x38] sm:$0xff] %vm63, %v1208
  %1219 = vst.msk [vmem:[#allocation2 + $0x40] sm:$0xff] %vm63, %v1209
  %1220 = vst.msk [vmem:[#allocation2 + $0x48] sm:$0x3f] %vm161, %v1210
  %v1221 = vld [vmem:[%s163 + $0x4] sm:$0xe]
  %v1222 = vld [vmem:[%s163 + $0x8] sm:$0xf]
  %v1223 = vld [vmem:[%s163 + $0xc] sm:$0xf]
  %v1224 = vld [vmem:[%s163 + $0x10] sm:$0xf]
  %v1225 = vld [vmem:[%s163 + $0x14] sm:$0xf]
  %v1226 = vld [vmem:[%s163 + $0x18] sm:$0xf]
  %v1227 = vld [vmem:[%s163 + $0x1c] sm:$0xf]
  %v1228 = vld [vmem:[%s163 + $0x20] sm:$0xf]
  %v1229 = vld [vmem:[%s163 + $0x24] sm:$0xf]
  %v1230 = vld [vmem:[%s163 + $0x28] sm:$0xf]
  %v1241 = vunpack.c.l.b16 %v1221
  %v1242 = vunpack.c.l.b16 %v1222
  %v1243 = vunpack.c.l.b16 %v1223
  %v1244 = vunpack.c.l.b16 %v1224
  %v1245 = vunpack.c.l.b16 %v1225
  %v1246 = vunpack.c.l.b16 %v1226
  %v1247 = vunpack.c.l.b16 %v1227
  %v1248 = vunpack.c.l.b16 %v1228
  %v1249 = vunpack.c.l.b16 %v1229
  %v1250 = vunpack.c.l.b16 %v1230
  %v1251 = vpack.c.b16 %v1242, %v1241
  %v1252 = vpack.c.b16 %v1244, %v1243
  %v1253 = vpack.c.b16 %v1246, %v1245
  %v1254 = vpack.c.b16 %v1248, %v1247
  %v1255 = vpack.c.b16 %v1250, %v1249
  %v1256 = vrot.slane %v1251, 1
  %v1257 = vrot.slane %v1252, 1
  %v1258 = vsel %vm740, %v1256, %v1257
  %v1259 = vrot.slane %v1253, 1
  %v1260 = vsel %vm740, %v1257, %v1259
  %v1261 = vrot.slane %v1254, 1
  %v1262 = vsel %vm740, %v1259, %v1261
  %v1263 = vrot.slane %v1255, 1
  %v1264 = vsel %vm740, %v1261, %v1263
  %v1266 = vsel %vm63, %v1258, 0
  %v1269 = vsel %vm63, %v1260, 0
  %v1272 = vsel %vm63, %v1262, 0
  %v1275 = vsel %vm63, %v1264, 0
  %v1278 = vsel %vm63, %v1263, 0
  %1280 = vmatprep.subr.bf16.mxu0 0
  %1281 = vmatpush1.bf16.msra.mxu0 %v1099
  %1282 = vmatprep.subr.bf16.mxu0 0
  %1283 = vmatpush1.bf16.msra.mxu0 %v1100
  %1284 = vmatprep.subr.bf16.mxu0 0
  %1285 = vmatpush1.bf16.msra.mxu0 0
  %1286 = vmatprep.subr.bf16.mxu0 0
  %1287 = vmatpush1.bf16.msra.mxu0 0
  %1288 = vmatprep.subr.bf16.mxu0 0
  %1289 = vmatpush1.bf16.msra.mxu0 0
  %1290 = vmatprep.subr.bf16.mxu0 0
  %1291 = vmatpush1.bf16.msra.mxu0 0
  %1292 = vmatprep.subr.bf16.mxu0 0
  %1293 = vmatpush1.bf16.msra.mxu0 0
  %1294 = vmatprep.subr.bf16.mxu0 0
  %1295 = vmatpush1.bf16.msra.mxu0 0
  %1296 = vmatprep.subr.bf16.mxu0 0
  %1297 = vmatpush1.bf16.msra.mxu0 0
  %1298 = vmatprep.subr.bf16.mxu0 0
  %1299 = vmatpush1.bf16.msra.mxu0 0
  %1300 = vmatprep.subr.bf16.mxu0 0
  %1301 = vmatpush1.bf16.msra.mxu0 0
  %1302 = vmatprep.subr.bf16.mxu0 0
  %1303 = vmatpush1.bf16.msra.mxu0 0
  %1304 = vmatprep.subr.bf16.mxu0 0
  %1305 = vmatpush1.bf16.msra.mxu0 0
  %1306 = vmatprep.subr.bf16.mxu0 0
  %1307 = vmatpush1.bf16.msra.mxu0 0
  %1308 = vmatprep.subr.bf16.mxu0 0
  %1309 = vmatpush1.bf16.msra.mxu0 0
  %1310 = vmatprep.subr.bf16.mxu0 0
  %1311 = vmatpush1.bf16.msra.mxu0 0
  %1312 = vmatprep.mubr.bf16.mxu0 0
  %1313 = vmatmul.mubr.bf16.gmra.mrb[0].mxu0 %v1266
  %v1314 = vpop.f32.mrb[0].mxu0
  %v1315 = vadd.f32 0.0, %v1314
  %v1316 = vpop.f32.mrb[0].mxu0
  %v1317 = vpop.f32.mrb[0].mxu0
  %v1318 = vadd.f32 0.0, %v1317
  %v1319 = vpop.f32.mrb[0].mxu0
  %1320 = vmatprep.mubr.bf16.mxu0 0
  %1321 = vmatmul.mubr.bf16.gmra.mrb[0].mxu0 %v1269
  %v1322 = vpop.f32.mrb[0].mxu0
  %v1323 = vadd.f32 0.0, %v1322
  %v1324 = vpop.f32.mrb[0].mxu0
  %v1325 = vpop.f32.mrb[0].mxu0
  %v1326 = vadd.f32 0.0, %v1325
  %v1327 = vpop.f32.mrb[0].mxu0
  %1328 = vmatprep.mubr.bf16.mxu0 0
  %1329 = vmatmul.mubr.bf16.gmra.mrb[0].mxu0 %v1272
  %v1330 = vpop.f32.mrb[0].mxu0
  %v1331 = vadd.f32 0.0, %v1330
  %v1332 = vpop.f32.mrb[0].mxu0
  %v1333 = vpop.f32.mrb[0].mxu0
  %v1334 = vadd.f32 0.0, %v1333
  %v1335 = vpop.f32.mrb[0].mxu0
  %1336 = vmatprep.mubr.bf16.mxu0 0
  %1337 = vmatmul.mubr.bf16.gmra.mrb[0].mxu0 %v1275
  %v1338 = vpop.f32.mrb[0].mxu0
  %v1339 = vadd.f32 0.0, %v1338
  %v1340 = vpop.f32.mrb[0].mxu0
  %v1341 = vpop.f32.mrb[0].mxu0
  %v1342 = vadd.f32 0.0, %v1341
  %v1343 = vpop.f32.mrb[0].mxu0
  %1344 = vmatprep.mubr.bf16.mxu0 0
  %1345 = vmatmul.mubr.bf16.gmra.mrb[0].mxu0 %v1278
  %v1346 = vpop.f32.mrb[0].mxu0
  %v1347 = vadd.f32 0.0, %v1346
  %v1348 = vpop.f32.mrb[0].mxu0
  %v1349 = vpop.f32.mrb[0].mxu0
  %v1350 = vadd.f32 0.0, %v1349
  %v1351 = vpop.f32.mrb[0].mxu0
  %1352 = vdwg.mxu0
  %v1353 = vld [vmem:[%s287] sm:$0xff]
  %v1354 = vld [vmem:[%s287 + $0x8] sm:$0xff]
  %v1355 = vld [vmem:[%s287 + $0x10] sm:$0xff]
  %v1356 = vld [vmem:[%s287 + $0x18] sm:$0xff]
  %v1357 = vld [vmem:[%s287 + $0x20] sm:$0xff]
  %v1358 = vld [vmem:[%s287 + $0x28] sm:$0xff]
  %v1359 = vld [vmem:[%s287 + $0x30] sm:$0xff]
  %v1360 = vld [vmem:[%s287 + $0x38] sm:$0xff]
  %v1361 = vld [vmem:[%s287 + $0x40] sm:$0xff]
  %v1362 = vld [vmem:[%s287 + $0x48] sm:$0x3f]
  %v1363 = vadd.f32 %v1353, %v1315
  %v1364 = vadd.f32 %v1354, %v1318
  %v1365 = vadd.f32 %v1355, %v1323
  %v1366 = vadd.f32 %v1356, %v1326
  %v1367 = vadd.f32 %v1357, %v1331
  %v1368 = vadd.f32 %v1358, %v1334
  %v1369 = vadd.f32 %v1359, %v1339
  %v1370 = vadd.f32 %v1360, %v1342
  %v1371 = vadd.f32 %v1361, %v1347
  %v1372 = vadd.f32 %v1362, %v1350
  %1373 = vst.msk [vmem:[%s287] sm:$0xff] %vm63, %v1363
  %1374 = vst.msk [vmem:[%s287 + $0x8] sm:$0xff] %vm63, %v1364
  %1375 = vst.msk [vmem:[%s287 + $0x10] sm:$0xff] %vm63, %v1365
  %1376 = vst.msk [vmem:[%s287 + $0x18] sm:$0xff] %vm63, %v1366
  %1377 = vst.msk [vmem:[%s287 + $0x20] sm:$0xff] %vm63, %v1367
  %1378 = vst.msk [vmem:[%s287 + $0x28] sm:$0xff] %vm63, %v1368
  %1379 = vst.msk [vmem:[%s287 + $0x30] sm:$0xff] %vm63, %v1369
  %1380 = vst.msk [vmem:[%s287 + $0x38] sm:$0xff] %vm63, %v1370
  %1381 = vst.msk [vmem:[%s287 + $0x40] sm:$0xff] %vm63, %v1371
  %1382 = vst.msk [vmem:[%s287 + $0x48] sm:$0x3f] %vm161, %v1372
  %s1383 = scalar_lea.vmem %s1, 64
  %v1384 = vld [vmem:[%s1383] sm:$0xf]
  %v1385 = vld [vmem:[%s1383 + $0x4] sm:$0xf]
  %v1386 = vld [vmem:[%s1383 + $0x8] sm:$0xf]
  %v1387 = vld [vmem:[%s1383 + $0xc] sm:$0xf]
  %v1388 = vld [vmem:[%s0 + $0x4] sm:$0xe]
  %v1389 = vld [vmem:[%s0 + $0x8] sm:$0xf]
  %v1390 = vld [vmem:[%s0 + $0xc] sm:$0xf]
  %v1391 = vld [vmem:[%s0 + $0x10] sm:$0xf]
  %v1392 = vld [vmem:[%s0 + $0x14] sm:$0xf]
  %v1393 = vld [vmem:[%s0 + $0x18] sm:$0xf]
  %v1394 = vld [vmem:[%s0 + $0x1c] sm:$0xf]
  %v1395 = vld [vmem:[%s0 + $0x20] sm:$0xf]
  %v1396 = vld [vmem:[%s0 + $0x24] sm:$0xf]
  %v1397 = vld [vmem:[%s0 + $0x28] sm:$0xf]
  %v1398 = vld [vmem:[%s0 + $0x2c] sm:$0x1]
  %v1410 = vunpack.c.l.b16 %v1388
  %v1411 = vunpack.c.l.b16 %v1389
  %v1412 = vunpack.c.l.b16 %v1390
  %v1413 = vunpack.c.l.b16 %v1391
  %v1414 = vunpack.c.l.b16 %v1392
  %v1415 = vunpack.c.l.b16 %v1393
  %v1416 = vunpack.c.l.b16 %v1394
  %v1417 = vunpack.c.l.b16 %v1395
  %v1418 = vunpack.c.l.b16 %v1396
  %v1419 = vunpack.c.l.b16 %v1397
  %v1420 = vunpack.c.l.b16 %v1398
  %v1421 = vpack.c.b16 %v1411, %v1410
  %v1422 = vpack.c.b16 %v1413, %v1412
  %v1423 = vpack.c.b16 %v1415, %v1414
  %v1424 = vpack.c.b16 %v1417, %v1416
  %v1425 = vpack.c.b16 %v1419, %v1418
  %v1426 = vpack.c.b16 %v1420, %v1420
  %vm1427 = vsmask.f32 6400
  %v1429 = vshrl.u32 %v1421, 16
  %v1431 = vrot.slane %v1429, 1
  %v1432 = vshll.u32 %v1421, 16
  %v1434 = vrot.slane %v1432, 2
  %v1435 = vor.u32 %v1431, %v1434
  %v1437 = vshrl.u32 %v1422, 16
  %v1439 = vrot.slane %v1437, 1
  %v1440 = vshll.u32 %v1422, 16
  %v1442 = vrot.slane %v1440, 2
  %v1443 = vor.u32 %v1439, %v1442
  %v1444 = vsel %vm1427, %v1435, %v1443
  %v1446 = vshrl.u32 %v1423, 16
  %v1448 = vrot.slane %v1446, 1
  %v1449 = vshll.u32 %v1423, 16
  %v1451 = vrot.slane %v1449, 2
  %v1452 = vor.u32 %v1448, %v1451
  %v1453 = vsel %vm1427, %v1443, %v1452
  %v1455 = vshrl.u32 %v1424, 16
  %v1457 = vrot.slane %v1455, 1
  %v1458 = vshll.u32 %v1424, 16
  %v1460 = vrot.slane %v1458, 2
  %v1461 = vor.u32 %v1457, %v1460
  %v1462 = vsel %vm1427, %v1452, %v1461
  %v1464 = vshrl.u32 %v1425, 16
  %v1466 = vrot.slane %v1464, 1
  %v1467 = vshll.u32 %v1425, 16
  %v1469 = vrot.slane %v1467, 2
  %v1470 = vor.u32 %v1466, %v1469
  %v1471 = vsel %vm1427, %v1461, %v1470
  %v1473 = vshll.u32 %v1426, 16
  %v1475 = vrot.slane %v1473, 2
  %v1476 = vsel %vm1427, %v1470, %v1475
  %v1481 = vunpack.c.l.b16 %v1384
  %v1482 = vunpack.c.l.b16 %v1385
  %v1483 = vunpack.c.l.b16 %v1386
  %v1484 = vunpack.c.l.b16 %v1387
  %v1485 = vpack.c.b16 %v1482, %v1481
  %v1486 = vpack.c.b16 %v1484, %v1483
  %v1490 = vsel %vm63, %v1444, 0
  %v1493 = vsel %vm63, %v1453, 0
  %v1496 = vsel %vm63, %v1462, 0
  %v1499 = vsel %vm63, %v1471, 0
  %v1502 = vsel %vm63, %v1476, 0
  %1504 = vmatprep.subr.bf16.mxu0 0
  %1505 = vmatpush1.bf16.msra.mxu0 %v1485
  %1506 = vmatprep.subr.bf16.mxu0 0
  %1507 = vmatpush1.bf16.msra.mxu0 %v1486
  %1508 = vmatprep.subr.bf16.mxu0 0
  %1509 = vmatpush1.bf16.msra.mxu0 0
  %1510 = vmatprep.subr.bf16.mxu0 0
  %1511 = vmatpush1.bf16.msra.mxu0 0
  %1512 = vmatprep.subr.bf16.mxu0 0
  %1513 = vmatpush1.bf16.msra.mxu0 0
  %1514 = vmatprep.subr.bf16.mxu0 0
  %1515 = vmatpush1.bf16.msra.mxu0 0
  %1516 = vmatprep.subr.bf16.mxu0 0
  %1517 = vmatpush1.bf16.msra.mxu0 0
  %1518 = vmatprep.subr.bf16.mxu0 0
  %1519 = vmatpush1.bf16.msra.mxu0 0
  %1520 = vmatprep.subr.bf16.mxu0 0
  %1521 = vmatpush1.bf16.msra.mxu0 0
  %1522 = vmatprep.subr.bf16.mxu0 0
  %1523 = vmatpush1.bf16.msra.mxu0 0
  %1524 = vmatprep.subr.bf16.mxu0 0
  %1525 = vmatpush1.bf16.msra.mxu0 0
  %1526 = vmatprep.subr.bf16.mxu0 0
  %1527 = vmatpush1.bf16.msra.mxu0 0
  %1528 = vmatprep.subr.bf16.mxu0 0
  %1529 = vmatpush1.bf16.msra.mxu0 0
  %1530 = vmatprep.subr.bf16.mxu0 0
  %1531 = vmatpush1.bf16.msra.mxu0 0
  %1532 = vmatprep.subr.bf16.mxu0 0
  %1533 = vmatpush1.bf16.msra.mxu0 0
  %1534 = vmatprep.subr.bf16.mxu0 0
  %1535 = vmatpush1.bf16.msra.mxu0 0
  %1536 = vmatprep.mubr.bf16.mxu0 0
  %1537 = vmatmul.mubr.bf16.gmra.mrb[0].mxu0 %v1490
  %v1538 = vpop.f32.mrb[0].mxu0
  %v1539 = vadd.f32 0.0, %v1538
  %v1540 = vpop.f32.mrb[0].mxu0
  %v1541 = vpop.f32.mrb[0].mxu0
  %v1542 = vadd.f32 0.0, %v1541
  %v1543 = vpop.f32.mrb[0].mxu0
  %1544 = vmatprep.mubr.bf16.mxu0 0
  %1545 = vmatmul.mubr.bf16.gmra.mrb[0].mxu0 %v1493
  %v1546 = vpop.f32.mrb[0].mxu0
  %v1547 = vadd.f32 0.0, %v1546
  %v1548 = vpop.f32.mrb[0].mxu0
  %v1549 = vpop.f32.mrb[0].mxu0
  %v1550 = vadd.f32 0.0, %v1549
  %v1551 = vpop.f32.mrb[0].mxu0
  %1552 = vmatprep.mubr.bf16.mxu0 0
  %1553 = vmatmul.mubr.bf16.gmra.mrb[0].mxu0 %v1496
  %v1554 = vpop.f32.mrb[0].mxu0
  %v1555 = vadd.f32 0.0, %v1554
  %v1556 = vpop.f32.mrb[0].mxu0
  %v1557 = vpop.f32.mrb[0].mxu0
  %v1558 = vadd.f32 0.0, %v1557
  %v1559 = vpop.f32.mrb[0].mxu0
  %1560 = vmatprep.mubr.bf16.mxu0 0
  %1561 = vmatmul.mubr.bf16.gmra.mrb[0].mxu0 %v1499
  %v1562 = vpop.f32.mrb[0].mxu0
  %v1563 = vadd.f32 0.0, %v1562
  %v1564 = vpop.f32.mrb[0].mxu0
  %v1565 = vpop.f32.mrb[0].mxu0
  %v1566 = vadd.f32 0.0, %v1565
  %v1567 = vpop.f32.mrb[0].mxu0
  %1568 = vmatprep.mubr.bf16.mxu0 0
  %1569 = vmatmul.mubr.bf16.gmra.mrb[0].mxu0 %v1502
  %v1570 = vpop.f32.mrb[0].mxu0
  %v1571 = vadd.f32 0.0, %v1570
  %v1572 = vpop.f32.mrb[0].mxu0
  %v1573 = vpop.f32.mrb[0].mxu0
  %v1574 = vadd.f32 0.0, %v1573
  %v1575 = vpop.f32.mrb[0].mxu0
  %1576 = vdwg.mxu0
  %v1577 = vld [vmem:[#allocation2] sm:$0xff]
  %v1578 = vld [vmem:[#allocation2 + $0x8] sm:$0xff]
  %v1579 = vld [vmem:[#allocation2 + $0x10] sm:$0xff]
  %v1580 = vld [vmem:[#allocation2 + $0x18] sm:$0xff]
  %v1581 = vld [vmem:[#allocation2 + $0x20] sm:$0xff]
  %v1582 = vld [vmem:[#allocation2 + $0x28] sm:$0xff]
  %v1583 = vld [vmem:[#allocation2 + $0x30] sm:$0xff]
  %v1584 = vld [vmem:[#allocation2 + $0x38] sm:$0xff]
  %v1585 = vld [vmem:[#allocation2 + $0x40] sm:$0xff]
  %v1586 = vld [vmem:[#allocation2 + $0x48] sm:$0x3f]
  %v1587 = vadd.f32 %v1577, %v1539
  %v1588 = vadd.f32 %v1578, %v1542
  %v1589 = vadd.f32 %v1579, %v1547
  %v1590 = vadd.f32 %v1580, %v1550
  %v1591 = vadd.f32 %v1581, %v1555
  %v1592 = vadd.f32 %v1582, %v1558
  %v1593 = vadd.f32 %v1583, %v1563
  %v1594 = vadd.f32 %v1584, %v1566
  %v1595 = vadd.f32 %v1585, %v1571
  %v1596 = vadd.f32 %v1586, %v1574
  %1597 = vst.msk [vmem:[#allocation2] sm:$0xff] %vm63, %v1587
  %1598 = vst.msk [vmem:[#allocation2 + $0x8] sm:$0xff] %vm63, %v1588
  %1599 = vst.msk [vmem:[#allocation2 + $0x10] sm:$0xff] %vm63, %v1589
  %1600 = vst.msk [vmem:[#allocation2 + $0x18] sm:$0xff] %vm63, %v1590
  %1601 = vst.msk [vmem:[#allocation2 + $0x20] sm:$0xff] %vm63, %v1591
  %1602 = vst.msk [vmem:[#allocation2 + $0x28] sm:$0xff] %vm63, %v1592
  %1603 = vst.msk [vmem:[#allocation2 + $0x30] sm:$0xff] %vm63, %v1593
  %1604 = vst.msk [vmem:[#allocation2 + $0x38] sm:$0xff] %vm63, %v1594
  %1605 = vst.msk [vmem:[#allocation2 + $0x40] sm:$0xff] %vm63, %v1595
  %1606 = vst.msk [vmem:[#allocation2 + $0x48] sm:$0x3f] %vm161, %v1596
  %v1607 = vld [vmem:[%s163 + $0x4] sm:$0xe]
  %v1608 = vld [vmem:[%s163 + $0x8] sm:$0xf]
  %v1609 = vld [vmem:[%s163 + $0xc] sm:$0xf]
  %v1610 = vld [vmem:[%s163 + $0x10] sm:$0xf]
  %v1611 = vld [vmem:[%s163 + $0x14] sm:$0xf]
  %v1612 = vld [vmem:[%s163 + $0x18] sm:$0xf]
  %v1613 = vld [vmem:[%s163 + $0x1c] sm:$0xf]
  %v1614 = vld [vmem:[%s163 + $0x20] sm:$0xf]
  %v1615 = vld [vmem:[%s163 + $0x24] sm:$0xf]
  %v1616 = vld [vmem:[%s163 + $0x28] sm:$0xf]
  %v1617 = vld [vmem:[%s163 + $0x2c] sm:$0x1]
  %v1629 = vunpack.c.l.b16 %v1607
  %v1630 = vunpack.c.l.b16 %v1608
  %v1631 = vunpack.c.l.b16 %v1609
  %v1632 = vunpack.c.l.b16 %v1610
  %v1633 = vunpack.c.l.b16 %v1611
  %v1634 = vunpack.c.l.b16 %v1612
  %v1635 = vunpack.c.l.b16 %v1613
  %v1636 = vunpack.c.l.b16 %v1614
  %v1637 = vunpack.c.l.b16 %v1615
  %v1638 = vunpack.c.l.b16 %v1616
  %v1639 = vunpack.c.l.b16 %v1617
  %v1640 = vpack.c.b16 %v1630, %v1629
  %v1641 = vpack.c.b16 %v1632, %v1631
  %v1642 = vpack.c.b16 %v1634, %v1633
  %v1643 = vpack.c.b16 %v1636, %v1635
  %v1644 = vpack.c.b16 %v1638, %v1637
  %v1645 = vpack.c.b16 %v1639, %v1639
  %v1647 = vshrl.u32 %v1640, 16
  %v1649 = vrot.slane %v1647, 1
  %v1650 = vshll.u32 %v1640, 16
  %v1652 = vrot.slane %v1650, 2
  %v1653 = vor.u32 %v1649, %v1652
  %v1655 = vshrl.u32 %v1641, 16
  %v1657 = vrot.slane %v1655, 1
  %v1658 = vshll.u32 %v1641, 16
  %v1660 = vrot.slane %v1658, 2
  %v1661 = vor.u32 %v1657, %v1660
  %v1662 = vsel %vm1427, %v1653, %v1661
  %v1664 = vshrl.u32 %v1642, 16
  %v1666 = vrot.slane %v1664, 1
  %v1667 = vshll.u32 %v1642, 16
  %v1669 = vrot.slane %v1667, 2
  %v1670 = vor.u32 %v1666, %v1669
  %v1671 = vsel %vm1427, %v1661, %v1670
  %v1673 = vshrl.u32 %v1643, 16
  %v1675 = vrot.slane %v1673, 1
  %v1676 = vshll.u32 %v1643, 16
  %v1678 = vrot.slane %v1676, 2
  %v1679 = vor.u32 %v1675, %v1678
  %v1680 = vsel %vm1427, %v1670, %v1679
  %v1682 = vshrl.u32 %v1644, 16
  %v1684 = vrot.slane %v1682, 1
  %v1685 = vshll.u32 %v1644, 16
  %v1687 = vrot.slane %v1685, 2
  %v1688 = vor.u32 %v1684, %v1687
  %v1689 = vsel %vm1427, %v1679, %v1688
  %v1691 = vshll.u32 %v1645, 16
  %v1693 = vrot.slane %v1691, 2
  %v1694 = vsel %vm1427, %v1688, %v1693
  %v1696 = vsel %vm63, %v1662, 0
  %v1699 = vsel %vm63, %v1671, 0
  %v1702 = vsel %vm63, %v1680, 0
  %v1705 = vsel %vm63, %v1689, 0
  %v1708 = vsel %vm63, %v1694, 0
  %1710 = vmatprep.subr.bf16.mxu0 0
  %1711 = vmatpush1.bf16.msra.mxu0 %v1485
  %1712 = vmatprep.subr.bf16.mxu0 0
  %1713 = vmatpush1.bf16.msra.mxu0 %v1486
  %1714 = vmatprep.subr.bf16.mxu0 0
  %1715 = vmatpush1.bf16.msra.mxu0 0
  %1716 = vmatprep.subr.bf16.mxu0 0
  %1717 = vmatpush1.bf16.msra.mxu0 0
  %1718 = vmatprep.subr.bf16.mxu0 0
  %1719 = vmatpush1.bf16.msra.mxu0 0
  %1720 = vmatprep.subr.bf16.mxu0 0
  %1721 = vmatpush1.bf16.msra.mxu0 0
  %1722 = vmatprep.subr.bf16.mxu0 0
  %1723 = vmatpush1.bf16.msra.mxu0 0
  %1724 = vmatprep.subr.bf16.mxu0 0
  %1725 = vmatpush1.bf16.msra.mxu0 0
  %1726 = vmatprep.subr.bf16.mxu0 0
  %1727 = vmatpush1.bf16.msra.mxu0 0
  %1728 = vmatprep.subr.bf16.mxu0 0
  %1729 = vmatpush1.bf16.msra.mxu0 0
  %1730 = vmatprep.subr.bf16.mxu0 0
  %1731 = vmatpush1.bf16.msra.mxu0 0
  %1732 = vmatprep.subr.bf16.mxu0 0
  %1733 = vmatpush1.bf16.msra.mxu0 0
  %1734 = vmatprep.subr.bf16.mxu0 0
  %1735 = vmatpush1.bf16.msra.mxu0 0
  %1736 = vmatprep.subr.bf16.mxu0 0
  %1737 = vmatpush1.bf16.msra.mxu0 0
  %1738 = vmatprep.subr.bf16.mxu0 0
  %1739 = vmatpush1.bf16.msra.mxu0 0
  %1740 = vmatprep.subr.bf16.mxu0 0
  %1741 = vmatpush1.bf16.msra.mxu0 0
  %1742 = vmatprep.mubr.bf16.mxu0 0
  %1743 = vmatmul.mubr.bf16.gmra.mrb[0].mxu0 %v1696
  %v1744 = vpop.f32.mrb[0].mxu0
  %v1745 = vadd.f32 0.0, %v1744
  %v1746 = vpop.f32.mrb[0].mxu0
  %v1747 = vpop.f32.mrb[0].mxu0
  %v1748 = vadd.f32 0.0, %v1747
  %v1749 = vpop.f32.mrb[0].mxu0
  %1750 = vmatprep.mubr.bf16.mxu0 0
  %1751 = vmatmul.mubr.bf16.gmra.mrb[0].mxu0 %v1699
  %v1752 = vpop.f32.mrb[0].mxu0
  %v1753 = vadd.f32 0.0, %v1752
  %v1754 = vpop.f32.mrb[0].mxu0
  %v1755 = vpop.f32.mrb[0].mxu0
  %v1756 = vadd.f32 0.0, %v1755
  %v1757 = vpop.f32.mrb[0].mxu0
  %1758 = vmatprep.mubr.bf16.mxu0 0
  %1759 = vmatmul.mubr.bf16.gmra.mrb[0].mxu0 %v1702
  %v1760 = vpop.f32.mrb[0].mxu0
  %v1761 = vadd.f32 0.0, %v1760
  %v1762 = vpop.f32.mrb[0].mxu0
  %v1763 = vpop.f32.mrb[0].mxu0
  %v1764 = vadd.f32 0.0, %v1763
  %v1765 = vpop.f32.mrb[0].mxu0
  %1766 = vmatprep.mubr.bf16.mxu0 0
  %1767 = vmatmul.mubr.bf16.gmra.mrb[0].mxu0 %v1705
  %v1768 = vpop.f32.mrb[0].mxu0
  %v1769 = vadd.f32 0.0, %v1768
  %v1770 = vpop.f32.mrb[0].mxu0
  %v1771 = vpop.f32.mrb[0].mxu0
  %v1772 = vadd.f32 0.0, %v1771
  %v1773 = vpop.f32.mrb[0].mxu0
  %1774 = vmatprep.mubr.bf16.mxu0 0
  %1775 = vmatmul.mubr.bf16.gmra.mrb[0].mxu0 %v1708
  %v1776 = vpop.f32.mrb[0].mxu0
  %v1777 = vadd.f32 0.0, %v1776
  %v1778 = vpop.f32.mrb[0].mxu0
  %v1779 = vpop.f32.mrb[0].mxu0
  %v1780 = vadd.f32 0.0, %v1779
  %v1781 = vpop.f32.mrb[0].mxu0
  %1782 = vdwg.mxu0
  %v1783 = vld [vmem:[%s287] sm:$0xff]
  %v1784 = vld [vmem:[%s287 + $0x8] sm:$0xff]
  %v1785 = vld [vmem:[%s287 + $0x10] sm:$0xff]
  %v1786 = vld [vmem:[%s287 + $0x18] sm:$0xff]
  %v1787 = vld [vmem:[%s287 + $0x20] sm:$0xff]
  %v1788 = vld [vmem:[%s287 + $0x28] sm:$0xff]
  %v1789 = vld [vmem:[%s287 + $0x30] sm:$0xff]
  %v1790 = vld [vmem:[%s287 + $0x38] sm:$0xff]
  %v1791 = vld [vmem:[%s287 + $0x40] sm:$0xff]
  %v1792 = vld [vmem:[%s287 + $0x48] sm:$0x3f]
  %v1793 = vadd.f32 %v1783, %v1745
  %v1794 = vadd.f32 %v1784, %v1748
  %v1795 = vadd.f32 %v1785, %v1753
  %v1796 = vadd.f32 %v1786, %v1756
  %v1797 = vadd.f32 %v1787, %v1761
  %v1798 = vadd.f32 %v1788, %v1764
  %v1799 = vadd.f32 %v1789, %v1769
  %v1800 = vadd.f32 %v1790, %v1772
  %v1801 = vadd.f32 %v1791, %v1777
  %v1802 = vadd.f32 %v1792, %v1780
  %1803 = vst.msk [vmem:[%s287] sm:$0xff] %vm63, %v1793
  %1804 = vst.msk [vmem:[%s287 + $0x8] sm:$0xff] %vm63, %v1794
  %1805 = vst.msk [vmem:[%s287 + $0x10] sm:$0xff] %vm63, %v1795
  %1806 = vst.msk [vmem:[%s287 + $0x18] sm:$0xff] %vm63, %v1796
  %1807 = vst.msk [vmem:[%s287 + $0x20] sm:$0xff] %vm63, %v1797
  %1808 = vst.msk [vmem:[%s287 + $0x28] sm:$0xff] %vm63, %v1798
  %1809 = vst.msk [vmem:[%s287 + $0x30] sm:$0xff] %vm63, %v1799
  %1810 = vst.msk [vmem:[%s287 + $0x38] sm:$0xff] %vm63, %v1800
  %1811 = vst.msk [vmem:[%s287 + $0x40] sm:$0xff] %vm63, %v1801
  %1812 = vst.msk [vmem:[%s287 + $0x48] sm:$0x3f] %vm161, %v1802
  %s1813 = scalar_lea.vmem %s1, 80
  %v1814 = vld [vmem:[%s1813] sm:$0xf]
  %v1815 = vld [vmem:[%s1813 + $0x4] sm:$0xf]
  %v1816 = vld [vmem:[%s1813 + $0x8] sm:$0xf]
  %v1817 = vld [vmem:[%s1813 + $0xc] sm:$0xf]
  %v1818 = vld [vmem:[%s0 + $0x4] sm:$0xc]
  %v1819 = vld [vmem:[%s0 + $0x8] sm:$0xf]
  %v1820 = vld [vmem:[%s0 + $0xc] sm:$0xf]
  %v1821 = vld [vmem:[%s0 + $0x10] sm:$0xf]
  %v1822 = vld [vmem:[%s0 + $0x14] sm:$0xf]
  %v1823 = vld [vmem:[%s0 + $0x18] sm:$0xf]
  %v1824 = vld [vmem:[%s0 + $0x1c] sm:$0xf]
  %v1825 = vld [vmem:[%s0 + $0x20] sm:$0xf]
  %v1826 = vld [vmem:[%s0 + $0x24] sm:$0xf]
  %v1827 = vld [vmem:[%s0 + $0x28] sm:$0xf]
  %v1828 = vld [vmem:[%s0 + $0x2c] sm:$0x1]
  %v1840 = vunpack.c.l.b16 %v1818
  %v1841 = vunpack.c.l.b16 %v1819
  %v1842 = vunpack.c.l.b16 %v1820
  %v1843 = vunpack.c.l.b16 %v1821
  %v1844 = vunpack.c.l.b16 %v1822
  %v1845 = vunpack.c.l.b16 %v1823
  %v1846 = vunpack.c.l.b16 %v1824
  %v1847 = vunpack.c.l.b16 %v1825
  %v1848 = vunpack.c.l.b16 %v1826
  %v1849 = vunpack.c.l.b16 %v1827
  %v1850 = vunpack.c.l.b16 %v1828
  %v1851 = vpack.c.b16 %v1841, %v1840
  %v1852 = vpack.c.b16 %v1843, %v1842
  %v1853 = vpack.c.b16 %v1845, %v1844
  %v1854 = vpack.c.b16 %v1847, %v1846
  %v1855 = vpack.c.b16 %v1849, %v1848
  %v1856 = vpack.c.b16 %v1850, %v1850
  %vm1857 = vcmask 1045504
  %v1858 = vrot.slane %v1851, 2
  %v1859 = vrot.slane %v1852, 2
  %v1860 = vsel %vm1857, %v1858, %v1859
  %v1861 = vrot.slane %v1853, 2
  %v1862 = vsel %vm1857, %v1859, %v1861
  %v1863 = vrot.slane %v1854, 2
  %v1864 = vsel %vm1857, %v1861, %v1863
  %v1865 = vrot.slane %v1855, 2
  %v1866 = vsel %vm1857, %v1863, %v1865
  %v1867 = vrot.slane %v1856, 2
  %v1868 = vsel %vm1857, %v1865, %v1867
  %v1873 = vunpack.c.l.b16 %v1814
  %v1874 = vunpack.c.l.b16 %v1815
  %v1875 = vunpack.c.l.b16 %v1816
  %v1876 = vunpack.c.l.b16 %v1817
  %v1877 = vpack.c.b16 %v1874, %v1873
  %v1878 = vpack.c.b16 %v1876, %v1875
  %v1882 = vsel %vm63, %v1860, 0
  %v1885 = vsel %vm63, %v1862, 0
  %v1888 = vsel %vm63, %v1864, 0
  %v1891 = vsel %vm63, %v1866, 0
  %v1894 = vsel %vm63, %v1868, 0
  %1896 = vmatprep.subr.bf16.mxu0 0
  %1897 = vmatpush1.bf16.msra.mxu0 %v1877
  %1898 = vmatprep.subr.bf16.mxu0 0
  %1899 = vmatpush1.bf16.msra.mxu0 %v1878
  %1900 = vmatprep.subr.bf16.mxu0 0
  %1901 = vmatpush1.bf16.msra.mxu0 0
  %1902 = vmatprep.subr.bf16.mxu0 0
  %1903 = vmatpush1.bf16.msra.mxu0 0
  %1904 = vmatprep.subr.bf16.mxu0 0
  %1905 = vmatpush1.bf16.msra.mxu0 0
  %1906 = vmatprep.subr.bf16.mxu0 0
  %1907 = vmatpush1.bf16.msra.mxu0 0
  %1908 = vmatprep.subr.bf16.mxu0 0
  %1909 = vmatpush1.bf16.msra.mxu0 0
  %1910 = vmatprep.subr.bf16.mxu0 0
  %1911 = vmatpush1.bf16.msra.mxu0 0
  %1912 = vmatprep.subr.bf16.mxu0 0
  %1913 = vmatpush1.bf16.msra.mxu0 0
  %1914 = vmatprep.subr.bf16.mxu0 0
  %1915 = vmatpush1.bf16.msra.mxu0 0
  %1916 = vmatprep.subr.bf16.mxu0 0
  %1917 = vmatpush1.bf16.msra.mxu0 0
  %1918 = vmatprep.subr.bf16.mxu0 0
  %1919 = vmatpush1.bf16.msra.mxu0 0
  %1920 = vmatprep.subr.bf16.mxu0 0
  %1921 = vmatpush1.bf16.msra.mxu0 0
  %1922 = vmatprep.subr.bf16.mxu0 0
  %1923 = vmatpush1.bf16.msra.mxu0 0
  %1924 = vmatprep.subr.bf16.mxu0 0
  %1925 = vmatpush1.bf16.msra.mxu0 0
  %1926 = vmatprep.subr.bf16.mxu0 0
  %1927 = vmatpush1.bf16.msra.mxu0 0
  %1928 = vmatprep.mubr.bf16.mxu0 0
  %1929 = vmatmul.mubr.bf16.gmra.mrb[0].mxu0 %v1882
  %v1930 = vpop.f32.mrb[0].mxu0
  %v1931 = vadd.f32 0.0, %v1930
  %v1932 = vpop.f32.mrb[0].mxu0
  %v1933 = vpop.f32.mrb[0].mxu0
  %v1934 = vadd.f32 0.0, %v1933
  %v1935 = vpop.f32.mrb[0].mxu0
  %1936 = vmatprep.mubr.bf16.mxu0 0
  %1937 = vmatmul.mubr.bf16.gmra.mrb[0].mxu0 %v1885
  %v1938 = vpop.f32.mrb[0].mxu0
  %v1939 = vadd.f32 0.0, %v1938
  %v1940 = vpop.f32.mrb[0].mxu0
  %v1941 = vpop.f32.mrb[0].mxu0
  %v1942 = vadd.f32 0.0, %v1941
  %v1943 = vpop.f32.mrb[0].mxu0
  %1944 = vmatprep.mubr.bf16.mxu0 0
  %1945 = vmatmul.mubr.bf16.gmra.mrb[0].mxu0 %v1888
  %v1946 = vpop.f32.mrb[0].mxu0
  %v1947 = vadd.f32 0.0, %v1946
  %v1948 = vpop.f32.mrb[0].mxu0
  %v1949 = vpop.f32.mrb[0].mxu0
  %v1950 = vadd.f32 0.0, %v1949
  %v1951 = vpop.f32.mrb[0].mxu0
  %1952 = vmatprep.mubr.bf16.mxu0 0
  %1953 = vmatmul.mubr.bf16.gmra.mrb[0].mxu0 %v1891
  %v1954 = vpop.f32.mrb[0].mxu0
  %v1955 = vadd.f32 0.0, %v1954
  %v1956 = vpop.f32.mrb[0].mxu0
  %v1957 = vpop.f32.mrb[0].mxu0
  %v1958 = vadd.f32 0.0, %v1957
  %v1959 = vpop.f32.mrb[0].mxu0
  %1960 = vmatprep.mubr.bf16.mxu0 0
  %1961 = vmatmul.mubr.bf16.gmra.mrb[0].mxu0 %v1894
  %v1962 = vpop.f32.mrb[0].mxu0
  %v1963 = vadd.f32 0.0, %v1962
  %v1964 = vpop.f32.mrb[0].mxu0
  %v1965 = vpop.f32.mrb[0].mxu0
  %v1966 = vadd.f32 0.0, %v1965
  %v1967 = vpop.f32.mrb[0].mxu0
  %1968 = vdwg.mxu0
  %v1969 = vld [vmem:[#allocation2] sm:$0xff]
  %v1970 = vld [vmem:[#allocation2 + $0x8] sm:$0xff]
  %v1971 = vld [vmem:[#allocation2 + $0x10] sm:$0xff]
  %v1972 = vld [vmem:[#allocation2 + $0x18] sm:$0xff]
  %v1973 = vld [vmem:[#allocation2 + $0x20] sm:$0xff]
  %v1974 = vld [vmem:[#allocation2 + $0x28] sm:$0xff]
  %v1975 = vld [vmem:[#allocation2 + $0x30] sm:$0xff]
  %v1976 = vld [vmem:[#allocation2 + $0x38] sm:$0xff]
  %v1977 = vld [vmem:[#allocation2 + $0x40] sm:$0xff]
  %v1978 = vld [vmem:[#allocation2 + $0x48] sm:$0x3f]
  %v1979 = vadd.f32 %v1969, %v1931
  %v1980 = vadd.f32 %v1970, %v1934
  %v1981 = vadd.f32 %v1971, %v1939
  %v1982 = vadd.f32 %v1972, %v1942
  %v1983 = vadd.f32 %v1973, %v1947
  %v1984 = vadd.f32 %v1974, %v1950
  %v1985 = vadd.f32 %v1975, %v1955
  %v1986 = vadd.f32 %v1976, %v1958
  %v1987 = vadd.f32 %v1977, %v1963
  %v1988 = vadd.f32 %v1978, %v1966
  %1989 = vst.msk [vmem:[#allocation2] sm:$0xff] %vm63, %v1979
  %1990 = vst.msk [vmem:[#allocation2 + $0x8] sm:$0xff] %vm63, %v1980
  %1991 = vst.msk [vmem:[#allocation2 + $0x10] sm:$0xff] %vm63, %v1981
  %1992 = vst.msk [vmem:[#allocation2 + $0x18] sm:$0xff] %vm63, %v1982
  %1993 = vst.msk [vmem:[#allocation2 + $0x20] sm:$0xff] %vm63, %v1983
  %1994 = vst.msk [vmem:[#allocation2 + $0x28] sm:$0xff] %vm63, %v1984
  %1995 = vst.msk [vmem:[#allocation2 + $0x30] sm:$0xff] %vm63, %v1985
  %1996 = vst.msk [vmem:[#allocation2 + $0x38] sm:$0xff] %vm63, %v1986
  %1997 = vst.msk [vmem:[#allocation2 + $0x40] sm:$0xff] %vm63, %v1987
  %1998 = vst.msk [vmem:[#allocation2 + $0x48] sm:$0x3f] %vm161, %v1988
  %v1999 = vld [vmem:[%s163 + $0x4] sm:$0xc]
  %v2000 = vld [vmem:[%s163 + $0x8] sm:$0xf]
  %v2001 = vld [vmem:[%s163 + $0xc] sm:$0xf]
  %v2002 = vld [vmem:[%s163 + $0x10] sm:$0xf]
  %v2003 = vld [vmem:[%s163 + $0x14] sm:$0xf]
  %v2004 = vld [vmem:[%s163 + $0x18] sm:$0xf]
  %v2005 = vld [vmem:[%s163 + $0x1c] sm:$0xf]
  %v2006 = vld [vmem:[%s163 + $0x20] sm:$0xf]
  %v2007 = vld [vmem:[%s163 + $0x24] sm:$0xf]
  %v2008 = vld [vmem:[%s163 + $0x28] sm:$0xf]
  %v2009 = vld [vmem:[%s163 + $0x2c] sm:$0x1]
  %v2021 = vunpack.c.l.b16 %v1999
  %v2022 = vunpack.c.l.b16 %v2000
  %v2023 = vunpack.c.l.b16 %v2001
  %v2024 = vunpack.c.l.b16 %v2002
  %v2025 = vunpack.c.l.b16 %v2003
  %v2026 = vunpack.c.l.b16 %v2004
  %v2027 = vunpack.c.l.b16 %v2005
  %v2028 = vunpack.c.l.b16 %v2006
  %v2029 = vunpack.c.l.b16 %v2007
  %v2030 = vunpack.c.l.b16 %v2008
  %v2031 = vunpack.c.l.b16 %v2009
  %v2032 = vpack.c.b16 %v2022, %v2021
  %v2033 = vpack.c.b16 %v2024, %v2023
  %v2034 = vpack.c.b16 %v2026, %v2025
  %v2035 = vpack.c.b16 %v2028, %v2027
  %v2036 = vpack.c.b16 %v2030, %v2029
  %v2037 = vpack.c.b16 %v2031, %v2031
  %v2038 = vrot.slane %v2032, 2
  %v2039 = vrot.slane %v2033, 2
  %v2040 = vsel %vm1857, %v2038, %v2039
  %v2041 = vrot.slane %v2034, 2
  %v2042 = vsel %vm1857, %v2039, %v2041
  %v2043 = vrot.slane %v2035, 2
  %v2044 = vsel %vm1857, %v2041, %v2043
  %v2045 = vrot.slane %v2036, 2
  %v2046 = vsel %vm1857, %v2043, %v2045
  %v2047 = vrot.slane %v2037, 2
  %v2048 = vsel %vm1857, %v2045, %v2047
  %v2050 = vsel %vm63, %v2040, 0
  %v2053 = vsel %vm63, %v2042, 0
  %v2056 = vsel %vm63, %v2044, 0
  %v2059 = vsel %vm63, %v2046, 0
  %v2062 = vsel %vm63, %v2048, 0
  %2064 = vmatprep.subr.bf16.mxu0 0
  %2065 = vmatpush1.bf16.msra.mxu0 %v1877
  %2066 = vmatprep.subr.bf16.mxu0 0
  %2067 = vmatpush1.bf16.msra.mxu0 %v1878
  %2068 = vmatprep.subr.bf16.mxu0 0
  %2069 = vmatpush1.bf16.msra.mxu0 0
  %2070 = vmatprep.subr.bf16.mxu0 0
  %2071 = vmatpush1.bf16.msra.mxu0 0
  %2072 = vmatprep.subr.bf16.mxu0 0
  %2073 = vmatpush1.bf16.msra.mxu0 0
  %2074 = vmatprep.subr.bf16.mxu0 0
  %2075 = vmatpush1.bf16.msra.mxu0 0
  %2076 = vmatprep.subr.bf16.mxu0 0
  %2077 = vmatpush1.bf16.msra.mxu0 0
  %2078 = vmatprep.subr.bf16.mxu0 0
  %2079 = vmatpush1.bf16.msra.mxu0 0
  %2080 = vmatprep.subr.bf16.mxu0 0
  %2081 = vmatpush1.bf16.msra.mxu0 0
  %2082 = vmatprep.subr.bf16.mxu0 0
  %2083 = vmatpush1.bf16.msra.mxu0 0
  %2084 = vmatprep.subr.bf16.mxu0 0
  %2085 = vmatpush1.bf16.msra.mxu0 0
  %2086 = vmatprep.subr.bf16.mxu0 0
  %2087 = vmatpush1.bf16.msra.mxu0 0
  %2088 = vmatprep.subr.bf16.mxu0 0
  %2089 = vmatpush1.bf16.msra.mxu0 0
  %2090 = vmatprep.subr.bf16.mxu0 0
  %2091 = vmatpush1.bf16.msra.mxu0 0
  %2092 = vmatprep.subr.bf16.mxu0 0
  %2093 = vmatpush1.bf16.msra.mxu0 0
  %2094 = vmatprep.subr.bf16.mxu0 0
  %2095 = vmatpush1.bf16.msra.mxu0 0
  %2096 = vmatprep.mubr.bf16.mxu0 0
  %2097 = vmatmul.mubr.bf16.gmra.mrb[0].mxu0 %v2050
  %v2098 = vpop.f32.mrb[0].mxu0
  %v2099 = vadd.f32 0.0, %v2098
  %v2100 = vpop.f32.mrb[0].mxu0
  %v2101 = vpop.f32.mrb[0].mxu0
  %v2102 = vadd.f32 0.0, %v2101
  %v2103 = vpop.f32.mrb[0].mxu0
  %2104 = vmatprep.mubr.bf16.mxu0 0
  %2105 = vmatmul.mubr.bf16.gmra.mrb[0].mxu0 %v2053
  %v2106 = vpop.f32.mrb[0].mxu0
  %v2107 = vadd.f32 0.0, %v2106
  %v2108 = vpop.f32.mrb[0].mxu0
  %v2109 = vpop.f32.mrb[0].mxu0
  %v2110 = vadd.f32 0.0, %v2109
  %v2111 = vpop.f32.mrb[0].mxu0
  %2112 = vmatprep.mubr.bf16.mxu0 0
  %2113 = vmatmul.mubr.bf16.gmra.mrb[0].mxu0 %v2056
  %v2114 = vpop.f32.mrb[0].mxu0
  %v2115 = vadd.f32 0.0, %v2114
  %v2116 = vpop.f32.mrb[0].mxu0
  %v2117 = vpop.f32.mrb[0].mxu0
  %v2118 = vadd.f32 0.0, %v2117
  %v2119 = vpop.f32.mrb[0].mxu0
  %2120 = vmatprep.mubr.bf16.mxu0 0
  %2121 = vmatmul.mubr.bf16.gmra.mrb[0].mxu0 %v2059
  %v2122 = vpop.f32.mrb[0].mxu0
  %v2123 = vadd.f32 0.0, %v2122
  %v2124 = vpop.f32.mrb[0].mxu0
  %v2125 = vpop.f32.mrb[0].mxu0
  %v2126 = vadd.f32 0.0, %v2125
  %v2127 = vpop.f32.mrb[0].mxu0
  %2128 = vmatprep.mubr.bf16.mxu0 0
  %2129 = vmatmul.mubr.bf16.gmra.mrb[0].mxu0 %v2062
  %v2130 = vpop.f32.mrb[0].mxu0
  %v2131 = vadd.f32 0.0, %v2130
  %v2132 = vpop.f32.mrb[0].mxu0
  %v2133 = vpop.f32.mrb[0].mxu0
  %v2134 = vadd.f32 0.0, %v2133
  %v2135 = vpop.f32.mrb[0].mxu0
  %2136 = vdwg.mxu0
  %v2137 = vld [vmem:[%s287] sm:$0xff]
  %v2138 = vld [vmem:[%s287 + $0x8] sm:$0xff]
  %v2139 = vld [vmem:[%s287 + $0x10] sm:$0xff]
  %v2140 = vld [vmem:[%s287 + $0x18] sm:$0xff]
  %v2141 = vld [vmem:[%s287 + $0x20] sm:$0xff]
  %v2142 = vld [vmem:[%s287 + $0x28] sm:$0xff]
  %v2143 = vld [vmem:[%s287 + $0x30] sm:$0xff]
  %v2144 = vld [vmem:[%s287 + $0x38] sm:$0xff]
  %v2145 = vld [vmem:[%s287 + $0x40] sm:$0xff]
  %v2146 = vld [vmem:[%s287 + $0x48] sm:$0x3f]
  %v2147 = vadd.f32 %v2137, %v2099
  %v2148 = vadd.f32 %v2138, %v2102
  %v2149 = vadd.f32 %v2139, %v2107
  %v2150 = vadd.f32 %v2140, %v2110
  %v2151 = vadd.f32 %v2141, %v2115
  %v2152 = vadd.f32 %v2142, %v2118
  %v2153 = vadd.f32 %v2143, %v2123
  %v2154 = vadd.f32 %v2144, %v2126
  %v2155 = vadd.f32 %v2145, %v2131
  %v2156 = vadd.f32 %v2146, %v2134
  %2157 = vst.msk [vmem:[%s287] sm:$0xff] %vm63, %v2147
  %2158 = vst.msk [vmem:[%s287 + $0x8] sm:$0xff] %vm63, %v2148
  %2159 = vst.msk [vmem:[%s287 + $0x10] sm:$0xff] %vm63, %v2149
  %2160 = vst.msk [vmem:[%s287 + $0x18] sm:$0xff] %vm63, %v2150
  %2161 = vst.msk [vmem:[%s287 + $0x20] sm:$0xff] %vm63, %v2151
  %2162 = vst.msk [vmem:[%s287 + $0x28] sm:$0xff] %vm63, %v2152
  %2163 = vst.msk [vmem:[%s287 + $0x30] sm:$0xff] %vm63, %v2153
  %2164 = vst.msk [vmem:[%s287 + $0x38] sm:$0xff] %vm63, %v2154
  %2165 = vst.msk [vmem:[%s287 + $0x40] sm:$0xff] %vm63, %v2155
  %2166 = vst.msk [vmem:[%s287 + $0x48] sm:$0x3f] %vm161, %v2156
  %s2167 = scalar_lea.vmem %s1, 96
  %v2168 = vld [vmem:[%s2167] sm:$0xf]
  %v2169 = vld [vmem:[%s2167 + $0x4] sm:$0xf]
  %v2170 = vld [vmem:[%s2167 + $0x8] sm:$0xf]
  %v2171 = vld [vmem:[%s2167 + $0xc] sm:$0xf]
  %v2172 = vld [vmem:[%s0 + $0x8] sm:$0xc]
  %v2173 = vld [vmem:[%s0 + $0xc] sm:$0xf]
  %v2174 = vld [vmem:[%s0 + $0x10] sm:$0xf]
  %v2175 = vld [vmem:[%s0 + $0x14] sm:$0xf]
  %v2176 = vld [vmem:[%s0 + $0x18] sm:$0xf]
  %v2177 = vld [vmem:[%s0 + $0x1c] sm:$0xf]
  %v2178 = vld [vmem:[%s0 + $0x20] sm:$0xf]
  %v2179 = vld [vmem:[%s0 + $0x24] sm:$0xf]
  %v2180 = vld [vmem:[%s0 + $0x28] sm:$0xf]
  %v2181 = vld [vmem:[%s0 + $0x2c] sm:$0xf]
  %v2182 = vld [vmem:[%s0 + $0x30] sm:$0x1]
  %v2194 = vunpack.c.l.b16 %v2172
  %v2195 = vunpack.c.l.b16 %v2173
  %v2196 = vunpack.c.l.b16 %v2174
  %v2197 = vunpack.c.l.b16 %v2175
  %v2198 = vunpack.c.l.b16 %v2176
  %v2199 = vunpack.c.l.b16 %v2177
  %v2200 = vunpack.c.l.b16 %v2178
  %v2201 = vunpack.c.l.b16 %v2179
  %v2202 = vunpack.c.l.b16 %v2180
  %v2203 = vunpack.c.l.b16 %v2181
  %v2204 = vunpack.c.l.b16 %v2182
  %v2205 = vpack.c.b16 %v2195, %v2194
  %v2206 = vpack.c.b16 %v2197, %v2196
  %v2207 = vpack.c.b16 %v2199, %v2198
  %v2208 = vpack.c.b16 %v2201, %v2200
  %v2209 = vpack.c.b16 %v2203, %v2202
  %v2210 = vpack.c.b16 %v2204, %v2204
  %v2211 = vrot.slane %v2205, 2
  %v2212 = vrot.slane %v2206, 2
  %v2213 = vsel %vm1857, %v2211, %v2212
  %v2214 = vrot.slane %v2207, 2
  %v2215 = vsel %vm1857, %v2212, %v2214
  %v2216 = vrot.slane %v2208, 2
  %v2217 = vsel %vm1857, %v2214, %v2216
  %v2218 = vrot.slane %v2209, 2
  %v2219 = vsel %vm1857, %v2216, %v2218
  %v2220 = vrot.slane %v2210, 2
  %v2221 = vsel %vm1857, %v2218, %v2220
  %v2226 = vunpack.c.l.b16 %v2168
  %v2227 = vunpack.c.l.b16 %v2169
  %v2228 = vunpack.c.l.b16 %v2170
  %v2229 = vunpack.c.l.b16 %v2171
  %v2230 = vpack.c.b16 %v2227, %v2226
  %v2231 = vpack.c.b16 %v2229, %v2228
  %v2235 = vsel %vm63, %v2213, 0
  %v2238 = vsel %vm63, %v2215, 0
  %v2241 = vsel %vm63, %v2217, 0
  %v2244 = vsel %vm63, %v2219, 0
  %v2247 = vsel %vm63, %v2221, 0
  %2249 = vmatprep.subr.bf16.mxu0 0
  %2250 = vmatpush1.bf16.msra.mxu0 %v2230
  %2251 = vmatprep.subr.bf16.mxu0 0
  %2252 = vmatpush1.bf16.msra.mxu0 %v2231
  %2253 = vmatprep.subr.bf16.mxu0 0
  %2254 = vmatpush1.bf16.msra.mxu0 0
  %2255 = vmatprep.subr.bf16.mxu0 0
  %2256 = vmatpush1.bf16.msra.mxu0 0
  %2257 = vmatprep.subr.bf16.mxu0 0
  %2258 = vmatpush1.bf16.msra.mxu0 0
  %2259 = vmatprep.subr.bf16.mxu0 0
  %2260 = vmatpush1.bf16.msra.mxu0 0
  %2261 = vmatprep.subr.bf16.mxu0 0
  %2262 = vmatpush1.bf16.msra.mxu0 0
  %2263 = vmatprep.subr.bf16.mxu0 0
  %2264 = vmatpush1.bf16.msra.mxu0 0
  %2265 = vmatprep.subr.bf16.mxu0 0
  %2266 = vmatpush1.bf16.msra.mxu0 0
  %2267 = vmatprep.subr.bf16.mxu0 0
  %2268 = vmatpush1.bf16.msra.mxu0 0
  %2269 = vmatprep.subr.bf16.mxu0 0
  %2270 = vmatpush1.bf16.msra.mxu0 0
  %2271 = vmatprep.subr.bf16.mxu0 0
  %2272 = vmatpush1.bf16.msra.mxu0 0
  %2273 = vmatprep.subr.bf16.mxu0 0
  %2274 = vmatpush1.bf16.msra.mxu0 0
  %2275 = vmatprep.subr.bf16.mxu0 0
  %2276 = vmatpush1.bf16.msra.mxu0 0
  %2277 = vmatprep.subr.bf16.mxu0 0
  %2278 = vmatpush1.bf16.msra.mxu0 0
  %2279 = vmatprep.subr.bf16.mxu0 0
  %2280 = vmatpush1.bf16.msra.mxu0 0
  %2281 = vmatprep.mubr.bf16.mxu0 0
  %2282 = vmatmul.mubr.bf16.gmra.mrb[0].mxu0 %v2235
  %v2283 = vpop.f32.mrb[0].mxu0
  %v2284 = vadd.f32 0.0, %v2283
  %v2285 = vpop.f32.mrb[0].mxu0
  %v2286 = vpop.f32.mrb[0].mxu0
  %v2287 = vadd.f32 0.0, %v2286
  %v2288 = vpop.f32.mrb[0].mxu0
  %2289 = vmatprep.mubr.bf16.mxu0 0
  %2290 = vmatmul.mubr.bf16.gmra.mrb[0].mxu0 %v2238
  %v2291 = vpop.f32.mrb[0].mxu0
  %v2292 = vadd.f32 0.0, %v2291
  %v2293 = vpop.f32.mrb[0].mxu0
  %v2294 = vpop.f32.mrb[0].mxu0
  %v2295 = vadd.f32 0.0, %v2294
  %v2296 = vpop.f32.mrb[0].mxu0
  %2297 = vmatprep.mubr.bf16.mxu0 0
  %2298 = vmatmul.mubr.bf16.gmra.mrb[0].mxu0 %v2241
  %v2299 = vpop.f32.mrb[0].mxu0
  %v2300 = vadd.f32 0.0, %v2299
  %v2301 = vpop.f32.mrb[0].mxu0
  %v2302 = vpop.f32.mrb[0].mxu0
  %v2303 = vadd.f32 0.0, %v2302
  %v2304 = vpop.f32.mrb[0].mxu0
  %2305 = vmatprep.mubr.bf16.mxu0 0
  %2306 = vmatmul.mubr.bf16.gmra.mrb[0].mxu0 %v2244
  %v2307 = vpop.f32.mrb[0].mxu0
  %v2308 = vadd.f32 0.0, %v2307
  %v2309 = vpop.f32.mrb[0].mxu0
  %v2310 = vpop.f32.mrb[0].mxu0
  %v2311 = vadd.f32 0.0, %v2310
  %v2312 = vpop.f32.mrb[0].mxu0
  %2313 = vmatprep.mubr.bf16.mxu0 0
  %2314 = vmatmul.mubr.bf16.gmra.mrb[0].mxu0 %v2247
  %v2315 = vpop.f32.mrb[0].mxu0
  %v2316 = vadd.f32 0.0, %v2315
  %v2317 = vpop.f32.mrb[0].mxu0
  %v2318 = vpop.f32.mrb[0].mxu0
  %v2319 = vadd.f32 0.0, %v2318
  %v2320 = vpop.f32.mrb[0].mxu0
  %2321 = vdwg.mxu0
  %v2322 = vld [vmem:[#allocation2] sm:$0xff]
  %v2323 = vld [vmem:[#allocation2 + $0x8] sm:$0xff]
  %v2324 = vld [vmem:[#allocation2 + $0x10] sm:$0xff]
  %v2325 = vld [vmem:[#allocation2 + $0x18] sm:$0xff]
  %v2326 = vld [vmem:[#allocation2 + $0x20] sm:$0xff]
  %v2327 = vld [vmem:[#allocation2 + $0x28] sm:$0xff]
  %v2328 = vld [vmem:[#allocation2 + $0x30] sm:$0xff]
  %v2329 = vld [vmem:[#allocation2 + $0x38] sm:$0xff]
  %v2330 = vld [vmem:[#allocation2 + $0x40] sm:$0xff]
  %v2331 = vld [vmem:[#allocation2 + $0x48] sm:$0x3f]
  %v2332 = vadd.f32 %v2322, %v2284
  %v2333 = vadd.f32 %v2323, %v2287
  %v2334 = vadd.f32 %v2324, %v2292
  %v2335 = vadd.f32 %v2325, %v2295
  %v2336 = vadd.f32 %v2326, %v2300
  %v2337 = vadd.f32 %v2327, %v2303
  %v2338 = vadd.f32 %v2328, %v2308
  %v2339 = vadd.f32 %v2329, %v2311
  %v2340 = vadd.f32 %v2330, %v2316
  %v2341 = vadd.f32 %v2331, %v2319
  %2342 = vst.msk [vmem:[#allocation2] sm:$0xff] %vm63, %v2332
  %2343 = vst.msk [vmem:[#allocation2 + $0x8] sm:$0xff] %vm63, %v2333
  %2344 = vst.msk [vmem:[#allocation2 + $0x10] sm:$0xff] %vm63, %v2334
  %2345 = vst.msk [vmem:[#allocation2 + $0x18] sm:$0xff] %vm63, %v2335
  %2346 = vst.msk [vmem:[#allocation2 + $0x20] sm:$0xff] %vm63, %v2336
  %2347 = vst.msk [vmem:[#allocation2 + $0x28] sm:$0xff] %vm63, %v2337
  %2348 = vst.msk [vmem:[#allocation2 + $0x30] sm:$0xff] %vm63, %v2338
  %2349 = vst.msk [vmem:[#allocation2 + $0x38] sm:$0xff] %vm63, %v2339
  %2350 = vst.msk [vmem:[#allocation2 + $0x40] sm:$0xff] %vm63, %v2340
  %2351 = vst.msk [vmem:[#allocation2 + $0x48] sm:$0x3f] %vm161, %v2341
  %v2352 = vld [vmem:[%s163 + $0x8] sm:$0xc]
  %v2353 = vld [vmem:[%s163 + $0xc] sm:$0xf]
  %v2354 = vld [vmem:[%s163 + $0x10] sm:$0xf]
  %v2355 = vld [vmem:[%s163 + $0x14] sm:$0xf]
  %v2356 = vld [vmem:[%s163 + $0x18] sm:$0xf]
  %v2357 = vld [vmem:[%s163 + $0x1c] sm:$0xf]
  %v2358 = vld [vmem:[%s163 + $0x20] sm:$0xf]
  %v2359 = vld [vmem:[%s163 + $0x24] sm:$0xf]
  %v2360 = vld [vmem:[%s163 + $0x28] sm:$0xf]
  %v2361 = vld [vmem:[%s163 + $0x2c] sm:$0xf]
  %v2362 = vld [vmem:[%s163 + $0x30] sm:$0x1]
  %v2374 = vunpack.c.l.b16 %v2352
  %v2375 = vunpack.c.l.b16 %v2353
  %v2376 = vunpack.c.l.b16 %v2354
  %v2377 = vunpack.c.l.b16 %v2355
  %v2378 = vunpack.c.l.b16 %v2356
  %v2379 = vunpack.c.l.b16 %v2357
  %v2380 = vunpack.c.l.b16 %v2358
  %v2381 = vunpack.c.l.b16 %v2359
  %v2382 = vunpack.c.l.b16 %v2360
  %v2383 = vunpack.c.l.b16 %v2361
  %v2384 = vunpack.c.l.b16 %v2362
  %v2385 = vpack.c.b16 %v2375, %v2374
  %v2386 = vpack.c.b16 %v2377, %v2376
  %v2387 = vpack.c.b16 %v2379, %v2378
  %v2388 = vpack.c.b16 %v2381, %v2380
  %v2389 = vpack.c.b16 %v2383, %v2382
  %v2390 = vpack.c.b16 %v2384, %v2384
  %v2391 = vrot.slane %v2385, 2
  %v2392 = vrot.slane %v2386, 2
  %v2393 = vsel %vm1857, %v2391, %v2392
  %v2394 = vrot.slane %v2387, 2
  %v2395 = vsel %vm1857, %v2392, %v2394
  %v2396 = vrot.slane %v2388, 2
  %v2397 = vsel %vm1857, %v2394, %v2396
  %v2398 = vrot.slane %v2389, 2
  %v2399 = vsel %vm1857, %v2396, %v2398
  %v2400 = vrot.slane %v2390, 2
  %v2401 = vsel %vm1857, %v2398, %v2400
  %v2403 = vsel %vm63, %v2393, 0
  %v2406 = vsel %vm63, %v2395, 0
  %v2409 = vsel %vm63, %v2397, 0
  %v2412 = vsel %vm63, %v2399, 0
  %v2415 = vsel %vm63, %v2401, 0
  %2417 = vmatprep.subr.bf16.mxu0 0
  %2418 = vmatpush1.bf16.msra.mxu0 %v2230
  %2419 = vmatprep.subr.bf16.mxu0 0
  %2420 = vmatpush1.bf16.msra.mxu0 %v2231
  %2421 = vmatprep.subr.bf16.mxu0 0
  %2422 = vmatpush1.bf16.msra.mxu0 0
  %2423 = vmatprep.subr.bf16.mxu0 0
  %2424 = vmatpush1.bf16.msra.mxu0 0
  %2425 = vmatprep.subr.bf16.mxu0 0
  %2426 = vmatpush1.bf16.msra.mxu0 0
  %2427 = vmatprep.subr.bf16.mxu0 0
  %2428 = vmatpush1.bf16.msra.mxu0 0
  %2429 = vmatprep.subr.bf16.mxu0 0
  %2430 = vmatpush1.bf16.msra.mxu0 0
  %2431 = vmatprep.subr.bf16.mxu0 0
  %2432 = vmatpush1.bf16.msra.mxu0 0
  %2433 = vmatprep.subr.bf16.mxu0 0
  %2434 = vmatpush1.bf16.msra.mxu0 0
  %2435 = vmatprep.subr.bf16.mxu0 0
  %2436 = vmatpush1.bf16.msra.mxu0 0
  %2437 = vmatprep.subr.bf16.mxu0 0
  %2438 = vmatpush1.bf16.msra.mxu0 0
  %2439 = vmatprep.subr.bf16.mxu0 0
  %2440 = vmatpush1.bf16.msra.mxu0 0
  %2441 = vmatprep.subr.bf16.mxu0 0
  %2442 = vmatpush1.bf16.msra.mxu0 0
  %2443 = vmatprep.subr.bf16.mxu0 0
  %2444 = vmatpush1.bf16.msra.mxu0 0
  %2445 = vmatprep.subr.bf16.mxu0 0
  %2446 = vmatpush1.bf16.msra.mxu0 0
  %2447 = vmatprep.subr.bf16.mxu0 0
  %2448 = vmatpush1.bf16.msra.mxu0 0
  %2449 = vmatprep.mubr.bf16.mxu0 0
  %2450 = vmatmul.mubr.bf16.gmra.mrb[0].mxu0 %v2403
  %v2451 = vpop.f32.mrb[0].mxu0
  %v2452 = vadd.f32 0.0, %v2451
  %v2453 = vpop.f32.mrb[0].mxu0
  %v2454 = vpop.f32.mrb[0].mxu0
  %v2455 = vadd.f32 0.0, %v2454
  %v2456 = vpop.f32.mrb[0].mxu0
  %2457 = vmatprep.mubr.bf16.mxu0 0
  %2458 = vmatmul.mubr.bf16.gmra.mrb[0].mxu0 %v2406
  %v2459 = vpop.f32.mrb[0].mxu0
  %v2460 = vadd.f32 0.0, %v2459
  %v2461 = vpop.f32.mrb[0].mxu0
  %v2462 = vpop.f32.mrb[0].mxu0
  %v2463 = vadd.f32 0.0, %v2462
  %v2464 = vpop.f32.mrb[0].mxu0
  %2465 = vmatprep.mubr.bf16.mxu0 0
  %2466 = vmatmul.mubr.bf16.gmra.mrb[0].mxu0 %v2409
  %v2467 = vpop.f32.mrb[0].mxu0
  %v2468 = vadd.f32 0.0, %v2467
  %v2469 = vpop.f32.mrb[0].mxu0
  %v2470 = vpop.f32.mrb[0].mxu0
  %v2471 = vadd.f32 0.0, %v2470
  %v2472 = vpop.f32.mrb[0].mxu0
  %2473 = vmatprep.mubr.bf16.mxu0 0
  %2474 = vmatmul.mubr.bf16.gmra.mrb[0].mxu0 %v2412
  %v2475 = vpop.f32.mrb[0].mxu0
  %v2476 = vadd.f32 0.0, %v2475
  %v2477 = vpop.f32.mrb[0].mxu0
  %v2478 = vpop.f32.mrb[0].mxu0
  %v2479 = vadd.f32 0.0, %v2478
  %v2480 = vpop.f32.mrb[0].mxu0
  %2481 = vmatprep.mubr.bf16.mxu0 0
  %2482 = vmatmul.mubr.bf16.gmra.mrb[0].mxu0 %v2415
  %v2483 = vpop.f32.mrb[0].mxu0
  %v2484 = vadd.f32 0.0, %v2483
  %v2485 = vpop.f32.mrb[0].mxu0
  %v2486 = vpop.f32.mrb[0].mxu0
  %v2487 = vadd.f32 0.0, %v2486
  %v2488 = vpop.f32.mrb[0].mxu0
  %2489 = vdwg.mxu0
  %v2490 = vld [vmem:[%s287] sm:$0xff]
  %v2491 = vld [vmem:[%s287 + $0x8] sm:$0xff]
  %v2492 = vld [vmem:[%s287 + $0x10] sm:$0xff]
  %v2493 = vld [vmem:[%s287 + $0x18] sm:$0xff]
  %v2494 = vld [vmem:[%s287 + $0x20] sm:$0xff]
  %v2495 = vld [vmem:[%s287 + $0x28] sm:$0xff]
  %v2496 = vld [vmem:[%s287 + $0x30] sm:$0xff]
  %v2497 = vld [vmem:[%s287 + $0x38] sm:$0xff]
  %v2498 = vld [vmem:[%s287 + $0x40] sm:$0xff]
  %v2499 = vld [vmem:[%s287 + $0x48] sm:$0x3f]
  %v2500 = vadd.f32 %v2490, %v2452
  %v2501 = vadd.f32 %v2491, %v2455
  %v2502 = vadd.f32 %v2492, %v2460
  %v2503 = vadd.f32 %v2493, %v2463
  %v2504 = vadd.f32 %v2494, %v2468
  %v2505 = vadd.f32 %v2495, %v2471
  %v2506 = vadd.f32 %v2496, %v2476
  %v2507 = vadd.f32 %v2497, %v2479
  %v2508 = vadd.f32 %v2498, %v2484
  %v2509 = vadd.f32 %v2499, %v2487
  %2510 = vst.msk [vmem:[%s287] sm:$0xff] %vm63, %v2500
  %2511 = vst.msk [vmem:[%s287 + $0x8] sm:$0xff] %vm63, %v2501
  %2512 = vst.msk [vmem:[%s287 + $0x10] sm:$0xff] %vm63, %v2502
  %2513 = vst.msk [vmem:[%s287 + $0x18] sm:$0xff] %vm63, %v2503
  %2514 = vst.msk [vmem:[%s287 + $0x20] sm:$0xff] %vm63, %v2504
  %2515 = vst.msk [vmem:[%s287 + $0x28] sm:$0xff] %vm63, %v2505
  %2516 = vst.msk [vmem:[%s287 + $0x30] sm:$0xff] %vm63, %v2506
  %2517 = vst.msk [vmem:[%s287 + $0x38] sm:$0xff] %vm63, %v2507
  %2518 = vst.msk [vmem:[%s287 + $0x40] sm:$0xff] %vm63, %v2508
  %2519 = vst.msk [vmem:[%s287 + $0x48] sm:$0x3f] %vm161, %v2509
  %s2520 = scalar_lea.vmem %s1, 112
  %v2521 = vld [vmem:[%s2520] sm:$0xf]
  %v2522 = vld [vmem:[%s2520 + $0x4] sm:$0xf]
  %v2523 = vld [vmem:[%s2520 + $0x8] sm:$0xf]
  %v2524 = vld [vmem:[%s2520 + $0xc] sm:$0xf]
  %v2525 = vld [vmem:[%s0 + $0x8] sm:$0xc]
  %v2526 = vld [vmem:[%s0 + $0xc] sm:$0xf]
  %v2527 = vld [vmem:[%s0 + $0x10] sm:$0xf]
  %v2528 = vld [vmem:[%s0 + $0x14] sm:$0xf]
  %v2529 = vld [vmem:[%s0 + $0x18] sm:$0xf]
  %v2530 = vld [vmem:[%s0 + $0x1c] sm:$0xf]
  %v2531 = vld [vmem:[%s0 + $0x20] sm:$0xf]
  %v2532 = vld [vmem:[%s0 + $0x24] sm:$0xf]
  %v2533 = vld [vmem:[%s0 + $0x28] sm:$0xf]
  %v2534 = vld [vmem:[%s0 + $0x2c] sm:$0xf]
  %v2535 = vld [vmem:[%s0 + $0x30] sm:$0x3]
  %v2547 = vunpack.c.l.b16 %v2525
  %v2548 = vunpack.c.l.b16 %v2526
  %v2549 = vunpack.c.l.b16 %v2527
  %v2550 = vunpack.c.l.b16 %v2528
  %v2551 = vunpack.c.l.b16 %v2529
  %v2552 = vunpack.c.l.b16 %v2530
  %v2553 = vunpack.c.l.b16 %v2531
  %v2554 = vunpack.c.l.b16 %v2532
  %v2555 = vunpack.c.l.b16 %v2533
  %v2556 = vunpack.c.l.b16 %v2534
  %v2557 = vunpack.c.l.b16 %v2535
  %v2558 = vpack.c.b16 %v2548, %v2547
  %v2559 = vpack.c.b16 %v2550, %v2549
  %v2560 = vpack.c.b16 %v2552, %v2551
  %v2561 = vpack.c.b16 %v2554, %v2553
  %v2562 = vpack.c.b16 %v2556, %v2555
  %v2563 = vpack.c.b16 %v2557, %v2557
  %vm2564 = vsmask.f32 5376
  %v2566 = vshrl.u32 %v2558, 16
  %v2568 = vrot.slane %v2566, 2
  %v2569 = vshll.u32 %v2558, 16
  %v2571 = vrot.slane %v2569, 3
  %v2572 = vor.u32 %v2568, %v2571
  %v2574 = vshrl.u32 %v2559, 16
  %v2576 = vrot.slane %v2574, 2
  %v2577 = vshll.u32 %v2559, 16
  %v2579 = vrot.slane %v2577, 3
  %v2580 = vor.u32 %v2576, %v2579
  %v2581 = vsel %vm2564, %v2572, %v2580
  %v2583 = vshrl.u32 %v2560, 16
  %v2585 = vrot.slane %v2583, 2
  %v2586 = vshll.u32 %v2560, 16
  %v2588 = vrot.slane %v2586, 3
  %v2589 = vor.u32 %v2585, %v2588
  %v2590 = vsel %vm2564, %v2580, %v2589
  %v2592 = vshrl.u32 %v2561, 16
  %v2594 = vrot.slane %v2592, 2
  %v2595 = vshll.u32 %v2561, 16
  %v2597 = vrot.slane %v2595, 3
  %v2598 = vor.u32 %v2594, %v2597
  %v2599 = vsel %vm2564, %v2589, %v2598
  %v2601 = vshrl.u32 %v2562, 16
  %v2603 = vrot.slane %v2601, 2
  %v2604 = vshll.u32 %v2562, 16
  %v2606 = vrot.slane %v2604, 3
  %v2607 = vor.u32 %v2603, %v2606
  %v2608 = vsel %vm2564, %v2598, %v2607
  %v2610 = vshrl.u32 %v2563, 16
  %v2612 = vrot.slane %v2610, 2
  %v2613 = vshll.u32 %v2563, 16
  %v2615 = vrot.slane %v2613, 3
  %v2616 = vor.u32 %v2612, %v2615
  %v2617 = vsel %vm2564, %v2607, %v2616
  %v2622 = vunpack.c.l.b16 %v2521
  %v2623 = vunpack.c.l.b16 %v2522
  %v2624 = vunpack.c.l.b16 %v2523
  %v2625 = vunpack.c.l.b16 %v2524
  %v2626 = vpack.c.b16 %v2623, %v2622
  %v2627 = vpack.c.b16 %v2625, %v2624
  %v2631 = vsel %vm63, %v2581, 0
  %v2634 = vsel %vm63, %v2590, 0
  %v2637 = vsel %vm63, %v2599, 0
  %v2640 = vsel %vm63, %v2608, 0
  %v2643 = vsel %vm63, %v2617, 0
  %2645 = vmatprep.subr.bf16.mxu0 0
  %2646 = vmatpush1.bf16.msra.mxu0 %v2626
  %2647 = vmatprep.subr.bf16.mxu0 0
  %2648 = vmatpush1.bf16.msra.mxu0 %v2627
  %2649 = vmatprep.subr.bf16.mxu0 0
  %2650 = vmatpush1.bf16.msra.mxu0 0
  %2651 = vmatprep.subr.bf16.mxu0 0
  %2652 = vmatpush1.bf16.msra.mxu0 0
  %2653 = vmatprep.subr.bf16.mxu0 0
  %2654 = vmatpush1.bf16.msra.mxu0 0
  %2655 = vmatprep.subr.bf16.mxu0 0
  %2656 = vmatpush1.bf16.msra.mxu0 0
  %2657 = vmatprep.subr.bf16.mxu0 0
  %2658 = vmatpush1.bf16.msra.mxu0 0
  %2659 = vmatprep.subr.bf16.mxu0 0
  %2660 = vmatpush1.bf16.msra.mxu0 0
  %2661 = vmatprep.subr.bf16.mxu0 0
  %2662 = vmatpush1.bf16.msra.mxu0 0
  %2663 = vmatprep.subr.bf16.mxu0 0
  %2664 = vmatpush1.bf16.msra.mxu0 0
  %2665 = vmatprep.subr.bf16.mxu0 0
  %2666 = vmatpush1.bf16.msra.mxu0 0
  %2667 = vmatprep.subr.bf16.mxu0 0
  %2668 = vmatpush1.bf16.msra.mxu0 0
  %2669 = vmatprep.subr.bf16.mxu0 0
  %2670 = vmatpush1.bf16.msra.mxu0 0
  %2671 = vmatprep.subr.bf16.mxu0 0
  %2672 = vmatpush1.bf16.msra.mxu0 0
  %2673 = vmatprep.subr.bf16.mxu0 0
  %2674 = vmatpush1.bf16.msra.mxu0 0
  %2675 = vmatprep.subr.bf16.mxu0 0
  %2676 = vmatpush1.bf16.msra.mxu0 0
  %2677 = vmatprep.mubr.bf16.mxu0 0
  %2678 = vmatmul.mubr.bf16.gmra.mrb[0].mxu0 %v2631
  %v2679 = vpop.f32.mrb[0].mxu0
  %v2680 = vadd.f32 0.0, %v2679
  %v2681 = vpop.f32.mrb[0].mxu0
  %v2682 = vpop.f32.mrb[0].mxu0
  %v2683 = vadd.f32 0.0, %v2682
  %v2684 = vpop.f32.mrb[0].mxu0
  %2685 = vmatprep.mubr.bf16.mxu0 0
  %2686 = vmatmul.mubr.bf16.gmra.mrb[0].mxu0 %v2634
  %v2687 = vpop.f32.mrb[0].mxu0
  %v2688 = vadd.f32 0.0, %v2687
  %v2689 = vpop.f32.mrb[0].mxu0
  %v2690 = vpop.f32.mrb[0].mxu0
  %v2691 = vadd.f32 0.0, %v2690
  %v2692 = vpop.f32.mrb[0].mxu0
  %2693 = vmatprep.mubr.bf16.mxu0 0
  %2694 = vmatmul.mubr.bf16.gmra.mrb[0].mxu0 %v2637
  %v2695 = vpop.f32.mrb[0].mxu0
  %v2696 = vadd.f32 0.0, %v2695
  %v2697 = vpop.f32.mrb[0].mxu0
  %v2698 = vpop.f32.mrb[0].mxu0
  %v2699 = vadd.f32 0.0, %v2698
  %v2700 = vpop.f32.mrb[0].mxu0
  %2701 = vmatprep.mubr.bf16.mxu0 0
  %2702 = vmatmul.mubr.bf16.gmra.mrb[0].mxu0 %v2640
  %v2703 = vpop.f32.mrb[0].mxu0
  %v2704 = vadd.f32 0.0, %v2703
  %v2705 = vpop.f32.mrb[0].mxu0
  %v2706 = vpop.f32.mrb[0].mxu0
  %v2707 = vadd.f32 0.0, %v2706
  %v2708 = vpop.f32.mrb[0].mxu0
  %2709 = vmatprep.mubr.bf16.mxu0 0
  %2710 = vmatmul.mubr.bf16.gmra.mrb[0].mxu0 %v2643
  %v2711 = vpop.f32.mrb[0].mxu0
  %v2712 = vadd.f32 0.0, %v2711
  %v2713 = vpop.f32.mrb[0].mxu0
  %v2714 = vpop.f32.mrb[0].mxu0
  %v2715 = vadd.f32 0.0, %v2714
  %v2716 = vpop.f32.mrb[0].mxu0
  %2717 = vdwg.mxu0
  %v2718 = vld [vmem:[#allocation2] sm:$0xff]
  %v2719 = vld [vmem:[#allocation2 + $0x8] sm:$0xff]
  %v2720 = vld [vmem:[#allocation2 + $0x10] sm:$0xff]
  %v2721 = vld [vmem:[#allocation2 + $0x18] sm:$0xff]
  %v2722 = vld [vmem:[#allocation2 + $0x20] sm:$0xff]
  %v2723 = vld [vmem:[#allocation2 + $0x28] sm:$0xff]
  %v2724 = vld [vmem:[#allocation2 + $0x30] sm:$0xff]
  %v2725 = vld [vmem:[#allocation2 + $0x38] sm:$0xff]
  %v2726 = vld [vmem:[#allocation2 + $0x40] sm:$0xff]
  %v2727 = vld [vmem:[#allocation2 + $0x48] sm:$0x3f]
  %v2728 = vadd.f32 %v2718, %v2680
  %v2729 = vadd.f32 %v2719, %v2683
  %v2730 = vadd.f32 %v2720, %v2688
  %v2731 = vadd.f32 %v2721, %v2691
  %v2732 = vadd.f32 %v2722, %v2696
  %v2733 = vadd.f32 %v2723, %v2699
  %v2734 = vadd.f32 %v2724, %v2704
  %v2735 = vadd.f32 %v2725, %v2707
  %v2736 = vadd.f32 %v2726, %v2712
  %v2737 = vadd.f32 %v2727, %v2715
  %2738 = vst.msk [vmem:[#allocation2] sm:$0xff] %vm63, %v2728
  %2739 = vst.msk [vmem:[#allocation2 + $0x8] sm:$0xff] %vm63, %v2729
  %2740 = vst.msk [vmem:[#allocation2 + $0x10] sm:$0xff] %vm63, %v2730
  %2741 = vst.msk [vmem:[#allocation2 + $0x18] sm:$0xff] %vm63, %v2731
  %2742 = vst.msk [vmem:[#allocation2 + $0x20] sm:$0xff] %vm63, %v2732
  %2743 = vst.msk [vmem:[#allocation2 + $0x28] sm:$0xff] %vm63, %v2733
  %2744 = vst.msk [vmem:[#allocation2 + $0x30] sm:$0xff] %vm63, %v2734
  %2745 = vst.msk [vmem:[#allocation2 + $0x38] sm:$0xff] %vm63, %v2735
  %2746 = vst.msk [vmem:[#allocation2 + $0x40] sm:$0xff] %vm63, %v2736
  %2747 = vst.msk [vmem:[#allocation2 + $0x48] sm:$0x3f] %vm161, %v2737
  %v2748 = vld [vmem:[%s163 + $0x8] sm:$0xc]
  %v2749 = vld [vmem:[%s163 + $0xc] sm:$0xf]
  %v2750 = vld [vmem:[%s163 + $0x10] sm:$0xf]
  %v2751 = vld [vmem:[%s163 + $0x14] sm:$0xf]
  %v2752 = vld [vmem:[%s163 + $0x18] sm:$0xf]
  %v2753 = vld [vmem:[%s163 + $0x1c] sm:$0xf]
  %v2754 = vld [vmem:[%s163 + $0x20] sm:$0xf]
  %v2755 = vld [vmem:[%s163 + $0x24] sm:$0xf]
  %v2756 = vld [vmem:[%s163 + $0x28] sm:$0xf]
  %v2757 = vld [vmem:[%s163 + $0x2c] sm:$0xf]
  %v2758 = vld [vmem:[%s163 + $0x30] sm:$0x3]
  %v2770 = vunpack.c.l.b16 %v2748
  %v2771 = vunpack.c.l.b16 %v2749
  %v2772 = vunpack.c.l.b16 %v2750
  %v2773 = vunpack.c.l.b16 %v2751
  %v2774 = vunpack.c.l.b16 %v2752
  %v2775 = vunpack.c.l.b16 %v2753
  %v2776 = vunpack.c.l.b16 %v2754
  %v2777 = vunpack.c.l.b16 %v2755
  %v2778 = vunpack.c.l.b16 %v2756
  %v2779 = vunpack.c.l.b16 %v2757
  %v2780 = vunpack.c.l.b16 %v2758
  %v2781 = vpack.c.b16 %v2771, %v2770
  %v2782 = vpack.c.b16 %v2773, %v2772
  %v2783 = vpack.c.b16 %v2775, %v2774
  %v2784 = vpack.c.b16 %v2777, %v2776
  %v2785 = vpack.c.b16 %v2779, %v2778
  %v2786 = vpack.c.b16 %v2780, %v2780
  %v2788 = vshrl.u32 %v2781, 16
  %v2790 = vrot.slane %v2788, 2
  %v2791 = vshll.u32 %v2781, 16
  %v2793 = vrot.slane %v2791, 3
  %v2794 = vor.u32 %v2790, %v2793
  %v2796 = vshrl.u32 %v2782, 16
  %v2798 = vrot.slane %v2796, 2
  %v2799 = vshll.u32 %v2782, 16
  %v2801 = vrot.slane %v2799, 3
  %v2802 = vor.u32 %v2798, %v2801
  %v2803 = vsel %vm2564, %v2794, %v2802
  %v2805 = vshrl.u32 %v2783, 16
  %v2807 = vrot.slane %v2805, 2
  %v2808 = vshll.u32 %v2783, 16
  %v2810 = vrot.slane %v2808, 3
  %v2811 = vor.u32 %v2807, %v2810
  %v2812 = vsel %vm2564, %v2802, %v2811
  %v2814 = vshrl.u32 %v2784, 16
  %v2816 = vrot.slane %v2814, 2
  %v2817 = vshll.u32 %v2784, 16
  %v2819 = vrot.slane %v2817, 3
  %v2820 = vor.u32 %v2816, %v2819
  %v2821 = vsel %vm2564, %v2811, %v2820
  %v2823 = vshrl.u32 %v2785, 16
  %v2825 = vrot.slane %v2823, 2
  %v2826 = vshll.u32 %v2785, 16
  %v2828 = vrot.slane %v2826, 3
  %v2829 = vor.u32 %v2825, %v2828
  %v2830 = vsel %vm2564, %v2820, %v2829
  %v2832 = vshrl.u32 %v2786, 16
  %v2834 = vrot.slane %v2832, 2
  %v2835 = vshll.u32 %v2786, 16
  %v2837 = vrot.slane %v2835, 3
  %v2838 = vor.u32 %v2834, %v2837
  %v2839 = vsel %vm2564, %v2829, %v2838
  %v2841 = vsel %vm63, %v2803, 0
  %v2844 = vsel %vm63, %v2812, 0
  %v2847 = vsel %vm63, %v2821, 0
  %v2850 = vsel %vm63, %v2830, 0
  %v2853 = vsel %vm63, %v2839, 0
  %2855 = vmatprep.subr.bf16.mxu0 0
  %2856 = vmatpush1.bf16.msra.mxu0 %v2626
  %2857 = vmatprep.subr.bf16.mxu0 0
  %2858 = vmatpush1.bf16.msra.mxu0 %v2627
  %2859 = vmatprep.subr.bf16.mxu0 0
  %2860 = vmatpush1.bf16.msra.mxu0 0
  %2861 = vmatprep.subr.bf16.mxu0 0
  %2862 = vmatpush1.bf16.msra.mxu0 0
  %2863 = vmatprep.subr.bf16.mxu0 0
  %2864 = vmatpush1.bf16.msra.mxu0 0
  %2865 = vmatprep.subr.bf16.mxu0 0
  %2866 = vmatpush1.bf16.msra.mxu0 0
  %2867 = vmatprep.subr.bf16.mxu0 0
  %2868 = vmatpush1.bf16.msra.mxu0 0
  %2869 = vmatprep.subr.bf16.mxu0 0
  %2870 = vmatpush1.bf16.msra.mxu0 0
  %2871 = vmatprep.subr.bf16.mxu0 0
  %2872 = vmatpush1.bf16.msra.mxu0 0
  %2873 = vmatprep.subr.bf16.mxu0 0
  %2874 = vmatpush1.bf16.msra.mxu0 0
  %2875 = vmatprep.subr.bf16.mxu0 0
  %2876 = vmatpush1.bf16.msra.mxu0 0
  %2877 = vmatprep.subr.bf16.mxu0 0
  %2878 = vmatpush1.bf16.msra.mxu0 0
  %2879 = vmatprep.subr.bf16.mxu0 0
  %2880 = vmatpush1.bf16.msra.mxu0 0
  %2881 = vmatprep.subr.bf16.mxu0 0
  %2882 = vmatpush1.bf16.msra.mxu0 0
  %2883 = vmatprep.subr.bf16.mxu0 0
  %2884 = vmatpush1.bf16.msra.mxu0 0
  %2885 = vmatprep.subr.bf16.mxu0 0
  %2886 = vmatpush1.bf16.msra.mxu0 0
  %2887 = vmatprep.mubr.bf16.mxu0 0
  %2888 = vmatmul.mubr.bf16.gmra.mrb[0].mxu0 %v2841
  %v2889 = vpop.f32.mrb[0].mxu0
  %v2890 = vadd.f32 0.0, %v2889
  %v2891 = vpop.f32.mrb[0].mxu0
  %v2892 = vpop.f32.mrb[0].mxu0
  %v2893 = vadd.f32 0.0, %v2892
  %v2894 = vpop.f32.mrb[0].mxu0
  %2895 = vmatprep.mubr.bf16.mxu0 0
  %2896 = vmatmul.mubr.bf16.gmra.mrb[0].mxu0 %v2844
  %v2897 = vpop.f32.mrb[0].mxu0
  %v2898 = vadd.f32 0.0, %v2897
  %v2899 = vpop.f32.mrb[0].mxu0
  %v2900 = vpop.f32.mrb[0].mxu0
  %v2901 = vadd.f32 0.0, %v2900
  %v2902 = vpop.f32.mrb[0].mxu0
  %2903 = vmatprep.mubr.bf16.mxu0 0
  %2904 = vmatmul.mubr.bf16.gmra.mrb[0].mxu0 %v2847
  %v2905 = vpop.f32.mrb[0].mxu0
  %v2906 = vadd.f32 0.0, %v2905
  %v2907 = vpop.f32.mrb[0].mxu0
  %v2908 = vpop.f32.mrb[0].mxu0
  %v2909 = vadd.f32 0.0, %v2908
  %v2910 = vpop.f32.mrb[0].mxu0
  %2911 = vmatprep.mubr.bf16.mxu0 0
  %2912 = vmatmul.mubr.bf16.gmra.mrb[0].mxu0 %v2850
  %v2913 = vpop.f32.mrb[0].mxu0
  %v2914 = vadd.f32 0.0, %v2913
  %v2915 = vpop.f32.mrb[0].mxu0
  %v2916 = vpop.f32.mrb[0].mxu0
  %v2917 = vadd.f32 0.0, %v2916
  %v2918 = vpop.f32.mrb[0].mxu0
  %2919 = vmatprep.mubr.bf16.mxu0 0
  %2920 = vmatmul.mubr.bf16.gmra.mrb[0].mxu0 %v2853
  %v2921 = vpop.f32.mrb[0].mxu0
  %v2922 = vadd.f32 0.0, %v2921
  %v2923 = vpop.f32.mrb[0].mxu0
  %v2924 = vpop.f32.mrb[0].mxu0
  %v2925 = vadd.f32 0.0, %v2924
  %v2926 = vpop.f32.mrb[0].mxu0
  %2927 = vdwg.mxu0
  %v2928 = vld [vmem:[%s287] sm:$0xff]
  %v2929 = vld [vmem:[%s287 + $0x8] sm:$0xff]
  %v2930 = vld [vmem:[%s287 + $0x10] sm:$0xff]
  %v2931 = vld [vmem:[%s287 + $0x18] sm:$0xff]
  %v2932 = vld [vmem:[%s287 + $0x20] sm:$0xff]
  %v2933 = vld [vmem:[%s287 + $0x28] sm:$0xff]
  %v2934 = vld [vmem:[%s287 + $0x30] sm:$0xff]
  %v2935 = vld [vmem:[%s287 + $0x38] sm:$0xff]
  %v2936 = vld [vmem:[%s287 + $0x40] sm:$0xff]
  %v2937 = vld [vmem:[%s287 + $0x48] sm:$0x3f]
  %v2938 = vadd.f32 %v2928, %v2890
  %v2939 = vadd.f32 %v2929, %v2893
  %v2940 = vadd.f32 %v2930, %v2898
  %v2941 = vadd.f32 %v2931, %v2901
  %v2942 = vadd.f32 %v2932, %v2906
  %v2943 = vadd.f32 %v2933, %v2909
  %v2944 = vadd.f32 %v2934, %v2914
  %v2945 = vadd.f32 %v2935, %v2917
  %v2946 = vadd.f32 %v2936, %v2922
  %v2947 = vadd.f32 %v2937, %v2925
  %2948 = vst.msk [vmem:[%s287] sm:$0xff] %vm63, %v2938
  %2949 = vst.msk [vmem:[%s287 + $0x8] sm:$0xff] %vm63, %v2939
  %2950 = vst.msk [vmem:[%s287 + $0x10] sm:$0xff] %vm63, %v2940
  %2951 = vst.msk [vmem:[%s287 + $0x18] sm:$0xff] %vm63, %v2941
  %2952 = vst.msk [vmem:[%s287 + $0x20] sm:$0xff] %vm63, %v2942
  %2953 = vst.msk [vmem:[%s287 + $0x28] sm:$0xff] %vm63, %v2943
  %2954 = vst.msk [vmem:[%s287 + $0x30] sm:$0xff] %vm63, %v2944
  %2955 = vst.msk [vmem:[%s287 + $0x38] sm:$0xff] %vm63, %v2945
  %2956 = vst.msk [vmem:[%s287 + $0x40] sm:$0xff] %vm63, %v2946
  %2957 = vst.msk [vmem:[%s287 + $0x48] sm:$0x3f] %vm161, %v2947
  %s2958 = scalar_lea.vmem %s1, 128
  %v2959 = vld [vmem:[%s2958] sm:$0xf]
  %v2960 = vld [vmem:[%s2958 + $0x4] sm:$0xf]
  %v2961 = vld [vmem:[%s2958 + $0x8] sm:$0xf]
  %v2962 = vld [vmem:[%s2958 + $0xc] sm:$0xf]
  %v2963 = vld [vmem:[%s0 + $0x8] sm:$0x8]
  %v2964 = vld [vmem:[%s0 + $0xc] sm:$0xf]
  %v2965 = vld [vmem:[%s0 + $0x10] sm:$0xf]
  %v2966 = vld [vmem:[%s0 + $0x14] sm:$0xf]
  %v2967 = vld [vmem:[%s0 + $0x18] sm:$0xf]
  %v2968 = vld [vmem:[%s0 + $0x1c] sm:$0xf]
  %v2969 = vld [vmem:[%s0 + $0x20] sm:$0xf]
  %v2970 = vld [vmem:[%s0 + $0x24] sm:$0xf]
  %v2971 = vld [vmem:[%s0 + $0x28] sm:$0xf]
  %v2972 = vld [vmem:[%s0 + $0x2c] sm:$0xf]
  %v2973 = vld [vmem:[%s0 + $0x30] sm:$0x3]
  %v2985 = vunpack.c.l.b16 %v2963
  %v2986 = vunpack.c.l.b16 %v2964
  %v2987 = vunpack.c.l.b16 %v2965
  %v2988 = vunpack.c.l.b16 %v2966
  %v2989 = vunpack.c.l.b16 %v2967
  %v2990 = vunpack.c.l.b16 %v2968
  %v2991 = vunpack.c.l.b16 %v2969
  %v2992 = vunpack.c.l.b16 %v2970
  %v2993 = vunpack.c.l.b16 %v2971
  %v2994 = vunpack.c.l.b16 %v2972
  %v2995 = vunpack.c.l.b16 %v2973
  %v2996 = vpack.c.b16 %v2986, %v2985
  %v2997 = vpack.c.b16 %v2988, %v2987
  %v2998 = vpack.c.b16 %v2990, %v2989
  %v2999 = vpack.c.b16 %v2992, %v2991
  %v3000 = vpack.c.b16 %v2994, %v2993
  %v3001 = vpack.c.b16 %v2995, %v2995
  %vm3002 = vcmask 1044480
  %v3003 = vrot.slane %v2996, 3
  %v3004 = vrot.slane %v2997, 3
  %v3005 = vsel %vm3002, %v3003, %v3004
  %v3006 = vrot.slane %v2998, 3
  %v3007 = vsel %vm3002, %v3004, %v3006
  %v3008 = vrot.slane %v2999, 3
  %v3009 = vsel %vm3002, %v3006, %v3008
  %v3010 = vrot.slane %v3000, 3
  %v3011 = vsel %vm3002, %v3008, %v3010
  %v3012 = vrot.slane %v3001, 3
  %v3013 = vsel %vm3002, %v3010, %v3012
  %v3018 = vunpack.c.l.b16 %v2959
  %v3019 = vunpack.c.l.b16 %v2960
  %v3020 = vunpack.c.l.b16 %v2961
  %v3021 = vunpack.c.l.b16 %v2962
  %v3022 = vpack.c.b16 %v3019, %v3018
  %v3023 = vpack.c.b16 %v3021, %v3020
  %v3027 = vsel %vm63, %v3005, 0
  %v3030 = vsel %vm63, %v3007, 0
  %v3033 = vsel %vm63, %v3009, 0
  %v3036 = vsel %vm63, %v3011, 0
  %v3039 = vsel %vm63, %v3013, 0
  %3041 = vmatprep.subr.bf16.mxu0 0
  %3042 = vmatpush1.bf16.msra.mxu0 %v3022
  %3043 = vmatprep.subr.bf16.mxu0 0
  %3044 = vmatpush1.bf16.msra.mxu0 %v3023
  %3045 = vmatprep.subr.bf16.mxu0 0
  %3046 = vmatpush1.bf16.msra.mxu0 0
  %3047 = vmatprep.subr.bf16.mxu0 0
  %3048 = vmatpush1.bf16.msra.mxu0 0
  %3049 = vmatprep.subr.bf16.mxu0 0
  %3050 = vmatpush1.bf16.msra.mxu0 0
  %3051 = vmatprep.subr.bf16.mxu0 0
  %3052 = vmatpush1.bf16.msra.mxu0 0
  %3053 = vmatprep.subr.bf16.mxu0 0
  %3054 = vmatpush1.bf16.msra.mxu0 0
  %3055 = vmatprep.subr.bf16.mxu0 0
  %3056 = vmatpush1.bf16.msra.mxu0 0
  %3057 = vmatprep.subr.bf16.mxu0 0
  %3058 = vmatpush1.bf16.msra.mxu0 0
  %3059 = vmatprep.subr.bf16.mxu0 0
  %3060 = vmatpush1.bf16.msra.mxu0 0
  %3061 = vmatprep.subr.bf16.mxu0 0
  %3062 = vmatpush1.bf16.msra.mxu0 0
  %3063 = vmatprep.subr.bf16.mxu0 0
  %3064 = vmatpush1.bf16.msra.mxu0 0
  %3065 = vmatprep.subr.bf16.mxu0 0
  %3066 = vmatpush1.bf16.msra.mxu0 0
  %3067 = vmatprep.subr.bf16.mxu0 0
  %3068 = vmatpush1.bf16.msra.mxu0 0
  %3069 = vmatprep.subr.bf16.mxu0 0
  %3070 = vmatpush1.bf16.msra.mxu0 0
  %3071 = vmatprep.subr.bf16.mxu0 0
  %3072 = vmatpush1.bf16.msra.mxu0 0
  %3073 = vmatprep.mubr.bf16.mxu0 0
  %3074 = vmatmul.mubr.bf16.gmra.mrb[0].mxu0 %v3027
  %v3075 = vpop.f32.mrb[0].mxu0
  %v3076 = vadd.f32 0.0, %v3075
  %v3077 = vpop.f32.mrb[0].mxu0
  %v3078 = vpop.f32.mrb[0].mxu0
  %v3079 = vadd.f32 0.0, %v3078
  %v3080 = vpop.f32.mrb[0].mxu0
  %3081 = vmatprep.mubr.bf16.mxu0 0
  %3082 = vmatmul.mubr.bf16.gmra.mrb[0].mxu0 %v3030
  %v3083 = vpop.f32.mrb[0].mxu0
  %v3084 = vadd.f32 0.0, %v3083
  %v3085 = vpop.f32.mrb[0].mxu0
  %v3086 = vpop.f32.mrb[0].mxu0
  %v3087 = vadd.f32 0.0, %v3086
  %v3088 = vpop.f32.mrb[0].mxu0
  %3089 = vmatprep.mubr.bf16.mxu0 0
  %3090 = vmatmul.mubr.bf16.gmra.mrb[0].mxu0 %v3033
  %v3091 = vpop.f32.mrb[0].mxu0
  %v3092 = vadd.f32 0.0, %v3091
  %v3093 = vpop.f32.mrb[0].mxu0
  %v3094 = vpop.f32.mrb[0].mxu0
  %v3095 = vadd.f32 0.0, %v3094
  %v3096 = vpop.f32.mrb[0].mxu0
  %3097 = vmatprep.mubr.bf16.mxu0 0
  %3098 = vmatmul.mubr.bf16.gmra.mrb[0].mxu0 %v3036
  %v3099 = vpop.f32.mrb[0].mxu0
  %v3100 = vadd.f32 0.0, %v3099
  %v3101 = vpop.f32.mrb[0].mxu0
  %v3102 = vpop.f32.mrb[0].mxu0
  %v3103 = vadd.f32 0.0, %v3102
  %v3104 = vpop.f32.mrb[0].mxu0
  %3105 = vmatprep.mubr.bf16.mxu0 0
  %3106 = vmatmul.mubr.bf16.gmra.mrb[0].mxu0 %v3039
  %v3107 = vpop.f32.mrb[0].mxu0
  %v3108 = vadd.f32 0.0, %v3107
  %v3109 = vpop.f32.mrb[0].mxu0
  %v3110 = vpop.f32.mrb[0].mxu0
  %v3111 = vadd.f32 0.0, %v3110
  %v3112 = vpop.f32.mrb[0].mxu0
  %3113 = vdwg.mxu0
  %v3114 = vld [vmem:[#allocation2] sm:$0xff]
  %v3115 = vld [vmem:[#allocation2 + $0x8] sm:$0xff]
  %v3116 = vld [vmem:[#allocation2 + $0x10] sm:$0xff]
  %v3117 = vld [vmem:[#allocation2 + $0x18] sm:$0xff]
  %v3118 = vld [vmem:[#allocation2 + $0x20] sm:$0xff]
  %v3119 = vld [vmem:[#allocation2 + $0x28] sm:$0xff]
  %v3120 = vld [vmem:[#allocation2 + $0x30] sm:$0xff]
  %v3121 = vld [vmem:[#allocation2 + $0x38] sm:$0xff]
  %v3122 = vld [vmem:[#allocation2 + $0x40] sm:$0xff]
  %v3123 = vld [vmem:[#allocation2 + $0x48] sm:$0x3f]
  %v3124 = vadd.f32 %v3114, %v3076
  %v3125 = vadd.f32 %v3115, %v3079
  %v3126 = vadd.f32 %v3116, %v3084
  %v3127 = vadd.f32 %v3117, %v3087
  %v3128 = vadd.f32 %v3118, %v3092
  %v3129 = vadd.f32 %v3119, %v3095
  %v3130 = vadd.f32 %v3120, %v3100
  %v3131 = vadd.f32 %v3121, %v3103
  %v3132 = vadd.f32 %v3122, %v3108
  %v3133 = vadd.f32 %v3123, %v3111
  %3134 = vst.msk [vmem:[#allocation2] sm:$0xff] %vm63, %v3124
  %3135 = vst.msk [vmem:[#allocation2 + $0x8] sm:$0xff] %vm63, %v3125
  %3136 = vst.msk [vmem:[#allocation2 + $0x10] sm:$0xff] %vm63, %v3126
  %3137 = vst.msk [vmem:[#allocation2 + $0x18] sm:$0xff] %vm63, %v3127
  %3138 = vst.msk [vmem:[#allocation2 + $0x20] sm:$0xff] %vm63, %v3128
  %3139 = vst.msk [vmem:[#allocation2 + $0x28] sm:$0xff] %vm63, %v3129
  %3140 = vst.msk [vmem:[#allocation2 + $0x30] sm:$0xff] %vm63, %v3130
  %3141 = vst.msk [vmem:[#allocation2 + $0x38] sm:$0xff] %vm63, %v3131
  %3142 = vst.msk [vmem:[#allocation2 + $0x40] sm:$0xff] %vm63, %v3132
  %3143 = vst.msk [vmem:[#allocation2 + $0x48] sm:$0x3f] %vm161, %v3133
  %v3144 = vld [vmem:[%s163 + $0x8] sm:$0x8]
  %v3145 = vld [vmem:[%s163 + $0xc] sm:$0xf]
  %v3146 = vld [vmem:[%s163 + $0x10] sm:$0xf]
  %v3147 = vld [vmem:[%s163 + $0x14] sm:$0xf]
  %v3148 = vld [vmem:[%s163 + $0x18] sm:$0xf]
  %v3149 = vld [vmem:[%s163 + $0x1c] sm:$0xf]
  %v3150 = vld [vmem:[%s163 + $0x20] sm:$0xf]
  %v3151 = vld [vmem:[%s163 + $0x24] sm:$0xf]
  %v3152 = vld [vmem:[%s163 + $0x28] sm:$0xf]
  %v3153 = vld [vmem:[%s163 + $0x2c] sm:$0xf]
  %v3154 = vld [vmem:[%s163 + $0x30] sm:$0x3]
  %v3166 = vunpack.c.l.b16 %v3144
  %v3167 = vunpack.c.l.b16 %v3145
  %v3168 = vunpack.c.l.b16 %v3146
  %v3169 = vunpack.c.l.b16 %v3147
  %v3170 = vunpack.c.l.b16 %v3148
  %v3171 = vunpack.c.l.b16 %v3149
  %v3172 = vunpack.c.l.b16 %v3150
  %v3173 = vunpack.c.l.b16 %v3151
  %v3174 = vunpack.c.l.b16 %v3152
  %v3175 = vunpack.c.l.b16 %v3153
  %v3176 = vunpack.c.l.b16 %v3154
  %v3177 = vpack.c.b16 %v3167, %v3166
  %v3178 = vpack.c.b16 %v3169, %v3168
  %v3179 = vpack.c.b16 %v3171, %v3170
  %v3180 = vpack.c.b16 %v3173, %v3172
  %v3181 = vpack.c.b16 %v3175, %v3174
  %v3182 = vpack.c.b16 %v3176, %v3176
  %v3183 = vrot.slane %v3177, 3
  %v3184 = vrot.slane %v3178, 3
  %v3185 = vsel %vm3002, %v3183, %v3184
  %v3186 = vrot.slane %v3179, 3
  %v3187 = vsel %vm3002, %v3184, %v3186
  %v3188 = vrot.slane %v3180, 3
  %v3189 = vsel %vm3002, %v3186, %v3188
  %v3190 = vrot.slane %v3181, 3
  %v3191 = vsel %vm3002, %v3188, %v3190
  %v3192 = vrot.slane %v3182, 3
  %v3193 = vsel %vm3002, %v3190, %v3192
  %v3195 = vsel %vm63, %v3185, 0
  %v3198 = vsel %vm63, %v3187, 0
  %v3201 = vsel %vm63, %v3189, 0
  %v3204 = vsel %vm63, %v3191, 0
  %v3207 = vsel %vm63, %v3193, 0
  %3209 = vmatprep.subr.bf16.mxu0 0
  %3210 = vmatpush1.bf16.msra.mxu0 %v3022
  %3211 = vmatprep.subr.bf16.mxu0 0
  %3212 = vmatpush1.bf16.msra.mxu0 %v3023
  %3213 = vmatprep.subr.bf16.mxu0 0
  %3214 = vmatpush1.bf16.msra.mxu0 0
  %3215 = vmatprep.subr.bf16.mxu0 0
  %3216 = vmatpush1.bf16.msra.mxu0 0
  %3217 = vmatprep.subr.bf16.mxu0 0
  %3218 = vmatpush1.bf16.msra.mxu0 0
  %3219 = vmatprep.subr.bf16.mxu0 0
  %3220 = vmatpush1.bf16.msra.mxu0 0
  %3221 = vmatprep.subr.bf16.mxu0 0
  %3222 = vmatpush1.bf16.msra.mxu0 0
  %3223 = vmatprep.subr.bf16.mxu0 0
  %3224 = vmatpush1.bf16.msra.mxu0 0
  %3225 = vmatprep.subr.bf16.mxu0 0
  %3226 = vmatpush1.bf16.msra.mxu0 0
  %3227 = vmatprep.subr.bf16.mxu0 0
  %3228 = vmatpush1.bf16.msra.mxu0 0
  %3229 = vmatprep.subr.bf16.mxu0 0
  %3230 = vmatpush1.bf16.msra.mxu0 0
  %3231 = vmatprep.subr.bf16.mxu0 0
  %3232 = vmatpush1.bf16.msra.mxu0 0
  %3233 = vmatprep.subr.bf16.mxu0 0
  %3234 = vmatpush1.bf16.msra.mxu0 0
  %3235 = vmatprep.subr.bf16.mxu0 0
  %3236 = vmatpush1.bf16.msra.mxu0 0
  %3237 = vmatprep.subr.bf16.mxu0 0
  %3238 = vmatpush1.bf16.msra.mxu0 0
  %3239 = vmatprep.subr.bf16.mxu0 0
  %3240 = vmatpush1.bf16.msra.mxu0 0
  %3241 = vmatprep.mubr.bf16.mxu0 0
  %3242 = vmatmul.mubr.bf16.gmra.mrb[0].mxu0 %v3195
  %v3243 = vpop.f32.mrb[0].mxu0
  %v3244 = vadd.f32 0.0, %v3243
  %v3245 = vpop.f32.mrb[0].mxu0
  %v3246 = vpop.f32.mrb[0].mxu0
  %v3247 = vadd.f32 0.0, %v3246
  %v3248 = vpop.f32.mrb[0].mxu0
  %3249 = vmatprep.mubr.bf16.mxu0 0
  %3250 = vmatmul.mubr.bf16.gmra.mrb[0].mxu0 %v3198
  %v3251 = vpop.f32.mrb[0].mxu0
  %v3252 = vadd.f32 0.0, %v3251
  %v3253 = vpop.f32.mrb[0].mxu0
  %v3254 = vpop.f32.mrb[0].mxu0
  %v3255 = vadd.f32 0.0, %v3254
  %v3256 = vpop.f32.mrb[0].mxu0
  %3257 = vmatprep.mubr.bf16.mxu0 0
  %3258 = vmatmul.mubr.bf16.gmra.mrb[0].mxu0 %v3201
  %v3259 = vpop.f32.mrb[0].mxu0
  %v3260 = vadd.f32 0.0, %v3259
  %v3261 = vpop.f32.mrb[0].mxu0
  %v3262 = vpop.f32.mrb[0].mxu0
  %v3263 = vadd.f32 0.0, %v3262
  %v3264 = vpop.f32.mrb[0].mxu0
  %3265 = vmatprep.mubr.bf16.mxu0 0
  %3266 = vmatmul.mubr.bf16.gmra.mrb[0].mxu0 %v3204
  %v3267 = vpop.f32.mrb[0].mxu0
  %v3268 = vadd.f32 0.0, %v3267
  %v3269 = vpop.f32.mrb[0].mxu0
  %v3270 = vpop.f32.mrb[0].mxu0
  %v3271 = vadd.f32 0.0, %v3270
  %v3272 = vpop.f32.mrb[0].mxu0
  %3273 = vmatprep.mubr.bf16.mxu0 0
  %3274 = vmatmul.mubr.bf16.gmra.mrb[0].mxu0 %v3207
  %v3275 = vpop.f32.mrb[0].mxu0
  %v3276 = vadd.f32 0.0, %v3275
  %v3277 = vpop.f32.mrb[0].mxu0
  %v3278 = vpop.f32.mrb[0].mxu0
  %v3279 = vadd.f32 0.0, %v3278
  %v3280 = vpop.f32.mrb[0].mxu0
  %3281 = vdwg.mxu0
  %v3282 = vld [vmem:[%s287] sm:$0xff]
  %v3283 = vld [vmem:[%s287 + $0x8] sm:$0xff]
  %v3284 = vld [vmem:[%s287 + $0x10] sm:$0xff]
  %v3285 = vld [vmem:[%s287 + $0x18] sm:$0xff]
  %v3286 = vld [vmem:[%s287 + $0x20] sm:$0xff]
  %v3287 = vld [vmem:[%s287 + $0x28] sm:$0xff]
  %v3288 = vld [vmem:[%s287 + $0x30] sm:$0xff]
  %v3289 = vld [vmem:[%s287 + $0x38] sm:$0xff]
  %v3290 = vld [vmem:[%s287 + $0x40] sm:$0xff]
  %v3291 = vld [vmem:[%s287 + $0x48] sm:$0x3f]
  %v3292 = vadd.f32 %v3282, %v3244
  %v3293 = vadd.f32 %v3283, %v3247
  %v3294 = vadd.f32 %v3284, %v3252
  %v3295 = vadd.f32 %v3285, %v3255
  %v3296 = vadd.f32 %v3286, %v3260
  %v3297 = vadd.f32 %v3287, %v3263
  %v3298 = vadd.f32 %v3288, %v3268
  %v3299 = vadd.f32 %v3289, %v3271
  %v3300 = vadd.f32 %v3290, %v3276
  %v3301 = vadd.f32 %v3291, %v3279
  %3302 = vst.msk [vmem:[%s287] sm:$0xff] %vm63, %v3292
  %3303 = vst.msk [vmem:[%s287 + $0x8] sm:$0xff] %vm63, %v3293
  %3304 = vst.msk [vmem:[%s287 + $0x10] sm:$0xff] %vm63, %v3294
  %3305 = vst.msk [vmem:[%s287 + $0x18] sm:$0xff] %vm63, %v3295
  %3306 = vst.msk [vmem:[%s287 + $0x20] sm:$0xff] %vm63, %v3296
  %3307 = vst.msk [vmem:[%s287 + $0x28] sm:$0xff] %vm63, %v3297
  %3308 = vst.msk [vmem:[%s287 + $0x30] sm:$0xff] %vm63, %v3298
  %3309 = vst.msk [vmem:[%s287 + $0x38] sm:$0xff] %vm63, %v3299
  %3310 = vst.msk [vmem:[%s287 + $0x40] sm:$0xff] %vm63, %v3300
  %3311 = vst.msk [vmem:[%s287 + $0x48] sm:$0x3f] %vm161, %v3301
  %v3312 = vld [vmem:[#allocation2] sm:$0xff]
  %v3313 = vld [vmem:[#allocation2 + $0x50] sm:$0xff]
  %v3314 = vpack.c.bf16 %v3312, %v3312
  %v3315 = vpack.c.bf16 %v3313, %v3313
  %vm3316 = vcmask 257024
  %3317 = vst.msk [vmem:[%s2] sm:$0xf] %vm3316, %v3314
  %3318 = vst.msk [vmem:[%s2 + $0x20] sm:$0xf] %vm3316, %v3315
  %v3319 = vld [vmem:[#allocation2 + $0xa] sm:$0xff]
  %v3320 = vld [vmem:[#allocation2 + $0x5a] sm:$0xff]
  %v3321 = vpack.c.bf16 %v3319, %v3319
  %v3322 = vpack.c.bf16 %v3320, %v3320
  %3323 = vst.msk [vmem:[%s2 + $0x4] sm:$0xf] %vm3316, %v3321
  %3324 = vst.msk [vmem:[%s2 + $0x24] sm:$0xf] %vm3316, %v3322
  %v3325 = vld [vmem:[#allocation2 + $0x14] sm:$0xff]
  %v3326 = vld [vmem:[#allocation2 + $0x64] sm:$0xff]
  %v3327 = vpack.c.bf16 %v3325, %v3325
  %v3328 = vpack.c.bf16 %v3326, %v3326
  %3329 = vst.msk [vmem:[%s2 + $0x8] sm:$0xf] %vm3316, %v3327
  %3330 = vst.msk [vmem:[%s2 + $0x28] sm:$0xf] %vm3316, %v3328
  %v3331 = vld [vmem:[#allocation2 + $0x1e] sm:$0xff]
  %v3332 = vld [vmem:[#allocation2 + $0x6e] sm:$0xff]
  %v3333 = vpack.c.bf16 %v3331, %v3331
  %v3334 = vpack.c.bf16 %v3332, %v3332
  %3335 = vst.msk [vmem:[%s2 + $0xc] sm:$0xf] %vm3316, %v3333
  %3336 = vst.msk [vmem:[%s2 + $0x2c] sm:$0xf] %vm3316, %v3334
  %v3337 = vld [vmem:[#allocation2 + $0x28] sm:$0xff]
  %v3338 = vld [vmem:[#allocation2 + $0x78] sm:$0xff]
  %v3339 = vpack.c.bf16 %v3337, %v3337
  %v3340 = vpack.c.bf16 %v3338, %v3338
  %3341 = vst.msk [vmem:[%s2 + $0x10] sm:$0xf] %vm3316, %v3339
  %3342 = vst.msk [vmem:[%s2 + $0x30] sm:$0xf] %vm3316, %v3340
  %v3343 = vld [vmem:[#allocation2 + $0x32] sm:$0xff]
  %v3344 = vld [vmem:[#allocation2 + $0x82] sm:$0xff]
  %v3345 = vpack.c.bf16 %v3343, %v3343
  %v3346 = vpack.c.bf16 %v3344, %v3344
  %3347 = vst.msk [vmem:[%s2 + $0x14] sm:$0xf] %vm3316, %v3345
  %3348 = vst.msk [vmem:[%s2 + $0x34] sm:$0xf] %vm3316, %v3346
  %v3349 = vld [vmem:[#allocation2 + $0x3c] sm:$0xff]
  %v3350 = vld [vmem:[#allocation2 + $0x8c] sm:$0xff]
  %v3351 = vpack.c.bf16 %v3349, %v3349
  %v3352 = vpack.c.bf16 %v3350, %v3350
  %3353 = vst.msk [vmem:[%s2 + $0x18] sm:$0xf] %vm3316, %v3351
  %3354 = vst.msk [vmem:[%s2 + $0x38] sm:$0xf] %vm3316, %v3352
  %v3355 = vld [vmem:[#allocation2 + $0x46] sm:$0xff]
  %v3356 = vld [vmem:[#allocation2 + $0x96] sm:$0xff]
  %v3357 = vpack.c.bf16 %v3355, %v3355
  %v3358 = vpack.c.bf16 %v3356, %v3356
  %3359 = vst.msk [vmem:[%s2 + $0x1c] sm:$0xf] %vm3316, %v3357
  %3360 = vst.msk [vmem:[%s2 + $0x3c] sm:$0xf] %vm3316, %v3358
  // Predicated region
  $region10: #{attention_adaptor_forward.2} parent=0 // pred_check
    _
  $region11: #{attention_adaptor_forward.2} parent=0 // pred_check_branch
    %3362 = sbr.rel (0) target = $region13
  $region12: #{attention_adaptor_forward.2} parent=0 // pred_region
    _
  $region13: #{attention_adaptor_forward.2} parent=0 // pred_fallthru
    _
  // Predicated region
  $region14: #{attention_adaptor_forward.2} parent=0 // pred_check
    _
  $region15: #{attention_adaptor_forward.2} parent=0 // pred_check_branch
    %3364 = sbr.rel (0) target = $region17
  $region16: #{attention_adaptor_forward.2} parent=0 // pred_region
    _
  $region17: #{attention_adaptor_forward.2} parent=0 // pred_fallthru
    _

// kernel: attention_adaptor_forward.3
$region0: #{attention_adaptor_forward.3}
  #allocation0 [shape = 'u32[]', space=smem, size = 0x4, offset = 0x4, fixed_abs, tag = 'smem constant byte address 0x4 - core index']
  #allocation1 [shape = 'u32[144,128]{1,0:T(1,128)}', space=vmem, size = 0x12000, scoped, tag = 'internal scratch']
  #allocation2 [shape = 'f32[2,80,32]{2,1,0:T(8,128)}', space=vmem, size = 0x14000, scoped, tag = 'scratch operand']
  %s0 = inlined_call_operand.vmem [shape: bf16[2,100,32], index: 0, kind: input, shape index: {}]
  %s1 = inlined_call_operand.vmem [shape: bf16[9,32,32], index: 1, kind: input, shape index: {}]
  %s2 = inlined_call_operand.vmem [shape: f32[2,64,32], index: 2, kind: input, shape index: {}]
  %s3 = inlined_call_operand.vmem [shape: f32[2,64,32], index: 3, kind: output, shape index: {}]
  %s4 = sld [smem:[#allocation0]]
  $region22: #{attention_adaptor_forward.3} parent=0
    _
  %s6 = ssub.s32 1, %s4
  %s7 = scalar_select 0, %s6, %s4
  // Predicated region
  $region2: #{attention_adaptor_forward.3} parent=0 // pred_check
    _
  $region3: #{attention_adaptor_forward.3} parent=0 // pred_check_branch
    %9 = sbr.rel (0) target = $region5
  $region4: #{attention_adaptor_forward.3} parent=0 // pred_region
    _
  $region5: #{attention_adaptor_forward.3} parent=0 // pred_fallthru
    _
  // Predicated region
  $region6: #{attention_adaptor_forward.3} parent=0 // pred_check
    _
  $region7: #{attention_adaptor_forward.3} parent=0 // pred_check_branch
    %11 = sbr.rel (0) target = $region9
  $region8: #{attention_adaptor_forward.3} parent=0 // pred_region
    _
  $region9: #{attention_adaptor_forward.3} parent=0 // pred_fallthru
    _
  // Predicated region
  $region10: #{attention_adaptor_forward.3} parent=0 // pred_check
    _
  $region11: #{attention_adaptor_forward.3} parent=0 // pred_check_branch
    %13 = sbr.rel (0) target = $region13
  $region12: #{attention_adaptor_forward.3} parent=0 // pred_region
    _
  $region13: #{attention_adaptor_forward.3} parent=0 // pred_fallthru
    _
  %v15 = vld [vmem:[%s1] sm:$0xf]
  %v16 = vld [vmem:[%s1 + $0x4] sm:$0xf]
  %v17 = vld [vmem:[%s1 + $0x8] sm:$0xf]
  %v18 = vld [vmem:[%s1 + $0xc] sm:$0xf]
  %v19 = vld [vmem:[%s0] sm:$0xf]
  %v20 = vld [vmem:[%s0 + $0x4] sm:$0xf]
  %v21 = vld [vmem:[%s0 + $0x8] sm:$0xf]
  %v22 = vld [vmem:[%s0 + $0xc] sm:$0xf]
  %v23 = vld [vmem:[%s0 + $0x10] sm:$0xf]
  %v24 = vld [vmem:[%s0 + $0x14] sm:$0xf]
  %v25 = vld [vmem:[%s0 + $0x18] sm:$0xf]
  %v26 = vld [vmem:[%s0 + $0x1c] sm:$0xf]
  %v27 = vld [vmem:[%s0 + $0x20] sm:$0xf]
  %v28 = vld [vmem:[%s0 + $0x24] sm:$0x7]
  %v39 = vunpack.c.l.b16 %v19
  %v40 = vunpack.c.l.b16 %v20
  %v41 = vunpack.c.l.b16 %v21
  %v42 = vunpack.c.l.b16 %v22
  %v43 = vunpack.c.l.b16 %v23
  %v44 = vunpack.c.l.b16 %v24
  %v45 = vunpack.c.l.b16 %v25
  %v46 = vunpack.c.l.b16 %v26
  %v47 = vunpack.c.l.b16 %v27
  %v48 = vunpack.c.l.b16 %v28
  %v49 = vpack.c.b16 %v40, %v39
  %v50 = vpack.c.b16 %v42, %v41
  %v51 = vpack.c.b16 %v44, %v43
  %v52 = vpack.c.b16 %v46, %v45
  %v53 = vpack.c.b16 %v48, %v47
  %v58 = vunpack.c.l.b16 %v15
  %v59 = vunpack.c.l.b16 %v16
  %v60 = vunpack.c.l.b16 %v17
  %v61 = vunpack.c.l.b16 %v18
  %v62 = vpack.c.b16 %v59, %v58
  %v63 = vpack.c.b16 %v61, %v60
  %vm66 = vcmask 261120
  %v68 = vsel %vm66, %v49, 0
  %v71 = vsel %vm66, %v50, 0
  %v74 = vsel %vm66, %v51, 0
  %v77 = vsel %vm66, %v52, 0
  %v80 = vsel %vm66, %v53, 0
  %82 = vmatprep.subr.bf16.mxu0 0
  %83 = vmatpush1.bf16.msra.mxu0 %v62
  %84 = vmatprep.subr.bf16.mxu0 0
  %85 = vmatpush1.bf16.msra.mxu0 %v63
  %86 = vmatprep.subr.bf16.mxu0 0
  %87 = vmatpush1.bf16.msra.mxu0 0
  %88 = vmatprep.subr.bf16.mxu0 0
  %89 = vmatpush1.bf16.msra.mxu0 0
  %90 = vmatprep.subr.bf16.mxu0 0
  %91 = vmatpush1.bf16.msra.mxu0 0
  %92 = vmatprep.subr.bf16.mxu0 0
  %93 = vmatpush1.bf16.msra.mxu0 0
  %94 = vmatprep.subr.bf16.mxu0 0
  %95 = vmatpush1.bf16.msra.mxu0 0
  %96 = vmatprep.subr.bf16.mxu0 0
  %97 = vmatpush1.bf16.msra.mxu0 0
  %98 = vmatprep.subr.bf16.mxu0 0
  %99 = vmatpush1.bf16.msra.mxu0 0
  %100 = vmatprep.subr.bf16.mxu0 0
  %101 = vmatpush1.bf16.msra.mxu0 0
  %102 = vmatprep.subr.bf16.mxu0 0
  %103 = vmatpush1.bf16.msra.mxu0 0
  %104 = vmatprep.subr.bf16.mxu0 0
  %105 = vmatpush1.bf16.msra.mxu0 0
  %106 = vmatprep.subr.bf16.mxu0 0
  %107 = vmatpush1.bf16.msra.mxu0 0
  %108 = vmatprep.subr.bf16.mxu0 0
  %109 = vmatpush1.bf16.msra.mxu0 0
  %110 = vmatprep.subr.bf16.mxu0 0
  %111 = vmatpush1.bf16.msra.mxu0 0
  %112 = vmatprep.subr.bf16.mxu0 0
  %113 = vmatpush1.bf16.msra.mxu0 0
  %114 = vmatprep.mubr.bf16.mxu0 0
  %115 = vmatmul.mubr.bf16.gmra.mrb[0].mxu0 %v68
  %v116 = vpop.f32.mrb[0].mxu0
  %v117 = vadd.f32 0.0, %v116
  %v118 = vpop.f32.mrb[0].mxu0
  %v119 = vpop.f32.mrb[0].mxu0
  %v120 = vadd.f32 0.0, %v119
  %v121 = vpop.f32.mrb[0].mxu0
  %122 = vmatprep.mubr.bf16.mxu0 0
  %123 = vmatmul.mubr.bf16.gmra.mrb[0].mxu0 %v71
  %v124 = vpop.f32.mrb[0].mxu0
  %v125 = vadd.f32 0.0, %v124
  %v126 = vpop.f32.mrb[0].mxu0
  %v127 = vpop.f32.mrb[0].mxu0
  %v128 = vadd.f32 0.0, %v127
  %v129 = vpop.f32.mrb[0].mxu0
  %130 = vmatprep.mubr.bf16.mxu0 0
  %131 = vmatmul.mubr.bf16.gmra.mrb[0].mxu0 %v74
  %v132 = vpop.f32.mrb[0].mxu0
  %v133 = vadd.f32 0.0, %v132
  %v134 = vpop.f32.mrb[0].mxu0
  %v135 = vpop.f32.mrb[0].mxu0
  %v136 = vadd.f32 0.0, %v135
  %v137 = vpop.f32.mrb[0].mxu0
  %138 = vmatprep.mubr.bf16.mxu0 0
  %139 = vmatmul.mubr.bf16.gmra.mrb[0].mxu0 %v77
  %v140 = vpop.f32.mrb[0].mxu0
  %v141 = vadd.f32 0.0, %v140
  %v142 = vpop.f32.mrb[0].mxu0
  %v143 = vpop.f32.mrb[0].mxu0
  %v144 = vadd.f32 0.0, %v143
  %v145 = vpop.f32.mrb[0].mxu0
  %146 = vmatprep.mubr.bf16.mxu0 0
  %147 = vmatmul.mubr.bf16.gmra.mrb[0].mxu0 %v80
  %v148 = vpop.f32.mrb[0].mxu0
  %v149 = vadd.f32 0.0, %v148
  %v150 = vpop.f32.mrb[0].mxu0
  %v151 = vpop.f32.mrb[0].mxu0
  %v152 = vadd.f32 0.0, %v151
  %v153 = vpop.f32.mrb[0].mxu0
  %154 = vdwg.mxu0
  %155 = vst.msk [vmem:[#allocation2] sm:$0xff] %vm66, %v117
  %156 = vst.msk [vmem:[#allocation2 + $0x8] sm:$0xff] %vm66, %v120
  %157 = vst.msk [vmem:[#allocation2 + $0x10] sm:$0xff] %vm66, %v125
  %158 = vst.msk [vmem:[#allocation2 + $0x18] sm:$0xff] %vm66, %v128
  %159 = vst.msk [vmem:[#allocation2 + $0x20] sm:$0xff] %vm66, %v133
  %160 = vst.msk [vmem:[#allocation2 + $0x28] sm:$0xff] %vm66, %v136
  %161 = vst.msk [vmem:[#allocation2 + $0x30] sm:$0xff] %vm66, %v141
  %162 = vst.msk [vmem:[#allocation2 + $0x38] sm:$0xff] %vm66, %v144
  %163 = vst.msk [vmem:[#allocation2 + $0x40] sm:$0xff] %vm66, %v149
  %vm164 = vcmask 259072
  %165 = vst.msk [vmem:[#allocation2 + $0x48] sm:$0x3f] %vm164, %v152
  %s166 = scalar_lea.vmem %s0, 52
  %v167 = vld [vmem:[%s166] sm:$0xf]
  %v168 = vld [vmem:[%s166 + $0x4] sm:$0xf]
  %v169 = vld [vmem:[%s166 + $0x8] sm:$0xf]
  %v170 = vld [vmem:[%s166 + $0xc] sm:$0xf]
  %v171 = vld [vmem:[%s166 + $0x10] sm:$0xf]
  %v172 = vld [vmem:[%s166 + $0x14] sm:$0xf]
  %v173 = vld [vmem:[%s166 + $0x18] sm:$0xf]
  %v174 = vld [vmem:[%s166 + $0x1c] sm:$0xf]
  %v175 = vld [vmem:[%s166 + $0x20] sm:$0xf]
  %v176 = vld [vmem:[%s166 + $0x24] sm:$0x7]
  %v187 = vunpack.c.l.b16 %v167
  %v188 = vunpack.c.l.b16 %v168
  %v189 = vunpack.c.l.b16 %v169
  %v190 = vunpack.c.l.b16 %v170
  %v191 = vunpack.c.l.b16 %v171
  %v192 = vunpack.c.l.b16 %v172
  %v193 = vunpack.c.l.b16 %v173
  %v194 = vunpack.c.l.b16 %v174
  %v195 = vunpack.c.l.b16 %v175
  %v196 = vunpack.c.l.b16 %v176
  %v197 = vpack.c.b16 %v188, %v187
  %v198 = vpack.c.b16 %v190, %v189
  %v199 = vpack.c.b16 %v192, %v191
  %v200 = vpack.c.b16 %v194, %v193
  %v201 = vpack.c.b16 %v196, %v195
  %v203 = vsel %vm66, %v197, 0
  %v206 = vsel %vm66, %v198, 0
  %v209 = vsel %vm66, %v199, 0
  %v212 = vsel %vm66, %v200, 0
  %v215 = vsel %vm66, %v201, 0
  %217 = vmatprep.subr.bf16.mxu0 0
  %218 = vmatpush1.bf16.msra.mxu0 %v62
  %219 = vmatprep.subr.bf16.mxu0 0
  %220 = vmatpush1.bf16.msra.mxu0 %v63
  %221 = vmatprep.subr.bf16.mxu0 0
  %222 = vmatpush1.bf16.msra.mxu0 0
  %223 = vmatprep.subr.bf16.mxu0 0
  %224 = vmatpush1.bf16.msra.mxu0 0
  %225 = vmatprep.subr.bf16.mxu0 0
  %226 = vmatpush1.bf16.msra.mxu0 0
  %227 = vmatprep.subr.bf16.mxu0 0
  %228 = vmatpush1.bf16.msra.mxu0 0
  %229 = vmatprep.subr.bf16.mxu0 0
  %230 = vmatpush1.bf16.msra.mxu0 0
  %231 = vmatprep.subr.bf16.mxu0 0
  %232 = vmatpush1.bf16.msra.mxu0 0
  %233 = vmatprep.subr.bf16.mxu0 0
  %234 = vmatpush1.bf16.msra.mxu0 0
  %235 = vmatprep.subr.bf16.mxu0 0
  %236 = vmatpush1.bf16.msra.mxu0 0
  %237 = vmatprep.subr.bf16.mxu0 0
  %238 = vmatpush1.bf16.msra.mxu0 0
  %239 = vmatprep.subr.bf16.mxu0 0
  %240 = vmatpush1.bf16.msra.mxu0 0
  %241 = vmatprep.subr.bf16.mxu0 0
  %242 = vmatpush1.bf16.msra.mxu0 0
  %243 = vmatprep.subr.bf16.mxu0 0
  %244 = vmatpush1.bf16.msra.mxu0 0
  %245 = vmatprep.subr.bf16.mxu0 0
  %246 = vmatpush1.bf16.msra.mxu0 0
  %247 = vmatprep.subr.bf16.mxu0 0
  %248 = vmatpush1.bf16.msra.mxu0 0
  %249 = vmatprep.mubr.bf16.mxu0 0
  %250 = vmatmul.mubr.bf16.gmra.mrb[0].mxu0 %v203
  %v251 = vpop.f32.mrb[0].mxu0
  %v252 = vadd.f32 0.0, %v251
  %v253 = vpop.f32.mrb[0].mxu0
  %v254 = vpop.f32.mrb[0].mxu0
  %v255 = vadd.f32 0.0, %v254
  %v256 = vpop.f32.mrb[0].mxu0
  %257 = vmatprep.mubr.bf16.mxu0 0
  %258 = vmatmul.mubr.bf16.gmra.mrb[0].mxu0 %v206
  %v259 = vpop.f32.mrb[0].mxu0
  %v260 = vadd.f32 0.0, %v259
  %v261 = vpop.f32.mrb[0].mxu0
  %v262 = vpop.f32.mrb[0].mxu0
  %v263 = vadd.f32 0.0, %v262
  %v264 = vpop.f32.mrb[0].mxu0
  %265 = vmatprep.mubr.bf16.mxu0 0
  %266 = vmatmul.mubr.bf16.gmra.mrb[0].mxu0 %v209
  %v267 = vpop.f32.mrb[0].mxu0
  %v268 = vadd.f32 0.0, %v267
  %v269 = vpop.f32.mrb[0].mxu0
  %v270 = vpop.f32.mrb[0].mxu0
  %v271 = vadd.f32 0.0, %v270
  %v272 = vpop.f32.mrb[0].mxu0
  %273 = vmatprep.mubr.bf16.mxu0 0
  %274 = vmatmul.mubr.bf16.gmra.mrb[0].mxu0 %v212
  %v275 = vpop.f32.mrb[0].mxu0
  %v276 = vadd.f32 0.0, %v275
  %v277 = vpop.f32.mrb[0].mxu0
  %v278 = vpop.f32.mrb[0].mxu0
  %v279 = vadd.f32 0.0, %v278
  %v280 = vpop.f32.mrb[0].mxu0
  %281 = vmatprep.mubr.bf16.mxu0 0
  %282 = vmatmul.mubr.bf16.gmra.mrb[0].mxu0 %v215
  %v283 = vpop.f32.mrb[0].mxu0
  %v284 = vadd.f32 0.0, %v283
  %v285 = vpop.f32.mrb[0].mxu0
  %v286 = vpop.f32.mrb[0].mxu0
  %v287 = vadd.f32 0.0, %v286
  %v288 = vpop.f32.mrb[0].mxu0
  %289 = vdwg.mxu0
  %s290 = scalar_lea.vmem [#allocation2], 80
  %291 = vst.msk [vmem:[%s290] sm:$0xff] %vm66, %v252
  %292 = vst.msk [vmem:[%s290 + $0x8] sm:$0xff] %vm66, %v255
  %293 = vst.msk [vmem:[%s290 + $0x10] sm:$0xff] %vm66, %v260
  %294 = vst.msk [vmem:[%s290 + $0x18] sm:$0xff] %vm66, %v263
  %295 = vst.msk [vmem:[%s290 + $0x20] sm:$0xff] %vm66, %v268
  %296 = vst.msk [vmem:[%s290 + $0x28] sm:$0xff] %vm66, %v271
  %297 = vst.msk [vmem:[%s290 + $0x30] sm:$0xff] %vm66, %v276
  %298 = vst.msk [vmem:[%s290 + $0x38] sm:$0xff] %vm66, %v279
  %299 = vst.msk [vmem:[%s290 + $0x40] sm:$0xff] %vm66, %v284
  %300 = vst.msk [vmem:[%s290 + $0x48] sm:$0x3f] %vm164, %v287
  %s301 = scalar_lea.vmem %s1, 16
  %v302 = vld [vmem:[%s301] sm:$0xf]
  %v303 = vld [vmem:[%s301 + $0x4] sm:$0xf]
  %v304 = vld [vmem:[%s301 + $0x8] sm:$0xf]
  %v305 = vld [vmem:[%s301 + $0xc] sm:$0xf]
  %v306 = vld [vmem:[%s0] sm:$0xf]
  %v307 = vld [vmem:[%s0 + $0x4] sm:$0xf]
  %v308 = vld [vmem:[%s0 + $0x8] sm:$0xf]
  %v309 = vld [vmem:[%s0 + $0xc] sm:$0xf]
  %v310 = vld [vmem:[%s0 + $0x10] sm:$0xf]
  %v311 = vld [vmem:[%s0 + $0x14] sm:$0xf]
  %v312 = vld [vmem:[%s0 + $0x18] sm:$0xf]
  %v313 = vld [vmem:[%s0 + $0x1c] sm:$0xf]
  %v314 = vld [vmem:[%s0 + $0x20] sm:$0xf]
  %v315 = vld [vmem:[%s0 + $0x24] sm:$0xf]
  %v326 = vunpack.c.l.b16 %v306
  %v327 = vunpack.c.l.b16 %v307
  %v328 = vunpack.c.l.b16 %v308
  %v329 = vunpack.c.l.b16 %v309
  %v330 = vunpack.c.l.b16 %v310
  %v331 = vunpack.c.l.b16 %v311
  %v332 = vunpack.c.l.b16 %v312
  %v333 = vunpack.c.l.b16 %v313
  %v334 = vunpack.c.l.b16 %v314
  %v335 = vunpack.c.l.b16 %v315
  %v336 = vpack.c.b16 %v327, %v326
  %v337 = vpack.c.b16 %v329, %v328
  %v338 = vpack.c.b16 %v331, %v330
  %v339 = vpack.c.b16 %v333, %v332
  %v340 = vpack.c.b16 %v335, %v334
  %vm341 = vsmask.f32 7424
  %v343 = vshrl.u32 %v336, 16
  %v345 = vshll.u32 %v336, 16
  %v347 = vrot.slane %v345, 1
  %v348 = vor.u32 %v343, %v347
  %v350 = vshll.u32 %v337, 16
  %v352 = vrot.slane %v350, 1
  %v353 = vsel %vm341, %v348, %v352
  %v354 = vshrl.u32 %v337, 16
  %v356 = vor.u32 %v354, %v352
  %v358 = vshll.u32 %v338, 16
  %v360 = vrot.slane %v358, 1
  %v361 = vsel %vm341, %v356, %v360
  %v362 = vshrl.u32 %v338, 16
  %v364 = vor.u32 %v362, %v360
  %v366 = vshll.u32 %v339, 16
  %v368 = vrot.slane %v366, 1
  %v369 = vsel %vm341, %v364, %v368
  %v370 = vshrl.u32 %v339, 16
  %v372 = vor.u32 %v370, %v368
  %v374 = vshll.u32 %v340, 16
  %v376 = vrot.slane %v374, 1
  %v377 = vsel %vm341, %v372, %v376
  %v378 = vshrl.u32 %v340, 16
  %v380 = vor.u32 %v378, %v376
  %v385 = vunpack.c.l.b16 %v302
  %v386 = vunpack.c.l.b16 %v303
  %v387 = vunpack.c.l.b16 %v304
  %v388 = vunpack.c.l.b16 %v305
  %v389 = vpack.c.b16 %v386, %v385
  %v390 = vpack.c.b16 %v388, %v387
  %v394 = vsel %vm66, %v353, 0
  %v397 = vsel %vm66, %v361, 0
  %v400 = vsel %vm66, %v369, 0
  %v403 = vsel %vm66, %v377, 0
  %v406 = vsel %vm66, %v380, 0
  %408 = vmatprep.subr.bf16.mxu0 0
  %409 = vmatpush1.bf16.msra.mxu0 %v389
  %410 = vmatprep.subr.bf16.mxu0 0
  %411 = vmatpush1.bf16.msra.mxu0 %v390
  %412 = vmatprep.subr.bf16.mxu0 0
  %413 = vmatpush1.bf16.msra.mxu0 0
  %414 = vmatprep.subr.bf16.mxu0 0
  %415 = vmatpush1.bf16.msra.mxu0 0
  %416 = vmatprep.subr.bf16.mxu0 0
  %417 = vmatpush1.bf16.msra.mxu0 0
  %418 = vmatprep.subr.bf16.mxu0 0
  %419 = vmatpush1.bf16.msra.mxu0 0
  %420 = vmatprep.subr.bf16.mxu0 0
  %421 = vmatpush1.bf16.msra.mxu0 0
  %422 = vmatprep.subr.bf16.mxu0 0
  %423 = vmatpush1.bf16.msra.mxu0 0
  %424 = vmatprep.subr.bf16.mxu0 0
  %425 = vmatpush1.bf16.msra.mxu0 0
  %426 = vmatprep.subr.bf16.mxu0 0
  %427 = vmatpush1.bf16.msra.mxu0 0
  %428 = vmatprep.subr.bf16.mxu0 0
  %429 = vmatpush1.bf16.msra.mxu0 0
  %430 = vmatprep.subr.bf16.mxu0 0
  %431 = vmatpush1.bf16.msra.mxu0 0
  %432 = vmatprep.subr.bf16.mxu0 0
  %433 = vmatpush1.bf16.msra.mxu0 0
  %434 = vmatprep.subr.bf16.mxu0 0
  %435 = vmatpush1.bf16.msra.mxu0 0
  %436 = vmatprep.subr.bf16.mxu0 0
  %437 = vmatpush1.bf16.msra.mxu0 0
  %438 = vmatprep.subr.bf16.mxu0 0
  %439 = vmatpush1.bf16.msra.mxu0 0
  %440 = vmatprep.mubr.bf16.mxu0 0
  %441 = vmatmul.mubr.bf16.gmra.mrb[0].mxu0 %v394
  %v442 = vpop.f32.mrb[0].mxu0
  %v443 = vadd.f32 0.0, %v442
  %v444 = vpop.f32.mrb[0].mxu0
  %v445 = vpop.f32.mrb[0].mxu0
  %v446 = vadd.f32 0.0, %v445
  %v447 = vpop.f32.mrb[0].mxu0
  %448 = vmatprep.mubr.bf16.mxu0 0
  %449 = vmatmul.mubr.bf16.gmra.mrb[0].mxu0 %v397
  %v450 = vpop.f32.mrb[0].mxu0
  %v451 = vadd.f32 0.0, %v450
  %v452 = vpop.f32.mrb[0].mxu0
  %v453 = vpop.f32.mrb[0].mxu0
  %v454 = vadd.f32 0.0, %v453
  %v455 = vpop.f32.mrb[0].mxu0
  %456 = vmatprep.mubr.bf16.mxu0 0
  %457 = vmatmul.mubr.bf16.gmra.mrb[0].mxu0 %v400
  %v458 = vpop.f32.mrb[0].mxu0
  %v459 = vadd.f32 0.0, %v458
  %v460 = vpop.f32.mrb[0].mxu0
  %v461 = vpop.f32.mrb[0].mxu0
  %v462 = vadd.f32 0.0, %v461
  %v463 = vpop.f32.mrb[0].mxu0
  %464 = vmatprep.mubr.bf16.mxu0 0
  %465 = vmatmul.mubr.bf16.gmra.mrb[0].mxu0 %v403
  %v466 = vpop.f32.mrb[0].mxu0
  %v467 = vadd.f32 0.0, %v466
  %v468 = vpop.f32.mrb[0].mxu0
  %v469 = vpop.f32.mrb[0].mxu0
  %v470 = vadd.f32 0.0, %v469
  %v471 = vpop.f32.mrb[0].mxu0
  %472 = vmatprep.mubr.bf16.mxu0 0
  %473 = vmatmul.mubr.bf16.gmra.mrb[0].mxu0 %v406
  %v474 = vpop.f32.mrb[0].mxu0
  %v475 = vadd.f32 0.0, %v474
  %v476 = vpop.f32.mrb[0].mxu0
  %v477 = vpop.f32.mrb[0].mxu0
  %v478 = vadd.f32 0.0, %v477
  %v479 = vpop.f32.mrb[0].mxu0
  %480 = vdwg.mxu0
  %v481 = vld [vmem:[#allocation2] sm:$0xff]
  %v482 = vld [vmem:[#allocation2 + $0x8] sm:$0xff]
  %v483 = vld [vmem:[#allocation2 + $0x10] sm:$0xff]
  %v484 = vld [vmem:[#allocation2 + $0x18] sm:$0xff]
  %v485 = vld [vmem:[#allocation2 + $0x20] sm:$0xff]
  %v486 = vld [vmem:[#allocation2 + $0x28] sm:$0xff]
  %v487 = vld [vmem:[#allocation2 + $0x30] sm:$0xff]
  %v488 = vld [vmem:[#allocation2 + $0x38] sm:$0xff]
  %v489 = vld [vmem:[#allocation2 + $0x40] sm:$0xff]
  %v490 = vld [vmem:[#allocation2 + $0x48] sm:$0x3f]
  %v491 = vadd.f32 %v481, %v443
  %v492 = vadd.f32 %v482, %v446
  %v493 = vadd.f32 %v483, %v451
  %v494 = vadd.f32 %v484, %v454
  %v495 = vadd.f32 %v485, %v459
  %v496 = vadd.f32 %v486, %v462
  %v497 = vadd.f32 %v487, %v467
  %v498 = vadd.f32 %v488, %v470
  %v499 = vadd.f32 %v489, %v475
  %v500 = vadd.f32 %v490, %v478
  %501 = vst.msk [vmem:[#allocation2] sm:$0xff] %vm66, %v491
  %502 = vst.msk [vmem:[#allocation2 + $0x8] sm:$0xff] %vm66, %v492
  %503 = vst.msk [vmem:[#allocation2 + $0x10] sm:$0xff] %vm66, %v493
  %504 = vst.msk [vmem:[#allocation2 + $0x18] sm:$0xff] %vm66, %v494
  %505 = vst.msk [vmem:[#allocation2 + $0x20] sm:$0xff] %vm66, %v495
  %506 = vst.msk [vmem:[#allocation2 + $0x28] sm:$0xff] %vm66, %v496
  %507 = vst.msk [vmem:[#allocation2 + $0x30] sm:$0xff] %vm66, %v497
  %508 = vst.msk [vmem:[#allocation2 + $0x38] sm:$0xff] %vm66, %v498
  %509 = vst.msk [vmem:[#allocation2 + $0x40] sm:$0xff] %vm66, %v499
  %510 = vst.msk [vmem:[#allocation2 + $0x48] sm:$0x3f] %vm164, %v500
  %v511 = vld [vmem:[%s166] sm:$0xf]
  %v512 = vld [vmem:[%s166 + $0x4] sm:$0xf]
  %v513 = vld [vmem:[%s166 + $0x8] sm:$0xf]
  %v514 = vld [vmem:[%s166 + $0xc] sm:$0xf]
  %v515 = vld [vmem:[%s166 + $0x10] sm:$0xf]
  %v516 = vld [vmem:[%s166 + $0x14] sm:$0xf]
  %v517 = vld [vmem:[%s166 + $0x18] sm:$0xf]
  %v518 = vld [vmem:[%s166 + $0x1c] sm:$0xf]
  %v519 = vld [vmem:[%s166 + $0x20] sm:$0xf]
  %v520 = vld [vmem:[%s166 + $0x24] sm:$0xf]
  %v531 = vunpack.c.l.b16 %v511
  %v532 = vunpack.c.l.b16 %v512
  %v533 = vunpack.c.l.b16 %v513
  %v534 = vunpack.c.l.b16 %v514
  %v535 = vunpack.c.l.b16 %v515
  %v536 = vunpack.c.l.b16 %v516
  %v537 = vunpack.c.l.b16 %v517
  %v538 = vunpack.c.l.b16 %v518
  %v539 = vunpack.c.l.b16 %v519
  %v540 = vunpack.c.l.b16 %v520
  %v541 = vpack.c.b16 %v532, %v531
  %v542 = vpack.c.b16 %v534, %v533
  %v543 = vpack.c.b16 %v536, %v535
  %v544 = vpack.c.b16 %v538, %v537
  %v545 = vpack.c.b16 %v540, %v539
  %v547 = vshrl.u32 %v541, 16
  %v549 = vshll.u32 %v541, 16
  %v551 = vrot.slane %v549, 1
  %v552 = vor.u32 %v547, %v551
  %v554 = vshll.u32 %v542, 16
  %v556 = vrot.slane %v554, 1
  %v557 = vsel %vm341, %v552, %v556
  %v558 = vshrl.u32 %v542, 16
  %v560 = vor.u32 %v558, %v556
  %v562 = vshll.u32 %v543, 16
  %v564 = vrot.slane %v562, 1
  %v565 = vsel %vm341, %v560, %v564
  %v566 = vshrl.u32 %v543, 16
  %v568 = vor.u32 %v566, %v564
  %v570 = vshll.u32 %v544, 16
  %v572 = vrot.slane %v570, 1
  %v573 = vsel %vm341, %v568, %v572
  %v574 = vshrl.u32 %v544, 16
  %v576 = vor.u32 %v574, %v572
  %v578 = vshll.u32 %v545, 16
  %v580 = vrot.slane %v578, 1
  %v581 = vsel %vm341, %v576, %v580
  %v582 = vshrl.u32 %v545, 16
  %v584 = vor.u32 %v582, %v580
  %v586 = vsel %vm66, %v557, 0
  %v589 = vsel %vm66, %v565, 0
  %v592 = vsel %vm66, %v573, 0
  %v595 = vsel %vm66, %v581, 0
  %v598 = vsel %vm66, %v584, 0
  %600 = vmatprep.subr.bf16.mxu0 0
  %601 = vmatpush1.bf16.msra.mxu0 %v389
  %602 = vmatprep.subr.bf16.mxu0 0
  %603 = vmatpush1.bf16.msra.mxu0 %v390
  %604 = vmatprep.subr.bf16.mxu0 0
  %605 = vmatpush1.bf16.msra.mxu0 0
  %606 = vmatprep.subr.bf16.mxu0 0
  %607 = vmatpush1.bf16.msra.mxu0 0
  %608 = vmatprep.subr.bf16.mxu0 0
  %609 = vmatpush1.bf16.msra.mxu0 0
  %610 = vmatprep.subr.bf16.mxu0 0
  %611 = vmatpush1.bf16.msra.mxu0 0
  %612 = vmatprep.subr.bf16.mxu0 0
  %613 = vmatpush1.bf16.msra.mxu0 0
  %614 = vmatprep.subr.bf16.mxu0 0
  %615 = vmatpush1.bf16.msra.mxu0 0
  %616 = vmatprep.subr.bf16.mxu0 0
  %617 = vmatpush1.bf16.msra.mxu0 0
  %618 = vmatprep.subr.bf16.mxu0 0
  %619 = vmatpush1.bf16.msra.mxu0 0
  %620 = vmatprep.subr.bf16.mxu0 0
  %621 = vmatpush1.bf16.msra.mxu0 0
  %622 = vmatprep.subr.bf16.mxu0 0
  %623 = vmatpush1.bf16.msra.mxu0 0
  %624 = vmatprep.subr.bf16.mxu0 0
  %625 = vmatpush1.bf16.msra.mxu0 0
  %626 = vmatprep.subr.bf16.mxu0 0
  %627 = vmatpush1.bf16.msra.mxu0 0
  %628 = vmatprep.subr.bf16.mxu0 0
  %629 = vmatpush1.bf16.msra.mxu0 0
  %630 = vmatprep.subr.bf16.mxu0 0
  %631 = vmatpush1.bf16.msra.mxu0 0
  %632 = vmatprep.mubr.bf16.mxu0 0
  %633 = vmatmul.mubr.bf16.gmra.mrb[0].mxu0 %v586
  %v634 = vpop.f32.mrb[0].mxu0
  %v635 = vadd.f32 0.0, %v634
  %v636 = vpop.f32.mrb[0].mxu0
  %v637 = vpop.f32.mrb[0].mxu0
  %v638 = vadd.f32 0.0, %v637
  %v639 = vpop.f32.mrb[0].mxu0
  %640 = vmatprep.mubr.bf16.mxu0 0
  %641 = vmatmul.mubr.bf16.gmra.mrb[0].mxu0 %v589
  %v642 = vpop.f32.mrb[0].mxu0
  %v643 = vadd.f32 0.0, %v642
  %v644 = vpop.f32.mrb[0].mxu0
  %v645 = vpop.f32.mrb[0].mxu0
  %v646 = vadd.f32 0.0, %v645
  %v647 = vpop.f32.mrb[0].mxu0
  %648 = vmatprep.mubr.bf16.mxu0 0
  %649 = vmatmul.mubr.bf16.gmra.mrb[0].mxu0 %v592
  %v650 = vpop.f32.mrb[0].mxu0
  %v651 = vadd.f32 0.0, %v650
  %v652 = vpop.f32.mrb[0].mxu0
  %v653 = vpop.f32.mrb[0].mxu0
  %v654 = vadd.f32 0.0, %v653
  %v655 = vpop.f32.mrb[0].mxu0
  %656 = vmatprep.mubr.bf16.mxu0 0
  %657 = vmatmul.mubr.bf16.gmra.mrb[0].mxu0 %v595
  %v658 = vpop.f32.mrb[0].mxu0
  %v659 = vadd.f32 0.0, %v658
  %v660 = vpop.f32.mrb[0].mxu0
  %v661 = vpop.f32.mrb[0].mxu0
  %v662 = vadd.f32 0.0, %v661
  %v663 = vpop.f32.mrb[0].mxu0
  %664 = vmatprep.mubr.bf16.mxu0 0
  %665 = vmatmul.mubr.bf16.gmra.mrb[0].mxu0 %v598
  %v666 = vpop.f32.mrb[0].mxu0
  %v667 = vadd.f32 0.0, %v666
  %v668 = vpop.f32.mrb[0].mxu0
  %v669 = vpop.f32.mrb[0].mxu0
  %v670 = vadd.f32 0.0, %v669
  %v671 = vpop.f32.mrb[0].mxu0
  %672 = vdwg.mxu0
  %v673 = vld [vmem:[%s290] sm:$0xff]
  %v674 = vld [vmem:[%s290 + $0x8] sm:$0xff]
  %v675 = vld [vmem:[%s290 + $0x10] sm:$0xff]
  %v676 = vld [vmem:[%s290 + $0x18] sm:$0xff]
  %v677 = vld [vmem:[%s290 + $0x20] sm:$0xff]
  %v678 = vld [vmem:[%s290 + $0x28] sm:$0xff]
  %v679 = vld [vmem:[%s290 + $0x30] sm:$0xff]
  %v680 = vld [vmem:[%s290 + $0x38] sm:$0xff]
  %v681 = vld [vmem:[%s290 + $0x40] sm:$0xff]
  %v682 = vld [vmem:[%s290 + $0x48] sm:$0x3f]
  %v683 = vadd.f32 %v673, %v635
  %v684 = vadd.f32 %v674, %v638
  %v685 = vadd.f32 %v675, %v643
  %v686 = vadd.f32 %v676, %v646
  %v687 = vadd.f32 %v677, %v651
  %v688 = vadd.f32 %v678, %v654
  %v689 = vadd.f32 %v679, %v659
  %v690 = vadd.f32 %v680, %v662
  %v691 = vadd.f32 %v681, %v667
  %v692 = vadd.f32 %v682, %v670
  %693 = vst.msk [vmem:[%s290] sm:$0xff] %vm66, %v683
  %694 = vst.msk [vmem:[%s290 + $0x8] sm:$0xff] %vm66, %v684
  %695 = vst.msk [vmem:[%s290 + $0x10] sm:$0xff] %vm66, %v685
  %696 = vst.msk [vmem:[%s290 + $0x18] sm:$0xff] %vm66, %v686
  %697 = vst.msk [vmem:[%s290 + $0x20] sm:$0xff] %vm66, %v687
  %698 = vst.msk [vmem:[%s290 + $0x28] sm:$0xff] %vm66, %v688
  %699 = vst.msk [vmem:[%s290 + $0x30] sm:$0xff] %vm66, %v689
  %700 = vst.msk [vmem:[%s290 + $0x38] sm:$0xff] %vm66, %v690
  %701 = vst.msk [vmem:[%s290 + $0x40] sm:$0xff] %vm66, %v691
  %702 = vst.msk [vmem:[%s290 + $0x48] sm:$0x3f] %vm164, %v692
  %s703 = scalar_lea.vmem %s1, 32
  %v704 = vld [vmem:[%s703] sm:$0xf]
  %v705 = vld [vmem:[%s703 + $0x4] sm:$0xf]
  %v706 = vld [vmem:[%s703 + $0x8] sm:$0xf]
  %v707 = vld [vmem:[%s703 + $0xc] sm:$0xf]
  %v708 = vld [vmem:[%s0] sm:$0xe]
  %v709 = vld [vmem:[%s0 + $0x4] sm:$0xf]
  %v710 = vld [vmem:[%s0 + $0x8] sm:$0xf]
  %v711 = vld [vmem:[%s0 + $0xc] sm:$0xf]
  %v712 = vld [vmem:[%s0 + $0x10] sm:$0xf]
  %v713 = vld [vmem:[%s0 + $0x14] sm:$0xf]
  %v714 = vld [vmem:[%s0 + $0x18] sm:$0xf]
  %v715 = vld [vmem:[%s0 + $0x1c] sm:$0xf]
  %v716 = vld [vmem:[%s0 + $0x20] sm:$0xf]
  %v717 = vld [vmem:[%s0 + $0x24] sm:$0xf]
  %v728 = vunpack.c.l.b16 %v708
  %v729 = vunpack.c.l.b16 %v709
  %v730 = vunpack.c.l.b16 %v710
  %v731 = vunpack.c.l.b16 %v711
  %v732 = vunpack.c.l.b16 %v712
  %v733 = vunpack.c.l.b16 %v713
  %v734 = vunpack.c.l.b16 %v714
  %v735 = vunpack.c.l.b16 %v715
  %v736 = vunpack.c.l.b16 %v716
  %v737 = vunpack.c.l.b16 %v717
  %v738 = vpack.c.b16 %v729, %v728
  %v739 = vpack.c.b16 %v731, %v730
  %v740 = vpack.c.b16 %v733, %v732
  %v741 = vpack.c.b16 %v735, %v734
  %v742 = vpack.c.b16 %v737, %v736
  %vm743 = vcmask 1046528
  %v744 = vrot.slane %v738, 1
  %v745 = vrot.slane %v739, 1
  %v746 = vsel %vm743, %v744, %v745
  %v747 = vrot.slane %v740, 1
  %v748 = vsel %vm743, %v745, %v747
  %v749 = vrot.slane %v741, 1
  %v750 = vsel %vm743, %v747, %v749
  %v751 = vrot.slane %v742, 1
  %v752 = vsel %vm743, %v749, %v751
  %v757 = vunpack.c.l.b16 %v704
  %v758 = vunpack.c.l.b16 %v705
  %v759 = vunpack.c.l.b16 %v706
  %v760 = vunpack.c.l.b16 %v707
  %v761 = vpack.c.b16 %v758, %v757
  %v762 = vpack.c.b16 %v760, %v759
  %v766 = vsel %vm66, %v746, 0
  %v769 = vsel %vm66, %v748, 0
  %v772 = vsel %vm66, %v750, 0
  %v775 = vsel %vm66, %v752, 0
  %v778 = vsel %vm66, %v751, 0
  %780 = vmatprep.subr.bf16.mxu0 0
  %781 = vmatpush1.bf16.msra.mxu0 %v761
  %782 = vmatprep.subr.bf16.mxu0 0
  %783 = vmatpush1.bf16.msra.mxu0 %v762
  %784 = vmatprep.subr.bf16.mxu0 0
  %785 = vmatpush1.bf16.msra.mxu0 0
  %786 = vmatprep.subr.bf16.mxu0 0
  %787 = vmatpush1.bf16.msra.mxu0 0
  %788 = vmatprep.subr.bf16.mxu0 0
  %789 = vmatpush1.bf16.msra.mxu0 0
  %790 = vmatprep.subr.bf16.mxu0 0
  %791 = vmatpush1.bf16.msra.mxu0 0
  %792 = vmatprep.subr.bf16.mxu0 0
  %793 = vmatpush1.bf16.msra.mxu0 0
  %794 = vmatprep.subr.bf16.mxu0 0
  %795 = vmatpush1.bf16.msra.mxu0 0
  %796 = vmatprep.subr.bf16.mxu0 0
  %797 = vmatpush1.bf16.msra.mxu0 0
  %798 = vmatprep.subr.bf16.mxu0 0
  %799 = vmatpush1.bf16.msra.mxu0 0
  %800 = vmatprep.subr.bf16.mxu0 0
  %801 = vmatpush1.bf16.msra.mxu0 0
  %802 = vmatprep.subr.bf16.mxu0 0
  %803 = vmatpush1.bf16.msra.mxu0 0
  %804 = vmatprep.subr.bf16.mxu0 0
  %805 = vmatpush1.bf16.msra.mxu0 0
  %806 = vmatprep.subr.bf16.mxu0 0
  %807 = vmatpush1.bf16.msra.mxu0 0
  %808 = vmatprep.subr.bf16.mxu0 0
  %809 = vmatpush1.bf16.msra.mxu0 0
  %810 = vmatprep.subr.bf16.mxu0 0
  %811 = vmatpush1.bf16.msra.mxu0 0
  %812 = vmatprep.mubr.bf16.mxu0 0
  %813 = vmatmul.mubr.bf16.gmra.mrb[0].mxu0 %v766
  %v814 = vpop.f32.mrb[0].mxu0
  %v815 = vadd.f32 0.0, %v814
  %v816 = vpop.f32.mrb[0].mxu0
  %v817 = vpop.f32.mrb[0].mxu0
  %v818 = vadd.f32 0.0, %v817
  %v819 = vpop.f32.mrb[0].mxu0
  %820 = vmatprep.mubr.bf16.mxu0 0
  %821 = vmatmul.mubr.bf16.gmra.mrb[0].mxu0 %v769
  %v822 = vpop.f32.mrb[0].mxu0
  %v823 = vadd.f32 0.0, %v822
  %v824 = vpop.f32.mrb[0].mxu0
  %v825 = vpop.f32.mrb[0].mxu0
  %v826 = vadd.f32 0.0, %v825
  %v827 = vpop.f32.mrb[0].mxu0
  %828 = vmatprep.mubr.bf16.mxu0 0
  %829 = vmatmul.mubr.bf16.gmra.mrb[0].mxu0 %v772
  %v830 = vpop.f32.mrb[0].mxu0
  %v831 = vadd.f32 0.0, %v830
  %v832 = vpop.f32.mrb[0].mxu0
  %v833 = vpop.f32.mrb[0].mxu0
  %v834 = vadd.f32 0.0, %v833
  %v835 = vpop.f32.mrb[0].mxu0
  %836 = vmatprep.mubr.bf16.mxu0 0
  %837 = vmatmul.mubr.bf16.gmra.mrb[0].mxu0 %v775
  %v838 = vpop.f32.mrb[0].mxu0
  %v839 = vadd.f32 0.0, %v838
  %v840 = vpop.f32.mrb[0].mxu0
  %v841 = vpop.f32.mrb[0].mxu0
  %v842 = vadd.f32 0.0, %v841
  %v843 = vpop.f32.mrb[0].mxu0
  %844 = vmatprep.mubr.bf16.mxu0 0
  %845 = vmatmul.mubr.bf16.gmra.mrb[0].mxu0 %v778
  %v846 = vpop.f32.mrb[0].mxu0
  %v847 = vadd.f32 0.0, %v846
  %v848 = vpop.f32.mrb[0].mxu0
  %v849 = vpop.f32.mrb[0].mxu0
  %v850 = vadd.f32 0.0, %v849
  %v851 = vpop.f32.mrb[0].mxu0
  %852 = vdwg.mxu0
  %v853 = vld [vmem:[#allocation2] sm:$0xff]
  %v854 = vld [vmem:[#allocation2 + $0x8] sm:$0xff]
  %v855 = vld [vmem:[#allocation2 + $0x10] sm:$0xff]
  %v856 = vld [vmem:[#allocation2 + $0x18] sm:$0xff]
  %v857 = vld [vmem:[#allocation2 + $0x20] sm:$0xff]
  %v858 = vld [vmem:[#allocation2 + $0x28] sm:$0xff]
  %v859 = vld [vmem:[#allocation2 + $0x30] sm:$0xff]
  %v860 = vld [vmem:[#allocation2 + $0x38] sm:$0xff]
  %v861 = vld [vmem:[#allocation2 + $0x40] sm:$0xff]
  %v862 = vld [vmem:[#allocation2 + $0x48] sm:$0x3f]
  %v863 = vadd.f32 %v853, %v815
  %v864 = vadd.f32 %v854, %v818
  %v865 = vadd.f32 %v855, %v823
  %v866 = vadd.f32 %v856, %v826
  %v867 = vadd.f32 %v857, %v831
  %v868 = vadd.f32 %v858, %v834
  %v869 = vadd.f32 %v859, %v839
  %v870 = vadd.f32 %v860, %v842
  %v871 = vadd.f32 %v861, %v847
  %v872 = vadd.f32 %v862, %v850
  %873 = vst.msk [vmem:[#allocation2] sm:$0xff] %vm66, %v863
  %874 = vst.msk [vmem:[#allocation2 + $0x8] sm:$0xff] %vm66, %v864
  %875 = vst.msk [vmem:[#allocation2 + $0x10] sm:$0xff] %vm66, %v865
  %876 = vst.msk [vmem:[#allocation2 + $0x18] sm:$0xff] %vm66, %v866
  %877 = vst.msk [vmem:[#allocation2 + $0x20] sm:$0xff] %vm66, %v867
  %878 = vst.msk [vmem:[#allocation2 + $0x28] sm:$0xff] %vm66, %v868
  %879 = vst.msk [vmem:[#allocation2 + $0x30] sm:$0xff] %vm66, %v869
  %880 = vst.msk [vmem:[#allocation2 + $0x38] sm:$0xff] %vm66, %v870
  %881 = vst.msk [vmem:[#allocation2 + $0x40] sm:$0xff] %vm66, %v871
  %882 = vst.msk [vmem:[#allocation2 + $0x48] sm:$0x3f] %vm164, %v872
  %v883 = vld [vmem:[%s166] sm:$0xe]
  %v884 = vld [vmem:[%s166 + $0x4] sm:$0xf]
  %v885 = vld [vmem:[%s166 + $0x8] sm:$0xf]
  %v886 = vld [vmem:[%s166 + $0xc] sm:$0xf]
  %v887 = vld [vmem:[%s166 + $0x10] sm:$0xf]
  %v888 = vld [vmem:[%s166 + $0x14] sm:$0xf]
  %v889 = vld [vmem:[%s166 + $0x18] sm:$0xf]
  %v890 = vld [vmem:[%s166 + $0x1c] sm:$0xf]
  %v891 = vld [vmem:[%s166 + $0x20] sm:$0xf]
  %v892 = vld [vmem:[%s166 + $0x24] sm:$0xf]
  %v903 = vunpack.c.l.b16 %v883
  %v904 = vunpack.c.l.b16 %v884
  %v905 = vunpack.c.l.b16 %v885
  %v906 = vunpack.c.l.b16 %v886
  %v907 = vunpack.c.l.b16 %v887
  %v908 = vunpack.c.l.b16 %v888
  %v909 = vunpack.c.l.b16 %v889
  %v910 = vunpack.c.l.b16 %v890
  %v911 = vunpack.c.l.b16 %v891
  %v912 = vunpack.c.l.b16 %v892
  %v913 = vpack.c.b16 %v904, %v903
  %v914 = vpack.c.b16 %v906, %v905
  %v915 = vpack.c.b16 %v908, %v907
  %v916 = vpack.c.b16 %v910, %v909
  %v917 = vpack.c.b16 %v912, %v911
  %v918 = vrot.slane %v913, 1
  %v919 = vrot.slane %v914, 1
  %v920 = vsel %vm743, %v918, %v919
  %v921 = vrot.slane %v915, 1
  %v922 = vsel %vm743, %v919, %v921
  %v923 = vrot.slane %v916, 1
  %v924 = vsel %vm743, %v921, %v923
  %v925 = vrot.slane %v917, 1
  %v926 = vsel %vm743, %v923, %v925
  %v928 = vsel %vm66, %v920, 0
  %v931 = vsel %vm66, %v922, 0
  %v934 = vsel %vm66, %v924, 0
  %v937 = vsel %vm66, %v926, 0
  %v940 = vsel %vm66, %v925, 0
  %942 = vmatprep.subr.bf16.mxu0 0
  %943 = vmatpush1.bf16.msra.mxu0 %v761
  %944 = vmatprep.subr.bf16.mxu0 0
  %945 = vmatpush1.bf16.msra.mxu0 %v762
  %946 = vmatprep.subr.bf16.mxu0 0
  %947 = vmatpush1.bf16.msra.mxu0 0
  %948 = vmatprep.subr.bf16.mxu0 0
  %949 = vmatpush1.bf16.msra.mxu0 0
  %950 = vmatprep.subr.bf16.mxu0 0
  %951 = vmatpush1.bf16.msra.mxu0 0
  %952 = vmatprep.subr.bf16.mxu0 0
  %953 = vmatpush1.bf16.msra.mxu0 0
  %954 = vmatprep.subr.bf16.mxu0 0
  %955 = vmatpush1.bf16.msra.mxu0 0
  %956 = vmatprep.subr.bf16.mxu0 0
  %957 = vmatpush1.bf16.msra.mxu0 0
  %958 = vmatprep.subr.bf16.mxu0 0
  %959 = vmatpush1.bf16.msra.mxu0 0
  %960 = vmatprep.subr.bf16.mxu0 0
  %961 = vmatpush1.bf16.msra.mxu0 0
  %962 = vmatprep.subr.bf16.mxu0 0
  %963 = vmatpush1.bf16.msra.mxu0 0
  %964 = vmatprep.subr.bf16.mxu0 0
  %965 = vmatpush1.bf16.msra.mxu0 0
  %966 = vmatprep.subr.bf16.mxu0 0
  %967 = vmatpush1.bf16.msra.mxu0 0
  %968 = vmatprep.subr.bf16.mxu0 0
  %969 = vmatpush1.bf16.msra.mxu0 0
  %970 = vmatprep.subr.bf16.mxu0 0
  %971 = vmatpush1.bf16.msra.mxu0 0
  %972 = vmatprep.subr.bf16.mxu0 0
  %973 = vmatpush1.bf16.msra.mxu0 0
  %974 = vmatprep.mubr.bf16.mxu0 0
  %975 = vmatmul.mubr.bf16.gmra.mrb[0].mxu0 %v928
  %v976 = vpop.f32.mrb[0].mxu0
  %v977 = vadd.f32 0.0, %v976
  %v978 = vpop.f32.mrb[0].mxu0
  %v979 = vpop.f32.mrb[0].mxu0
  %v980 = vadd.f32 0.0, %v979
  %v981 = vpop.f32.mrb[0].mxu0
  %982 = vmatprep.mubr.bf16.mxu0 0
  %983 = vmatmul.mubr.bf16.gmra.mrb[0].mxu0 %v931
  %v984 = vpop.f32.mrb[0].mxu0
  %v985 = vadd.f32 0.0, %v984
  %v986 = vpop.f32.mrb[0].mxu0
  %v987 = vpop.f32.mrb[0].mxu0
  %v988 = vadd.f32 0.0, %v987
  %v989 = vpop.f32.mrb[0].mxu0
  %990 = vmatprep.mubr.bf16.mxu0 0
  %991 = vmatmul.mubr.bf16.gmra.mrb[0].mxu0 %v934
  %v992 = vpop.f32.mrb[0].mxu0
  %v993 = vadd.f32 0.0, %v992
  %v994 = vpop.f32.mrb[0].mxu0
  %v995 = vpop.f32.mrb[0].mxu0
  %v996 = vadd.f32 0.0, %v995
  %v997 = vpop.f32.mrb[0].mxu0
  %998 = vmatprep.mubr.bf16.mxu0 0
  %999 = vmatmul.mubr.bf16.gmra.mrb[0].mxu0 %v937
  %v1000 = vpop.f32.mrb[0].mxu0
  %v1001 = vadd.f32 0.0, %v1000
  %v1002 = vpop.f32.mrb[0].mxu0
  %v1003 = vpop.f32.mrb[0].mxu0
  %v1004 = vadd.f32 0.0, %v1003
  %v1005 = vpop.f32.mrb[0].mxu0
  %1006 = vmatprep.mubr.bf16.mxu0 0
  %1007 = vmatmul.mubr.bf16.gmra.mrb[0].mxu0 %v940
  %v1008 = vpop.f32.mrb[0].mxu0
  %v1009 = vadd.f32 0.0, %v1008
  %v1010 = vpop.f32.mrb[0].mxu0
  %v1011 = vpop.f32.mrb[0].mxu0
  %v1012 = vadd.f32 0.0, %v1011
  %v1013 = vpop.f32.mrb[0].mxu0
  %1014 = vdwg.mxu0
  %v1015 = vld [vmem:[%s290] sm:$0xff]
  %v1016 = vld [vmem:[%s290 + $0x8] sm:$0xff]
  %v1017 = vld [vmem:[%s290 + $0x10] sm:$0xff]
  %v1018 = vld [vmem:[%s290 + $0x18] sm:$0xff]
  %v1019 = vld [vmem:[%s290 + $0x20] sm:$0xff]
  %v1020 = vld [vmem:[%s290 + $0x28] sm:$0xff]
  %v1021 = vld [vmem:[%s290 + $0x30] sm:$0xff]
  %v1022 = vld [vmem:[%s290 + $0x38] sm:$0xff]
  %v1023 = vld [vmem:[%s290 + $0x40] sm:$0xff]
  %v1024 = vld [vmem:[%s290 + $0x48] sm:$0x3f]
  %v1025 = vadd.f32 %v1015, %v977
  %v1026 = vadd.f32 %v1016, %v980
  %v1027 = vadd.f32 %v1017, %v985
  %v1028 = vadd.f32 %v1018, %v988
  %v1029 = vadd.f32 %v1019, %v993
  %v1030 = vadd.f32 %v1020, %v996
  %v1031 = vadd.f32 %v1021, %v1001
  %v1032 = vadd.f32 %v1022, %v1004
  %v1033 = vadd.f32 %v1023, %v1009
  %v1034 = vadd.f32 %v1024, %v1012
  %1035 = vst.msk [vmem:[%s290] sm:$0xff] %vm66, %v1025
  %1036 = vst.msk [vmem:[%s290 + $0x8] sm:$0xff] %vm66, %v1026
  %1037 = vst.msk [vmem:[%s290 + $0x10] sm:$0xff] %vm66, %v1027
  %1038 = vst.msk [vmem:[%s290 + $0x18] sm:$0xff] %vm66, %v1028
  %1039 = vst.msk [vmem:[%s290 + $0x20] sm:$0xff] %vm66, %v1029
  %1040 = vst.msk [vmem:[%s290 + $0x28] sm:$0xff] %vm66, %v1030
  %1041 = vst.msk [vmem:[%s290 + $0x30] sm:$0xff] %vm66, %v1031
  %1042 = vst.msk [vmem:[%s290 + $0x38] sm:$0xff] %vm66, %v1032
  %1043 = vst.msk [vmem:[%s290 + $0x40] sm:$0xff] %vm66, %v1033
  %1044 = vst.msk [vmem:[%s290 + $0x48] sm:$0x3f] %vm164, %v1034
  %s1045 = scalar_lea.vmem %s1, 48
  %v1046 = vld [vmem:[%s1045] sm:$0xf]
  %v1047 = vld [vmem:[%s1045 + $0x4] sm:$0xf]
  %v1048 = vld [vmem:[%s1045 + $0x8] sm:$0xf]
  %v1049 = vld [vmem:[%s1045 + $0xc] sm:$0xf]
  %v1050 = vld [vmem:[%s0 + $0x4] sm:$0xe]
  %v1051 = vld [vmem:[%s0 + $0x8] sm:$0xf]
  %v1052 = vld [vmem:[%s0 + $0xc] sm:$0xf]
  %v1053 = vld [vmem:[%s0 + $0x10] sm:$0xf]
  %v1054 = vld [vmem:[%s0 + $0x14] sm:$0xf]
  %v1055 = vld [vmem:[%s0 + $0x18] sm:$0xf]
  %v1056 = vld [vmem:[%s0 + $0x1c] sm:$0xf]
  %v1057 = vld [vmem:[%s0 + $0x20] sm:$0xf]
  %v1058 = vld [vmem:[%s0 + $0x24] sm:$0xf]
  %v1059 = vld [vmem:[%s0 + $0x28] sm:$0xf]
  %v1070 = vunpack.c.l.b16 %v1050
  %v1071 = vunpack.c.l.b16 %v1051
  %v1072 = vunpack.c.l.b16 %v1052
  %v1073 = vunpack.c.l.b16 %v1053
  %v1074 = vunpack.c.l.b16 %v1054
  %v1075 = vunpack.c.l.b16 %v1055
  %v1076 = vunpack.c.l.b16 %v1056
  %v1077 = vunpack.c.l.b16 %v1057
  %v1078 = vunpack.c.l.b16 %v1058
  %v1079 = vunpack.c.l.b16 %v1059
  %v1080 = vpack.c.b16 %v1071, %v1070
  %v1081 = vpack.c.b16 %v1073, %v1072
  %v1082 = vpack.c.b16 %v1075, %v1074
  %v1083 = vpack.c.b16 %v1077, %v1076
  %v1084 = vpack.c.b16 %v1079, %v1078
  %v1085 = vrot.slane %v1080, 1
  %v1086 = vrot.slane %v1081, 1
  %v1087 = vsel %vm743, %v1085, %v1086
  %v1088 = vrot.slane %v1082, 1
  %v1089 = vsel %vm743, %v1086, %v1088
  %v1090 = vrot.slane %v1083, 1
  %v1091 = vsel %vm743, %v1088, %v1090
  %v1092 = vrot.slane %v1084, 1
  %v1093 = vsel %vm743, %v1090, %v1092
  %v1098 = vunpack.c.l.b16 %v1046
  %v1099 = vunpack.c.l.b16 %v1047
  %v1100 = vunpack.c.l.b16 %v1048
  %v1101 = vunpack.c.l.b16 %v1049
  %v1102 = vpack.c.b16 %v1099, %v1098
  %v1103 = vpack.c.b16 %v1101, %v1100
  %v1107 = vsel %vm66, %v1087, 0
  %v1110 = vsel %vm66, %v1089, 0
  %v1113 = vsel %vm66, %v1091, 0
  %v1116 = vsel %vm66, %v1093, 0
  %v1119 = vsel %vm66, %v1092, 0
  %1121 = vmatprep.subr.bf16.mxu0 0
  %1122 = vmatpush1.bf16.msra.mxu0 %v1102
  %1123 = vmatprep.subr.bf16.mxu0 0
  %1124 = vmatpush1.bf16.msra.mxu0 %v1103
  %1125 = vmatprep.subr.bf16.mxu0 0
  %1126 = vmatpush1.bf16.msra.mxu0 0
  %1127 = vmatprep.subr.bf16.mxu0 0
  %1128 = vmatpush1.bf16.msra.mxu0 0
  %1129 = vmatprep.subr.bf16.mxu0 0
  %1130 = vmatpush1.bf16.msra.mxu0 0
  %1131 = vmatprep.subr.bf16.mxu0 0
  %1132 = vmatpush1.bf16.msra.mxu0 0
  %1133 = vmatprep.subr.bf16.mxu0 0
  %1134 = vmatpush1.bf16.msra.mxu0 0
  %1135 = vmatprep.subr.bf16.mxu0 0
  %1136 = vmatpush1.bf16.msra.mxu0 0
  %1137 = vmatprep.subr.bf16.mxu0 0
  %1138 = vmatpush1.bf16.msra.mxu0 0
  %1139 = vmatprep.subr.bf16.mxu0 0
  %1140 = vmatpush1.bf16.msra.mxu0 0
  %1141 = vmatprep.subr.bf16.mxu0 0
  %1142 = vmatpush1.bf16.msra.mxu0 0
  %1143 = vmatprep.subr.bf16.mxu0 0
  %1144 = vmatpush1.bf16.msra.mxu0 0
  %1145 = vmatprep.subr.bf16.mxu0 0
  %1146 = vmatpush1.bf16.msra.mxu0 0
  %1147 = vmatprep.subr.bf16.mxu0 0
  %1148 = vmatpush1.bf16.msra.mxu0 0
  %1149 = vmatprep.subr.bf16.mxu0 0
  %1150 = vmatpush1.bf16.msra.mxu0 0
  %1151 = vmatprep.subr.bf16.mxu0 0
  %1152 = vmatpush1.bf16.msra.mxu0 0
  %1153 = vmatprep.mubr.bf16.mxu0 0
  %1154 = vmatmul.mubr.bf16.gmra.mrb[0].mxu0 %v1107
  %v1155 = vpop.f32.mrb[0].mxu0
  %v1156 = vadd.f32 0.0, %v1155
  %v1157 = vpop.f32.mrb[0].mxu0
  %v1158 = vpop.f32.mrb[0].mxu0
  %v1159 = vadd.f32 0.0, %v1158
  %v1160 = vpop.f32.mrb[0].mxu0
  %1161 = vmatprep.mubr.bf16.mxu0 0
  %1162 = vmatmul.mubr.bf16.gmra.mrb[0].mxu0 %v1110
  %v1163 = vpop.f32.mrb[0].mxu0
  %v1164 = vadd.f32 0.0, %v1163
  %v1165 = vpop.f32.mrb[0].mxu0
  %v1166 = vpop.f32.mrb[0].mxu0
  %v1167 = vadd.f32 0.0, %v1166
  %v1168 = vpop.f32.mrb[0].mxu0
  %1169 = vmatprep.mubr.bf16.mxu0 0
  %1170 = vmatmul.mubr.bf16.gmra.mrb[0].mxu0 %v1113
  %v1171 = vpop.f32.mrb[0].mxu0
  %v1172 = vadd.f32 0.0, %v1171
  %v1173 = vpop.f32.mrb[0].mxu0
  %v1174 = vpop.f32.mrb[0].mxu0
  %v1175 = vadd.f32 0.0, %v1174
  %v1176 = vpop.f32.mrb[0].mxu0
  %1177 = vmatprep.mubr.bf16.mxu0 0
  %1178 = vmatmul.mubr.bf16.gmra.mrb[0].mxu0 %v1116
  %v1179 = vpop.f32.mrb[0].mxu0
  %v1180 = vadd.f32 0.0, %v1179
  %v1181 = vpop.f32.mrb[0].mxu0
  %v1182 = vpop.f32.mrb[0].mxu0
  %v1183 = vadd.f32 0.0, %v1182
  %v1184 = vpop.f32.mrb[0].mxu0
  %1185 = vmatprep.mubr.bf16.mxu0 0
  %1186 = vmatmul.mubr.bf16.gmra.mrb[0].mxu0 %v1119
  %v1187 = vpop.f32.mrb[0].mxu0
  %v1188 = vadd.f32 0.0, %v1187
  %v1189 = vpop.f32.mrb[0].mxu0
  %v1190 = vpop.f32.mrb[0].mxu0
  %v1191 = vadd.f32 0.0, %v1190
  %v1192 = vpop.f32.mrb[0].mxu0
  %1193 = vdwg.mxu0
  %v1194 = vld [vmem:[#allocation2] sm:$0xff]
  %v1195 = vld [vmem:[#allocation2 + $0x8] sm:$0xff]
  %v1196 = vld [vmem:[#allocation2 + $0x10] sm:$0xff]
  %v1197 = vld [vmem:[#allocation2 + $0x18] sm:$0xff]
  %v1198 = vld [vmem:[#allocation2 + $0x20] sm:$0xff]
  %v1199 = vld [vmem:[#allocation2 + $0x28] sm:$0xff]
  %v1200 = vld [vmem:[#allocation2 + $0x30] sm:$0xff]
  %v1201 = vld [vmem:[#allocation2 + $0x38] sm:$0xff]
  %v1202 = vld [vmem:[#allocation2 + $0x40] sm:$0xff]
  %v1203 = vld [vmem:[#allocation2 + $0x48] sm:$0x3f]
  %v1204 = vadd.f32 %v1194, %v1156
  %v1205 = vadd.f32 %v1195, %v1159
  %v1206 = vadd.f32 %v1196, %v1164
  %v1207 = vadd.f32 %v1197, %v1167
  %v1208 = vadd.f32 %v1198, %v1172
  %v1209 = vadd.f32 %v1199, %v1175
  %v1210 = vadd.f32 %v1200, %v1180
  %v1211 = vadd.f32 %v1201, %v1183
  %v1212 = vadd.f32 %v1202, %v1188
  %v1213 = vadd.f32 %v1203, %v1191
  %1214 = vst.msk [vmem:[#allocation2] sm:$0xff] %vm66, %v1204
  %1215 = vst.msk [vmem:[#allocation2 + $0x8] sm:$0xff] %vm66, %v1205
  %1216 = vst.msk [vmem:[#allocation2 + $0x10] sm:$0xff] %vm66, %v1206
  %1217 = vst.msk [vmem:[#allocation2 + $0x18] sm:$0xff] %vm66, %v1207
  %1218 = vst.msk [vmem:[#allocation2 + $0x20] sm:$0xff] %vm66, %v1208
  %1219 = vst.msk [vmem:[#allocation2 + $0x28] sm:$0xff] %vm66, %v1209
  %1220 = vst.msk [vmem:[#allocation2 + $0x30] sm:$0xff] %vm66, %v1210
  %1221 = vst.msk [vmem:[#allocation2 + $0x38] sm:$0xff] %vm66, %v1211
  %1222 = vst.msk [vmem:[#allocation2 + $0x40] sm:$0xff] %vm66, %v1212
  %1223 = vst.msk [vmem:[#allocation2 + $0x48] sm:$0x3f] %vm164, %v1213
  %v1224 = vld [vmem:[%s166 + $0x4] sm:$0xe]
  %v1225 = vld [vmem:[%s166 + $0x8] sm:$0xf]
  %v1226 = vld [vmem:[%s166 + $0xc] sm:$0xf]
  %v1227 = vld [vmem:[%s166 + $0x10] sm:$0xf]
  %v1228 = vld [vmem:[%s166 + $0x14] sm:$0xf]
  %v1229 = vld [vmem:[%s166 + $0x18] sm:$0xf]
  %v1230 = vld [vmem:[%s166 + $0x1c] sm:$0xf]
  %v1231 = vld [vmem:[%s166 + $0x20] sm:$0xf]
  %v1232 = vld [vmem:[%s166 + $0x24] sm:$0xf]
  %v1233 = vld [vmem:[%s166 + $0x28] sm:$0xf]
  %v1244 = vunpack.c.l.b16 %v1224
  %v1245 = vunpack.c.l.b16 %v1225
  %v1246 = vunpack.c.l.b16 %v1226
  %v1247 = vunpack.c.l.b16 %v1227
  %v1248 = vunpack.c.l.b16 %v1228
  %v1249 = vunpack.c.l.b16 %v1229
  %v1250 = vunpack.c.l.b16 %v1230
  %v1251 = vunpack.c.l.b16 %v1231
  %v1252 = vunpack.c.l.b16 %v1232
  %v1253 = vunpack.c.l.b16 %v1233
  %v1254 = vpack.c.b16 %v1245, %v1244
  %v1255 = vpack.c.b16 %v1247, %v1246
  %v1256 = vpack.c.b16 %v1249, %v1248
  %v1257 = vpack.c.b16 %v1251, %v1250
  %v1258 = vpack.c.b16 %v1253, %v1252
  %v1259 = vrot.slane %v1254, 1
  %v1260 = vrot.slane %v1255, 1
  %v1261 = vsel %vm743, %v1259, %v1260
  %v1262 = vrot.slane %v1256, 1
  %v1263 = vsel %vm743, %v1260, %v1262
  %v1264 = vrot.slane %v1257, 1
  %v1265 = vsel %vm743, %v1262, %v1264
  %v1266 = vrot.slane %v1258, 1
  %v1267 = vsel %vm743, %v1264, %v1266
  %v1269 = vsel %vm66, %v1261, 0
  %v1272 = vsel %vm66, %v1263, 0
  %v1275 = vsel %vm66, %v1265, 0
  %v1278 = vsel %vm66, %v1267, 0
  %v1281 = vsel %vm66, %v1266, 0
  %1283 = vmatprep.subr.bf16.mxu0 0
  %1284 = vmatpush1.bf16.msra.mxu0 %v1102
  %1285 = vmatprep.subr.bf16.mxu0 0
  %1286 = vmatpush1.bf16.msra.mxu0 %v1103
  %1287 = vmatprep.subr.bf16.mxu0 0
  %1288 = vmatpush1.bf16.msra.mxu0 0
  %1289 = vmatprep.subr.bf16.mxu0 0
  %1290 = vmatpush1.bf16.msra.mxu0 0
  %1291 = vmatprep.subr.bf16.mxu0 0
  %1292 = vmatpush1.bf16.msra.mxu0 0
  %1293 = vmatprep.subr.bf16.mxu0 0
  %1294 = vmatpush1.bf16.msra.mxu0 0
  %1295 = vmatprep.subr.bf16.mxu0 0
  %1296 = vmatpush1.bf16.msra.mxu0 0
  %1297 = vmatprep.subr.bf16.mxu0 0
  %1298 = vmatpush1.bf16.msra.mxu0 0
  %1299 = vmatprep.subr.bf16.mxu0 0
  %1300 = vmatpush1.bf16.msra.mxu0 0
  %1301 = vmatprep.subr.bf16.mxu0 0
  %1302 = vmatpush1.bf16.msra.mxu0 0
  %1303 = vmatprep.subr.bf16.mxu0 0
  %1304 = vmatpush1.bf16.msra.mxu0 0
  %1305 = vmatprep.subr.bf16.mxu0 0
  %1306 = vmatpush1.bf16.msra.mxu0 0
  %1307 = vmatprep.subr.bf16.mxu0 0
  %1308 = vmatpush1.bf16.msra.mxu0 0
  %1309 = vmatprep.subr.bf16.mxu0 0
  %1310 = vmatpush1.bf16.msra.mxu0 0
  %1311 = vmatprep.subr.bf16.mxu0 0
  %1312 = vmatpush1.bf16.msra.mxu0 0
  %1313 = vmatprep.subr.bf16.mxu0 0
  %1314 = vmatpush1.bf16.msra.mxu0 0
  %1315 = vmatprep.mubr.bf16.mxu0 0
  %1316 = vmatmul.mubr.bf16.gmra.mrb[0].mxu0 %v1269
  %v1317 = vpop.f32.mrb[0].mxu0
  %v1318 = vadd.f32 0.0, %v1317
  %v1319 = vpop.f32.mrb[0].mxu0
  %v1320 = vpop.f32.mrb[0].mxu0
  %v1321 = vadd.f32 0.0, %v1320
  %v1322 = vpop.f32.mrb[0].mxu0
  %1323 = vmatprep.mubr.bf16.mxu0 0
  %1324 = vmatmul.mubr.bf16.gmra.mrb[0].mxu0 %v1272
  %v1325 = vpop.f32.mrb[0].mxu0
  %v1326 = vadd.f32 0.0, %v1325
  %v1327 = vpop.f32.mrb[0].mxu0
  %v1328 = vpop.f32.mrb[0].mxu0
  %v1329 = vadd.f32 0.0, %v1328
  %v1330 = vpop.f32.mrb[0].mxu0
  %1331 = vmatprep.mubr.bf16.mxu0 0
  %1332 = vmatmul.mubr.bf16.gmra.mrb[0].mxu0 %v1275
  %v1333 = vpop.f32.mrb[0].mxu0
  %v1334 = vadd.f32 0.0, %v1333
  %v1335 = vpop.f32.mrb[0].mxu0
  %v1336 = vpop.f32.mrb[0].mxu0
  %v1337 = vadd.f32 0.0, %v1336
  %v1338 = vpop.f32.mrb[0].mxu0
  %1339 = vmatprep.mubr.bf16.mxu0 0
  %1340 = vmatmul.mubr.bf16.gmra.mrb[0].mxu0 %v1278
  %v1341 = vpop.f32.mrb[0].mxu0
  %v1342 = vadd.f32 0.0, %v1341
  %v1343 = vpop.f32.mrb[0].mxu0
  %v1344 = vpop.f32.mrb[0].mxu0
  %v1345 = vadd.f32 0.0, %v1344
  %v1346 = vpop.f32.mrb[0].mxu0
  %1347 = vmatprep.mubr.bf16.mxu0 0
  %1348 = vmatmul.mubr.bf16.gmra.mrb[0].mxu0 %v1281
  %v1349 = vpop.f32.mrb[0].mxu0
  %v1350 = vadd.f32 0.0, %v1349
  %v1351 = vpop.f32.mrb[0].mxu0
  %v1352 = vpop.f32.mrb[0].mxu0
  %v1353 = vadd.f32 0.0, %v1352
  %v1354 = vpop.f32.mrb[0].mxu0
  %1355 = vdwg.mxu0
  %v1356 = vld [vmem:[%s290] sm:$0xff]
  %v1357 = vld [vmem:[%s290 + $0x8] sm:$0xff]
  %v1358 = vld [vmem:[%s290 + $0x10] sm:$0xff]
  %v1359 = vld [vmem:[%s290 + $0x18] sm:$0xff]
  %v1360 = vld [vmem:[%s290 + $0x20] sm:$0xff]
  %v1361 = vld [vmem:[%s290 + $0x28] sm:$0xff]
  %v1362 = vld [vmem:[%s290 + $0x30] sm:$0xff]
  %v1363 = vld [vmem:[%s290 + $0x38] sm:$0xff]
  %v1364 = vld [vmem:[%s290 + $0x40] sm:$0xff]
  %v1365 = vld [vmem:[%s290 + $0x48] sm:$0x3f]
  %v1366 = vadd.f32 %v1356, %v1318
  %v1367 = vadd.f32 %v1357, %v1321
  %v1368 = vadd.f32 %v1358, %v1326
  %v1369 = vadd.f32 %v1359, %v1329
  %v1370 = vadd.f32 %v1360, %v1334
  %v1371 = vadd.f32 %v1361, %v1337
  %v1372 = vadd.f32 %v1362, %v1342
  %v1373 = vadd.f32 %v1363, %v1345
  %v1374 = vadd.f32 %v1364, %v1350
  %v1375 = vadd.f32 %v1365, %v1353
  %1376 = vst.msk [vmem:[%s290] sm:$0xff] %vm66, %v1366
  %1377 = vst.msk [vmem:[%s290 + $0x8] sm:$0xff] %vm66, %v1367
  %1378 = vst.msk [vmem:[%s290 + $0x10] sm:$0xff] %vm66, %v1368
  %1379 = vst.msk [vmem:[%s290 + $0x18] sm:$0xff] %vm66, %v1369
  %1380 = vst.msk [vmem:[%s290 + $0x20] sm:$0xff] %vm66, %v1370
  %1381 = vst.msk [vmem:[%s290 + $0x28] sm:$0xff] %vm66, %v1371
  %1382 = vst.msk [vmem:[%s290 + $0x30] sm:$0xff] %vm66, %v1372
  %1383 = vst.msk [vmem:[%s290 + $0x38] sm:$0xff] %vm66, %v1373
  %1384 = vst.msk [vmem:[%s290 + $0x40] sm:$0xff] %vm66, %v1374
  %1385 = vst.msk [vmem:[%s290 + $0x48] sm:$0x3f] %vm164, %v1375
  %s1386 = scalar_lea.vmem %s1, 64
  %v1387 = vld [vmem:[%s1386] sm:$0xf]
  %v1388 = vld [vmem:[%s1386 + $0x4] sm:$0xf]
  %v1389 = vld [vmem:[%s1386 + $0x8] sm:$0xf]
  %v1390 = vld [vmem:[%s1386 + $0xc] sm:$0xf]
  %v1391 = vld [vmem:[%s0 + $0x4] sm:$0xe]
  %v1392 = vld [vmem:[%s0 + $0x8] sm:$0xf]
  %v1393 = vld [vmem:[%s0 + $0xc] sm:$0xf]
  %v1394 = vld [vmem:[%s0 + $0x10] sm:$0xf]
  %v1395 = vld [vmem:[%s0 + $0x14] sm:$0xf]
  %v1396 = vld [vmem:[%s0 + $0x18] sm:$0xf]
  %v1397 = vld [vmem:[%s0 + $0x1c] sm:$0xf]
  %v1398 = vld [vmem:[%s0 + $0x20] sm:$0xf]
  %v1399 = vld [vmem:[%s0 + $0x24] sm:$0xf]
  %v1400 = vld [vmem:[%s0 + $0x28] sm:$0xf]
  %v1401 = vld [vmem:[%s0 + $0x2c] sm:$0x1]
  %v1413 = vunpack.c.l.b16 %v1391
  %v1414 = vunpack.c.l.b16 %v1392
  %v1415 = vunpack.c.l.b16 %v1393
  %v1416 = vunpack.c.l.b16 %v1394
  %v1417 = vunpack.c.l.b16 %v1395
  %v1418 = vunpack.c.l.b16 %v1396
  %v1419 = vunpack.c.l.b16 %v1397
  %v1420 = vunpack.c.l.b16 %v1398
  %v1421 = vunpack.c.l.b16 %v1399
  %v1422 = vunpack.c.l.b16 %v1400
  %v1423 = vunpack.c.l.b16 %v1401
  %v1424 = vpack.c.b16 %v1414, %v1413
  %v1425 = vpack.c.b16 %v1416, %v1415
  %v1426 = vpack.c.b16 %v1418, %v1417
  %v1427 = vpack.c.b16 %v1420, %v1419
  %v1428 = vpack.c.b16 %v1422, %v1421
  %v1429 = vpack.c.b16 %v1423, %v1423
  %vm1430 = vsmask.f32 6400
  %v1432 = vshrl.u32 %v1424, 16
  %v1434 = vrot.slane %v1432, 1
  %v1435 = vshll.u32 %v1424, 16
  %v1437 = vrot.slane %v1435, 2
  %v1438 = vor.u32 %v1434, %v1437
  %v1440 = vshrl.u32 %v1425, 16
  %v1442 = vrot.slane %v1440, 1
  %v1443 = vshll.u32 %v1425, 16
  %v1445 = vrot.slane %v1443, 2
  %v1446 = vor.u32 %v1442, %v1445
  %v1447 = vsel %vm1430, %v1438, %v1446
  %v1449 = vshrl.u32 %v1426, 16
  %v1451 = vrot.slane %v1449, 1
  %v1452 = vshll.u32 %v1426, 16
  %v1454 = vrot.slane %v1452, 2
  %v1455 = vor.u32 %v1451, %v1454
  %v1456 = vsel %vm1430, %v1446, %v1455
  %v1458 = vshrl.u32 %v1427, 16
  %v1460 = vrot.slane %v1458, 1
  %v1461 = vshll.u32 %v1427, 16
  %v1463 = vrot.slane %v1461, 2
  %v1464 = vor.u32 %v1460, %v1463
  %v1465 = vsel %vm1430, %v1455, %v1464
  %v1467 = vshrl.u32 %v1428, 16
  %v1469 = vrot.slane %v1467, 1
  %v1470 = vshll.u32 %v1428, 16
  %v1472 = vrot.slane %v1470, 2
  %v1473 = vor.u32 %v1469, %v1472
  %v1474 = vsel %vm1430, %v1464, %v1473
  %v1476 = vshll.u32 %v1429, 16
  %v1478 = vrot.slane %v1476, 2
  %v1479 = vsel %vm1430, %v1473, %v1478
  %v1484 = vunpack.c.l.b16 %v1387
  %v1485 = vunpack.c.l.b16 %v1388
  %v1486 = vunpack.c.l.b16 %v1389
  %v1487 = vunpack.c.l.b16 %v1390
  %v1488 = vpack.c.b16 %v1485, %v1484
  %v1489 = vpack.c.b16 %v1487, %v1486
  %v1493 = vsel %vm66, %v1447, 0
  %v1496 = vsel %vm66, %v1456, 0
  %v1499 = vsel %vm66, %v1465, 0
  %v1502 = vsel %vm66, %v1474, 0
  %v1505 = vsel %vm66, %v1479, 0
  %1507 = vmatprep.subr.bf16.mxu0 0
  %1508 = vmatpush1.bf16.msra.mxu0 %v1488
  %1509 = vmatprep.subr.bf16.mxu0 0
  %1510 = vmatpush1.bf16.msra.mxu0 %v1489
  %1511 = vmatprep.subr.bf16.mxu0 0
  %1512 = vmatpush1.bf16.msra.mxu0 0
  %1513 = vmatprep.subr.bf16.mxu0 0
  %1514 = vmatpush1.bf16.msra.mxu0 0
  %1515 = vmatprep.subr.bf16.mxu0 0
  %1516 = vmatpush1.bf16.msra.mxu0 0
  %1517 = vmatprep.subr.bf16.mxu0 0
  %1518 = vmatpush1.bf16.msra.mxu0 0
  %1519 = vmatprep.subr.bf16.mxu0 0
  %1520 = vmatpush1.bf16.msra.mxu0 0
  %1521 = vmatprep.subr.bf16.mxu0 0
  %1522 = vmatpush1.bf16.msra.mxu0 0
  %1523 = vmatprep.subr.bf16.mxu0 0
  %1524 = vmatpush1.bf16.msra.mxu0 0
  %1525 = vmatprep.subr.bf16.mxu0 0
  %1526 = vmatpush1.bf16.msra.mxu0 0
  %1527 = vmatprep.subr.bf16.mxu0 0
  %1528 = vmatpush1.bf16.msra.mxu0 0
  %1529 = vmatprep.subr.bf16.mxu0 0
  %1530 = vmatpush1.bf16.msra.mxu0 0
  %1531 = vmatprep.subr.bf16.mxu0 0
  %1532 = vmatpush1.bf16.msra.mxu0 0
  %1533 = vmatprep.subr.bf16.mxu0 0
  %1534 = vmatpush1.bf16.msra.mxu0 0
  %1535 = vmatprep.subr.bf16.mxu0 0
  %1536 = vmatpush1.bf16.msra.mxu0 0
  %1537 = vmatprep.subr.bf16.mxu0 0
  %1538 = vmatpush1.bf16.msra.mxu0 0
  %1539 = vmatprep.mubr.bf16.mxu0 0
  %1540 = vmatmul.mubr.bf16.gmra.mrb[0].mxu0 %v1493
  %v1541 = vpop.f32.mrb[0].mxu0
  %v1542 = vadd.f32 0.0, %v1541
  %v1543 = vpop.f32.mrb[0].mxu0
  %v1544 = vpop.f32.mrb[0].mxu0
  %v1545 = vadd.f32 0.0, %v1544
  %v1546 = vpop.f32.mrb[0].mxu0
  %1547 = vmatprep.mubr.bf16.mxu0 0
  %1548 = vmatmul.mubr.bf16.gmra.mrb[0].mxu0 %v1496
  %v1549 = vpop.f32.mrb[0].mxu0
  %v1550 = vadd.f32 0.0, %v1549
  %v1551 = vpop.f32.mrb[0].mxu0
  %v1552 = vpop.f32.mrb[0].mxu0
  %v1553 = vadd.f32 0.0, %v1552
  %v1554 = vpop.f32.mrb[0].mxu0
  %1555 = vmatprep.mubr.bf16.mxu0 0
  %1556 = vmatmul.mubr.bf16.gmra.mrb[0].mxu0 %v1499
  %v1557 = vpop.f32.mrb[0].mxu0
  %v1558 = vadd.f32 0.0, %v1557
  %v1559 = vpop.f32.mrb[0].mxu0
  %v1560 = vpop.f32.mrb[0].mxu0
  %v1561 = vadd.f32 0.0, %v1560
  %v1562 = vpop.f32.mrb[0].mxu0
  %1563 = vmatprep.mubr.bf16.mxu0 0
  %1564 = vmatmul.mubr.bf16.gmra.mrb[0].mxu0 %v1502
  %v1565 = vpop.f32.mrb[0].mxu0
  %v1566 = vadd.f32 0.0, %v1565
  %v1567 = vpop.f32.mrb[0].mxu0
  %v1568 = vpop.f32.mrb[0].mxu0
  %v1569 = vadd.f32 0.0, %v1568
  %v1570 = vpop.f32.mrb[0].mxu0
  %1571 = vmatprep.mubr.bf16.mxu0 0
  %1572 = vmatmul.mubr.bf16.gmra.mrb[0].mxu0 %v1505
  %v1573 = vpop.f32.mrb[0].mxu0
  %v1574 = vadd.f32 0.0, %v1573
  %v1575 = vpop.f32.mrb[0].mxu0
  %v1576 = vpop.f32.mrb[0].mxu0
  %v1577 = vadd.f32 0.0, %v1576
  %v1578 = vpop.f32.mrb[0].mxu0
  %1579 = vdwg.mxu0
  %v1580 = vld [vmem:[#allocation2] sm:$0xff]
  %v1581 = vld [vmem:[#allocation2 + $0x8] sm:$0xff]
  %v1582 = vld [vmem:[#allocation2 + $0x10] sm:$0xff]
  %v1583 = vld [vmem:[#allocation2 + $0x18] sm:$0xff]
  %v1584 = vld [vmem:[#allocation2 + $0x20] sm:$0xff]
  %v1585 = vld [vmem:[#allocation2 + $0x28] sm:$0xff]
  %v1586 = vld [vmem:[#allocation2 + $0x30] sm:$0xff]
  %v1587 = vld [vmem:[#allocation2 + $0x38] sm:$0xff]
  %v1588 = vld [vmem:[#allocation2 + $0x40] sm:$0xff]
  %v1589 = vld [vmem:[#allocation2 + $0x48] sm:$0x3f]
  %v1590 = vadd.f32 %v1580, %v1542
  %v1591 = vadd.f32 %v1581, %v1545
  %v1592 = vadd.f32 %v1582, %v1550
  %v1593 = vadd.f32 %v1583, %v1553
  %v1594 = vadd.f32 %v1584, %v1558
  %v1595 = vadd.f32 %v1585, %v1561
  %v1596 = vadd.f32 %v1586, %v1566
  %v1597 = vadd.f32 %v1587, %v1569
  %v1598 = vadd.f32 %v1588, %v1574
  %v1599 = vadd.f32 %v1589, %v1577
  %1600 = vst.msk [vmem:[#allocation2] sm:$0xff] %vm66, %v1590
  %1601 = vst.msk [vmem:[#allocation2 + $0x8] sm:$0xff] %vm66, %v1591
  %1602 = vst.msk [vmem:[#allocation2 + $0x10] sm:$0xff] %vm66, %v1592
  %1603 = vst.msk [vmem:[#allocation2 + $0x18] sm:$0xff] %vm66, %v1593
  %1604 = vst.msk [vmem:[#allocation2 + $0x20] sm:$0xff] %vm66, %v1594
  %1605 = vst.msk [vmem:[#allocation2 + $0x28] sm:$0xff] %vm66, %v1595
  %1606 = vst.msk [vmem:[#allocation2 + $0x30] sm:$0xff] %vm66, %v1596
  %1607 = vst.msk [vmem:[#allocation2 + $0x38] sm:$0xff] %vm66, %v1597
  %1608 = vst.msk [vmem:[#allocation2 + $0x40] sm:$0xff] %vm66, %v1598
  %1609 = vst.msk [vmem:[#allocation2 + $0x48] sm:$0x3f] %vm164, %v1599
  %v1610 = vld [vmem:[%s166 + $0x4] sm:$0xe]
  %v1611 = vld [vmem:[%s166 + $0x8] sm:$0xf]
  %v1612 = vld [vmem:[%s166 + $0xc] sm:$0xf]
  %v1613 = vld [vmem:[%s166 + $0x10] sm:$0xf]
  %v1614 = vld [vmem:[%s166 + $0x14] sm:$0xf]
  %v1615 = vld [vmem:[%s166 + $0x18] sm:$0xf]
  %v1616 = vld [vmem:[%s166 + $0x1c] sm:$0xf]
  %v1617 = vld [vmem:[%s166 + $0x20] sm:$0xf]
  %v1618 = vld [vmem:[%s166 + $0x24] sm:$0xf]
  %v1619 = vld [vmem:[%s166 + $0x28] sm:$0xf]
  %v1620 = vld [vmem:[%s166 + $0x2c] sm:$0x1]
  %v1632 = vunpack.c.l.b16 %v1610
  %v1633 = vunpack.c.l.b16 %v1611
  %v1634 = vunpack.c.l.b16 %v1612
  %v1635 = vunpack.c.l.b16 %v1613
  %v1636 = vunpack.c.l.b16 %v1614
  %v1637 = vunpack.c.l.b16 %v1615
  %v1638 = vunpack.c.l.b16 %v1616
  %v1639 = vunpack.c.l.b16 %v1617
  %v1640 = vunpack.c.l.b16 %v1618
  %v1641 = vunpack.c.l.b16 %v1619
  %v1642 = vunpack.c.l.b16 %v1620
  %v1643 = vpack.c.b16 %v1633, %v1632
  %v1644 = vpack.c.b16 %v1635, %v1634
  %v1645 = vpack.c.b16 %v1637, %v1636
  %v1646 = vpack.c.b16 %v1639, %v1638
  %v1647 = vpack.c.b16 %v1641, %v1640
  %v1648 = vpack.c.b16 %v1642, %v1642
  %v1650 = vshrl.u32 %v1643, 16
  %v1652 = vrot.slane %v1650, 1
  %v1653 = vshll.u32 %v1643, 16
  %v1655 = vrot.slane %v1653, 2
  %v1656 = vor.u32 %v1652, %v1655
  %v1658 = vshrl.u32 %v1644, 16
  %v1660 = vrot.slane %v1658, 1
  %v1661 = vshll.u32 %v1644, 16
  %v1663 = vrot.slane %v1661, 2
  %v1664 = vor.u32 %v1660, %v1663
  %v1665 = vsel %vm1430, %v1656, %v1664
  %v1667 = vshrl.u32 %v1645, 16
  %v1669 = vrot.slane %v1667, 1
  %v1670 = vshll.u32 %v1645, 16
  %v1672 = vrot.slane %v1670, 2
  %v1673 = vor.u32 %v1669, %v1672
  %v1674 = vsel %vm1430, %v1664, %v1673
  %v1676 = vshrl.u32 %v1646, 16
  %v1678 = vrot.slane %v1676, 1
  %v1679 = vshll.u32 %v1646, 16
  %v1681 = vrot.slane %v1679, 2
  %v1682 = vor.u32 %v1678, %v1681
  %v1683 = vsel %vm1430, %v1673, %v1682
  %v1685 = vshrl.u32 %v1647, 16
  %v1687 = vrot.slane %v1685, 1
  %v1688 = vshll.u32 %v1647, 16
  %v1690 = vrot.slane %v1688, 2
  %v1691 = vor.u32 %v1687, %v1690
  %v1692 = vsel %vm1430, %v1682, %v1691
  %v1694 = vshll.u32 %v1648, 16
  %v1696 = vrot.slane %v1694, 2
  %v1697 = vsel %vm1430, %v1691, %v1696
  %v1699 = vsel %vm66, %v1665, 0
  %v1702 = vsel %vm66, %v1674, 0
  %v1705 = vsel %vm66, %v1683, 0
  %v1708 = vsel %vm66, %v1692, 0
  %v1711 = vsel %vm66, %v1697, 0
  %1713 = vmatprep.subr.bf16.mxu0 0
  %1714 = vmatpush1.bf16.msra.mxu0 %v1488
  %1715 = vmatprep.subr.bf16.mxu0 0
  %1716 = vmatpush1.bf16.msra.mxu0 %v1489
  %1717 = vmatprep.subr.bf16.mxu0 0
  %1718 = vmatpush1.bf16.msra.mxu0 0
  %1719 = vmatprep.subr.bf16.mxu0 0
  %1720 = vmatpush1.bf16.msra.mxu0 0
  %1721 = vmatprep.subr.bf16.mxu0 0
  %1722 = vmatpush1.bf16.msra.mxu0 0
  %1723 = vmatprep.subr.bf16.mxu0 0
  %1724 = vmatpush1.bf16.msra.mxu0 0
  %1725 = vmatprep.subr.bf16.mxu0 0
  %1726 = vmatpush1.bf16.msra.mxu0 0
  %1727 = vmatprep.subr.bf16.mxu0 0
  %1728 = vmatpush1.bf16.msra.mxu0 0
  %1729 = vmatprep.subr.bf16.mxu0 0
  %1730 = vmatpush1.bf16.msra.mxu0 0
  %1731 = vmatprep.subr.bf16.mxu0 0
  %1732 = vmatpush1.bf16.msra.mxu0 0
  %1733 = vmatprep.subr.bf16.mxu0 0
  %1734 = vmatpush1.bf16.msra.mxu0 0
  %1735 = vmatprep.subr.bf16.mxu0 0
  %1736 = vmatpush1.bf16.msra.mxu0 0
  %1737 = vmatprep.subr.bf16.mxu0 0
  %1738 = vmatpush1.bf16.msra.mxu0 0
  %1739 = vmatprep.subr.bf16.mxu0 0
  %1740 = vmatpush1.bf16.msra.mxu0 0
  %1741 = vmatprep.subr.bf16.mxu0 0
  %1742 = vmatpush1.bf16.msra.mxu0 0
  %1743 = vmatprep.subr.bf16.mxu0 0
  %1744 = vmatpush1.bf16.msra.mxu0 0
  %1745 = vmatprep.mubr.bf16.mxu0 0
  %1746 = vmatmul.mubr.bf16.gmra.mrb[0].mxu0 %v1699
  %v1747 = vpop.f32.mrb[0].mxu0
  %v1748 = vadd.f32 0.0, %v1747
  %v1749 = vpop.f32.mrb[0].mxu0
  %v1750 = vpop.f32.mrb[0].mxu0
  %v1751 = vadd.f32 0.0, %v1750
  %v1752 = vpop.f32.mrb[0].mxu0
  %1753 = vmatprep.mubr.bf16.mxu0 0
  %1754 = vmatmul.mubr.bf16.gmra.mrb[0].mxu0 %v1702
  %v1755 = vpop.f32.mrb[0].mxu0
  %v1756 = vadd.f32 0.0, %v1755
  %v1757 = vpop.f32.mrb[0].mxu0
  %v1758 = vpop.f32.mrb[0].mxu0
  %v1759 = vadd.f32 0.0, %v1758
  %v1760 = vpop.f32.mrb[0].mxu0
  %1761 = vmatprep.mubr.bf16.mxu0 0
  %1762 = vmatmul.mubr.bf16.gmra.mrb[0].mxu0 %v1705
  %v1763 = vpop.f32.mrb[0].mxu0
  %v1764 = vadd.f32 0.0, %v1763
  %v1765 = vpop.f32.mrb[0].mxu0
  %v1766 = vpop.f32.mrb[0].mxu0
  %v1767 = vadd.f32 0.0, %v1766
  %v1768 = vpop.f32.mrb[0].mxu0
  %1769 = vmatprep.mubr.bf16.mxu0 0
  %1770 = vmatmul.mubr.bf16.gmra.mrb[0].mxu0 %v1708
  %v1771 = vpop.f32.mrb[0].mxu0
  %v1772 = vadd.f32 0.0, %v1771
  %v1773 = vpop.f32.mrb[0].mxu0
  %v1774 = vpop.f32.mrb[0].mxu0
  %v1775 = vadd.f32 0.0, %v1774
  %v1776 = vpop.f32.mrb[0].mxu0
  %1777 = vmatprep.mubr.bf16.mxu0 0
  %1778 = vmatmul.mubr.bf16.gmra.mrb[0].mxu0 %v1711
  %v1779 = vpop.f32.mrb[0].mxu0
  %v1780 = vadd.f32 0.0, %v1779
  %v1781 = vpop.f32.mrb[0].mxu0
  %v1782 = vpop.f32.mrb[0].mxu0
  %v1783 = vadd.f32 0.0, %v1782
  %v1784 = vpop.f32.mrb[0].mxu0
  %1785 = vdwg.mxu0
  %v1786 = vld [vmem:[%s290] sm:$0xff]
  %v1787 = vld [vmem:[%s290 + $0x8] sm:$0xff]
  %v1788 = vld [vmem:[%s290 + $0x10] sm:$0xff]
  %v1789 = vld [vmem:[%s290 + $0x18] sm:$0xff]
  %v1790 = vld [vmem:[%s290 + $0x20] sm:$0xff]
  %v1791 = vld [vmem:[%s290 + $0x28] sm:$0xff]
  %v1792 = vld [vmem:[%s290 + $0x30] sm:$0xff]
  %v1793 = vld [vmem:[%s290 + $0x38] sm:$0xff]
  %v1794 = vld [vmem:[%s290 + $0x40] sm:$0xff]
  %v1795 = vld [vmem:[%s290 + $0x48] sm:$0x3f]
  %v1796 = vadd.f32 %v1786, %v1748
  %v1797 = vadd.f32 %v1787, %v1751
  %v1798 = vadd.f32 %v1788, %v1756
  %v1799 = vadd.f32 %v1789, %v1759
  %v1800 = vadd.f32 %v1790, %v1764
  %v1801 = vadd.f32 %v1791, %v1767
  %v1802 = vadd.f32 %v1792, %v1772
  %v1803 = vadd.f32 %v1793, %v1775
  %v1804 = vadd.f32 %v1794, %v1780
  %v1805 = vadd.f32 %v1795, %v1783
  %1806 = vst.msk [vmem:[%s290] sm:$0xff] %vm66, %v1796
  %1807 = vst.msk [vmem:[%s290 + $0x8] sm:$0xff] %vm66, %v1797
  %1808 = vst.msk [vmem:[%s290 + $0x10] sm:$0xff] %vm66, %v1798
  %1809 = vst.msk [vmem:[%s290 + $0x18] sm:$0xff] %vm66, %v1799
  %1810 = vst.msk [vmem:[%s290 + $0x20] sm:$0xff] %vm66, %v1800
  %1811 = vst.msk [vmem:[%s290 + $0x28] sm:$0xff] %vm66, %v1801
  %1812 = vst.msk [vmem:[%s290 + $0x30] sm:$0xff] %vm66, %v1802
  %1813 = vst.msk [vmem:[%s290 + $0x38] sm:$0xff] %vm66, %v1803
  %1814 = vst.msk [vmem:[%s290 + $0x40] sm:$0xff] %vm66, %v1804
  %1815 = vst.msk [vmem:[%s290 + $0x48] sm:$0x3f] %vm164, %v1805
  %s1816 = scalar_lea.vmem %s1, 80
  %v1817 = vld [vmem:[%s1816] sm:$0xf]
  %v1818 = vld [vmem:[%s1816 + $0x4] sm:$0xf]
  %v1819 = vld [vmem:[%s1816 + $0x8] sm:$0xf]
  %v1820 = vld [vmem:[%s1816 + $0xc] sm:$0xf]
  %v1821 = vld [vmem:[%s0 + $0x4] sm:$0xc]
  %v1822 = vld [vmem:[%s0 + $0x8] sm:$0xf]
  %v1823 = vld [vmem:[%s0 + $0xc] sm:$0xf]
  %v1824 = vld [vmem:[%s0 + $0x10] sm:$0xf]
  %v1825 = vld [vmem:[%s0 + $0x14] sm:$0xf]
  %v1826 = vld [vmem:[%s0 + $0x18] sm:$0xf]
  %v1827 = vld [vmem:[%s0 + $0x1c] sm:$0xf]
  %v1828 = vld [vmem:[%s0 + $0x20] sm:$0xf]
  %v1829 = vld [vmem:[%s0 + $0x24] sm:$0xf]
  %v1830 = vld [vmem:[%s0 + $0x28] sm:$0xf]
  %v1831 = vld [vmem:[%s0 + $0x2c] sm:$0x1]
  %v1843 = vunpack.c.l.b16 %v1821
  %v1844 = vunpack.c.l.b16 %v1822
  %v1845 = vunpack.c.l.b16 %v1823
  %v1846 = vunpack.c.l.b16 %v1824
  %v1847 = vunpack.c.l.b16 %v1825
  %v1848 = vunpack.c.l.b16 %v1826
  %v1849 = vunpack.c.l.b16 %v1827
  %v1850 = vunpack.c.l.b16 %v1828
  %v1851 = vunpack.c.l.b16 %v1829
  %v1852 = vunpack.c.l.b16 %v1830
  %v1853 = vunpack.c.l.b16 %v1831
  %v1854 = vpack.c.b16 %v1844, %v1843
  %v1855 = vpack.c.b16 %v1846, %v1845
  %v1856 = vpack.c.b16 %v1848, %v1847
  %v1857 = vpack.c.b16 %v1850, %v1849
  %v1858 = vpack.c.b16 %v1852, %v1851
  %v1859 = vpack.c.b16 %v1853, %v1853
  %vm1860 = vcmask 1045504
  %v1861 = vrot.slane %v1854, 2
  %v1862 = vrot.slane %v1855, 2
  %v1863 = vsel %vm1860, %v1861, %v1862
  %v1864 = vrot.slane %v1856, 2
  %v1865 = vsel %vm1860, %v1862, %v1864
  %v1866 = vrot.slane %v1857, 2
  %v1867 = vsel %vm1860, %v1864, %v1866
  %v1868 = vrot.slane %v1858, 2
  %v1869 = vsel %vm1860, %v1866, %v1868
  %v1870 = vrot.slane %v1859, 2
  %v1871 = vsel %vm1860, %v1868, %v1870
  %v1876 = vunpack.c.l.b16 %v1817
  %v1877 = vunpack.c.l.b16 %v1818
  %v1878 = vunpack.c.l.b16 %v1819
  %v1879 = vunpack.c.l.b16 %v1820
  %v1880 = vpack.c.b16 %v1877, %v1876
  %v1881 = vpack.c.b16 %v1879, %v1878
  %v1885 = vsel %vm66, %v1863, 0
  %v1888 = vsel %vm66, %v1865, 0
  %v1891 = vsel %vm66, %v1867, 0
  %v1894 = vsel %vm66, %v1869, 0
  %v1897 = vsel %vm66, %v1871, 0
  %1899 = vmatprep.subr.bf16.mxu0 0
  %1900 = vmatpush1.bf16.msra.mxu0 %v1880
  %1901 = vmatprep.subr.bf16.mxu0 0
  %1902 = vmatpush1.bf16.msra.mxu0 %v1881
  %1903 = vmatprep.subr.bf16.mxu0 0
  %1904 = vmatpush1.bf16.msra.mxu0 0
  %1905 = vmatprep.subr.bf16.mxu0 0
  %1906 = vmatpush1.bf16.msra.mxu0 0
  %1907 = vmatprep.subr.bf16.mxu0 0
  %1908 = vmatpush1.bf16.msra.mxu0 0
  %1909 = vmatprep.subr.bf16.mxu0 0
  %1910 = vmatpush1.bf16.msra.mxu0 0
  %1911 = vmatprep.subr.bf16.mxu0 0
  %1912 = vmatpush1.bf16.msra.mxu0 0
  %1913 = vmatprep.subr.bf16.mxu0 0
  %1914 = vmatpush1.bf16.msra.mxu0 0
  %1915 = vmatprep.subr.bf16.mxu0 0
  %1916 = vmatpush1.bf16.msra.mxu0 0
  %1917 = vmatprep.subr.bf16.mxu0 0
  %1918 = vmatpush1.bf16.msra.mxu0 0
  %1919 = vmatprep.subr.bf16.mxu0 0
  %1920 = vmatpush1.bf16.msra.mxu0 0
  %1921 = vmatprep.subr.bf16.mxu0 0
  %1922 = vmatpush1.bf16.msra.mxu0 0
  %1923 = vmatprep.subr.bf16.mxu0 0
  %1924 = vmatpush1.bf16.msra.mxu0 0
  %1925 = vmatprep.subr.bf16.mxu0 0
  %1926 = vmatpush1.bf16.msra.mxu0 0
  %1927 = vmatprep.subr.bf16.mxu0 0
  %1928 = vmatpush1.bf16.msra.mxu0 0
  %1929 = vmatprep.subr.bf16.mxu0 0
  %1930 = vmatpush1.bf16.msra.mxu0 0
  %1931 = vmatprep.mubr.bf16.mxu0 0
  %1932 = vmatmul.mubr.bf16.gmra.mrb[0].mxu0 %v1885
  %v1933 = vpop.f32.mrb[0].mxu0
  %v1934 = vadd.f32 0.0, %v1933
  %v1935 = vpop.f32.mrb[0].mxu0
  %v1936 = vpop.f32.mrb[0].mxu0
  %v1937 = vadd.f32 0.0, %v1936
  %v1938 = vpop.f32.mrb[0].mxu0
  %1939 = vmatprep.mubr.bf16.mxu0 0
  %1940 = vmatmul.mubr.bf16.gmra.mrb[0].mxu0 %v1888
  %v1941 = vpop.f32.mrb[0].mxu0
  %v1942 = vadd.f32 0.0, %v1941
  %v1943 = vpop.f32.mrb[0].mxu0
  %v1944 = vpop.f32.mrb[0].mxu0
  %v1945 = vadd.f32 0.0, %v1944
  %v1946 = vpop.f32.mrb[0].mxu0
  %1947 = vmatprep.mubr.bf16.mxu0 0
  %1948 = vmatmul.mubr.bf16.gmra.mrb[0].mxu0 %v1891
  %v1949 = vpop.f32.mrb[0].mxu0
  %v1950 = vadd.f32 0.0, %v1949
  %v1951 = vpop.f32.mrb[0].mxu0
  %v1952 = vpop.f32.mrb[0].mxu0
  %v1953 = vadd.f32 0.0, %v1952
  %v1954 = vpop.f32.mrb[0].mxu0
  %1955 = vmatprep.mubr.bf16.mxu0 0
  %1956 = vmatmul.mubr.bf16.gmra.mrb[0].mxu0 %v1894
  %v1957 = vpop.f32.mrb[0].mxu0
  %v1958 = vadd.f32 0.0, %v1957
  %v1959 = vpop.f32.mrb[0].mxu0
  %v1960 = vpop.f32.mrb[0].mxu0
  %v1961 = vadd.f32 0.0, %v1960
  %v1962 = vpop.f32.mrb[0].mxu0
  %1963 = vmatprep.mubr.bf16.mxu0 0
  %1964 = vmatmul.mubr.bf16.gmra.mrb[0].mxu0 %v1897
  %v1965 = vpop.f32.mrb[0].mxu0
  %v1966 = vadd.f32 0.0, %v1965
  %v1967 = vpop.f32.mrb[0].mxu0
  %v1968 = vpop.f32.mrb[0].mxu0
  %v1969 = vadd.f32 0.0, %v1968
  %v1970 = vpop.f32.mrb[0].mxu0
  %1971 = vdwg.mxu0
  %v1972 = vld [vmem:[#allocation2] sm:$0xff]
  %v1973 = vld [vmem:[#allocation2 + $0x8] sm:$0xff]
  %v1974 = vld [vmem:[#allocation2 + $0x10] sm:$0xff]
  %v1975 = vld [vmem:[#allocation2 + $0x18] sm:$0xff]
  %v1976 = vld [vmem:[#allocation2 + $0x20] sm:$0xff]
  %v1977 = vld [vmem:[#allocation2 + $0x28] sm:$0xff]
  %v1978 = vld [vmem:[#allocation2 + $0x30] sm:$0xff]
  %v1979 = vld [vmem:[#allocation2 + $0x38] sm:$0xff]
  %v1980 = vld [vmem:[#allocation2 + $0x40] sm:$0xff]
  %v1981 = vld [vmem:[#allocation2 + $0x48] sm:$0x3f]
  %v1982 = vadd.f32 %v1972, %v1934
  %v1983 = vadd.f32 %v1973, %v1937
  %v1984 = vadd.f32 %v1974, %v1942
  %v1985 = vadd.f32 %v1975, %v1945
  %v1986 = vadd.f32 %v1976, %v1950
  %v1987 = vadd.f32 %v1977, %v1953
  %v1988 = vadd.f32 %v1978, %v1958
  %v1989 = vadd.f32 %v1979, %v1961
  %v1990 = vadd.f32 %v1980, %v1966
  %v1991 = vadd.f32 %v1981, %v1969
  %1992 = vst.msk [vmem:[#allocation2] sm:$0xff] %vm66, %v1982
  %1993 = vst.msk [vmem:[#allocation2 + $0x8] sm:$0xff] %vm66, %v1983
  %1994 = vst.msk [vmem:[#allocation2 + $0x10] sm:$0xff] %vm66, %v1984
  %1995 = vst.msk [vmem:[#allocation2 + $0x18] sm:$0xff] %vm66, %v1985
  %1996 = vst.msk [vmem:[#allocation2 + $0x20] sm:$0xff] %vm66, %v1986
  %1997 = vst.msk [vmem:[#allocation2 + $0x28] sm:$0xff] %vm66, %v1987
  %1998 = vst.msk [vmem:[#allocation2 + $0x30] sm:$0xff] %vm66, %v1988
  %1999 = vst.msk [vmem:[#allocation2 + $0x38] sm:$0xff] %vm66, %v1989
  %2000 = vst.msk [vmem:[#allocation2 + $0x40] sm:$0xff] %vm66, %v1990
  %2001 = vst.msk [vmem:[#allocation2 + $0x48] sm:$0x3f] %vm164, %v1991
  %v2002 = vld [vmem:[%s166 + $0x4] sm:$0xc]
  %v2003 = vld [vmem:[%s166 + $0x8] sm:$0xf]
  %v2004 = vld [vmem:[%s166 + $0xc] sm:$0xf]
  %v2005 = vld [vmem:[%s166 + $0x10] sm:$0xf]
  %v2006 = vld [vmem:[%s166 + $0x14] sm:$0xf]
  %v2007 = vld [vmem:[%s166 + $0x18] sm:$0xf]
  %v2008 = vld [vmem:[%s166 + $0x1c] sm:$0xf]
  %v2009 = vld [vmem:[%s166 + $0x20] sm:$0xf]
  %v2010 = vld [vmem:[%s166 + $0x24] sm:$0xf]
  %v2011 = vld [vmem:[%s166 + $0x28] sm:$0xf]
  %v2012 = vld [vmem:[%s166 + $0x2c] sm:$0x1]
  %v2024 = vunpack.c.l.b16 %v2002
  %v2025 = vunpack.c.l.b16 %v2003
  %v2026 = vunpack.c.l.b16 %v2004
  %v2027 = vunpack.c.l.b16 %v2005
  %v2028 = vunpack.c.l.b16 %v2006
  %v2029 = vunpack.c.l.b16 %v2007
  %v2030 = vunpack.c.l.b16 %v2008
  %v2031 = vunpack.c.l.b16 %v2009
  %v2032 = vunpack.c.l.b16 %v2010
  %v2033 = vunpack.c.l.b16 %v2011
  %v2034 = vunpack.c.l.b16 %v2012
  %v2035 = vpack.c.b16 %v2025, %v2024
  %v2036 = vpack.c.b16 %v2027, %v2026
  %v2037 = vpack.c.b16 %v2029, %v2028
  %v2038 = vpack.c.b16 %v2031, %v2030
  %v2039 = vpack.c.b16 %v2033, %v2032
  %v2040 = vpack.c.b16 %v2034, %v2034
  %v2041 = vrot.slane %v2035, 2
  %v2042 = vrot.slane %v2036, 2
  %v2043 = vsel %vm1860, %v2041, %v2042
  %v2044 = vrot.slane %v2037, 2
  %v2045 = vsel %vm1860, %v2042, %v2044
  %v2046 = vrot.slane %v2038, 2
  %v2047 = vsel %vm1860, %v2044, %v2046
  %v2048 = vrot.slane %v2039, 2
  %v2049 = vsel %vm1860, %v2046, %v2048
  %v2050 = vrot.slane %v2040, 2
  %v2051 = vsel %vm1860, %v2048, %v2050
  %v2053 = vsel %vm66, %v2043, 0
  %v2056 = vsel %vm66, %v2045, 0
  %v2059 = vsel %vm66, %v2047, 0
  %v2062 = vsel %vm66, %v2049, 0
  %v2065 = vsel %vm66, %v2051, 0
  %2067 = vmatprep.subr.bf16.mxu0 0
  %2068 = vmatpush1.bf16.msra.mxu0 %v1880
  %2069 = vmatprep.subr.bf16.mxu0 0
  %2070 = vmatpush1.bf16.msra.mxu0 %v1881
  %2071 = vmatprep.subr.bf16.mxu0 0
  %2072 = vmatpush1.bf16.msra.mxu0 0
  %2073 = vmatprep.subr.bf16.mxu0 0
  %2074 = vmatpush1.bf16.msra.mxu0 0
  %2075 = vmatprep.subr.bf16.mxu0 0
  %2076 = vmatpush1.bf16.msra.mxu0 0
  %2077 = vmatprep.subr.bf16.mxu0 0
  %2078 = vmatpush1.bf16.msra.mxu0 0
  %2079 = vmatprep.subr.bf16.mxu0 0
  %2080 = vmatpush1.bf16.msra.mxu0 0
  %2081 = vmatprep.subr.bf16.mxu0 0
  %2082 = vmatpush1.bf16.msra.mxu0 0
  %2083 = vmatprep.subr.bf16.mxu0 0
  %2084 = vmatpush1.bf16.msra.mxu0 0
  %2085 = vmatprep.subr.bf16.mxu0 0
  %2086 = vmatpush1.bf16.msra.mxu0 0
  %2087 = vmatprep.subr.bf16.mxu0 0
  %2088 = vmatpush1.bf16.msra.mxu0 0
  %2089 = vmatprep.subr.bf16.mxu0 0
  %2090 = vmatpush1.bf16.msra.mxu0 0
  %2091 = vmatprep.subr.bf16.mxu0 0
  %2092 = vmatpush1.bf16.msra.mxu0 0
  %2093 = vmatprep.subr.bf16.mxu0 0
  %2094 = vmatpush1.bf16.msra.mxu0 0
  %2095 = vmatprep.subr.bf16.mxu0 0
  %2096 = vmatpush1.bf16.msra.mxu0 0
  %2097 = vmatprep.subr.bf16.mxu0 0
  %2098 = vmatpush1.bf16.msra.mxu0 0
  %2099 = vmatprep.mubr.bf16.mxu0 0
  %2100 = vmatmul.mubr.bf16.gmra.mrb[0].mxu0 %v2053
  %v2101 = vpop.f32.mrb[0].mxu0
  %v2102 = vadd.f32 0.0, %v2101
  %v2103 = vpop.f32.mrb[0].mxu0
  %v2104 = vpop.f32.mrb[0].mxu0
  %v2105 = vadd.f32 0.0, %v2104
  %v2106 = vpop.f32.mrb[0].mxu0
  %2107 = vmatprep.mubr.bf16.mxu0 0
  %2108 = vmatmul.mubr.bf16.gmra.mrb[0].mxu0 %v2056
  %v2109 = vpop.f32.mrb[0].mxu0
  %v2110 = vadd.f32 0.0, %v2109
  %v2111 = vpop.f32.mrb[0].mxu0
  %v2112 = vpop.f32.mrb[0].mxu0
  %v2113 = vadd.f32 0.0, %v2112
  %v2114 = vpop.f32.mrb[0].mxu0
  %2115 = vmatprep.mubr.bf16.mxu0 0
  %2116 = vmatmul.mubr.bf16.gmra.mrb[0].mxu0 %v2059
  %v2117 = vpop.f32.mrb[0].mxu0
  %v2118 = vadd.f32 0.0, %v2117
  %v2119 = vpop.f32.mrb[0].mxu0
  %v2120 = vpop.f32.mrb[0].mxu0
  %v2121 = vadd.f32 0.0, %v2120
  %v2122 = vpop.f32.mrb[0].mxu0
  %2123 = vmatprep.mubr.bf16.mxu0 0
  %2124 = vmatmul.mubr.bf16.gmra.mrb[0].mxu0 %v2062
  %v2125 = vpop.f32.mrb[0].mxu0
  %v2126 = vadd.f32 0.0, %v2125
  %v2127 = vpop.f32.mrb[0].mxu0
  %v2128 = vpop.f32.mrb[0].mxu0
  %v2129 = vadd.f32 0.0, %v2128
  %v2130 = vpop.f32.mrb[0].mxu0
  %2131 = vmatprep.mubr.bf16.mxu0 0
  %2132 = vmatmul.mubr.bf16.gmra.mrb[0].mxu0 %v2065
  %v2133 = vpop.f32.mrb[0].mxu0
  %v2134 = vadd.f32 0.0, %v2133
  %v2135 = vpop.f32.mrb[0].mxu0
  %v2136 = vpop.f32.mrb[0].mxu0
  %v2137 = vadd.f32 0.0, %v2136
  %v2138 = vpop.f32.mrb[0].mxu0
  %2139 = vdwg.mxu0
  %v2140 = vld [vmem:[%s290] sm:$0xff]
  %v2141 = vld [vmem:[%s290 + $0x8] sm:$0xff]
  %v2142 = vld [vmem:[%s290 + $0x10] sm:$0xff]
  %v2143 = vld [vmem:[%s290 + $0x18] sm:$0xff]
  %v2144 = vld [vmem:[%s290 + $0x20] sm:$0xff]
  %v2145 = vld [vmem:[%s290 + $0x28] sm:$0xff]
  %v2146 = vld [vmem:[%s290 + $0x30] sm:$0xff]
  %v2147 = vld [vmem:[%s290 + $0x38] sm:$0xff]
  %v2148 = vld [vmem:[%s290 + $0x40] sm:$0xff]
  %v2149 = vld [vmem:[%s290 + $0x48] sm:$0x3f]
  %v2150 = vadd.f32 %v2140, %v2102
  %v2151 = vadd.f32 %v2141, %v2105
  %v2152 = vadd.f32 %v2142, %v2110
  %v2153 = vadd.f32 %v2143, %v2113
  %v2154 = vadd.f32 %v2144, %v2118
  %v2155 = vadd.f32 %v2145, %v2121
  %v2156 = vadd.f32 %v2146, %v2126
  %v2157 = vadd.f32 %v2147, %v2129
  %v2158 = vadd.f32 %v2148, %v2134
  %v2159 = vadd.f32 %v2149, %v2137
  %2160 = vst.msk [vmem:[%s290] sm:$0xff] %vm66, %v2150
  %2161 = vst.msk [vmem:[%s290 + $0x8] sm:$0xff] %vm66, %v2151
  %2162 = vst.msk [vmem:[%s290 + $0x10] sm:$0xff] %vm66, %v2152
  %2163 = vst.msk [vmem:[%s290 + $0x18] sm:$0xff] %vm66, %v2153
  %2164 = vst.msk [vmem:[%s290 + $0x20] sm:$0xff] %vm66, %v2154
  %2165 = vst.msk [vmem:[%s290 + $0x28] sm:$0xff] %vm66, %v2155
  %2166 = vst.msk [vmem:[%s290 + $0x30] sm:$0xff] %vm66, %v2156
  %2167 = vst.msk [vmem:[%s290 + $0x38] sm:$0xff] %vm66, %v2157
  %2168 = vst.msk [vmem:[%s290 + $0x40] sm:$0xff] %vm66, %v2158
  %2169 = vst.msk [vmem:[%s290 + $0x48] sm:$0x3f] %vm164, %v2159
  %s2170 = scalar_lea.vmem %s1, 96
  %v2171 = vld [vmem:[%s2170] sm:$0xf]
  %v2172 = vld [vmem:[%s2170 + $0x4] sm:$0xf]
  %v2173 = vld [vmem:[%s2170 + $0x8] sm:$0xf]
  %v2174 = vld [vmem:[%s2170 + $0xc] sm:$0xf]
  %v2175 = vld [vmem:[%s0 + $0x8] sm:$0xc]
  %v2176 = vld [vmem:[%s0 + $0xc] sm:$0xf]
  %v2177 = vld [vmem:[%s0 + $0x10] sm:$0xf]
  %v2178 = vld [vmem:[%s0 + $0x14] sm:$0xf]
  %v2179 = vld [vmem:[%s0 + $0x18] sm:$0xf]
  %v2180 = vld [vmem:[%s0 + $0x1c] sm:$0xf]
  %v2181 = vld [vmem:[%s0 + $0x20] sm:$0xf]
  %v2182 = vld [vmem:[%s0 + $0x24] sm:$0xf]
  %v2183 = vld [vmem:[%s0 + $0x28] sm:$0xf]
  %v2184 = vld [vmem:[%s0 + $0x2c] sm:$0xf]
  %v2185 = vld [vmem:[%s0 + $0x30] sm:$0x1]
  %v2197 = vunpack.c.l.b16 %v2175
  %v2198 = vunpack.c.l.b16 %v2176
  %v2199 = vunpack.c.l.b16 %v2177
  %v2200 = vunpack.c.l.b16 %v2178
  %v2201 = vunpack.c.l.b16 %v2179
  %v2202 = vunpack.c.l.b16 %v2180
  %v2203 = vunpack.c.l.b16 %v2181
  %v2204 = vunpack.c.l.b16 %v2182
  %v2205 = vunpack.c.l.b16 %v2183
  %v2206 = vunpack.c.l.b16 %v2184
  %v2207 = vunpack.c.l.b16 %v2185
  %v2208 = vpack.c.b16 %v2198, %v2197
  %v2209 = vpack.c.b16 %v2200, %v2199
  %v2210 = vpack.c.b16 %v2202, %v2201
  %v2211 = vpack.c.b16 %v2204, %v2203
  %v2212 = vpack.c.b16 %v2206, %v2205
  %v2213 = vpack.c.b16 %v2207, %v2207
  %v2214 = vrot.slane %v2208, 2
  %v2215 = vrot.slane %v2209, 2
  %v2216 = vsel %vm1860, %v2214, %v2215
  %v2217 = vrot.slane %v2210, 2
  %v2218 = vsel %vm1860, %v2215, %v2217
  %v2219 = vrot.slane %v2211, 2
  %v2220 = vsel %vm1860, %v2217, %v2219
  %v2221 = vrot.slane %v2212, 2
  %v2222 = vsel %vm1860, %v2219, %v2221
  %v2223 = vrot.slane %v2213, 2
  %v2224 = vsel %vm1860, %v2221, %v2223
  %v2229 = vunpack.c.l.b16 %v2171
  %v2230 = vunpack.c.l.b16 %v2172
  %v2231 = vunpack.c.l.b16 %v2173
  %v2232 = vunpack.c.l.b16 %v2174
  %v2233 = vpack.c.b16 %v2230, %v2229
  %v2234 = vpack.c.b16 %v2232, %v2231
  %v2238 = vsel %vm66, %v2216, 0
  %v2241 = vsel %vm66, %v2218, 0
  %v2244 = vsel %vm66, %v2220, 0
  %v2247 = vsel %vm66, %v2222, 0
  %v2250 = vsel %vm66, %v2224, 0
  %2252 = vmatprep.subr.bf16.mxu0 0
  %2253 = vmatpush1.bf16.msra.mxu0 %v2233
  %2254 = vmatprep.subr.bf16.mxu0 0
  %2255 = vmatpush1.bf16.msra.mxu0 %v2234
  %2256 = vmatprep.subr.bf16.mxu0 0
  %2257 = vmatpush1.bf16.msra.mxu0 0
  %2258 = vmatprep.subr.bf16.mxu0 0
  %2259 = vmatpush1.bf16.msra.mxu0 0
  %2260 = vmatprep.subr.bf16.mxu0 0
  %2261 = vmatpush1.bf16.msra.mxu0 0
  %2262 = vmatprep.subr.bf16.mxu0 0
  %2263 = vmatpush1.bf16.msra.mxu0 0
  %2264 = vmatprep.subr.bf16.mxu0 0
  %2265 = vmatpush1.bf16.msra.mxu0 0
  %2266 = vmatprep.subr.bf16.mxu0 0
  %2267 = vmatpush1.bf16.msra.mxu0 0
  %2268 = vmatprep.subr.bf16.mxu0 0
  %2269 = vmatpush1.bf16.msra.mxu0 0
  %2270 = vmatprep.subr.bf16.mxu0 0
  %2271 = vmatpush1.bf16.msra.mxu0 0
  %2272 = vmatprep.subr.bf16.mxu0 0
  %2273 = vmatpush1.bf16.msra.mxu0 0
  %2274 = vmatprep.subr.bf16.mxu0 0
  %2275 = vmatpush1.bf16.msra.mxu0 0
  %2276 = vmatprep.subr.bf16.mxu0 0
  %2277 = vmatpush1.bf16.msra.mxu0 0
  %2278 = vmatprep.subr.bf16.mxu0 0
  %2279 = vmatpush1.bf16.msra.mxu0 0
  %2280 = vmatprep.subr.bf16.mxu0 0
  %2281 = vmatpush1.bf16.msra.mxu0 0
  %2282 = vmatprep.subr.bf16.mxu0 0
  %2283 = vmatpush1.bf16.msra.mxu0 0
  %2284 = vmatprep.mubr.bf16.mxu0 0
  %2285 = vmatmul.mubr.bf16.gmra.mrb[0].mxu0 %v2238
  %v2286 = vpop.f32.mrb[0].mxu0
  %v2287 = vadd.f32 0.0, %v2286
  %v2288 = vpop.f32.mrb[0].mxu0
  %v2289 = vpop.f32.mrb[0].mxu0
  %v2290 = vadd.f32 0.0, %v2289
  %v2291 = vpop.f32.mrb[0].mxu0
  %2292 = vmatprep.mubr.bf16.mxu0 0
  %2293 = vmatmul.mubr.bf16.gmra.mrb[0].mxu0 %v2241
  %v2294 = vpop.f32.mrb[0].mxu0
  %v2295 = vadd.f32 0.0, %v2294
  %v2296 = vpop.f32.mrb[0].mxu0
  %v2297 = vpop.f32.mrb[0].mxu0
  %v2298 = vadd.f32 0.0, %v2297
  %v2299 = vpop.f32.mrb[0].mxu0
  %2300 = vmatprep.mubr.bf16.mxu0 0
  %2301 = vmatmul.mubr.bf16.gmra.mrb[0].mxu0 %v2244
  %v2302 = vpop.f32.mrb[0].mxu0
  %v2303 = vadd.f32 0.0, %v2302
  %v2304 = vpop.f32.mrb[0].mxu0
  %v2305 = vpop.f32.mrb[0].mxu0
  %v2306 = vadd.f32 0.0, %v2305
  %v2307 = vpop.f32.mrb[0].mxu0
  %2308 = vmatprep.mubr.bf16.mxu0 0
  %2309 = vmatmul.mubr.bf16.gmra.mrb[0].mxu0 %v2247
  %v2310 = vpop.f32.mrb[0].mxu0
  %v2311 = vadd.f32 0.0, %v2310
  %v2312 = vpop.f32.mrb[0].mxu0
  %v2313 = vpop.f32.mrb[0].mxu0
  %v2314 = vadd.f32 0.0, %v2313
  %v2315 = vpop.f32.mrb[0].mxu0
  %2316 = vmatprep.mubr.bf16.mxu0 0
  %2317 = vmatmul.mubr.bf16.gmra.mrb[0].mxu0 %v2250
  %v2318 = vpop.f32.mrb[0].mxu0
  %v2319 = vadd.f32 0.0, %v2318
  %v2320 = vpop.f32.mrb[0].mxu0
  %v2321 = vpop.f32.mrb[0].mxu0
  %v2322 = vadd.f32 0.0, %v2321
  %v2323 = vpop.f32.mrb[0].mxu0
  %2324 = vdwg.mxu0
  %v2325 = vld [vmem:[#allocation2] sm:$0xff]
  %v2326 = vld [vmem:[#allocation2 + $0x8] sm:$0xff]
  %v2327 = vld [vmem:[#allocation2 + $0x10] sm:$0xff]
  %v2328 = vld [vmem:[#allocation2 + $0x18] sm:$0xff]
  %v2329 = vld [vmem:[#allocation2 + $0x20] sm:$0xff]
  %v2330 = vld [vmem:[#allocation2 + $0x28] sm:$0xff]
  %v2331 = vld [vmem:[#allocation2 + $0x30] sm:$0xff]
  %v2332 = vld [vmem:[#allocation2 + $0x38] sm:$0xff]
  %v2333 = vld [vmem:[#allocation2 + $0x40] sm:$0xff]
  %v2334 = vld [vmem:[#allocation2 + $0x48] sm:$0x3f]
  %v2335 = vadd.f32 %v2325, %v2287
  %v2336 = vadd.f32 %v2326, %v2290
  %v2337 = vadd.f32 %v2327, %v2295
  %v2338 = vadd.f32 %v2328, %v2298
  %v2339 = vadd.f32 %v2329, %v2303
  %v2340 = vadd.f32 %v2330, %v2306
  %v2341 = vadd.f32 %v2331, %v2311
  %v2342 = vadd.f32 %v2332, %v2314
  %v2343 = vadd.f32 %v2333, %v2319
  %v2344 = vadd.f32 %v2334, %v2322
  %2345 = vst.msk [vmem:[#allocation2] sm:$0xff] %vm66, %v2335
  %2346 = vst.msk [vmem:[#allocation2 + $0x8] sm:$0xff] %vm66, %v2336
  %2347 = vst.msk [vmem:[#allocation2 + $0x10] sm:$0xff] %vm66, %v2337
  %2348 = vst.msk [vmem:[#allocation2 + $0x18] sm:$0xff] %vm66, %v2338
  %2349 = vst.msk [vmem:[#allocation2 + $0x20] sm:$0xff] %vm66, %v2339
  %2350 = vst.msk [vmem:[#allocation2 + $0x28] sm:$0xff] %vm66, %v2340
  %2351 = vst.msk [vmem:[#allocation2 + $0x30] sm:$0xff] %vm66, %v2341
  %2352 = vst.msk [vmem:[#allocation2 + $0x38] sm:$0xff] %vm66, %v2342
  %2353 = vst.msk [vmem:[#allocation2 + $0x40] sm:$0xff] %vm66, %v2343
  %2354 = vst.msk [vmem:[#allocation2 + $0x48] sm:$0x3f] %vm164, %v2344
  %v2355 = vld [vmem:[%s166 + $0x8] sm:$0xc]
  %v2356 = vld [vmem:[%s166 + $0xc] sm:$0xf]
  %v2357 = vld [vmem:[%s166 + $0x10] sm:$0xf]
  %v2358 = vld [vmem:[%s166 + $0x14] sm:$0xf]
  %v2359 = vld [vmem:[%s166 + $0x18] sm:$0xf]
  %v2360 = vld [vmem:[%s166 + $0x1c] sm:$0xf]
  %v2361 = vld [vmem:[%s166 + $0x20] sm:$0xf]
  %v2362 = vld [vmem:[%s166 + $0x24] sm:$0xf]
  %v2363 = vld [vmem:[%s166 + $0x28] sm:$0xf]
  %v2364 = vld [vmem:[%s166 + $0x2c] sm:$0xf]
  %v2365 = vld [vmem:[%s166 + $0x30] sm:$0x1]
  %v2377 = vunpack.c.l.b16 %v2355
  %v2378 = vunpack.c.l.b16 %v2356
  %v2379 = vunpack.c.l.b16 %v2357
  %v2380 = vunpack.c.l.b16 %v2358
  %v2381 = vunpack.c.l.b16 %v2359
  %v2382 = vunpack.c.l.b16 %v2360
  %v2383 = vunpack.c.l.b16 %v2361
  %v2384 = vunpack.c.l.b16 %v2362
  %v2385 = vunpack.c.l.b16 %v2363
  %v2386 = vunpack.c.l.b16 %v2364
  %v2387 = vunpack.c.l.b16 %v2365
  %v2388 = vpack.c.b16 %v2378, %v2377
  %v2389 = vpack.c.b16 %v2380, %v2379
  %v2390 = vpack.c.b16 %v2382, %v2381
  %v2391 = vpack.c.b16 %v2384, %v2383
  %v2392 = vpack.c.b16 %v2386, %v2385
  %v2393 = vpack.c.b16 %v2387, %v2387
  %v2394 = vrot.slane %v2388, 2
  %v2395 = vrot.slane %v2389, 2
  %v2396 = vsel %vm1860, %v2394, %v2395
  %v2397 = vrot.slane %v2390, 2
  %v2398 = vsel %vm1860, %v2395, %v2397
  %v2399 = vrot.slane %v2391, 2
  %v2400 = vsel %vm1860, %v2397, %v2399
  %v2401 = vrot.slane %v2392, 2
  %v2402 = vsel %vm1860, %v2399, %v2401
  %v2403 = vrot.slane %v2393, 2
  %v2404 = vsel %vm1860, %v2401, %v2403
  %v2406 = vsel %vm66, %v2396, 0
  %v2409 = vsel %vm66, %v2398, 0
  %v2412 = vsel %vm66, %v2400, 0
  %v2415 = vsel %vm66, %v2402, 0
  %v2418 = vsel %vm66, %v2404, 0
  %2420 = vmatprep.subr.bf16.mxu0 0
  %2421 = vmatpush1.bf16.msra.mxu0 %v2233
  %2422 = vmatprep.subr.bf16.mxu0 0
  %2423 = vmatpush1.bf16.msra.mxu0 %v2234
  %2424 = vmatprep.subr.bf16.mxu0 0
  %2425 = vmatpush1.bf16.msra.mxu0 0
  %2426 = vmatprep.subr.bf16.mxu0 0
  %2427 = vmatpush1.bf16.msra.mxu0 0
  %2428 = vmatprep.subr.bf16.mxu0 0
  %2429 = vmatpush1.bf16.msra.mxu0 0
  %2430 = vmatprep.subr.bf16.mxu0 0
  %2431 = vmatpush1.bf16.msra.mxu0 0
  %2432 = vmatprep.subr.bf16.mxu0 0
  %2433 = vmatpush1.bf16.msra.mxu0 0
  %2434 = vmatprep.subr.bf16.mxu0 0
  %2435 = vmatpush1.bf16.msra.mxu0 0
  %2436 = vmatprep.subr.bf16.mxu0 0
  %2437 = vmatpush1.bf16.msra.mxu0 0
  %2438 = vmatprep.subr.bf16.mxu0 0
  %2439 = vmatpush1.bf16.msra.mxu0 0
  %2440 = vmatprep.subr.bf16.mxu0 0
  %2441 = vmatpush1.bf16.msra.mxu0 0
  %2442 = vmatprep.subr.bf16.mxu0 0
  %2443 = vmatpush1.bf16.msra.mxu0 0
  %2444 = vmatprep.subr.bf16.mxu0 0
  %2445 = vmatpush1.bf16.msra.mxu0 0
  %2446 = vmatprep.subr.bf16.mxu0 0
  %2447 = vmatpush1.bf16.msra.mxu0 0
  %2448 = vmatprep.subr.bf16.mxu0 0
  %2449 = vmatpush1.bf16.msra.mxu0 0
  %2450 = vmatprep.subr.bf16.mxu0 0
  %2451 = vmatpush1.bf16.msra.mxu0 0
  %2452 = vmatprep.mubr.bf16.mxu0 0
  %2453 = vmatmul.mubr.bf16.gmra.mrb[0].mxu0 %v2406
  %v2454 = vpop.f32.mrb[0].mxu0
  %v2455 = vadd.f32 0.0, %v2454
  %v2456 = vpop.f32.mrb[0].mxu0
  %v2457 = vpop.f32.mrb[0].mxu0
  %v2458 = vadd.f32 0.0, %v2457
  %v2459 = vpop.f32.mrb[0].mxu0
  %2460 = vmatprep.mubr.bf16.mxu0 0
  %2461 = vmatmul.mubr.bf16.gmra.mrb[0].mxu0 %v2409
  %v2462 = vpop.f32.mrb[0].mxu0
  %v2463 = vadd.f32 0.0, %v2462
  %v2464 = vpop.f32.mrb[0].mxu0
  %v2465 = vpop.f32.mrb[0].mxu0
  %v2466 = vadd.f32 0.0, %v2465
  %v2467 = vpop.f32.mrb[0].mxu0
  %2468 = vmatprep.mubr.bf16.mxu0 0
  %2469 = vmatmul.mubr.bf16.gmra.mrb[0].mxu0 %v2412
  %v2470 = vpop.f32.mrb[0].mxu0
  %v2471 = vadd.f32 0.0, %v2470
  %v2472 = vpop.f32.mrb[0].mxu0
  %v2473 = vpop.f32.mrb[0].mxu0
  %v2474 = vadd.f32 0.0, %v2473
  %v2475 = vpop.f32.mrb[0].mxu0
  %2476 = vmatprep.mubr.bf16.mxu0 0
  %2477 = vmatmul.mubr.bf16.gmra.mrb[0].mxu0 %v2415
  %v2478 = vpop.f32.mrb[0].mxu0
  %v2479 = vadd.f32 0.0, %v2478
  %v2480 = vpop.f32.mrb[0].mxu0
  %v2481 = vpop.f32.mrb[0].mxu0
  %v2482 = vadd.f32 0.0, %v2481
  %v2483 = vpop.f32.mrb[0].mxu0
  %2484 = vmatprep.mubr.bf16.mxu0 0
  %2485 = vmatmul.mubr.bf16.gmra.mrb[0].mxu0 %v2418
  %v2486 = vpop.f32.mrb[0].mxu0
  %v2487 = vadd.f32 0.0, %v2486
  %v2488 = vpop.f32.mrb[0].mxu0
  %v2489 = vpop.f32.mrb[0].mxu0
  %v2490 = vadd.f32 0.0, %v2489
  %v2491 = vpop.f32.mrb[0].mxu0
  %2492 = vdwg.mxu0
  %v2493 = vld [vmem:[%s290] sm:$0xff]
  %v2494 = vld [vmem:[%s290 + $0x8] sm:$0xff]
  %v2495 = vld [vmem:[%s290 + $0x10] sm:$0xff]
  %v2496 = vld [vmem:[%s290 + $0x18] sm:$0xff]
  %v2497 = vld [vmem:[%s290 + $0x20] sm:$0xff]
  %v2498 = vld [vmem:[%s290 + $0x28] sm:$0xff]
  %v2499 = vld [vmem:[%s290 + $0x30] sm:$0xff]
  %v2500 = vld [vmem:[%s290 + $0x38] sm:$0xff]
  %v2501 = vld [vmem:[%s290 + $0x40] sm:$0xff]
  %v2502 = vld [vmem:[%s290 + $0x48] sm:$0x3f]
  %v2503 = vadd.f32 %v2493, %v2455
  %v2504 = vadd.f32 %v2494, %v2458
  %v2505 = vadd.f32 %v2495, %v2463
  %v2506 = vadd.f32 %v2496, %v2466
  %v2507 = vadd.f32 %v2497, %v2471
  %v2508 = vadd.f32 %v2498, %v2474
  %v2509 = vadd.f32 %v2499, %v2479
  %v2510 = vadd.f32 %v2500, %v2482
  %v2511 = vadd.f32 %v2501, %v2487
  %v2512 = vadd.f32 %v2502, %v2490
  %2513 = vst.msk [vmem:[%s290] sm:$0xff] %vm66, %v2503
  %2514 = vst.msk [vmem:[%s290 + $0x8] sm:$0xff] %vm66, %v2504
  %2515 = vst.msk [vmem:[%s290 + $0x10] sm:$0xff] %vm66, %v2505
  %2516 = vst.msk [vmem:[%s290 + $0x18] sm:$0xff] %vm66, %v2506
  %2517 = vst.msk [vmem:[%s290 + $0x20] sm:$0xff] %vm66, %v2507
  %2518 = vst.msk [vmem:[%s290 + $0x28] sm:$0xff] %vm66, %v2508
  %2519 = vst.msk [vmem:[%s290 + $0x30] sm:$0xff] %vm66, %v2509
  %2520 = vst.msk [vmem:[%s290 + $0x38] sm:$0xff] %vm66, %v2510
  %2521 = vst.msk [vmem:[%s290 + $0x40] sm:$0xff] %vm66, %v2511
  %2522 = vst.msk [vmem:[%s290 + $0x48] sm:$0x3f] %vm164, %v2512
  %s2523 = scalar_lea.vmem %s1, 112
  %v2524 = vld [vmem:[%s2523] sm:$0xf]
  %v2525 = vld [vmem:[%s2523 + $0x4] sm:$0xf]
  %v2526 = vld [vmem:[%s2523 + $0x8] sm:$0xf]
  %v2527 = vld [vmem:[%s2523 + $0xc] sm:$0xf]
  %v2528 = vld [vmem:[%s0 + $0x8] sm:$0xc]
  %v2529 = vld [vmem:[%s0 + $0xc] sm:$0xf]
  %v2530 = vld [vmem:[%s0 + $0x10] sm:$0xf]
  %v2531 = vld [vmem:[%s0 + $0x14] sm:$0xf]
  %v2532 = vld [vmem:[%s0 + $0x18] sm:$0xf]
  %v2533 = vld [vmem:[%s0 + $0x1c] sm:$0xf]
  %v2534 = vld [vmem:[%s0 + $0x20] sm:$0xf]
  %v2535 = vld [vmem:[%s0 + $0x24] sm:$0xf]
  %v2536 = vld [vmem:[%s0 + $0x28] sm:$0xf]
  %v2537 = vld [vmem:[%s0 + $0x2c] sm:$0xf]
  %v2538 = vld [vmem:[%s0 + $0x30] sm:$0x3]
  %v2550 = vunpack.c.l.b16 %v2528
  %v2551 = vunpack.c.l.b16 %v2529
  %v2552 = vunpack.c.l.b16 %v2530
  %v2553 = vunpack.c.l.b16 %v2531
  %v2554 = vunpack.c.l.b16 %v2532
  %v2555 = vunpack.c.l.b16 %v2533
  %v2556 = vunpack.c.l.b16 %v2534
  %v2557 = vunpack.c.l.b16 %v2535
  %v2558 = vunpack.c.l.b16 %v2536
  %v2559 = vunpack.c.l.b16 %v2537
  %v2560 = vunpack.c.l.b16 %v2538
  %v2561 = vpack.c.b16 %v2551, %v2550
  %v2562 = vpack.c.b16 %v2553, %v2552
  %v2563 = vpack.c.b16 %v2555, %v2554
  %v2564 = vpack.c.b16 %v2557, %v2556
  %v2565 = vpack.c.b16 %v2559, %v2558
  %v2566 = vpack.c.b16 %v2560, %v2560
  %vm2567 = vsmask.f32 5376
  %v2569 = vshrl.u32 %v2561, 16
  %v2571 = vrot.slane %v2569, 2
  %v2572 = vshll.u32 %v2561, 16
  %v2574 = vrot.slane %v2572, 3
  %v2575 = vor.u32 %v2571, %v2574
  %v2577 = vshrl.u32 %v2562, 16
  %v2579 = vrot.slane %v2577, 2
  %v2580 = vshll.u32 %v2562, 16
  %v2582 = vrot.slane %v2580, 3
  %v2583 = vor.u32 %v2579, %v2582
  %v2584 = vsel %vm2567, %v2575, %v2583
  %v2586 = vshrl.u32 %v2563, 16
  %v2588 = vrot.slane %v2586, 2
  %v2589 = vshll.u32 %v2563, 16
  %v2591 = vrot.slane %v2589, 3
  %v2592 = vor.u32 %v2588, %v2591
  %v2593 = vsel %vm2567, %v2583, %v2592
  %v2595 = vshrl.u32 %v2564, 16
  %v2597 = vrot.slane %v2595, 2
  %v2598 = vshll.u32 %v2564, 16
  %v2600 = vrot.slane %v2598, 3
  %v2601 = vor.u32 %v2597, %v2600
  %v2602 = vsel %vm2567, %v2592, %v2601
  %v2604 = vshrl.u32 %v2565, 16
  %v2606 = vrot.slane %v2604, 2
  %v2607 = vshll.u32 %v2565, 16
  %v2609 = vrot.slane %v2607, 3
  %v2610 = vor.u32 %v2606, %v2609
  %v2611 = vsel %vm2567, %v2601, %v2610
  %v2613 = vshrl.u32 %v2566, 16
  %v2615 = vrot.slane %v2613, 2
  %v2616 = vshll.u32 %v2566, 16
  %v2618 = vrot.slane %v2616, 3
  %v2619 = vor.u32 %v2615, %v2618
  %v2620 = vsel %vm2567, %v2610, %v2619
  %v2625 = vunpack.c.l.b16 %v2524
  %v2626 = vunpack.c.l.b16 %v2525
  %v2627 = vunpack.c.l.b16 %v2526
  %v2628 = vunpack.c.l.b16 %v2527
  %v2629 = vpack.c.b16 %v2626, %v2625
  %v2630 = vpack.c.b16 %v2628, %v2627
  %v2634 = vsel %vm66, %v2584, 0
  %v2637 = vsel %vm66, %v2593, 0
  %v2640 = vsel %vm66, %v2602, 0
  %v2643 = vsel %vm66, %v2611, 0
  %v2646 = vsel %vm66, %v2620, 0
  %2648 = vmatprep.subr.bf16.mxu0 0
  %2649 = vmatpush1.bf16.msra.mxu0 %v2629
  %2650 = vmatprep.subr.bf16.mxu0 0
  %2651 = vmatpush1.bf16.msra.mxu0 %v2630
  %2652 = vmatprep.subr.bf16.mxu0 0
  %2653 = vmatpush1.bf16.msra.mxu0 0
  %2654 = vmatprep.subr.bf16.mxu0 0
  %2655 = vmatpush1.bf16.msra.mxu0 0
  %2656 = vmatprep.subr.bf16.mxu0 0
  %2657 = vmatpush1.bf16.msra.mxu0 0
  %2658 = vmatprep.subr.bf16.mxu0 0
  %2659 = vmatpush1.bf16.msra.mxu0 0
  %2660 = vmatprep.subr.bf16.mxu0 0
  %2661 = vmatpush1.bf16.msra.mxu0 0
  %2662 = vmatprep.subr.bf16.mxu0 0
  %2663 = vmatpush1.bf16.msra.mxu0 0
  %2664 = vmatprep.subr.bf16.mxu0 0
  %2665 = vmatpush1.bf16.msra.mxu0 0
  %2666 = vmatprep.subr.bf16.mxu0 0
  %2667 = vmatpush1.bf16.msra.mxu0 0
  %2668 = vmatprep.subr.bf16.mxu0 0
  %2669 = vmatpush1.bf16.msra.mxu0 0
  %2670 = vmatprep.subr.bf16.mxu0 0
  %2671 = vmatpush1.bf16.msra.mxu0 0
  %2672 = vmatprep.subr.bf16.mxu0 0
  %2673 = vmatpush1.bf16.msra.mxu0 0
  %2674 = vmatprep.subr.bf16.mxu0 0
  %2675 = vmatpush1.bf16.msra.mxu0 0
  %2676 = vmatprep.subr.bf16.mxu0 0
  %2677 = vmatpush1.bf16.msra.mxu0 0
  %2678 = vmatprep.subr.bf16.mxu0 0
  %2679 = vmatpush1.bf16.msra.mxu0 0
  %2680 = vmatprep.mubr.bf16.mxu0 0
  %2681 = vmatmul.mubr.bf16.gmra.mrb[0].mxu0 %v2634
  %v2682 = vpop.f32.mrb[0].mxu0
  %v2683 = vadd.f32 0.0, %v2682
  %v2684 = vpop.f32.mrb[0].mxu0
  %v2685 = vpop.f32.mrb[0].mxu0
  %v2686 = vadd.f32 0.0, %v2685
  %v2687 = vpop.f32.mrb[0].mxu0
  %2688 = vmatprep.mubr.bf16.mxu0 0
  %2689 = vmatmul.mubr.bf16.gmra.mrb[0].mxu0 %v2637
  %v2690 = vpop.f32.mrb[0].mxu0
  %v2691 = vadd.f32 0.0, %v2690
  %v2692 = vpop.f32.mrb[0].mxu0
  %v2693 = vpop.f32.mrb[0].mxu0
  %v2694 = vadd.f32 0.0, %v2693
  %v2695 = vpop.f32.mrb[0].mxu0
  %2696 = vmatprep.mubr.bf16.mxu0 0
  %2697 = vmatmul.mubr.bf16.gmra.mrb[0].mxu0 %v2640
  %v2698 = vpop.f32.mrb[0].mxu0
  %v2699 = vadd.f32 0.0, %v2698
  %v2700 = vpop.f32.mrb[0].mxu0
  %v2701 = vpop.f32.mrb[0].mxu0
  %v2702 = vadd.f32 0.0, %v2701
  %v2703 = vpop.f32.mrb[0].mxu0
  %2704 = vmatprep.mubr.bf16.mxu0 0
  %2705 = vmatmul.mubr.bf16.gmra.mrb[0].mxu0 %v2643
  %v2706 = vpop.f32.mrb[0].mxu0
  %v2707 = vadd.f32 0.0, %v2706
  %v2708 = vpop.f32.mrb[0].mxu0
  %v2709 = vpop.f32.mrb[0].mxu0
  %v2710 = vadd.f32 0.0, %v2709
  %v2711 = vpop.f32.mrb[0].mxu0
  %2712 = vmatprep.mubr.bf16.mxu0 0
  %2713 = vmatmul.mubr.bf16.gmra.mrb[0].mxu0 %v2646
  %v2714 = vpop.f32.mrb[0].mxu0
  %v2715 = vadd.f32 0.0, %v2714
  %v2716 = vpop.f32.mrb[0].mxu0
  %v2717 = vpop.f32.mrb[0].mxu0
  %v2718 = vadd.f32 0.0, %v2717
  %v2719 = vpop.f32.mrb[0].mxu0
  %2720 = vdwg.mxu0
  %v2721 = vld [vmem:[#allocation2] sm:$0xff]
  %v2722 = vld [vmem:[#allocation2 + $0x8] sm:$0xff]
  %v2723 = vld [vmem:[#allocation2 + $0x10] sm:$0xff]
  %v2724 = vld [vmem:[#allocation2 + $0x18] sm:$0xff]
  %v2725 = vld [vmem:[#allocation2 + $0x20] sm:$0xff]
  %v2726 = vld [vmem:[#allocation2 + $0x28] sm:$0xff]
  %v2727 = vld [vmem:[#allocation2 + $0x30] sm:$0xff]
  %v2728 = vld [vmem:[#allocation2 + $0x38] sm:$0xff]
  %v2729 = vld [vmem:[#allocation2 + $0x40] sm:$0xff]
  %v2730 = vld [vmem:[#allocation2 + $0x48] sm:$0x3f]
  %v2731 = vadd.f32 %v2721, %v2683
  %v2732 = vadd.f32 %v2722, %v2686
  %v2733 = vadd.f32 %v2723, %v2691
  %v2734 = vadd.f32 %v2724, %v2694
  %v2735 = vadd.f32 %v2725, %v2699
  %v2736 = vadd.f32 %v2726, %v2702
  %v2737 = vadd.f32 %v2727, %v2707
  %v2738 = vadd.f32 %v2728, %v2710
  %v2739 = vadd.f32 %v2729, %v2715
  %v2740 = vadd.f32 %v2730, %v2718
  %2741 = vst.msk [vmem:[#allocation2] sm:$0xff] %vm66, %v2731
  %2742 = vst.msk [vmem:[#allocation2 + $0x8] sm:$0xff] %vm66, %v2732
  %2743 = vst.msk [vmem:[#allocation2 + $0x10] sm:$0xff] %vm66, %v2733
  %2744 = vst.msk [vmem:[#allocation2 + $0x18] sm:$0xff] %vm66, %v2734
  %2745 = vst.msk [vmem:[#allocation2 + $0x20] sm:$0xff] %vm66, %v2735
  %2746 = vst.msk [vmem:[#allocation2 + $0x28] sm:$0xff] %vm66, %v2736
  %2747 = vst.msk [vmem:[#allocation2 + $0x30] sm:$0xff] %vm66, %v2737
  %2748 = vst.msk [vmem:[#allocation2 + $0x38] sm:$0xff] %vm66, %v2738
  %2749 = vst.msk [vmem:[#allocation2 + $0x40] sm:$0xff] %vm66, %v2739
  %2750 = vst.msk [vmem:[#allocation2 + $0x48] sm:$0x3f] %vm164, %v2740
  %v2751 = vld [vmem:[%s166 + $0x8] sm:$0xc]
  %v2752 = vld [vmem:[%s166 + $0xc] sm:$0xf]
  %v2753 = vld [vmem:[%s166 + $0x10] sm:$0xf]
  %v2754 = vld [vmem:[%s166 + $0x14] sm:$0xf]
  %v2755 = vld [vmem:[%s166 + $0x18] sm:$0xf]
  %v2756 = vld [vmem:[%s166 + $0x1c] sm:$0xf]
  %v2757 = vld [vmem:[%s166 + $0x20] sm:$0xf]
  %v2758 = vld [vmem:[%s166 + $0x24] sm:$0xf]
  %v2759 = vld [vmem:[%s166 + $0x28] sm:$0xf]
  %v2760 = vld [vmem:[%s166 + $0x2c] sm:$0xf]
  %v2761 = vld [vmem:[%s166 + $0x30] sm:$0x3]
  %v2773 = vunpack.c.l.b16 %v2751
  %v2774 = vunpack.c.l.b16 %v2752
  %v2775 = vunpack.c.l.b16 %v2753
  %v2776 = vunpack.c.l.b16 %v2754
  %v2777 = vunpack.c.l.b16 %v2755
  %v2778 = vunpack.c.l.b16 %v2756
  %v2779 = vunpack.c.l.b16 %v2757
  %v2780 = vunpack.c.l.b16 %v2758
  %v2781 = vunpack.c.l.b16 %v2759
  %v2782 = vunpack.c.l.b16 %v2760
  %v2783 = vunpack.c.l.b16 %v2761
  %v2784 = vpack.c.b16 %v2774, %v2773
  %v2785 = vpack.c.b16 %v2776, %v2775
  %v2786 = vpack.c.b16 %v2778, %v2777
  %v2787 = vpack.c.b16 %v2780, %v2779
  %v2788 = vpack.c.b16 %v2782, %v2781
  %v2789 = vpack.c.b16 %v2783, %v2783
  %v2791 = vshrl.u32 %v2784, 16
  %v2793 = vrot.slane %v2791, 2
  %v2794 = vshll.u32 %v2784, 16
  %v2796 = vrot.slane %v2794, 3
  %v2797 = vor.u32 %v2793, %v2796
  %v2799 = vshrl.u32 %v2785, 16
  %v2801 = vrot.slane %v2799, 2
  %v2802 = vshll.u32 %v2785, 16
  %v2804 = vrot.slane %v2802, 3
  %v2805 = vor.u32 %v2801, %v2804
  %v2806 = vsel %vm2567, %v2797, %v2805
  %v2808 = vshrl.u32 %v2786, 16
  %v2810 = vrot.slane %v2808, 2
  %v2811 = vshll.u32 %v2786, 16
  %v2813 = vrot.slane %v2811, 3
  %v2814 = vor.u32 %v2810, %v2813
  %v2815 = vsel %vm2567, %v2805, %v2814
  %v2817 = vshrl.u32 %v2787, 16
  %v2819 = vrot.slane %v2817, 2
  %v2820 = vshll.u32 %v2787, 16
  %v2822 = vrot.slane %v2820, 3
  %v2823 = vor.u32 %v2819, %v2822
  %v2824 = vsel %vm2567, %v2814, %v2823
  %v2826 = vshrl.u32 %v2788, 16
  %v2828 = vrot.slane %v2826, 2
  %v2829 = vshll.u32 %v2788, 16
  %v2831 = vrot.slane %v2829, 3
  %v2832 = vor.u32 %v2828, %v2831
  %v2833 = vsel %vm2567, %v2823, %v2832
  %v2835 = vshrl.u32 %v2789, 16
  %v2837 = vrot.slane %v2835, 2
  %v2838 = vshll.u32 %v2789, 16
  %v2840 = vrot.slane %v2838, 3
  %v2841 = vor.u32 %v2837, %v2840
  %v2842 = vsel %vm2567, %v2832, %v2841
  %v2844 = vsel %vm66, %v2806, 0
  %v2847 = vsel %vm66, %v2815, 0
  %v2850 = vsel %vm66, %v2824, 0
  %v2853 = vsel %vm66, %v2833, 0
  %v2856 = vsel %vm66, %v2842, 0
  %2858 = vmatprep.subr.bf16.mxu0 0
  %2859 = vmatpush1.bf16.msra.mxu0 %v2629
  %2860 = vmatprep.subr.bf16.mxu0 0
  %2861 = vmatpush1.bf16.msra.mxu0 %v2630
  %2862 = vmatprep.subr.bf16.mxu0 0
  %2863 = vmatpush1.bf16.msra.mxu0 0
  %2864 = vmatprep.subr.bf16.mxu0 0
  %2865 = vmatpush1.bf16.msra.mxu0 0
  %2866 = vmatprep.subr.bf16.mxu0 0
  %2867 = vmatpush1.bf16.msra.mxu0 0
  %2868 = vmatprep.subr.bf16.mxu0 0
  %2869 = vmatpush1.bf16.msra.mxu0 0
  %2870 = vmatprep.subr.bf16.mxu0 0
  %2871 = vmatpush1.bf16.msra.mxu0 0
  %2872 = vmatprep.subr.bf16.mxu0 0
  %2873 = vmatpush1.bf16.msra.mxu0 0
  %2874 = vmatprep.subr.bf16.mxu0 0
  %2875 = vmatpush1.bf16.msra.mxu0 0
  %2876 = vmatprep.subr.bf16.mxu0 0
  %2877 = vmatpush1.bf16.msra.mxu0 0
  %2878 = vmatprep.subr.bf16.mxu0 0
  %2879 = vmatpush1.bf16.msra.mxu0 0
  %2880 = vmatprep.subr.bf16.mxu0 0
  %2881 = vmatpush1.bf16.msra.mxu0 0
  %2882 = vmatprep.subr.bf16.mxu0 0
  %2883 = vmatpush1.bf16.msra.mxu0 0
  %2884 = vmatprep.subr.bf16.mxu0 0
  %2885 = vmatpush1.bf16.msra.mxu0 0
  %2886 = vmatprep.subr.bf16.mxu0 0
  %2887 = vmatpush1.bf16.msra.mxu0 0
  %2888 = vmatprep.subr.bf16.mxu0 0
  %2889 = vmatpush1.bf16.msra.mxu0 0
  %2890 = vmatprep.mubr.bf16.mxu0 0
  %2891 = vmatmul.mubr.bf16.gmra.mrb[0].mxu0 %v2844
  %v2892 = vpop.f32.mrb[0].mxu0
  %v2893 = vadd.f32 0.0, %v2892
  %v2894 = vpop.f32.mrb[0].mxu0
  %v2895 = vpop.f32.mrb[0].mxu0
  %v2896 = vadd.f32 0.0, %v2895
  %v2897 = vpop.f32.mrb[0].mxu0
  %2898 = vmatprep.mubr.bf16.mxu0 0
  %2899 = vmatmul.mubr.bf16.gmra.mrb[0].mxu0 %v2847
  %v2900 = vpop.f32.mrb[0].mxu0
  %v2901 = vadd.f32 0.0, %v2900
  %v2902 = vpop.f32.mrb[0].mxu0
  %v2903 = vpop.f32.mrb[0].mxu0
  %v2904 = vadd.f32 0.0, %v2903
  %v2905 = vpop.f32.mrb[0].mxu0
  %2906 = vmatprep.mubr.bf16.mxu0 0
  %2907 = vmatmul.mubr.bf16.gmra.mrb[0].mxu0 %v2850
  %v2908 = vpop.f32.mrb[0].mxu0
  %v2909 = vadd.f32 0.0, %v2908
  %v2910 = vpop.f32.mrb[0].mxu0
  %v2911 = vpop.f32.mrb[0].mxu0
  %v2912 = vadd.f32 0.0, %v2911
  %v2913 = vpop.f32.mrb[0].mxu0
  %2914 = vmatprep.mubr.bf16.mxu0 0
  %2915 = vmatmul.mubr.bf16.gmra.mrb[0].mxu0 %v2853
  %v2916 = vpop.f32.mrb[0].mxu0
  %v2917 = vadd.f32 0.0, %v2916
  %v2918 = vpop.f32.mrb[0].mxu0
  %v2919 = vpop.f32.mrb[0].mxu0
  %v2920 = vadd.f32 0.0, %v2919
  %v2921 = vpop.f32.mrb[0].mxu0
  %2922 = vmatprep.mubr.bf16.mxu0 0
  %2923 = vmatmul.mubr.bf16.gmra.mrb[0].mxu0 %v2856
  %v2924 = vpop.f32.mrb[0].mxu0
  %v2925 = vadd.f32 0.0, %v2924
  %v2926 = vpop.f32.mrb[0].mxu0
  %v2927 = vpop.f32.mrb[0].mxu0
  %v2928 = vadd.f32 0.0, %v2927
  %v2929 = vpop.f32.mrb[0].mxu0
  %2930 = vdwg.mxu0
  %v2931 = vld [vmem:[%s290] sm:$0xff]
  %v2932 = vld [vmem:[%s290 + $0x8] sm:$0xff]
  %v2933 = vld [vmem:[%s290 + $0x10] sm:$0xff]
  %v2934 = vld [vmem:[%s290 + $0x18] sm:$0xff]
  %v2935 = vld [vmem:[%s290 + $0x20] sm:$0xff]
  %v2936 = vld [vmem:[%s290 + $0x28] sm:$0xff]
  %v2937 = vld [vmem:[%s290 + $0x30] sm:$0xff]
  %v2938 = vld [vmem:[%s290 + $0x38] sm:$0xff]
  %v2939 = vld [vmem:[%s290 + $0x40] sm:$0xff]
  %v2940 = vld [vmem:[%s290 + $0x48] sm:$0x3f]
  %v2941 = vadd.f32 %v2931, %v2893
  %v2942 = vadd.f32 %v2932, %v2896
  %v2943 = vadd.f32 %v2933, %v2901
  %v2944 = vadd.f32 %v2934, %v2904
  %v2945 = vadd.f32 %v2935, %v2909
  %v2946 = vadd.f32 %v2936, %v2912
  %v2947 = vadd.f32 %v2937, %v2917
  %v2948 = vadd.f32 %v2938, %v2920
  %v2949 = vadd.f32 %v2939, %v2925
  %v2950 = vadd.f32 %v2940, %v2928
  %2951 = vst.msk [vmem:[%s290] sm:$0xff] %vm66, %v2941
  %2952 = vst.msk [vmem:[%s290 + $0x8] sm:$0xff] %vm66, %v2942
  %2953 = vst.msk [vmem:[%s290 + $0x10] sm:$0xff] %vm66, %v2943
  %2954 = vst.msk [vmem:[%s290 + $0x18] sm:$0xff] %vm66, %v2944
  %2955 = vst.msk [vmem:[%s290 + $0x20] sm:$0xff] %vm66, %v2945
  %2956 = vst.msk [vmem:[%s290 + $0x28] sm:$0xff] %vm66, %v2946
  %2957 = vst.msk [vmem:[%s290 + $0x30] sm:$0xff] %vm66, %v2947
  %2958 = vst.msk [vmem:[%s290 + $0x38] sm:$0xff] %vm66, %v2948
  %2959 = vst.msk [vmem:[%s290 + $0x40] sm:$0xff] %vm66, %v2949
  %2960 = vst.msk [vmem:[%s290 + $0x48] sm:$0x3f] %vm164, %v2950
  %s2961 = scalar_lea.vmem %s1, 128
  %v2962 = vld [vmem:[%s2961] sm:$0xf]
  %v2963 = vld [vmem:[%s2961 + $0x4] sm:$0xf]
  %v2964 = vld [vmem:[%s2961 + $0x8] sm:$0xf]
  %v2965 = vld [vmem:[%s2961 + $0xc] sm:$0xf]
  %v2966 = vld [vmem:[%s0 + $0x8] sm:$0x8]
  %v2967 = vld [vmem:[%s0 + $0xc] sm:$0xf]
  %v2968 = vld [vmem:[%s0 + $0x10] sm:$0xf]
  %v2969 = vld [vmem:[%s0 + $0x14] sm:$0xf]
  %v2970 = vld [vmem:[%s0 + $0x18] sm:$0xf]
  %v2971 = vld [vmem:[%s0 + $0x1c] sm:$0xf]
  %v2972 = vld [vmem:[%s0 + $0x20] sm:$0xf]
  %v2973 = vld [vmem:[%s0 + $0x24] sm:$0xf]
  %v2974 = vld [vmem:[%s0 + $0x28] sm:$0xf]
  %v2975 = vld [vmem:[%s0 + $0x2c] sm:$0xf]
  %v2976 = vld [vmem:[%s0 + $0x30] sm:$0x3]
  %v2988 = vunpack.c.l.b16 %v2966
  %v2989 = vunpack.c.l.b16 %v2967
  %v2990 = vunpack.c.l.b16 %v2968
  %v2991 = vunpack.c.l.b16 %v2969
  %v2992 = vunpack.c.l.b16 %v2970
  %v2993 = vunpack.c.l.b16 %v2971
  %v2994 = vunpack.c.l.b16 %v2972
  %v2995 = vunpack.c.l.b16 %v2973
  %v2996 = vunpack.c.l.b16 %v2974
  %v2997 = vunpack.c.l.b16 %v2975
  %v2998 = vunpack.c.l.b16 %v2976
  %v2999 = vpack.c.b16 %v2989, %v2988
  %v3000 = vpack.c.b16 %v2991, %v2990
  %v3001 = vpack.c.b16 %v2993, %v2992
  %v3002 = vpack.c.b16 %v2995, %v2994
  %v3003 = vpack.c.b16 %v2997, %v2996
  %v3004 = vpack.c.b16 %v2998, %v2998
  %vm3005 = vcmask 1044480
  %v3006 = vrot.slane %v2999, 3
  %v3007 = vrot.slane %v3000, 3
  %v3008 = vsel %vm3005, %v3006, %v3007
  %v3009 = vrot.slane %v3001, 3
  %v3010 = vsel %vm3005, %v3007, %v3009
  %v3011 = vrot.slane %v3002, 3
  %v3012 = vsel %vm3005, %v3009, %v3011
  %v3013 = vrot.slane %v3003, 3
  %v3014 = vsel %vm3005, %v3011, %v3013
  %v3015 = vrot.slane %v3004, 3
  %v3016 = vsel %vm3005, %v3013, %v3015
  %v3021 = vunpack.c.l.b16 %v2962
  %v3022 = vunpack.c.l.b16 %v2963
  %v3023 = vunpack.c.l.b16 %v2964
  %v3024 = vunpack.c.l.b16 %v2965
  %v3025 = vpack.c.b16 %v3022, %v3021
  %v3026 = vpack.c.b16 %v3024, %v3023
  %v3030 = vsel %vm66, %v3008, 0
  %v3033 = vsel %vm66, %v3010, 0
  %v3036 = vsel %vm66, %v3012, 0
  %v3039 = vsel %vm66, %v3014, 0
  %v3042 = vsel %vm66, %v3016, 0
  %3044 = vmatprep.subr.bf16.mxu0 0
  %3045 = vmatpush1.bf16.msra.mxu0 %v3025
  %3046 = vmatprep.subr.bf16.mxu0 0
  %3047 = vmatpush1.bf16.msra.mxu0 %v3026
  %3048 = vmatprep.subr.bf16.mxu0 0
  %3049 = vmatpush1.bf16.msra.mxu0 0
  %3050 = vmatprep.subr.bf16.mxu0 0
  %3051 = vmatpush1.bf16.msra.mxu0 0
  %3052 = vmatprep.subr.bf16.mxu0 0
  %3053 = vmatpush1.bf16.msra.mxu0 0
  %3054 = vmatprep.subr.bf16.mxu0 0
  %3055 = vmatpush1.bf16.msra.mxu0 0
  %3056 = vmatprep.subr.bf16.mxu0 0
  %3057 = vmatpush1.bf16.msra.mxu0 0
  %3058 = vmatprep.subr.bf16.mxu0 0
  %3059 = vmatpush1.bf16.msra.mxu0 0
  %3060 = vmatprep.subr.bf16.mxu0 0
  %3061 = vmatpush1.bf16.msra.mxu0 0
  %3062 = vmatprep.subr.bf16.mxu0 0
  %3063 = vmatpush1.bf16.msra.mxu0 0
  %3064 = vmatprep.subr.bf16.mxu0 0
  %3065 = vmatpush1.bf16.msra.mxu0 0
  %3066 = vmatprep.subr.bf16.mxu0 0
  %3067 = vmatpush1.bf16.msra.mxu0 0
  %3068 = vmatprep.subr.bf16.mxu0 0
  %3069 = vmatpush1.bf16.msra.mxu0 0
  %3070 = vmatprep.subr.bf16.mxu0 0
  %3071 = vmatpush1.bf16.msra.mxu0 0
  %3072 = vmatprep.subr.bf16.mxu0 0
  %3073 = vmatpush1.bf16.msra.mxu0 0
  %3074 = vmatprep.subr.bf16.mxu0 0
  %3075 = vmatpush1.bf16.msra.mxu0 0
  %3076 = vmatprep.mubr.bf16.mxu0 0
  %3077 = vmatmul.mubr.bf16.gmra.mrb[0].mxu0 %v3030
  %v3078 = vpop.f32.mrb[0].mxu0
  %v3079 = vadd.f32 0.0, %v3078
  %v3080 = vpop.f32.mrb[0].mxu0
  %v3081 = vpop.f32.mrb[0].mxu0
  %v3082 = vadd.f32 0.0, %v3081
  %v3083 = vpop.f32.mrb[0].mxu0
  %3084 = vmatprep.mubr.bf16.mxu0 0
  %3085 = vmatmul.mubr.bf16.gmra.mrb[0].mxu0 %v3033
  %v3086 = vpop.f32.mrb[0].mxu0
  %v3087 = vadd.f32 0.0, %v3086
  %v3088 = vpop.f32.mrb[0].mxu0
  %v3089 = vpop.f32.mrb[0].mxu0
  %v3090 = vadd.f32 0.0, %v3089
  %v3091 = vpop.f32.mrb[0].mxu0
  %3092 = vmatprep.mubr.bf16.mxu0 0
  %3093 = vmatmul.mubr.bf16.gmra.mrb[0].mxu0 %v3036
  %v3094 = vpop.f32.mrb[0].mxu0
  %v3095 = vadd.f32 0.0, %v3094
  %v3096 = vpop.f32.mrb[0].mxu0
  %v3097 = vpop.f32.mrb[0].mxu0
  %v3098 = vadd.f32 0.0, %v3097
  %v3099 = vpop.f32.mrb[0].mxu0
  %3100 = vmatprep.mubr.bf16.mxu0 0
  %3101 = vmatmul.mubr.bf16.gmra.mrb[0].mxu0 %v3039
  %v3102 = vpop.f32.mrb[0].mxu0
  %v3103 = vadd.f32 0.0, %v3102
  %v3104 = vpop.f32.mrb[0].mxu0
  %v3105 = vpop.f32.mrb[0].mxu0
  %v3106 = vadd.f32 0.0, %v3105
  %v3107 = vpop.f32.mrb[0].mxu0
  %3108 = vmatprep.mubr.bf16.mxu0 0
  %3109 = vmatmul.mubr.bf16.gmra.mrb[0].mxu0 %v3042
  %v3110 = vpop.f32.mrb[0].mxu0
  %v3111 = vadd.f32 0.0, %v3110
  %v3112 = vpop.f32.mrb[0].mxu0
  %v3113 = vpop.f32.mrb[0].mxu0
  %v3114 = vadd.f32 0.0, %v3113
  %v3115 = vpop.f32.mrb[0].mxu0
  %3116 = vdwg.mxu0
  %v3117 = vld [vmem:[#allocation2] sm:$0xff]
  %v3118 = vld [vmem:[#allocation2 + $0x8] sm:$0xff]
  %v3119 = vld [vmem:[#allocation2 + $0x10] sm:$0xff]
  %v3120 = vld [vmem:[#allocation2 + $0x18] sm:$0xff]
  %v3121 = vld [vmem:[#allocation2 + $0x20] sm:$0xff]
  %v3122 = vld [vmem:[#allocation2 + $0x28] sm:$0xff]
  %v3123 = vld [vmem:[#allocation2 + $0x30] sm:$0xff]
  %v3124 = vld [vmem:[#allocation2 + $0x38] sm:$0xff]
  %v3125 = vld [vmem:[#allocation2 + $0x40] sm:$0xff]
  %v3126 = vld [vmem:[#allocation2 + $0x48] sm:$0x3f]
  %v3127 = vadd.f32 %v3117, %v3079
  %v3128 = vadd.f32 %v3118, %v3082
  %v3129 = vadd.f32 %v3119, %v3087
  %v3130 = vadd.f32 %v3120, %v3090
  %v3131 = vadd.f32 %v3121, %v3095
  %v3132 = vadd.f32 %v3122, %v3098
  %v3133 = vadd.f32 %v3123, %v3103
  %v3134 = vadd.f32 %v3124, %v3106
  %v3135 = vadd.f32 %v3125, %v3111
  %v3136 = vadd.f32 %v3126, %v3114
  %3137 = vst.msk [vmem:[#allocation2] sm:$0xff] %vm66, %v3127
  %3138 = vst.msk [vmem:[#allocation2 + $0x8] sm:$0xff] %vm66, %v3128
  %3139 = vst.msk [vmem:[#allocation2 + $0x10] sm:$0xff] %vm66, %v3129
  %3140 = vst.msk [vmem:[#allocation2 + $0x18] sm:$0xff] %vm66, %v3130
  %3141 = vst.msk [vmem:[#allocation2 + $0x20] sm:$0xff] %vm66, %v3131
  %3142 = vst.msk [vmem:[#allocation2 + $0x28] sm:$0xff] %vm66, %v3132
  %3143 = vst.msk [vmem:[#allocation2 + $0x30] sm:$0xff] %vm66, %v3133
  %3144 = vst.msk [vmem:[#allocation2 + $0x38] sm:$0xff] %vm66, %v3134
  %3145 = vst.msk [vmem:[#allocation2 + $0x40] sm:$0xff] %vm66, %v3135
  %3146 = vst.msk [vmem:[#allocation2 + $0x48] sm:$0x3f] %vm164, %v3136
  %v3147 = vld [vmem:[%s166 + $0x8] sm:$0x8]
  %v3148 = vld [vmem:[%s166 + $0xc] sm:$0xf]
  %v3149 = vld [vmem:[%s166 + $0x10] sm:$0xf]
  %v3150 = vld [vmem:[%s166 + $0x14] sm:$0xf]
  %v3151 = vld [vmem:[%s166 + $0x18] sm:$0xf]
  %v3152 = vld [vmem:[%s166 + $0x1c] sm:$0xf]
  %v3153 = vld [vmem:[%s166 + $0x20] sm:$0xf]
  %v3154 = vld [vmem:[%s166 + $0x24] sm:$0xf]
  %v3155 = vld [vmem:[%s166 + $0x28] sm:$0xf]
  %v3156 = vld [vmem:[%s166 + $0x2c] sm:$0xf]
  %v3157 = vld [vmem:[%s166 + $0x30] sm:$0x3]
  %v3169 = vunpack.c.l.b16 %v3147
  %v3170 = vunpack.c.l.b16 %v3148
  %v3171 = vunpack.c.l.b16 %v3149
  %v3172 = vunpack.c.l.b16 %v3150
  %v3173 = vunpack.c.l.b16 %v3151
  %v3174 = vunpack.c.l.b16 %v3152
  %v3175 = vunpack.c.l.b16 %v3153
  %v3176 = vunpack.c.l.b16 %v3154
  %v3177 = vunpack.c.l.b16 %v3155
  %v3178 = vunpack.c.l.b16 %v3156
  %v3179 = vunpack.c.l.b16 %v3157
  %v3180 = vpack.c.b16 %v3170, %v3169
  %v3181 = vpack.c.b16 %v3172, %v3171
  %v3182 = vpack.c.b16 %v3174, %v3173
  %v3183 = vpack.c.b16 %v3176, %v3175
  %v3184 = vpack.c.b16 %v3178, %v3177
  %v3185 = vpack.c.b16 %v3179, %v3179
  %v3186 = vrot.slane %v3180, 3
  %v3187 = vrot.slane %v3181, 3
  %v3188 = vsel %vm3005, %v3186, %v3187
  %v3189 = vrot.slane %v3182, 3
  %v3190 = vsel %vm3005, %v3187, %v3189
  %v3191 = vrot.slane %v3183, 3
  %v3192 = vsel %vm3005, %v3189, %v3191
  %v3193 = vrot.slane %v3184, 3
  %v3194 = vsel %vm3005, %v3191, %v3193
  %v3195 = vrot.slane %v3185, 3
  %v3196 = vsel %vm3005, %v3193, %v3195
  %v3198 = vsel %vm66, %v3188, 0
  %v3201 = vsel %vm66, %v3190, 0
  %v3204 = vsel %vm66, %v3192, 0
  %v3207 = vsel %vm66, %v3194, 0
  %v3210 = vsel %vm66, %v3196, 0
  %3212 = vmatprep.subr.bf16.mxu0 0
  %3213 = vmatpush1.bf16.msra.mxu0 %v3025
  %3214 = vmatprep.subr.bf16.mxu0 0
  %3215 = vmatpush1.bf16.msra.mxu0 %v3026
  %3216 = vmatprep.subr.bf16.mxu0 0
  %3217 = vmatpush1.bf16.msra.mxu0 0
  %3218 = vmatprep.subr.bf16.mxu0 0
  %3219 = vmatpush1.bf16.msra.mxu0 0
  %3220 = vmatprep.subr.bf16.mxu0 0
  %3221 = vmatpush1.bf16.msra.mxu0 0
  %3222 = vmatprep.subr.bf16.mxu0 0
  %3223 = vmatpush1.bf16.msra.mxu0 0
  %3224 = vmatprep.subr.bf16.mxu0 0
  %3225 = vmatpush1.bf16.msra.mxu0 0
  %3226 = vmatprep.subr.bf16.mxu0 0
  %3227 = vmatpush1.bf16.msra.mxu0 0
  %3228 = vmatprep.subr.bf16.mxu0 0
  %3229 = vmatpush1.bf16.msra.mxu0 0
  %3230 = vmatprep.subr.bf16.mxu0 0
  %3231 = vmatpush1.bf16.msra.mxu0 0
  %3232 = vmatprep.subr.bf16.mxu0 0
  %3233 = vmatpush1.bf16.msra.mxu0 0
  %3234 = vmatprep.subr.bf16.mxu0 0
  %3235 = vmatpush1.bf16.msra.mxu0 0
  %3236 = vmatprep.subr.bf16.mxu0 0
  %3237 = vmatpush1.bf16.msra.mxu0 0
  %3238 = vmatprep.subr.bf16.mxu0 0
  %3239 = vmatpush1.bf16.msra.mxu0 0
  %3240 = vmatprep.subr.bf16.mxu0 0
  %3241 = vmatpush1.bf16.msra.mxu0 0
  %3242 = vmatprep.subr.bf16.mxu0 0
  %3243 = vmatpush1.bf16.msra.mxu0 0
  %3244 = vmatprep.mubr.bf16.mxu0 0
  %3245 = vmatmul.mubr.bf16.gmra.mrb[0].mxu0 %v3198
  %v3246 = vpop.f32.mrb[0].mxu0
  %v3247 = vadd.f32 0.0, %v3246
  %v3248 = vpop.f32.mrb[0].mxu0
  %v3249 = vpop.f32.mrb[0].mxu0
  %v3250 = vadd.f32 0.0, %v3249
  %v3251 = vpop.f32.mrb[0].mxu0
  %3252 = vmatprep.mubr.bf16.mxu0 0
  %3253 = vmatmul.mubr.bf16.gmra.mrb[0].mxu0 %v3201
  %v3254 = vpop.f32.mrb[0].mxu0
  %v3255 = vadd.f32 0.0, %v3254
  %v3256 = vpop.f32.mrb[0].mxu0
  %v3257 = vpop.f32.mrb[0].mxu0
  %v3258 = vadd.f32 0.0, %v3257
  %v3259 = vpop.f32.mrb[0].mxu0
  %3260 = vmatprep.mubr.bf16.mxu0 0
  %3261 = vmatmul.mubr.bf16.gmra.mrb[0].mxu0 %v3204
  %v3262 = vpop.f32.mrb[0].mxu0
  %v3263 = vadd.f32 0.0, %v3262
  %v3264 = vpop.f32.mrb[0].mxu0
  %v3265 = vpop.f32.mrb[0].mxu0
  %v3266 = vadd.f32 0.0, %v3265
  %v3267 = vpop.f32.mrb[0].mxu0
  %3268 = vmatprep.mubr.bf16.mxu0 0
  %3269 = vmatmul.mubr.bf16.gmra.mrb[0].mxu0 %v3207
  %v3270 = vpop.f32.mrb[0].mxu0
  %v3271 = vadd.f32 0.0, %v3270
  %v3272 = vpop.f32.mrb[0].mxu0
  %v3273 = vpop.f32.mrb[0].mxu0
  %v3274 = vadd.f32 0.0, %v3273
  %v3275 = vpop.f32.mrb[0].mxu0
  %3276 = vmatprep.mubr.bf16.mxu0 0
  %3277 = vmatmul.mubr.bf16.gmra.mrb[0].mxu0 %v3210
  %v3278 = vpop.f32.mrb[0].mxu0
  %v3279 = vadd.f32 0.0, %v3278
  %v3280 = vpop.f32.mrb[0].mxu0
  %v3281 = vpop.f32.mrb[0].mxu0
  %v3282 = vadd.f32 0.0, %v3281
  %v3283 = vpop.f32.mrb[0].mxu0
  %3284 = vdwg.mxu0
  %v3285 = vld [vmem:[%s290] sm:$0xff]
  %v3286 = vld [vmem:[%s290 + $0x8] sm:$0xff]
  %v3287 = vld [vmem:[%s290 + $0x10] sm:$0xff]
  %v3288 = vld [vmem:[%s290 + $0x18] sm:$0xff]
  %v3289 = vld [vmem:[%s290 + $0x20] sm:$0xff]
  %v3290 = vld [vmem:[%s290 + $0x28] sm:$0xff]
  %v3291 = vld [vmem:[%s290 + $0x30] sm:$0xff]
  %v3292 = vld [vmem:[%s290 + $0x38] sm:$0xff]
  %v3293 = vld [vmem:[%s290 + $0x40] sm:$0xff]
  %v3294 = vld [vmem:[%s290 + $0x48] sm:$0x3f]
  %v3295 = vadd.f32 %v3285, %v3247
  %v3296 = vadd.f32 %v3286, %v3250
  %v3297 = vadd.f32 %v3287, %v3255
  %v3298 = vadd.f32 %v3288, %v3258
  %v3299 = vadd.f32 %v3289, %v3263
  %v3300 = vadd.f32 %v3290, %v3266
  %v3301 = vadd.f32 %v3291, %v3271
  %v3302 = vadd.f32 %v3292, %v3274
  %v3303 = vadd.f32 %v3293, %v3279
  %v3304 = vadd.f32 %v3294, %v3282
  %3305 = vst.msk [vmem:[%s290] sm:$0xff] %vm66, %v3295
  %3306 = vst.msk [vmem:[%s290 + $0x8] sm:$0xff] %vm66, %v3296
  %3307 = vst.msk [vmem:[%s290 + $0x10] sm:$0xff] %vm66, %v3297
  %3308 = vst.msk [vmem:[%s290 + $0x18] sm:$0xff] %vm66, %v3298
  %3309 = vst.msk [vmem:[%s290 + $0x20] sm:$0xff] %vm66, %v3299
  %3310 = vst.msk [vmem:[%s290 + $0x28] sm:$0xff] %vm66, %v3300
  %3311 = vst.msk [vmem:[%s290 + $0x30] sm:$0xff] %vm66, %v3301
  %3312 = vst.msk [vmem:[%s290 + $0x38] sm:$0xff] %vm66, %v3302
  %3313 = vst.msk [vmem:[%s290 + $0x40] sm:$0xff] %vm66, %v3303
  %3314 = vst.msk [vmem:[%s290 + $0x48] sm:$0x3f] %vm164, %v3304
  %v3315 = vld [vmem:[#allocation2] sm:$0xff]
  %v3316 = vld [vmem:[#allocation2 + $0x50] sm:$0xff]
  %v3317 = vld [vmem:[%s2] sm:$0xff]
  %v3318 = vld [vmem:[%s2 + $0x40] sm:$0xff]
  %v3319 = vadd.f32 %v3315, %v3317
  %v3320 = vadd.f32 %v3316, %v3318
  %3321 = vst.msk [vmem:[%s3] sm:$0xff] %vm66, %v3319
  %3322 = vst.msk [vmem:[%s3 + $0x40] sm:$0xff] %vm66, %v3320
  %v3323 = vld [vmem:[#allocation2 + $0xa] sm:$0xff]
  %v3324 = vld [vmem:[#allocation2 + $0x5a] sm:$0xff]
  %v3325 = vld [vmem:[%s2 + $0x8] sm:$0xff]
  %v3326 = vld [vmem:[%s2 + $0x48] sm:$0xff]
  %v3327 = vadd.f32 %v3323, %v3325
  %v3328 = vadd.f32 %v3324, %v3326
  %3329 = vst.msk [vmem:[%s3 + $0x8] sm:$0xff] %vm66, %v3327
  %3330 = vst.msk [vmem:[%s3 + $0x48] sm:$0xff] %vm66, %v3328
  %v3331 = vld [vmem:[#allocation2 + $0x14] sm:$0xff]
  %v3332 = vld [vmem:[#allocation2 + $0x64] sm:$0xff]
  %v3333 = vld [vmem:[%s2 + $0x10] sm:$0xff]
  %v3334 = vld [vmem:[%s2 + $0x50] sm:$0xff]
  %v3335 = vadd.f32 %v3331, %v3333
  %v3336 = vadd.f32 %v3332, %v3334
  %3337 = vst.msk [vmem:[%s3 + $0x10] sm:$0xff] %vm66, %v3335
  %3338 = vst.msk [vmem:[%s3 + $0x50] sm:$0xff] %vm66, %v3336
  %v3339 = vld [vmem:[#allocation2 + $0x1e] sm:$0xff]
  %v3340 = vld [vmem:[#allocation2 + $0x6e] sm:$0xff]
  %v3341 = vld [vmem:[%s2 + $0x18] sm:$0xff]
  %v3342 = vld [vmem:[%s2 + $0x58] sm:$0xff]
  %v3343 = vadd.f32 %v3339, %v3341
  %v3344 = vadd.f32 %v3340, %v3342
  %3345 = vst.msk [vmem:[%s3 + $0x18] sm:$0xff] %vm66, %v3343
  %3346 = vst.msk [vmem:[%s3 + $0x58] sm:$0xff] %vm66, %v3344
  %v3347 = vld [vmem:[#allocation2 + $0x28] sm:$0xff]
  %v3348 = vld [vmem:[#allocation2 + $0x78] sm:$0xff]
  %v3349 = vld [vmem:[%s2 + $0x20] sm:$0xff]
  %v3350 = vld [vmem:[%s2 + $0x60] sm:$0xff]
  %v3351 = vadd.f32 %v3347, %v3349
  %v3352 = vadd.f32 %v3348, %v3350
  %3353 = vst.msk [vmem:[%s3 + $0x20] sm:$0xff] %vm66, %v3351
  %3354 = vst.msk [vmem:[%s3 + $0x60] sm:$0xff] %vm66, %v3352
  %v3355 = vld [vmem:[#allocation2 + $0x32] sm:$0xff]
  %v3356 = vld [vmem:[#allocation2 + $0x82] sm:$0xff]
  %v3357 = vld [vmem:[%s2 + $0x28] sm:$0xff]
  %v3358 = vld [vmem:[%s2 + $0x68] sm:$0xff]
  %v3359 = vadd.f32 %v3355, %v3357
  %v3360 = vadd.f32 %v3356, %v3358
  %3361 = vst.msk [vmem:[%s3 + $0x28] sm:$0xff] %vm66, %v3359
  %3362 = vst.msk [vmem:[%s3 + $0x68] sm:$0xff] %vm66, %v3360
  %v3363 = vld [vmem:[#allocation2 + $0x3c] sm:$0xff]
  %v3364 = vld [vmem:[#allocation2 + $0x8c] sm:$0xff]
  %v3365 = vld [vmem:[%s2 + $0x30] sm:$0xff]
  %v3366 = vld [vmem:[%s2 + $0x70] sm:$0xff]
  %v3367 = vadd.f32 %v3363, %v3365
  %v3368 = vadd.f32 %v3364, %v3366
  %3369 = vst.msk [vmem:[%s3 + $0x30] sm:$0xff] %vm66, %v3367
  %3370 = vst.msk [vmem:[%s3 + $0x70] sm:$0xff] %vm66, %v3368
  %v3371 = vld [vmem:[#allocation2 + $0x46] sm:$0xff]
  %v3372 = vld [vmem:[#allocation2 + $0x96] sm:$0xff]
  %v3373 = vld [vmem:[%s2 + $0x38] sm:$0xff]
  %v3374 = vld [vmem:[%s2 + $0x78] sm:$0xff]
  %v3375 = vadd.f32 %v3371, %v3373
  %v3376 = vadd.f32 %v3372, %v3374
  %3377 = vst.msk [vmem:[%s3 + $0x38] sm:$0xff] %vm66, %v3375
  %3378 = vst.msk [vmem:[%s3 + $0x78] sm:$0xff] %vm66, %v3376
  // Predicated region
  $region14: #{attention_adaptor_forward.3} parent=0 // pred_check
    _
  $region15: #{attention_adaptor_forward.3} parent=0 // pred_check_branch
    %3380 = sbr.rel (0) target = $region17
  $region16: #{attention_adaptor_forward.3} parent=0 // pred_region
    _
  $region17: #{attention_adaptor_forward.3} parent=0 // pred_fallthru
    _
  // Predicated region
  $region18: #{attention_adaptor_forward.3} parent=0 // pred_check
    _
  $region19: #{attention_adaptor_forward.3} parent=0 // pred_check_branch
    %3382 = sbr.rel (0) target = $region21
  $region20: #{attention_adaptor_forward.3} parent=0 // pred_region
    _
  $region21: #{attention_adaptor_forward.3} parent=0 // pred_fallthru
    _

</llo_original>
